<compile_context>
chip_gen: v5e
topology: v5e:2x2
jax: 0.10.0
libtpu: 0.0.40
codegen_flags: <defaults>
</compile_context>

<pallas_src>
import functools

import jax
import jax.numpy as jnp
from jax.experimental import pallas as pl
from jax.experimental.pallas import tpu as pltpu


def _round_up(v, m):
    return (v + m - 1) // m * m


def _pick_batch_block(n, cap=8):
    """Largest divisor of n that is <= cap (images per grid step)."""
    nb = min(n, cap)
    while n % nb:
        nb -= 1
    return nb


def _conv_block_kernel(*refs, training):
    """Fused [conv3x3 + bias + ReLU + dropout] x 2 for one batch block.

    Refs (in order):
      x     : (NB, H, W, Cin)        f32   raw input block (unpadded channels)
      w1    : (9*Cin_p, Cout_p)      bf16  layer-1 weight slab (im2col layout)
      b1    : (1, Cout_p)            f32
      w2    : (9*Cout_p, Cout_p)     bf16
      b2    : (1, Cout_p)            f32
      [m1]  : (NB, H, W, Cout_p)     f32   dropout scale (mask/keep_prob)
      [m2]  : (NB, H, W, Cout_p)     f32
      o     : (NB, H, W, Cout_p)     f32   output block
      scratch: xpad (NB,H+2,W+2,Cin_p) f32, a1pad (NB,H+2,W+2,Cout_p) f32,
               col1 (NB*H*W, 9*Cin_p) bf16, col2 (NB*H*W, 9*Cout_p) bf16
    """
    if training:
        (x_ref, w1_ref, b1_ref, w2_ref, b2_ref, m1_ref, m2_ref,
         o_ref, xpad_ref, a1pad_ref, col1_ref, col2_ref) = refs
    else:
        (x_ref, w1_ref, b1_ref, w2_ref, b2_ref,
         o_ref, xpad_ref, a1pad_ref, col1_ref, col2_ref) = refs
        m1_ref = m2_ref = None

    nb, H, W, cout_p = o_ref.shape
    cin = x_ref.shape[-1]
    cin_p = xpad_ref.shape[-1]
    M = nb * H * W

    # ---- zero-pad input in VMEM (spatial halo + channel pad to cin_p) ----
    xpad_ref[...] = jnp.zeros_like(xpad_ref)
    xpad_ref[:, 1:1 + H, 1:1 + W, 0:cin] = x_ref[...].astype(xpad_ref.dtype)

    # ---- layer 1: im2col (dy/dx shifts done once) + single MXU matmul ----
    for t in range(9):
        dy, dx = divmod(t, 3)
        col1_ref[:, t * cin_p:(t + 1) * cin_p] = (
            xpad_ref[:, dy:dy + H, dx:dx + W, :]
            .reshape(M, cin_p).astype(col1_ref.dtype))
    a = jnp.dot(col1_ref[...], w1_ref[...],
                preferred_element_type=jnp.float32)
    a = jnp.maximum(a + b1_ref[...], 0.0)
    if training:
        a = a * m1_ref[...].reshape(M, cout_p)

    # ---- layer-1 activation stays on-chip: zero-pad in VMEM ----
    a1pad_ref[...] = jnp.zeros_like(a1pad_ref)
    a1pad_ref[:, 1:1 + H, 1:1 + W, :] = (
        a.reshape(nb, H, W, cout_p).astype(a1pad_ref.dtype))

    # ---- layer 2: im2col + single MXU matmul ----
    for t in range(9):
        dy, dx = divmod(t, 3)
        col2_ref[:, t * cout_p:(t + 1) * cout_p] = (
            a1pad_ref[:, dy:dy + H, dx:dx + W, :]
            .reshape(M, cout_p).astype(col2_ref.dtype))
    a2 = jnp.dot(col2_ref[...], w2_ref[...],
                 preferred_element_type=jnp.float32)
    a2 = jnp.maximum(a2 + b2_ref[...], 0.0)
    if training:
        a2 = a2 * m2_ref[...].reshape(M, cout_p)

    o_ref[...] = a2.reshape(nb, H, W, cout_p).astype(o_ref.dtype)


def _pack_weight(w_oihw, cin_p, cout_p, dtype=jnp.bfloat16):
    """OIHW conv weight -> lane-dense (9*cin_p, cout_p) im2col slab."""
    cout, cin, kh, kw = w_oihw.shape
    w_hwio = jnp.transpose(w_oihw, (2, 3, 1, 0))          # (3,3,Cin,Cout)
    w_pad = jnp.zeros((kh, kw, cin_p, cout_p), w_hwio.dtype)
    w_pad = w_pad.at[:, :, :cin, :cout].set(w_hwio)
    return w_pad.reshape(kh * kw * cin_p, cout_p).astype(dtype)


def _pack_bias(b, cout_p):
    return jnp.zeros((1, cout_p), jnp.float32).at[0, :b.shape[0]].set(
        b.astype(jnp.float32))


def conv_block_forward(x_nchw, params, *, training=False, dropout_key=None,
                       drop_p=0.6, batch_block=8):
    """ConvBlock.forward: [Conv3x3(pad=1) -> ReLU -> Dropout(drop_p)] x 2.

    x_nchw: (N, C, H, W) like the PyTorch module; returns (N, out_size, H, W).
    """
    (w1, b1), (w2, b2) = params
    N, cin, H, W = x_nchw.shape
    cout = w1.shape[0]
    cin_p = _round_up(cin, 128)
    cout_p = _round_up(cout, 128)
    nb = _pick_batch_block(N, batch_block)

    x_nhwc = jnp.transpose(x_nchw, (0, 2, 3, 1)).astype(jnp.float32)  # glue

    w1m = _pack_weight(w1, cin_p, cout_p)
    w2m = _pack_weight(w2, cout_p, cout_p)
    b1p = _pack_bias(b1, cout_p)
    b2p = _pack_bias(b2, cout_p)

    args = [x_nhwc, w1m, b1p, w2m, b2p]
    in_specs = [
        pl.BlockSpec((nb, H, W, cin), lambda n: (n, 0, 0, 0)),
        pl.BlockSpec((9 * cin_p, cout_p), lambda n: (0, 0)),
        pl.BlockSpec((1, cout_p), lambda n: (0, 0)),
        pl.BlockSpec((9 * cout_p, cout_p), lambda n: (0, 0)),
        pl.BlockSpec((1, cout_p), lambda n: (0, 0)),
    ]

    if training:
        # TODO(synk): PyTorch's dropout RNG stream cannot be matched
        # bit-for-bit; masks use jax.random with the same Bernoulli(p) law.
        keep_prob = 1.0 - drop_p
        if dropout_key is None:
            dropout_key = jax.random.PRNGKey(0)
        k1, k2 = jax.random.split(dropout_key)
        scale = 1.0 / keep_prob
        m1 = jax.random.bernoulli(
            k1, keep_prob, (N, H, W, cout_p)).astype(jnp.float32) * scale
        m2 = jax.random.bernoulli(
            k2, keep_prob, (N, H, W, cout_p)).astype(jnp.float32) * scale
        args += [m1, m2]
        in_specs += [
            pl.BlockSpec((nb, H, W, cout_p), lambda n: (n, 0, 0, 0)),
            pl.BlockSpec((nb, H, W, cout_p), lambda n: (n, 0, 0, 0)),
        ]

    kernel = functools.partial(_conv_block_kernel, training=training)
    out_p = pl.pallas_call(
        kernel,
        out_shape=jax.ShapeDtypeStruct((N, H, W, cout_p), jnp.float32),
        grid_spec=pltpu.PrefetchScalarGridSpec(
            num_scalar_prefetch=0,
            grid=(N // nb,),                # batch blocks; "parallel" axis
            in_specs=in_specs,
            out_specs=pl.BlockSpec((nb, H, W, cout_p),
                                   lambda n: (n, 0, 0, 0)),
            scratch_shapes=[
                # NOTE: for much larger H/W/batch_block (esp. v7x 64 MiB VMEM)
                # re-derive these against the scoped VMEM limit / tile H.
                pltpu.VMEM((nb, H + 2, W + 2, cin_p), jnp.float32),   # xpad
                pltpu.VMEM((nb, H + 2, W + 2, cout_p), jnp.float32),  # a1pad
                pltpu.VMEM((nb * H * W, 9 * cin_p), jnp.bfloat16),    # col1
                pltpu.VMEM((nb * H * W, 9 * cout_p), jnp.bfloat16),   # col2
            ],
        ),
        compiler_params=pltpu.CompilerParams(
            dimension_semantics=("parallel",)),
    )(*args)

    out = out_p[..., :cout]                         # strip channel padding
    return jnp.transpose(out, (0, 3, 1, 2))         # NHWC -> NCHW (glue)


def init_conv_block_params(key, in_size, out_size):
    """Deterministic params matching nn.Conv2d shapes (OIHW weights)."""
    params = []
    cins = [in_size, out_size]
    for layer, cin in enumerate(cins):
        kw, kb = jax.random.split(jax.random.fold_in(key, layer))
        fan_in = cin * 3 * 3
        bound = 1.0 / jnp.sqrt(fan_in)
        w = jax.random.uniform(kw, (out_size, cin, 3, 3),
                               minval=-bound, maxval=bound,
                               dtype=jnp.float32)
        b = jax.random.uniform(kb, (out_size,),
                               minval=-bound, maxval=bound,
                               dtype=jnp.float32)
        params.append((w, b))
    return params


def _conv_block_reference(x_nchw, params):
    """Pure-JAX eval-mode reference (dropout == identity)."""
    x = x_nchw
    for w, b in params:
        x = jax.lax.conv_general_dilated(
            x, w, window_strides=(1, 1), padding="SAME",
            dimension_numbers=("NCHW", "OIHW", "NCHW"))
        x = jnp.maximum(x + b[None, :, None, None], 0.0)
    return x


if __name__ == "__main__":
    key = jax.random.PRNGKey(0)
    k_x, k_p, k_d = jax.random.split(key, 3)

    N, in_size, out_size, H, W = 2, 4, 8, 16, 16
    x = jax.random.normal(k_x, (N, in_size, H, W), dtype=jnp.float32)
    params = init_conv_block_params(k_p, in_size, out_size)

    # Inference-mode forward (Dropout == identity, deterministic).
    out_eval = jax.block_until_ready(
        conv_block_forward(x, params, training=False))
    assert out_eval.shape == (N, out_size, H, W)
    assert out_eval.dtype == jnp.float32

    # Numerics check vs pure-JAX reference (bf16 matmul, f32 accumulation).
    ref = _conv_block_reference(x, params)
    max_err = float(jnp.max(jnp.abs(out_eval - ref)))
    assert max_err < 5e-2, f"max abs error vs reference too large: {max_err}"

    # Training-mode forward: dropout masks built with jax.random in the
    # wrapper, applied as a fused multiply inside the kernel.
    out_train = jax.block_until_ready(
        conv_block_forward(x, params, training=True, dropout_key=k_d))
    assert out_train.shape == (N, out_size, H, W)

    print("KERNEL_OK")
</pallas_src>

<mosaic_0001>
module attributes {stable_mosaic.version = 11 : i64} {
  func.func @_conv_block_kernel(%arg0: i32, %arg1: memref<2x16x16x4xf32, #tpu.memory_space<vmem>>, %arg2: memref<1152x128xbf16, #tpu.memory_space<vmem>>, %arg3: memref<1x128xf32, #tpu.memory_space<vmem>>, %arg4: memref<1152x128xbf16, #tpu.memory_space<vmem>>, %arg5: memref<1x128xf32, #tpu.memory_space<vmem>>, %arg6: memref<2x16x16x128xf32, #tpu.memory_space<vmem>>, %arg7: memref<2x18x18x128xf32, #tpu.memory_space<vmem>>, %arg8: memref<2x18x18x128xf32, #tpu.memory_space<vmem>>, %arg9: memref<512x1152xbf16, #tpu.memory_space<vmem>>, %arg10: memref<512x1152xbf16, #tpu.memory_space<vmem>>) attributes {dimension_semantics = [#tpu.dimension_semantics<parallel>], iteration_bounds = array<i64: 1>, scalar_prefetch = 0 : i64, scratch_operands = 4 : i64, tpu.core_type = #tpu.core_type<tc>, window_params = [{transform_indices = @transform_0, window_bounds = array<i64: 2, 16, 16, 4>}, {pipeline_mode = #tpu.pipeline_mode<synchronous>, transform_indices = @transform_1, window_bounds = array<i64: 1152, 128>}, {pipeline_mode = #tpu.pipeline_mode<synchronous>, transform_indices = @transform_2, window_bounds = array<i64: 1, 128>}, {pipeline_mode = #tpu.pipeline_mode<synchronous>, transform_indices = @transform_3, window_bounds = array<i64: 1152, 128>}, {pipeline_mode = #tpu.pipeline_mode<synchronous>, transform_indices = @transform_4, window_bounds = array<i64: 1, 128>}, {transform_indices = @transform_5, window_bounds = array<i64: 2, 16, 16, 128>}]} {
    %cst = arith.constant 0.000000e+00 : f32
    %0 = vector.broadcast %cst : f32 to vector<2x18x18x128xf32>
    %c0 = arith.constant 0 : index
    %c0_0 = arith.constant 0 : index
    %c0_1 = arith.constant 0 : index
    %c0_2 = arith.constant 0 : index
    %1 = vector.load %arg7[%c0, %c0_0, %c0_1, %c0_2] : memref<2x18x18x128xf32, #tpu.memory_space<vmem>>, vector<2x18x18x128xf32>
    tpu.vector_store %arg7[%c0, %c0_0, %c0_1, %c0_2], %0 {strides = array<i32>} : memref<2x18x18x128xf32, #tpu.memory_space<vmem>>, vector<2x18x18x128xf32>,
    %c0_3 = arith.constant 0 : index
    %c0_4 = arith.constant 0 : index
    %c0_5 = arith.constant 0 : index
    %c0_6 = arith.constant 0 : index
    %2 = vector.load %arg1[%c0_3, %c0_4, %c0_5, %c0_6] : memref<2x16x16x4xf32, #tpu.memory_space<vmem>>, vector<2x16x16x4xf32>
    %c0_7 = arith.constant 0 : index
    %c1 = arith.constant 1 : index
    %c1_8 = arith.constant 1 : index
    %c0_9 = arith.constant 0 : index
    %3 = vector.load %arg7[%c0_7, %c1, %c1_8, %c0_9] : memref<2x18x18x128xf32, #tpu.memory_space<vmem>>, vector<2x16x16x4xf32>
    tpu.vector_store %arg7[%c0_7, %c1, %c1_8, %c0_9], %2 {strides = array<i32>} : memref<2x18x18x128xf32, #tpu.memory_space<vmem>>, vector<2x16x16x4xf32>,
    %c0_10 = arith.constant 0 : index
    %c0_11 = arith.constant 0 : index
    %c0_12 = arith.constant 0 : index
    %c0_13 = arith.constant 0 : index
    %4 = vector.load %arg7[%c0_10, %c0_11, %c0_12, %c0_13] : memref<2x18x18x128xf32, #tpu.memory_space<vmem>>, vector<2x16x16x128xf32>
    %5 = vector.shape_cast %4 : vector<2x16x16x128xf32> to vector<512x128xf32>
    %6 = arith.truncf %5 : vector<512x128xf32> to vector<512x128xbf16>
    %c0_14 = arith.constant 0 : index
    %c0_15 = arith.constant 0 : index
    %7 = vector.load %arg9[%c0_14, %c0_15] : memref<512x1152xbf16, #tpu.memory_space<vmem>>, vector<512x128xbf16>
    tpu.vector_store %arg9[%c0_14, %c0_15], %6 {strides = array<i32>} : memref<512x1152xbf16, #tpu.memory_space<vmem>>, vector<512x128xbf16>,
    %c0_16 = arith.constant 0 : index
    %c0_17 = arith.constant 0 : index
    %c1_18 = arith.constant 1 : index
    %c0_19 = arith.constant 0 : index
    %8 = vector.load %arg7[%c0_16, %c0_17, %c1_18, %c0_19] : memref<2x18x18x128xf32, #tpu.memory_space<vmem>>, vector<2x16x16x128xf32>
    %9 = vector.shape_cast %8 : vector<2x16x16x128xf32> to vector<512x128xf32>
    %10 = arith.truncf %9 : vector<512x128xf32> to vector<512x128xbf16>
    %c0_20 = arith.constant 0 : index
    %c128 = arith.constant 128 : index
    %11 = vector.load %arg9[%c0_20, %c128] : memref<512x1152xbf16, #tpu.memory_space<vmem>>, vector<512x128xbf16>
    tpu.vector_store %arg9[%c0_20, %c128], %10 {strides = array<i32>} : memref<512x1152xbf16, #tpu.memory_space<vmem>>, vector<512x128xbf16>,
    %c0_21 = arith.constant 0 : index
    %c0_22 = arith.constant 0 : index
    %c2 = arith.constant 2 : index
    %c0_23 = arith.constant 0 : index
    %12 = vector.load %arg7[%c0_21, %c0_22, %c2, %c0_23] : memref<2x18x18x128xf32, #tpu.memory_space<vmem>>, vector<2x16x16x128xf32>
    %13 = vector.shape_cast %12 : vector<2x16x16x128xf32> to vector<512x128xf32>
    %14 = arith.truncf %13 : vector<512x128xf32> to vector<512x128xbf16>
    %c0_24 = arith.constant 0 : index
    %c256 = arith.constant 256 : index
    %15 = vector.load %arg9[%c0_24, %c256] : memref<512x1152xbf16, #tpu.memory_space<vmem>>, vector<512x128xbf16>
    tpu.vector_store %arg9[%c0_24, %c256], %14 {strides = array<i32>} : memref<512x1152xbf16, #tpu.memory_space<vmem>>, vector<512x128xbf16>,
    %c0_25 = arith.constant 0 : index
    %c1_26 = arith.constant 1 : index
    %c0_27 = arith.constant 0 : index
    %c0_28 = arith.constant 0 : index
    %16 = vector.load %arg7[%c0_25, %c1_26, %c0_27, %c0_28] : memref<2x18x18x128xf32, #tpu.memory_space<vmem>>, vector<2x16x16x128xf32>
    %17 = vector.shape_cast %16 : vector<2x16x16x128xf32> to vector<512x128xf32>
    %18 = arith.truncf %17 : vector<512x128xf32> to vector<512x128xbf16>
    %c0_29 = arith.constant 0 : index
    %c384 = arith.constant 384 : index
    %19 = vector.load %arg9[%c0_29, %c384] : memref<512x1152xbf16, #tpu.memory_space<vmem>>, vector<512x128xbf16>
    tpu.vector_store %arg9[%c0_29, %c384], %18 {strides = array<i32>} : memref<512x1152xbf16, #tpu.memory_space<vmem>>, vector<512x128xbf16>,
    %c0_30 = arith.constant 0 : index
    %c1_31 = arith.constant 1 : index
    %c1_32 = arith.constant 1 : index
    %c0_33 = arith.constant 0 : index
    %20 = vector.load %arg7[%c0_30, %c1_31, %c1_32, %c0_33] : memref<2x18x18x128xf32, #tpu.memory_space<vmem>>, vector<2x16x16x128xf32>
    %21 = vector.shape_cast %20 : vector<2x16x16x128xf32> to vector<512x128xf32>
    %22 = arith.truncf %21 : vector<512x128xf32> to vector<512x128xbf16>
    %c0_34 = arith.constant 0 : index
    %c512 = arith.constant 512 : index
    %23 = vector.load %arg9[%c0_34, %c512] : memref<512x1152xbf16, #tpu.memory_space<vmem>>, vector<512x128xbf16>
    tpu.vector_store %arg9[%c0_34, %c512], %22 {strides = array<i32>} : memref<512x1152xbf16, #tpu.memory_space<vmem>>, vector<512x128xbf16>,
    %c0_35 = arith.constant 0 : index
    %c1_36 = arith.constant 1 : index
    %c2_37 = arith.constant 2 : index
    %c0_38 = arith.constant 0 : index
    %24 = vector.load %arg7[%c0_35, %c1_36, %c2_37, %c0_38] : memref<2x18x18x128xf32, #tpu.memory_space<vmem>>, vector<2x16x16x128xf32>
    %25 = vector.shape_cast %24 : vector<2x16x16x128xf32> to vector<512x128xf32>
    %26 = arith.truncf %25 : vector<512x128xf32> to vector<512x128xbf16>
    %c0_39 = arith.constant 0 : index
    %c640 = arith.constant 640 : index
    %27 = vector.load %arg9[%c0_39, %c640] : memref<512x1152xbf16, #tpu.memory_space<vmem>>, vector<512x128xbf16>
    tpu.vector_store %arg9[%c0_39, %c640], %26 {strides = array<i32>} : memref<512x1152xbf16, #tpu.memory_space<vmem>>, vector<512x128xbf16>,
    %c0_40 = arith.constant 0 : index
    %c2_41 = arith.constant 2 : index
    %c0_42 = arith.constant 0 : index
    %c0_43 = arith.constant 0 : index
    %28 = vector.load %arg7[%c0_40, %c2_41, %c0_42, %c0_43] : memref<2x18x18x128xf32, #tpu.memory_space<vmem>>, vector<2x16x16x128xf32>
    %29 = vector.shape_cast %28 : vector<2x16x16x128xf32> to vector<512x128xf32>
    %30 = arith.truncf %29 : vector<512x128xf32> to vector<512x128xbf16>
    %c0_44 = arith.constant 0 : index
    %c768 = arith.constant 768 : index
    %31 = vector.load %arg9[%c0_44, %c768] : memref<512x1152xbf16, #tpu.memory_space<vmem>>, vector<512x128xbf16>
    tpu.vector_store %arg9[%c0_44, %c768], %30 {strides = array<i32>} : memref<512x1152xbf16, #tpu.memory_space<vmem>>, vector<512x128xbf16>,
    %c0_45 = arith.constant 0 : index
    %c2_46 = arith.constant 2 : index
    %c1_47 = arith.constant 1 : index
    %c0_48 = arith.constant 0 : index
    %32 = vector.load %arg7[%c0_45, %c2_46, %c1_47, %c0_48] : memref<2x18x18x128xf32, #tpu.memory_space<vmem>>, vector<2x16x16x128xf32>
    %33 = vector.shape_cast %32 : vector<2x16x16x128xf32> to vector<512x128xf32>
    %34 = arith.truncf %33 : vector<512x128xf32> to vector<512x128xbf16>
    %c0_49 = arith.constant 0 : index
    %c896 = arith.constant 896 : index
    %35 = vector.load %arg9[%c0_49, %c896] : memref<512x1152xbf16, #tpu.memory_space<vmem>>, vector<512x128xbf16>
    tpu.vector_store %arg9[%c0_49, %c896], %34 {strides = array<i32>} : memref<512x1152xbf16, #tpu.memory_space<vmem>>, vector<512x128xbf16>,
    %c0_50 = arith.constant 0 : index
    %c2_51 = arith.constant 2 : index
    %c2_52 = arith.constant 2 : index
    %c0_53 = arith.constant 0 : index
    %36 = vector.load %arg7[%c0_50, %c2_51, %c2_52, %c0_53] : memref<2x18x18x128xf32, #tpu.memory_space<vmem>>, vector<2x16x16x128xf32>
    %37 = vector.shape_cast %36 : vector<2x16x16x128xf32> to vector<512x128xf32>
    %38 = arith.truncf %37 : vector<512x128xf32> to vector<512x128xbf16>
    %c0_54 = arith.constant 0 : index
    %c1024 = arith.constant 1024 : index
    %39 = vector.load %arg9[%c0_54, %c1024] : memref<512x1152xbf16, #tpu.memory_space<vmem>>, vector<512x128xbf16>
    tpu.vector_store %arg9[%c0_54, %c1024], %38 {strides = array<i32>} : memref<512x1152xbf16, #tpu.memory_space<vmem>>, vector<512x128xbf16>,
    %c0_55 = arith.constant 0 : index
    %c0_56 = arith.constant 0 : index
    %40 = vector.load %arg9[%c0_55, %c0_56] : memref<512x1152xbf16, #tpu.memory_space<vmem>>, vector<512x1152xbf16>
    %c0_57 = arith.constant 0 : index
    %c0_58 = arith.constant 0 : index
    %41 = vector.load %arg2[%c0_57, %c0_58] : memref<1152x128xbf16, #tpu.memory_space<vmem>>, vector<1152x128xbf16>
    %cst_59 = arith.constant dense<0.000000e+00> : vector<512x128xf32>
    %42 = tpu.matmul %40, %41, %cst_59 {dimension_numbers = #tpu.dot_dimension_numbers<[1], [0], [0], [1], [0, 0, 1, 1], [], []>} : vector<512x1152xbf16>, vector<1152x128xbf16>, vector<512x128xf32> -> vector<512x128xf32>
    %c0_60 = arith.constant 0 : index
    %c0_61 = arith.constant 0 : index
    %43 = vector.load %arg3[%c0_60, %c0_61] : memref<1x128xf32, #tpu.memory_space<vmem>>, vector<1x128xf32>
    %44 = vector.broadcast %43 : vector<1x128xf32> to vector<512x128xf32>
    %45 = arith.addf %42, %44 : vector<512x128xf32>
    %cst_62 = arith.constant 0.000000e+00 : f32
    %46 = vector.broadcast %cst_62 : f32 to vector<512x128xf32>
    %47 = arith.maximumf %45, %46 : vector<512x128xf32>
    %cst_63 = arith.constant 0.000000e+00 : f32
    %48 = vector.broadcast %cst_63 : f32 to vector<2x18x18x128xf32>
    %c0_64 = arith.constant 0 : index
    %c0_65 = arith.constant 0 : index
    %c0_66 = arith.constant 0 : index
    %c0_67 = arith.constant 0 : index
    %49 = vector.load %arg8[%c0_64, %c0_65, %c0_66, %c0_67] : memref<2x18x18x128xf32, #tpu.memory_space<vmem>>, vector<2x18x18x128xf32>
    tpu.vector_store %arg8[%c0_64, %c0_65, %c0_66, %c0_67], %48 {strides = array<i32>} : memref<2x18x18x128xf32, #tpu.memory_space<vmem>>, vector<2x18x18x128xf32>,
    %50 = vector.shape_cast %47 : vector<512x128xf32> to vector<2x16x16x128xf32>
    %c0_68 = arith.constant 0 : index
    %c1_69 = arith.constant 1 : index
    %c1_70 = arith.constant 1 : index
    %c0_71 = arith.constant 0 : index
    %51 = vector.load %arg8[%c0_68, %c1_69, %c1_70, %c0_71] : memref<2x18x18x128xf32, #tpu.memory_space<vmem>>, vector<2x16x16x128xf32>
    tpu.vector_store %arg8[%c0_68, %c1_69, %c1_70, %c0_71], %50 {strides = array<i32>} : memref<2x18x18x128xf32, #tpu.memory_space<vmem>>, vector<2x16x16x128xf32>,
    %c0_72 = arith.constant 0 : index
    %c0_73 = arith.constant 0 : index
    %c0_74 = arith.constant 0 : index
    %c0_75 = arith.constant 0 : index
    %52 = vector.load %arg8[%c0_72, %c0_73, %c0_74, %c0_75] : memref<2x18x18x128xf32, #tpu.memory_space<vmem>>, vector<2x16x16x128xf32>
    %53 = vector.shape_cast %52 : vector<2x16x16x128xf32> to vector<512x128xf32>
    %54 = arith.truncf %53 : vector<512x128xf32> to vector<512x128xbf16>
    %c0_76 = arith.constant 0 : index
    %c0_77 = arith.constant 0 : index
    %55 = vector.load %arg10[%c0_76, %c0_77] : memref<512x1152xbf16, #tpu.memory_space<vmem>>, vector<512x128xbf16>
    tpu.vector_store %arg10[%c0_76, %c0_77], %54 {strides = array<i32>} : memref<512x1152xbf16, #tpu.memory_space<vmem>>, vector<512x128xbf16>,
    %c0_78 = arith.constant 0 : index
    %c0_79 = arith.constant 0 : index
    %c1_80 = arith.constant 1 : index
    %c0_81 = arith.constant 0 : index
    %56 = vector.load %arg8[%c0_78, %c0_79, %c1_80, %c0_81] : memref<2x18x18x128xf32, #tpu.memory_space<vmem>>, vector<2x16x16x128xf32>
    %57 = vector.shape_cast %56 : vector<2x16x16x128xf32> to vector<512x128xf32>
    %58 = arith.truncf %57 : vector<512x128xf32> to vector<512x128xbf16>
    %c0_82 = arith.constant 0 : index
    %c128_83 = arith.constant 128 : index
    %59 = vector.load %arg10[%c0_82, %c128_83] : memref<512x1152xbf16, #tpu.memory_space<vmem>>, vector<512x128xbf16>
    tpu.vector_store %arg10[%c0_82, %c128_83], %58 {strides = array<i32>} : memref<512x1152xbf16, #tpu.memory_space<vmem>>, vector<512x128xbf16>,
    %c0_84 = arith.constant 0 : index
    %c0_85 = arith.constant 0 : index
    %c2_86 = arith.constant 2 : index
    %c0_87 = arith.constant 0 : index
    %60 = vector.load %arg8[%c0_84, %c0_85, %c2_86, %c0_87] : memref<2x18x18x128xf32, #tpu.memory_space<vmem>>, vector<2x16x16x128xf32>
    %61 = vector.shape_cast %60 : vector<2x16x16x128xf32> to vector<512x128xf32>
    %62 = arith.truncf %61 : vector<512x128xf32> to vector<512x128xbf16>
    %c0_88 = arith.constant 0 : index
    %c256_89 = arith.constant 256 : index
    %63 = vector.load %arg10[%c0_88, %c256_89] : memref<512x1152xbf16, #tpu.memory_space<vmem>>, vector<512x128xbf16>
    tpu.vector_store %arg10[%c0_88, %c256_89], %62 {strides = array<i32>} : memref<512x1152xbf16, #tpu.memory_space<vmem>>, vector<512x128xbf16>,
    %c0_90 = arith.constant 0 : index
    %c1_91 = arith.constant 1 : index
    %c0_92 = arith.constant 0 : index
    %c0_93 = arith.constant 0 : index
    %64 = vector.load %arg8[%c0_90, %c1_91, %c0_92, %c0_93] : memref<2x18x18x128xf32, #tpu.memory_space<vmem>>, vector<2x16x16x128xf32>
    %65 = vector.shape_cast %64 : vector<2x16x16x128xf32> to vector<512x128xf32>
    %66 = arith.truncf %65 : vector<512x128xf32> to vector<512x128xbf16>
    %c0_94 = arith.constant 0 : index
    %c384_95 = arith.constant 384 : index
    %67 = vector.load %arg10[%c0_94, %c384_95] : memref<512x1152xbf16, #tpu.memory_space<vmem>>, vector<512x128xbf16>
    tpu.vector_store %arg10[%c0_94, %c384_95], %66 {strides = array<i32>} : memref<512x1152xbf16, #tpu.memory_space<vmem>>, vector<512x128xbf16>,
    %c0_96 = arith.constant 0 : index
    %c1_97 = arith.constant 1 : index
    %c1_98 = arith.constant 1 : index
    %c0_99 = arith.constant 0 : index
    %68 = vector.load %arg8[%c0_96, %c1_97, %c1_98, %c0_99] : memref<2x18x18x128xf32, #tpu.memory_space<vmem>>, vector<2x16x16x128xf32>
    %69 = vector.shape_cast %68 : vector<2x16x16x128xf32> to vector<512x128xf32>
    %70 = arith.truncf %69 : vector<512x128xf32> to vector<512x128xbf16>
    %c0_100 = arith.constant 0 : index
    %c512_101 = arith.constant 512 : index
    %71 = vector.load %arg10[%c0_100, %c512_101] : memref<512x1152xbf16, #tpu.memory_space<vmem>>, vector<512x128xbf16>
    tpu.vector_store %arg10[%c0_100, %c512_101], %70 {strides = array<i32>} : memref<512x1152xbf16, #tpu.memory_space<vmem>>, vector<512x128xbf16>,
    %c0_102 = arith.constant 0 : index
    %c1_103 = arith.constant 1 : index
    %c2_104 = arith.constant 2 : index
    %c0_105 = arith.constant 0 : index
    %72 = vector.load %arg8[%c0_102, %c1_103, %c2_104, %c0_105] : memref<2x18x18x128xf32, #tpu.memory_space<vmem>>, vector<2x16x16x128xf32>
    %73 = vector.shape_cast %72 : vector<2x16x16x128xf32> to vector<512x128xf32>
    %74 = arith.truncf %73 : vector<512x128xf32> to vector<512x128xbf16>
    %c0_106 = arith.constant 0 : index
    %c640_107 = arith.constant 640 : index
    %75 = vector.load %arg10[%c0_106, %c640_107] : memref<512x1152xbf16, #tpu.memory_space<vmem>>, vector<512x128xbf16>
    tpu.vector_store %arg10[%c0_106, %c640_107], %74 {strides = array<i32>} : memref<512x1152xbf16, #tpu.memory_space<vmem>>, vector<512x128xbf16>,
    %c0_108 = arith.constant 0 : index
    %c2_109 = arith.constant 2 : index
    %c0_110 = arith.constant 0 : index
    %c0_111 = arith.constant 0 : index
    %76 = vector.load %arg8[%c0_108, %c2_109, %c0_110, %c0_111] : memref<2x18x18x128xf32, #tpu.memory_space<vmem>>, vector<2x16x16x128xf32>
    %77 = vector.shape_cast %76 : vector<2x16x16x128xf32> to vector<512x128xf32>
    %78 = arith.truncf %77 : vector<512x128xf32> to vector<512x128xbf16>
    %c0_112 = arith.constant 0 : index
    %c768_113 = arith.constant 768 : index
    %79 = vector.load %arg10[%c0_112, %c768_113] : memref<512x1152xbf16, #tpu.memory_space<vmem>>, vector<512x128xbf16>
    tpu.vector_store %arg10[%c0_112, %c768_113], %78 {strides = array<i32>} : memref<512x1152xbf16, #tpu.memory_space<vmem>>, vector<512x128xbf16>,
    %c0_114 = arith.constant 0 : index
    %c2_115 = arith.constant 2 : index
    %c1_116 = arith.constant 1 : index
    %c0_117 = arith.constant 0 : index
    %80 = vector.load %arg8[%c0_114, %c2_115, %c1_116, %c0_117] : memref<2x18x18x128xf32, #tpu.memory_space<vmem>>, vector<2x16x16x128xf32>
    %81 = vector.shape_cast %80 : vector<2x16x16x128xf32> to vector<512x128xf32>
    %82 = arith.truncf %81 : vector<512x128xf32> to vector<512x128xbf16>
    %c0_118 = arith.constant 0 : index
    %c896_119 = arith.constant 896 : index
    %83 = vector.load %arg10[%c0_118, %c896_119] : memref<512x1152xbf16, #tpu.memory_space<vmem>>, vector<512x128xbf16>
    tpu.vector_store %arg10[%c0_118, %c896_119], %82 {strides = array<i32>} : memref<512x1152xbf16, #tpu.memory_space<vmem>>, vector<512x128xbf16>,
    %c0_120 = arith.constant 0 : index
    %c2_121 = arith.constant 2 : index
    %c2_122 = arith.constant 2 : index
    %c0_123 = arith.constant 0 : index
    %84 = vector.load %arg8[%c0_120, %c2_121, %c2_122, %c0_123] : memref<2x18x18x128xf32, #tpu.memory_space<vmem>>, vector<2x16x16x128xf32>
    %85 = vector.shape_cast %84 : vector<2x16x16x128xf32> to vector<512x128xf32>
    %86 = arith.truncf %85 : vector<512x128xf32> to vector<512x128xbf16>
    %c0_124 = arith.constant 0 : index
    %c1024_125 = arith.constant 1024 : index
    %87 = vector.load %arg10[%c0_124, %c1024_125] : memref<512x1152xbf16, #tpu.memory_space<vmem>>, vector<512x128xbf16>
    tpu.vector_store %arg10[%c0_124, %c1024_125], %86 {strides = array<i32>} : memref<512x1152xbf16, #tpu.memory_space<vmem>>, vector<512x128xbf16>,
    %c0_126 = arith.constant 0 : index
    %c0_127 = arith.constant 0 : index
    %88 = vector.load %arg10[%c0_126, %c0_127] : memref<512x1152xbf16, #tpu.memory_space<vmem>>, vector<512x1152xbf16>
    %c0_128 = arith.constant 0 : index
    %c0_129 = arith.constant 0 : index
    %89 = vector.load %arg4[%c0_128, %c0_129] : memref<1152x128xbf16, #tpu.memory_space<vmem>>, vector<1152x128xbf16>
    %cst_130 = arith.constant dense<0.000000e+00> : vector<512x128xf32>
    %90 = tpu.matmul %88, %89, %cst_130 {dimension_numbers = #tpu.dot_dimension_numbers<[1], [0], [0], [1], [0, 0, 1, 1], [], []>} : vector<512x1152xbf16>, vector<1152x128xbf16>, vector<512x128xf32> -> vector<512x128xf32>
    %c0_131 = arith.constant 0 : index
    %c0_132 = arith.constant 0 : index
    %91 = vector.load %arg5[%c0_131, %c0_132] : memref<1x128xf32, #tpu.memory_space<vmem>>, vector<1x128xf32>
    %92 = vector.broadcast %91 : vector<1x128xf32> to vector<512x128xf32>
    %93 = arith.addf %90, %92 : vector<512x128xf32>
    %cst_133 = arith.constant 0.000000e+00 : f32
    %94 = vector.broadcast %cst_133 : f32 to vector<512x128xf32>
    %95 = arith.maximumf %93, %94 : vector<512x128xf32>
    %96 = vector.shape_cast %95 : vector<512x128xf32> to vector<2x16x16x128xf32>
    %c0_134 = arith.constant 0 : index
    %c0_135 = arith.constant 0 : index
    %c0_136 = arith.constant 0 : index
    %c0_137 = arith.constant 0 : index
    %97 = vector.load %arg6[%c0_134, %c0_135, %c0_136, %c0_137] : memref<2x16x16x128xf32, #tpu.memory_space<vmem>>, vector<2x16x16x128xf32>
    tpu.vector_store %arg6[%c0_134, %c0_135, %c0_136, %c0_137], %96 {strides = array<i32>} : memref<2x16x16x128xf32, #tpu.memory_space<vmem>>, vector<2x16x16x128xf32>,
    return
  }
  func.func @transform_0(%arg0: i32) -> (i32, i32, i32, i32) {
    %c0_i32 = arith.constant 0 : i32
    %c0_i32_0 = arith.constant 0 : i32
    %c0_i32_1 = arith.constant 0 : i32
    %c0_i32_2 = arith.constant 0 : i32
    return %arg0, %c0_i32, %c0_i32_0, %c0_i32_1 : i32, i32, i32, i32
  }
  func.func @transform_1(%arg0: i32) -> (i32, i32) {
    %c0_i32 = arith.constant 0 : i32
    %c0_i32_0 = arith.constant 0 : i32
    %c0_i32_1 = arith.constant 0 : i32
    return %c0_i32, %c0_i32_0 : i32, i32
  }
  func.func @transform_2(%arg0: i32) -> (i32, i32) {
    %c0_i32 = arith.constant 0 : i32
    %c0_i32_0 = arith.constant 0 : i32
    %c0_i32_1 = arith.constant 0 : i32
    return %c0_i32, %c0_i32_0 : i32, i32
  }
  func.func @transform_3(%arg0: i32) -> (i32, i32) {
    %c0_i32 = arith.constant 0 : i32
    %c0_i32_0 = arith.constant 0 : i32
    %c0_i32_1 = arith.constant 0 : i32
    return %c0_i32, %c0_i32_0 : i32, i32
  }
  func.func @transform_4(%arg0: i32) -> (i32, i32) {
    %c0_i32 = arith.constant 0 : i32
    %c0_i32_0 = arith.constant 0 : i32
    %c0_i32_1 = arith.constant 0 : i32
    return %c0_i32, %c0_i32_0 : i32, i32
  }
  func.func @transform_5(%arg0: i32) -> (i32, i32, i32, i32) {
    %c0_i32 = arith.constant 0 : i32
    %c0_i32_0 = arith.constant 0 : i32
    %c0_i32_1 = arith.constant 0 : i32
    %c0_i32_2 = arith.constant 0 : i32
    return %arg0, %c0_i32, %c0_i32_0, %c0_i32_1 : i32, i32, i32, i32
  }
}

</mosaic_0001>

<llo_original>
// kernel: tpu_custom_call.1
$region0: #{tpu_custom_call.1}
  #allocation0 [shape = 'u32[]', space=smem, size = 0x4, offset = 0x4, fixed_abs, tag = 'smem constant byte address 0x4 - core index']
  #allocation1 [shape = 'u32[72,128]{1,0:T(1,128)}', space=vmem, size = 0x9000, scoped, tag = 'internal scratch']
  #allocation2 [shape = 'f32[2,18,18,128]{3,2,1,0:T(8,128)}', space=vmem, size = 0x6c000, scoped, tag = 'scratch operand']
  #allocation3 [shape = 'f32[2,18,18,128]{3,2,1,0:T(8,128)}', space=vmem, size = 0x6c000, scoped, tag = 'scratch operand']
  #allocation4 [shape = 'bf16[512,1152]{1,0:T(8,128)(2,1)}', space=vmem, size = 0x120000, scoped, tag = 'scratch operand']
  #allocation5 [shape = 'bf16[512,1152]{1,0:T(8,128)(2,1)}', space=vmem, size = 0x120000, scoped, tag = 'scratch operand']
  %s0 = inlined_call_operand.vmem [shape: f32[2,16,16,4], index: 0, kind: input, shape index: {}]
  %s1 = inlined_call_operand.vmem [shape: bf16[1152,128], index: 1, kind: input, shape index: {}]
  %s2 = inlined_call_operand.vmem [shape: f32[1,128], index: 2, kind: input, shape index: {}]
  %s3 = inlined_call_operand.hbm [shape: bf16[1152,128], index: 3, kind: input, shape index: {}]
  %s4 = inlined_call_operand.vmem [shape: f32[1,128], index: 4, kind: input, shape index: {}]
  %s5 = inlined_call_operand.hbm [shape: f32[2,16,16,128], index: 5, kind: output, shape index: {}]
  %s6 = sld [smem:[#allocation0]]
  $region34: #{tpu_custom_call.1} parent=0
    _
  %s8 = ssub.s32 1, %s6
  %s9 = scalar_select 0, %s8, %s6
  $region1: #{tpu_custom_call.1} parent=0
    #allocation6 [shape = 'u8[294912]{0}', space=vmem, size = 0x48000, scoped, tag = 'input window, operand 3, single buffered']
    #allocation7 [shape = 's32[1]{0}', space=sflag, size = 0x4, scoped, tag = 'scoped memory for tpu_custom_call.1']
    #allocation8 [shape = 's32[1]{0}', space=sflag, size = 0x4, scoped, tag = 'scoped memory for tpu_custom_call.1']
    #allocation9 [shape = 'u8[262144]{0}', space=vmem, size = 0x40000, scoped, tag = 'output window, operand 0, single buffered']
    %10 = vsyncpa [#allocation7], 0
    %11 = vsyncpa [#allocation8], 0
    // Predicated region
    $region2: #{tpu_custom_call.1} parent=1 // pred_check
      _
    $region3: #{tpu_custom_call.1} parent=1 // pred_check_branch
      %13 = sbr.rel (0) target = $region5
    $region4: #{tpu_custom_call.1} parent=1 // pred_region
      _
    $region5: #{tpu_custom_call.1} parent=1 // pred_fallthru
      _
    // Predicated region
    $region6: #{tpu_custom_call.1} parent=1 // pred_check
      _
    $region7: #{tpu_custom_call.1} parent=1 // pred_check_branch
      %15 = sbr.rel (0) target = $region9
    $region8: #{tpu_custom_call.1} parent=1 // pred_region
      _
    $region9: #{tpu_custom_call.1} parent=1 // pred_fallthru
      _
    // Predicated region
    $region10: #{tpu_custom_call.1} parent=1 // pred_check
      _
    $region11: #{tpu_custom_call.1} parent=1 // pred_check_branch
      %17 = sbr.rel (0) target = $region13
    $region12: #{tpu_custom_call.1} parent=1 // pred_region
      _
    $region13: #{tpu_custom_call.1} parent=1 // pred_fallthru
      _
    // Predicated region
    $region14: #{tpu_custom_call.1} parent=1 // pred_check
      _
    $region15: #{tpu_custom_call.1} parent=1 // pred_check_branch
      %19 = sbr.rel (0) target = $region17
    $region16: #{tpu_custom_call.1} parent=1 // pred_region
      %21 = vsyncadd [#allocation7], 0
      %s22 = sshll.u32 %s3, 4
      %s23 = int_to_ptr.hbm [resolvable:$true] %s22
      %s24 = sshll.u32 [#allocation6], 4
      %s25 = int_to_ptr.vmem [resolvable:$true] %s24
      %30 = dma.hbm_to_vmem [thread:$0]  %s23, 9216, %s25, [#allocation7], 64, 64, 4
    $region17: #{tpu_custom_call.1} parent=1 // pred_fallthru
      _
    // Predicated region
    $region18: #{tpu_custom_call.1} parent=1 // pred_check
      _
    $region19: #{tpu_custom_call.1} parent=1 // pred_check_branch
      %32 = sbr.rel (0) target = $region21
    $region20: #{tpu_custom_call.1} parent=1 // pred_region
      _
    $region21: #{tpu_custom_call.1} parent=1 // pred_fallthru
      _
    // Predicated region
    $region22: #{tpu_custom_call.1} parent=1 // pred_check
      _
    $region23: #{tpu_custom_call.1} parent=1 // pred_check_branch
      %34 = sbr.rel (0) target = $region25
    $region24: #{tpu_custom_call.1} parent=1 // pred_region
      %36 = dma.done [#allocation7], 9216
    $region25: #{tpu_custom_call.1} parent=1 // pred_fallthru
      _
    %37 = vst [vmem:[#allocation2] sm:$0xff] 0.0
    %38 = vst [vmem:[#allocation2 + $0x8] sm:$0xff] 0.0
    %39 = vst [vmem:[#allocation2 + $0x10] sm:$0x3] 0.0
    %40 = vst [vmem:[#allocation2 + $0x18] sm:$0xff] 0.0
    %41 = vst [vmem:[#allocation2 + $0x20] sm:$0xff] 0.0
    %42 = vst [vmem:[#allocation2 + $0x28] sm:$0x3] 0.0
    %43 = vst [vmem:[#allocation2 + $0x30] sm:$0xff] 0.0
    %44 = vst [vmem:[#allocation2 + $0x38] sm:$0xff] 0.0
    %45 = vst [vmem:[#allocation2 + $0x40] sm:$0x3] 0.0
    %46 = vst [vmem:[#allocation2 + $0x48] sm:$0xff] 0.0
    %47 = vst [vmem:[#allocation2 + $0x50] sm:$0xff] 0.0
    %48 = vst [vmem:[#allocation2 + $0x58] sm:$0x3] 0.0
    %49 = vst [vmem:[#allocation2 + $0x60] sm:$0xff] 0.0
    %50 = vst [vmem:[#allocation2 + $0x68] sm:$0xff] 0.0
    %51 = vst [vmem:[#allocation2 + $0x70] sm:$0x3] 0.0
    %52 = vst [vmem:[#allocation2 + $0x78] sm:$0xff] 0.0
    %53 = vst [vmem:[#allocation2 + $0x80] sm:$0xff] 0.0
    %54 = vst [vmem:[#allocation2 + $0x88] sm:$0x3] 0.0
    %55 = vst [vmem:[#allocation2 + $0x90] sm:$0xff] 0.0
    %56 = vst [vmem:[#allocation2 + $0x98] sm:$0xff] 0.0
    %57 = vst [vmem:[#allocation2 + $0xa0] sm:$0x3] 0.0
    %58 = vst [vmem:[#allocation2 + $0xa8] sm:$0xff] 0.0
    %59 = vst [vmem:[#allocation2 + $0xb0] sm:$0xff] 0.0
    %60 = vst [vmem:[#allocation2 + $0xb8] sm:$0x3] 0.0
    %61 = vst [vmem:[#allocation2 + $0xc0] sm:$0xff] 0.0
    %62 = vst [vmem:[#allocation2 + $0xc8] sm:$0xff] 0.0
    %63 = vst [vmem:[#allocation2 + $0xd0] sm:$0x3] 0.0
    %64 = vst [vmem:[#allocation2 + $0xd8] sm:$0xff] 0.0
    %65 = vst [vmem:[#allocation2 + $0xe0] sm:$0xff] 0.0
    %66 = vst [vmem:[#allocation2 + $0xe8] sm:$0x3] 0.0
    %67 = vst [vmem:[#allocation2 + $0xf0] sm:$0xff] 0.0
    %68 = vst [vmem:[#allocation2 + $0xf8] sm:$0xff] 0.0
    %69 = vst [vmem:[#allocation2 + $0x100] sm:$0x3] 0.0
    %70 = vst [vmem:[#allocation2 + $0x108] sm:$0xff] 0.0
    %71 = vst [vmem:[#allocation2 + $0x110] sm:$0xff] 0.0
    %72 = vst [vmem:[#allocation2 + $0x118] sm:$0x3] 0.0
    %73 = vst [vmem:[#allocation2 + $0x120] sm:$0xff] 0.0
    %74 = vst [vmem:[#allocation2 + $0x128] sm:$0xff] 0.0
    %75 = vst [vmem:[#allocation2 + $0x130] sm:$0x3] 0.0
    %76 = vst [vmem:[#allocation2 + $0x138] sm:$0xff] 0.0
    %77 = vst [vmem:[#allocation2 + $0x140] sm:$0xff] 0.0
    %78 = vst [vmem:[#allocation2 + $0x148] sm:$0x3] 0.0
    %79 = vst [vmem:[#allocation2 + $0x150] sm:$0xff] 0.0
    %80 = vst [vmem:[#allocation2 + $0x158] sm:$0xff] 0.0
    %81 = vst [vmem:[#allocation2 + $0x160] sm:$0x3] 0.0
    %82 = vst [vmem:[#allocation2 + $0x168] sm:$0xff] 0.0
    %83 = vst [vmem:[#allocation2 + $0x170] sm:$0xff] 0.0
    %84 = vst [vmem:[#allocation2 + $0x178] sm:$0x3] 0.0
    %85 = vst [vmem:[#allocation2 + $0x180] sm:$0xff] 0.0
    %86 = vst [vmem:[#allocation2 + $0x188] sm:$0xff] 0.0
    %87 = vst [vmem:[#allocation2 + $0x190] sm:$0x3] 0.0
    %88 = vst [vmem:[#allocation2 + $0x198] sm:$0xff] 0.0
    %89 = vst [vmem:[#allocation2 + $0x1a0] sm:$0xff] 0.0
    %90 = vst [vmem:[#allocation2 + $0x1a8] sm:$0x3] 0.0
    %91 = vst [vmem:[#allocation2 + $0x1b0] sm:$0xff] 0.0
    %92 = vst [vmem:[#allocation2 + $0x1b8] sm:$0xff] 0.0
    %93 = vst [vmem:[#allocation2 + $0x1c0] sm:$0x3] 0.0
    %94 = vst [vmem:[#allocation2 + $0x1c8] sm:$0xff] 0.0
    %95 = vst [vmem:[#allocation2 + $0x1d0] sm:$0xff] 0.0
    %96 = vst [vmem:[#allocation2 + $0x1d8] sm:$0x3] 0.0
    %97 = vst [vmem:[#allocation2 + $0x1e0] sm:$0xff] 0.0
    %98 = vst [vmem:[#allocation2 + $0x1e8] sm:$0xff] 0.0
    %99 = vst [vmem:[#allocation2 + $0x1f0] sm:$0x3] 0.0
    %100 = vst [vmem:[#allocation2 + $0x1f8] sm:$0xff] 0.0
    %101 = vst [vmem:[#allocation2 + $0x200] sm:$0xff] 0.0
    %102 = vst [vmem:[#allocation2 + $0x208] sm:$0x3] 0.0
    %103 = vst [vmem:[#allocation2 + $0x210] sm:$0xff] 0.0
    %104 = vst [vmem:[#allocation2 + $0x218] sm:$0xff] 0.0
    %105 = vst [vmem:[#allocation2 + $0x220] sm:$0x3] 0.0
    %106 = vst [vmem:[#allocation2 + $0x228] sm:$0xff] 0.0
    %107 = vst [vmem:[#allocation2 + $0x230] sm:$0xff] 0.0
    %108 = vst [vmem:[#allocation2 + $0x238] sm:$0x3] 0.0
    %109 = vst [vmem:[#allocation2 + $0x240] sm:$0xff] 0.0
    %110 = vst [vmem:[#allocation2 + $0x248] sm:$0xff] 0.0
    %111 = vst [vmem:[#allocation2 + $0x250] sm:$0x3] 0.0
    %112 = vst [vmem:[#allocation2 + $0x258] sm:$0xff] 0.0
    %113 = vst [vmem:[#allocation2 + $0x260] sm:$0xff] 0.0
    %114 = vst [vmem:[#allocation2 + $0x268] sm:$0x3] 0.0
    %115 = vst [vmem:[#allocation2 + $0x270] sm:$0xff] 0.0
    %116 = vst [vmem:[#allocation2 + $0x278] sm:$0xff] 0.0
    %117 = vst [vmem:[#allocation2 + $0x280] sm:$0x3] 0.0
    %118 = vst [vmem:[#allocation2 + $0x288] sm:$0xff] 0.0
    %119 = vst [vmem:[#allocation2 + $0x290] sm:$0xff] 0.0
    %120 = vst [vmem:[#allocation2 + $0x298] sm:$0x3] 0.0
    %121 = vst [vmem:[#allocation2 + $0x2a0] sm:$0xff] 0.0
    %122 = vst [vmem:[#allocation2 + $0x2a8] sm:$0xff] 0.0
    %123 = vst [vmem:[#allocation2 + $0x2b0] sm:$0x3] 0.0
    %124 = vst [vmem:[#allocation2 + $0x2b8] sm:$0xff] 0.0
    %125 = vst [vmem:[#allocation2 + $0x2c0] sm:$0xff] 0.0
    %126 = vst [vmem:[#allocation2 + $0x2c8] sm:$0x3] 0.0
    %127 = vst [vmem:[#allocation2 + $0x2d0] sm:$0xff] 0.0
    %128 = vst [vmem:[#allocation2 + $0x2d8] sm:$0xff] 0.0
    %129 = vst [vmem:[#allocation2 + $0x2e0] sm:$0x3] 0.0
    %130 = vst [vmem:[#allocation2 + $0x2e8] sm:$0xff] 0.0
    %131 = vst [vmem:[#allocation2 + $0x2f0] sm:$0xff] 0.0
    %132 = vst [vmem:[#allocation2 + $0x2f8] sm:$0x3] 0.0
    %133 = vst [vmem:[#allocation2 + $0x300] sm:$0xff] 0.0
    %134 = vst [vmem:[#allocation2 + $0x308] sm:$0xff] 0.0
    %135 = vst [vmem:[#allocation2 + $0x310] sm:$0x3] 0.0
    %136 = vst [vmem:[#allocation2 + $0x318] sm:$0xff] 0.0
    %137 = vst [vmem:[#allocation2 + $0x320] sm:$0xff] 0.0
    %138 = vst [vmem:[#allocation2 + $0x328] sm:$0x3] 0.0
    %139 = vst [vmem:[#allocation2 + $0x330] sm:$0xff] 0.0
    %140 = vst [vmem:[#allocation2 + $0x338] sm:$0xff] 0.0
    %141 = vst [vmem:[#allocation2 + $0x340] sm:$0x3] 0.0
    %142 = vst [vmem:[#allocation2 + $0x348] sm:$0xff] 0.0
    %143 = vst [vmem:[#allocation2 + $0x350] sm:$0xff] 0.0
    %144 = vst [vmem:[#allocation2 + $0x358] sm:$0x3] 0.0
    %v145 = vld [vmem:[%s0] sm:$0xff]
    %v146 = vld [vmem:[%s0 + $0x8] sm:$0xff]
    %v147 = vld [vmem:[%s0 + $0x10] sm:$0xff]
    %v148 = vld [vmem:[%s0 + $0x18] sm:$0xff]
    %v149 = vld [vmem:[%s0 + $0x20] sm:$0xff]
    %v150 = vld [vmem:[%s0 + $0x28] sm:$0xff]
    %v151 = vld [vmem:[%s0 + $0x30] sm:$0xff]
    %v152 = vld [vmem:[%s0 + $0x38] sm:$0xff]
    %v153 = vld [vmem:[%s0 + $0x40] sm:$0xff]
    %v154 = vld [vmem:[%s0 + $0x48] sm:$0xff]
    %v155 = vld [vmem:[%s0 + $0x50] sm:$0xff]
    %v156 = vld [vmem:[%s0 + $0x58] sm:$0xff]
    %v157 = vld [vmem:[%s0 + $0x60] sm:$0xff]
    %v158 = vld [vmem:[%s0 + $0x68] sm:$0xff]
    %v159 = vld [vmem:[%s0 + $0x70] sm:$0xff]
    %v160 = vld [vmem:[%s0 + $0x78] sm:$0xff]
    %v161 = vld [vmem:[%s0 + $0x80] sm:$0xff]
    %v162 = vld [vmem:[%s0 + $0x88] sm:$0xff]
    %v163 = vld [vmem:[%s0 + $0x90] sm:$0xff]
    %v164 = vld [vmem:[%s0 + $0x98] sm:$0xff]
    %v165 = vld [vmem:[%s0 + $0xa0] sm:$0xff]
    %v166 = vld [vmem:[%s0 + $0xa8] sm:$0xff]
    %v167 = vld [vmem:[%s0 + $0xb0] sm:$0xff]
    %v168 = vld [vmem:[%s0 + $0xb8] sm:$0xff]
    %v169 = vld [vmem:[%s0 + $0xc0] sm:$0xff]
    %v170 = vld [vmem:[%s0 + $0xc8] sm:$0xff]
    %v171 = vld [vmem:[%s0 + $0xd0] sm:$0xff]
    %v172 = vld [vmem:[%s0 + $0xd8] sm:$0xff]
    %v173 = vld [vmem:[%s0 + $0xe0] sm:$0xff]
    %v174 = vld [vmem:[%s0 + $0xe8] sm:$0xff]
    %v175 = vld [vmem:[%s0 + $0xf0] sm:$0xff]
    %v176 = vld [vmem:[%s0 + $0xf8] sm:$0xff]
    %v177 = vld [vmem:[%s0 + $0x100] sm:$0xff]
    %v178 = vld [vmem:[%s0 + $0x108] sm:$0xff]
    %v179 = vld [vmem:[%s0 + $0x110] sm:$0xff]
    %v180 = vld [vmem:[%s0 + $0x118] sm:$0xff]
    %v181 = vld [vmem:[%s0 + $0x120] sm:$0xff]
    %v182 = vld [vmem:[%s0 + $0x128] sm:$0xff]
    %v183 = vld [vmem:[%s0 + $0x130] sm:$0xff]
    %v184 = vld [vmem:[%s0 + $0x138] sm:$0xff]
    %v185 = vld [vmem:[%s0 + $0x140] sm:$0xff]
    %v186 = vld [vmem:[%s0 + $0x148] sm:$0xff]
    %v187 = vld [vmem:[%s0 + $0x150] sm:$0xff]
    %v188 = vld [vmem:[%s0 + $0x158] sm:$0xff]
    %v189 = vld [vmem:[%s0 + $0x160] sm:$0xff]
    %v190 = vld [vmem:[%s0 + $0x168] sm:$0xff]
    %v191 = vld [vmem:[%s0 + $0x170] sm:$0xff]
    %v192 = vld [vmem:[%s0 + $0x178] sm:$0xff]
    %v193 = vld [vmem:[%s0 + $0x180] sm:$0xff]
    %v194 = vld [vmem:[%s0 + $0x188] sm:$0xff]
    %v195 = vld [vmem:[%s0 + $0x190] sm:$0xff]
    %v196 = vld [vmem:[%s0 + $0x198] sm:$0xff]
    %v197 = vld [vmem:[%s0 + $0x1a0] sm:$0xff]
    %v198 = vld [vmem:[%s0 + $0x1a8] sm:$0xff]
    %v199 = vld [vmem:[%s0 + $0x1b0] sm:$0xff]
    %v200 = vld [vmem:[%s0 + $0x1b8] sm:$0xff]
    %v201 = vld [vmem:[%s0 + $0x1c0] sm:$0xff]
    %v202 = vld [vmem:[%s0 + $0x1c8] sm:$0xff]
    %v203 = vld [vmem:[%s0 + $0x1d0] sm:$0xff]
    %v204 = vld [vmem:[%s0 + $0x1d8] sm:$0xff]
    %v205 = vld [vmem:[%s0 + $0x1e0] sm:$0xff]
    %v206 = vld [vmem:[%s0 + $0x1e8] sm:$0xff]
    %v207 = vld [vmem:[%s0 + $0x1f0] sm:$0xff]
    %v208 = vld [vmem:[%s0 + $0x1f8] sm:$0xff]
    %s209 = scalar_lea.vmem [#allocation2], 24
    %vm210 = vcmask 31744
    %211 = vst.msk [vmem:[%s209 + $0x1] sm:$0xff] %vm210, %v145
    %212 = vst.msk [vmem:[%s209 + $0x9] sm:$0xff] %vm210, %v146
    %213 = vst.msk [vmem:[%s209 + $0x19] sm:$0xff] %vm210, %v147
    %214 = vst.msk [vmem:[%s209 + $0x21] sm:$0xff] %vm210, %v148
    %215 = vst.msk [vmem:[%s209 + $0x31] sm:$0xff] %vm210, %v149
    %216 = vst.msk [vmem:[%s209 + $0x39] sm:$0xff] %vm210, %v150
    %217 = vst.msk [vmem:[%s209 + $0x49] sm:$0xff] %vm210, %v151
    %218 = vst.msk [vmem:[%s209 + $0x51] sm:$0xff] %vm210, %v152
    %219 = vst.msk [vmem:[%s209 + $0x61] sm:$0xff] %vm210, %v153
    %220 = vst.msk [vmem:[%s209 + $0x69] sm:$0xff] %vm210, %v154
    %221 = vst.msk [vmem:[%s209 + $0x79] sm:$0xff] %vm210, %v155
    %222 = vst.msk [vmem:[%s209 + $0x81] sm:$0xff] %vm210, %v156
    %223 = vst.msk [vmem:[%s209 + $0x91] sm:$0xff] %vm210, %v157
    %224 = vst.msk [vmem:[%s209 + $0x99] sm:$0xff] %vm210, %v158
    %225 = vst.msk [vmem:[%s209 + $0xa9] sm:$0xff] %vm210, %v159
    %226 = vst.msk [vmem:[%s209 + $0xb1] sm:$0xff] %vm210, %v160
    %227 = vst.msk [vmem:[%s209 + $0xc1] sm:$0xff] %vm210, %v161
    %228 = vst.msk [vmem:[%s209 + $0xc9] sm:$0xff] %vm210, %v162
    %229 = vst.msk [vmem:[%s209 + $0xd9] sm:$0xff] %vm210, %v163
    %230 = vst.msk [vmem:[%s209 + $0xe1] sm:$0xff] %vm210, %v164
    %231 = vst.msk [vmem:[%s209 + $0xf1] sm:$0xff] %vm210, %v165
    %232 = vst.msk [vmem:[%s209 + $0xf9] sm:$0xff] %vm210, %v166
    %233 = vst.msk [vmem:[%s209 + $0x109] sm:$0xff] %vm210, %v167
    %234 = vst.msk [vmem:[%s209 + $0x111] sm:$0xff] %vm210, %v168
    %235 = vst.msk [vmem:[%s209 + $0x121] sm:$0xff] %vm210, %v169
    %236 = vst.msk [vmem:[%s209 + $0x129] sm:$0xff] %vm210, %v170
    %237 = vst.msk [vmem:[%s209 + $0x139] sm:$0xff] %vm210, %v171
    %238 = vst.msk [vmem:[%s209 + $0x141] sm:$0xff] %vm210, %v172
    %239 = vst.msk [vmem:[%s209 + $0x151] sm:$0xff] %vm210, %v173
    %240 = vst.msk [vmem:[%s209 + $0x159] sm:$0xff] %vm210, %v174
    %241 = vst.msk [vmem:[%s209 + $0x169] sm:$0xff] %vm210, %v175
    %242 = vst.msk [vmem:[%s209 + $0x171] sm:$0xff] %vm210, %v176
    %243 = vst.msk [vmem:[%s209 + $0x1b1] sm:$0xff] %vm210, %v177
    %244 = vst.msk [vmem:[%s209 + $0x1b9] sm:$0xff] %vm210, %v178
    %245 = vst.msk [vmem:[%s209 + $0x1c9] sm:$0xff] %vm210, %v179
    %246 = vst.msk [vmem:[%s209 + $0x1d1] sm:$0xff] %vm210, %v180
    %247 = vst.msk [vmem:[%s209 + $0x1e1] sm:$0xff] %vm210, %v181
    %248 = vst.msk [vmem:[%s209 + $0x1e9] sm:$0xff] %vm210, %v182
    %249 = vst.msk [vmem:[%s209 + $0x1f9] sm:$0xff] %vm210, %v183
    %250 = vst.msk [vmem:[%s209 + $0x201] sm:$0xff] %vm210, %v184
    %251 = vst.msk [vmem:[%s209 + $0x211] sm:$0xff] %vm210, %v185
    %252 = vst.msk [vmem:[%s209 + $0x219] sm:$0xff] %vm210, %v186
    %253 = vst.msk [vmem:[%s209 + $0x229] sm:$0xff] %vm210, %v187
    %254 = vst.msk [vmem:[%s209 + $0x231] sm:$0xff] %vm210, %v188
    %255 = vst.msk [vmem:[%s209 + $0x241] sm:$0xff] %vm210, %v189
    %256 = vst.msk [vmem:[%s209 + $0x249] sm:$0xff] %vm210, %v190
    %257 = vst.msk [vmem:[%s209 + $0x259] sm:$0xff] %vm210, %v191
    %258 = vst.msk [vmem:[%s209 + $0x261] sm:$0xff] %vm210, %v192
    %259 = vst.msk [vmem:[%s209 + $0x271] sm:$0xff] %vm210, %v193
    %260 = vst.msk [vmem:[%s209 + $0x279] sm:$0xff] %vm210, %v194
    %261 = vst.msk [vmem:[%s209 + $0x289] sm:$0xff] %vm210, %v195
    %262 = vst.msk [vmem:[%s209 + $0x291] sm:$0xff] %vm210, %v196
    %263 = vst.msk [vmem:[%s209 + $0x2a1] sm:$0xff] %vm210, %v197
    %264 = vst.msk [vmem:[%s209 + $0x2a9] sm:$0xff] %vm210, %v198
    %265 = vst.msk [vmem:[%s209 + $0x2b9] sm:$0xff] %vm210, %v199
    %266 = vst.msk [vmem:[%s209 + $0x2c1] sm:$0xff] %vm210, %v200
    %267 = vst.msk [vmem:[%s209 + $0x2d1] sm:$0xff] %vm210, %v201
    %268 = vst.msk [vmem:[%s209 + $0x2d9] sm:$0xff] %vm210, %v202
    %269 = vst.msk [vmem:[%s209 + $0x2e9] sm:$0xff] %vm210, %v203
    %270 = vst.msk [vmem:[%s209 + $0x2f1] sm:$0xff] %vm210, %v204
    %271 = vst.msk [vmem:[%s209 + $0x301] sm:$0xff] %vm210, %v205
    %272 = vst.msk [vmem:[%s209 + $0x309] sm:$0xff] %vm210, %v206
    %273 = vst.msk [vmem:[%s209 + $0x319] sm:$0xff] %vm210, %v207
    %274 = vst.msk [vmem:[%s209 + $0x321] sm:$0xff] %vm210, %v208
    %v275 = vld [vmem:[#allocation2] sm:$0xff]
    %v276 = vld [vmem:[#allocation2 + $0x8] sm:$0xff]
    %v277 = vld [vmem:[#allocation2 + $0x18] sm:$0xff]
    %v278 = vld [vmem:[#allocation2 + $0x20] sm:$0xff]
    %v279 = vld [vmem:[#allocation2 + $0x30] sm:$0xff]
    %v280 = vld [vmem:[#allocation2 + $0x38] sm:$0xff]
    %v281 = vld [vmem:[#allocation2 + $0x48] sm:$0xff]
    %v282 = vld [vmem:[#allocation2 + $0x50] sm:$0xff]
    %v283 = vld [vmem:[#allocation2 + $0x60] sm:$0xff]
    %v284 = vld [vmem:[#allocation2 + $0x68] sm:$0xff]
    %v285 = vld [vmem:[#allocation2 + $0x78] sm:$0xff]
    %v286 = vld [vmem:[#allocation2 + $0x80] sm:$0xff]
    %v287 = vld [vmem:[#allocation2 + $0x90] sm:$0xff]
    %v288 = vld [vmem:[#allocation2 + $0x98] sm:$0xff]
    %v289 = vld [vmem:[#allocation2 + $0xa8] sm:$0xff]
    %v290 = vld [vmem:[#allocation2 + $0xb0] sm:$0xff]
    %v291 = vld [vmem:[#allocation2 + $0xc0] sm:$0xff]
    %v292 = vld [vmem:[#allocation2 + $0xc8] sm:$0xff]
    %v293 = vld [vmem:[#allocation2 + $0xd8] sm:$0xff]
    %v294 = vld [vmem:[#allocation2 + $0xe0] sm:$0xff]
    %v295 = vld [vmem:[#allocation2 + $0xf0] sm:$0xff]
    %v296 = vld [vmem:[#allocation2 + $0xf8] sm:$0xff]
    %v297 = vld [vmem:[#allocation2 + $0x108] sm:$0xff]
    %v298 = vld [vmem:[#allocation2 + $0x110] sm:$0xff]
    %v299 = vld [vmem:[#allocation2 + $0x120] sm:$0xff]
    %v300 = vld [vmem:[#allocation2 + $0x128] sm:$0xff]
    %v301 = vld [vmem:[#allocation2 + $0x138] sm:$0xff]
    %v302 = vld [vmem:[#allocation2 + $0x140] sm:$0xff]
    %v303 = vld [vmem:[#allocation2 + $0x150] sm:$0xff]
    %v304 = vld [vmem:[#allocation2 + $0x158] sm:$0xff]
    %v305 = vld [vmem:[#allocation2 + $0x168] sm:$0xff]
    %v306 = vld [vmem:[#allocation2 + $0x170] sm:$0xff]
    %v307 = vld [vmem:[#allocation2 + $0x1b0] sm:$0xff]
    %v308 = vld [vmem:[#allocation2 + $0x1b8] sm:$0xff]
    %v309 = vld [vmem:[#allocation2 + $0x1c8] sm:$0xff]
    %v310 = vld [vmem:[#allocation2 + $0x1d0] sm:$0xff]
    %v311 = vld [vmem:[#allocation2 + $0x1e0] sm:$0xff]
    %v312 = vld [vmem:[#allocation2 + $0x1e8] sm:$0xff]
    %v313 = vld [vmem:[#allocation2 + $0x1f8] sm:$0xff]
    %v314 = vld [vmem:[#allocation2 + $0x200] sm:$0xff]
    %v315 = vld [vmem:[#allocation2 + $0x210] sm:$0xff]
    %v316 = vld [vmem:[#allocation2 + $0x218] sm:$0xff]
    %v317 = vld [vmem:[#allocation2 + $0x228] sm:$0xff]
    %v318 = vld [vmem:[#allocation2 + $0x230] sm:$0xff]
    %v319 = vld [vmem:[#allocation2 + $0x240] sm:$0xff]
    %v320 = vld [vmem:[#allocation2 + $0x248] sm:$0xff]
    %v321 = vld [vmem:[#allocation2 + $0x258] sm:$0xff]
    %v322 = vld [vmem:[#allocation2 + $0x260] sm:$0xff]
    %v323 = vld [vmem:[#allocation2 + $0x270] sm:$0xff]
    %v324 = vld [vmem:[#allocation2 + $0x278] sm:$0xff]
    %v325 = vld [vmem:[#allocation2 + $0x288] sm:$0xff]
    %v326 = vld [vmem:[#allocation2 + $0x290] sm:$0xff]
    %v327 = vld [vmem:[#allocation2 + $0x2a0] sm:$0xff]
    %v328 = vld [vmem:[#allocation2 + $0x2a8] sm:$0xff]
    %v329 = vld [vmem:[#allocation2 + $0x2b8] sm:$0xff]
    %v330 = vld [vmem:[#allocation2 + $0x2c0] sm:$0xff]
    %v331 = vld [vmem:[#allocation2 + $0x2d0] sm:$0xff]
    %v332 = vld [vmem:[#allocation2 + $0x2d8] sm:$0xff]
    %v333 = vld [vmem:[#allocation2 + $0x2e8] sm:$0xff]
    %v334 = vld [vmem:[#allocation2 + $0x2f0] sm:$0xff]
    %v335 = vld [vmem:[#allocation2 + $0x300] sm:$0xff]
    %v336 = vld [vmem:[#allocation2 + $0x308] sm:$0xff]
    %v337 = vld [vmem:[#allocation2 + $0x318] sm:$0xff]
    %v338 = vld [vmem:[#allocation2 + $0x320] sm:$0xff]
    %v339 = vpack.c.bf16 %v275, %v275
    %v340 = vpack.c.bf16 %v276, %v276
    %v341 = vpack.c.bf16 %v277, %v277
    %v342 = vpack.c.bf16 %v278, %v278
    %v343 = vpack.c.bf16 %v279, %v279
    %v344 = vpack.c.bf16 %v280, %v280
    %v345 = vpack.c.bf16 %v281, %v281
    %v346 = vpack.c.bf16 %v282, %v282
    %v347 = vpack.c.bf16 %v283, %v283
    %v348 = vpack.c.bf16 %v284, %v284
    %v349 = vpack.c.bf16 %v285, %v285
    %v350 = vpack.c.bf16 %v286, %v286
    %v351 = vpack.c.bf16 %v287, %v287
    %v352 = vpack.c.bf16 %v288, %v288
    %v353 = vpack.c.bf16 %v289, %v289
    %v354 = vpack.c.bf16 %v290, %v290
    %v355 = vpack.c.bf16 %v291, %v291
    %v356 = vpack.c.bf16 %v292, %v292
    %v357 = vpack.c.bf16 %v293, %v293
    %v358 = vpack.c.bf16 %v294, %v294
    %v359 = vpack.c.bf16 %v295, %v295
    %v360 = vpack.c.bf16 %v296, %v296
    %v361 = vpack.c.bf16 %v297, %v297
    %v362 = vpack.c.bf16 %v298, %v298
    %v363 = vpack.c.bf16 %v299, %v299
    %v364 = vpack.c.bf16 %v300, %v300
    %v365 = vpack.c.bf16 %v301, %v301
    %v366 = vpack.c.bf16 %v302, %v302
    %v367 = vpack.c.bf16 %v303, %v303
    %v368 = vpack.c.bf16 %v304, %v304
    %v369 = vpack.c.bf16 %v305, %v305
    %v370 = vpack.c.bf16 %v306, %v306
    %v371 = vpack.c.bf16 %v307, %v307
    %v372 = vpack.c.bf16 %v308, %v308
    %v373 = vpack.c.bf16 %v309, %v309
    %v374 = vpack.c.bf16 %v310, %v310
    %v375 = vpack.c.bf16 %v311, %v311
    %v376 = vpack.c.bf16 %v312, %v312
    %v377 = vpack.c.bf16 %v313, %v313
    %v378 = vpack.c.bf16 %v314, %v314
    %v379 = vpack.c.bf16 %v315, %v315
    %v380 = vpack.c.bf16 %v316, %v316
    %v381 = vpack.c.bf16 %v317, %v317
    %v382 = vpack.c.bf16 %v318, %v318
    %v383 = vpack.c.bf16 %v319, %v319
    %v384 = vpack.c.bf16 %v320, %v320
    %v385 = vpack.c.bf16 %v321, %v321
    %v386 = vpack.c.bf16 %v322, %v322
    %v387 = vpack.c.bf16 %v323, %v323
    %v388 = vpack.c.bf16 %v324, %v324
    %v389 = vpack.c.bf16 %v325, %v325
    %v390 = vpack.c.bf16 %v326, %v326
    %v391 = vpack.c.bf16 %v327, %v327
    %v392 = vpack.c.bf16 %v328, %v328
    %v393 = vpack.c.bf16 %v329, %v329
    %v394 = vpack.c.bf16 %v330, %v330
    %v395 = vpack.c.bf16 %v331, %v331
    %v396 = vpack.c.bf16 %v332, %v332
    %v397 = vpack.c.bf16 %v333, %v333
    %v398 = vpack.c.bf16 %v334, %v334
    %v399 = vpack.c.bf16 %v335, %v335
    %v400 = vpack.c.bf16 %v336, %v336
    %v401 = vpack.c.bf16 %v337, %v337
    %v402 = vpack.c.bf16 %v338, %v338
    %403 = vst [vmem:[#allocation4] sm:$0xf] %v339
    %404 = vst [vmem:[#allocation4 + $0x24] sm:$0xf] %v340
    %405 = vst [vmem:[#allocation4 + $0x48] sm:$0xf] %v341
    %406 = vst [vmem:[#allocation4 + $0x6c] sm:$0xf] %v342
    %407 = vst [vmem:[#allocation4 + $0x90] sm:$0xf] %v343
    %408 = vst [vmem:[#allocation4 + $0xb4] sm:$0xf] %v344
    %409 = vst [vmem:[#allocation4 + $0xd8] sm:$0xf] %v345
    %410 = vst [vmem:[#allocation4 + $0xfc] sm:$0xf] %v346
    %411 = vst [vmem:[#allocation4 + $0x120] sm:$0xf] %v347
    %412 = vst [vmem:[#allocation4 + $0x144] sm:$0xf] %v348
    %413 = vst [vmem:[#allocation4 + $0x168] sm:$0xf] %v349
    %414 = vst [vmem:[#allocation4 + $0x18c] sm:$0xf] %v350
    %415 = vst [vmem:[#allocation4 + $0x1b0] sm:$0xf] %v351
    %416 = vst [vmem:[#allocation4 + $0x1d4] sm:$0xf] %v352
    %417 = vst [vmem:[#allocation4 + $0x1f8] sm:$0xf] %v353
    %418 = vst [vmem:[#allocation4 + $0x21c] sm:$0xf] %v354
    %419 = vst [vmem:[#allocation4 + $0x240] sm:$0xf] %v355
    %420 = vst [vmem:[#allocation4 + $0x264] sm:$0xf] %v356
    %421 = vst [vmem:[#allocation4 + $0x288] sm:$0xf] %v357
    %422 = vst [vmem:[#allocation4 + $0x2ac] sm:$0xf] %v358
    %423 = vst [vmem:[#allocation4 + $0x2d0] sm:$0xf] %v359
    %424 = vst [vmem:[#allocation4 + $0x2f4] sm:$0xf] %v360
    %425 = vst [vmem:[#allocation4 + $0x318] sm:$0xf] %v361
    %426 = vst [vmem:[#allocation4 + $0x33c] sm:$0xf] %v362
    %427 = vst [vmem:[#allocation4 + $0x360] sm:$0xf] %v363
    %428 = vst [vmem:[#allocation4 + $0x384] sm:$0xf] %v364
    %429 = vst [vmem:[#allocation4 + $0x3a8] sm:$0xf] %v365
    %430 = vst [vmem:[#allocation4 + $0x3cc] sm:$0xf] %v366
    %431 = vst [vmem:[#allocation4 + $0x3f0] sm:$0xf] %v367
    %432 = vst [vmem:[#allocation4 + $0x414] sm:$0xf] %v368
    %433 = vst [vmem:[#allocation4 + $0x438] sm:$0xf] %v369
    %434 = vst [vmem:[#allocation4 + $0x45c] sm:$0xf] %v370
    %435 = vst [vmem:[#allocation4 + $0x480] sm:$0xf] %v371
    %436 = vst [vmem:[#allocation4 + $0x4a4] sm:$0xf] %v372
    %437 = vst [vmem:[#allocation4 + $0x4c8] sm:$0xf] %v373
    %438 = vst [vmem:[#allocation4 + $0x4ec] sm:$0xf] %v374
    %439 = vst [vmem:[#allocation4 + $0x510] sm:$0xf] %v375
    %440 = vst [vmem:[#allocation4 + $0x534] sm:$0xf] %v376
    %441 = vst [vmem:[#allocation4 + $0x558] sm:$0xf] %v377
    %442 = vst [vmem:[#allocation4 + $0x57c] sm:$0xf] %v378
    %443 = vst [vmem:[#allocation4 + $0x5a0] sm:$0xf] %v379
    %444 = vst [vmem:[#allocation4 + $0x5c4] sm:$0xf] %v380
    %445 = vst [vmem:[#allocation4 + $0x5e8] sm:$0xf] %v381
    %446 = vst [vmem:[#allocation4 + $0x60c] sm:$0xf] %v382
    %447 = vst [vmem:[#allocation4 + $0x630] sm:$0xf] %v383
    %448 = vst [vmem:[#allocation4 + $0x654] sm:$0xf] %v384
    %449 = vst [vmem:[#allocation4 + $0x678] sm:$0xf] %v385
    %450 = vst [vmem:[#allocation4 + $0x69c] sm:$0xf] %v386
    %451 = vst [vmem:[#allocation4 + $0x6c0] sm:$0xf] %v387
    %452 = vst [vmem:[#allocation4 + $0x6e4] sm:$0xf] %v388
    %453 = vst [vmem:[#allocation4 + $0x708] sm:$0xf] %v389
    %454 = vst [vmem:[#allocation4 + $0x72c] sm:$0xf] %v390
    %455 = vst [vmem:[#allocation4 + $0x750] sm:$0xf] %v391
    %456 = vst [vmem:[#allocation4 + $0x774] sm:$0xf] %v392
    %457 = vst [vmem:[#allocation4 + $0x798] sm:$0xf] %v393
    %458 = vst [vmem:[#allocation4 + $0x7bc] sm:$0xf] %v394
    %459 = vst [vmem:[#allocation4 + $0x7e0] sm:$0xf] %v395
    %460 = vst [vmem:[#allocation4 + $0x804] sm:$0xf] %v396
    %461 = vst [vmem:[#allocation4 + $0x828] sm:$0xf] %v397
    %462 = vst [vmem:[#allocation4 + $0x84c] sm:$0xf] %v398
    %463 = vst [vmem:[#allocation4 + $0x870] sm:$0xf] %v399
    %464 = vst [vmem:[#allocation4 + $0x894] sm:$0xf] %v400
    %465 = vst [vmem:[#allocation4 + $0x8b8] sm:$0xf] %v401
    %466 = vst [vmem:[#allocation4 + $0x8dc] sm:$0xf] %v402
    %v467 = vld [vmem:[#allocation2 + $0x1] sm:$0xff]
    %v468 = vld [vmem:[#allocation2 + $0x9] sm:$0xff]
    %v469 = vld [vmem:[#allocation2 + $0x19] sm:$0xff]
    %v470 = vld [vmem:[#allocation2 + $0x21] sm:$0xff]
    %v471 = vld [vmem:[#allocation2 + $0x31] sm:$0xff]
    %v472 = vld [vmem:[#allocation2 + $0x39] sm:$0xff]
    %v473 = vld [vmem:[#allocation2 + $0x49] sm:$0xff]
    %v474 = vld [vmem:[#allocation2 + $0x51] sm:$0xff]
    %v475 = vld [vmem:[#allocation2 + $0x61] sm:$0xff]
    %v476 = vld [vmem:[#allocation2 + $0x69] sm:$0xff]
    %v477 = vld [vmem:[#allocation2 + $0x79] sm:$0xff]
    %v478 = vld [vmem:[#allocation2 + $0x81] sm:$0xff]
    %v479 = vld [vmem:[#allocation2 + $0x91] sm:$0xff]
    %v480 = vld [vmem:[#allocation2 + $0x99] sm:$0xff]
    %v481 = vld [vmem:[#allocation2 + $0xa9] sm:$0xff]
    %v482 = vld [vmem:[#allocation2 + $0xb1] sm:$0xff]
    %v483 = vld [vmem:[#allocation2 + $0xc1] sm:$0xff]
    %v484 = vld [vmem:[#allocation2 + $0xc9] sm:$0xff]
    %v485 = vld [vmem:[#allocation2 + $0xd9] sm:$0xff]
    %v486 = vld [vmem:[#allocation2 + $0xe1] sm:$0xff]
    %v487 = vld [vmem:[#allocation2 + $0xf1] sm:$0xff]
    %v488 = vld [vmem:[#allocation2 + $0xf9] sm:$0xff]
    %v489 = vld [vmem:[#allocation2 + $0x109] sm:$0xff]
    %v490 = vld [vmem:[#allocation2 + $0x111] sm:$0xff]
    %v491 = vld [vmem:[#allocation2 + $0x121] sm:$0xff]
    %v492 = vld [vmem:[#allocation2 + $0x129] sm:$0xff]
    %v493 = vld [vmem:[#allocation2 + $0x139] sm:$0xff]
    %v494 = vld [vmem:[#allocation2 + $0x141] sm:$0xff]
    %v495 = vld [vmem:[#allocation2 + $0x151] sm:$0xff]
    %v496 = vld [vmem:[#allocation2 + $0x159] sm:$0xff]
    %v497 = vld [vmem:[#allocation2 + $0x169] sm:$0xff]
    %v498 = vld [vmem:[#allocation2 + $0x171] sm:$0xff]
    %v499 = vld [vmem:[#allocation2 + $0x1b1] sm:$0xff]
    %v500 = vld [vmem:[#allocation2 + $0x1b9] sm:$0xff]
    %v501 = vld [vmem:[#allocation2 + $0x1c9] sm:$0xff]
    %v502 = vld [vmem:[#allocation2 + $0x1d1] sm:$0xff]
    %v503 = vld [vmem:[#allocation2 + $0x1e1] sm:$0xff]
    %v504 = vld [vmem:[#allocation2 + $0x1e9] sm:$0xff]
    %v505 = vld [vmem:[#allocation2 + $0x1f9] sm:$0xff]
    %v506 = vld [vmem:[#allocation2 + $0x201] sm:$0xff]
    %v507 = vld [vmem:[#allocation2 + $0x211] sm:$0xff]
    %v508 = vld [vmem:[#allocation2 + $0x219] sm:$0xff]
    %v509 = vld [vmem:[#allocation2 + $0x229] sm:$0xff]
    %v510 = vld [vmem:[#allocation2 + $0x231] sm:$0xff]
    %v511 = vld [vmem:[#allocation2 + $0x241] sm:$0xff]
    %v512 = vld [vmem:[#allocation2 + $0x249] sm:$0xff]
    %v513 = vld [vmem:[#allocation2 + $0x259] sm:$0xff]
    %v514 = vld [vmem:[#allocation2 + $0x261] sm:$0xff]
    %v515 = vld [vmem:[#allocation2 + $0x271] sm:$0xff]
    %v516 = vld [vmem:[#allocation2 + $0x279] sm:$0xff]
    %v517 = vld [vmem:[#allocation2 + $0x289] sm:$0xff]
    %v518 = vld [vmem:[#allocation2 + $0x291] sm:$0xff]
    %v519 = vld [vmem:[#allocation2 + $0x2a1] sm:$0xff]
    %v520 = vld [vmem:[#allocation2 + $0x2a9] sm:$0xff]
    %v521 = vld [vmem:[#allocation2 + $0x2b9] sm:$0xff]
    %v522 = vld [vmem:[#allocation2 + $0x2c1] sm:$0xff]
    %v523 = vld [vmem:[#allocation2 + $0x2d1] sm:$0xff]
    %v524 = vld [vmem:[#allocation2 + $0x2d9] sm:$0xff]
    %v525 = vld [vmem:[#allocation2 + $0x2e9] sm:$0xff]
    %v526 = vld [vmem:[#allocation2 + $0x2f1] sm:$0xff]
    %v527 = vld [vmem:[#allocation2 + $0x301] sm:$0xff]
    %v528 = vld [vmem:[#allocation2 + $0x309] sm:$0xff]
    %v529 = vld [vmem:[#allocation2 + $0x319] sm:$0xff]
    %v530 = vld [vmem:[#allocation2 + $0x321] sm:$0xff]
    %v531 = vpack.c.bf16 %v467, %v467
    %v532 = vpack.c.bf16 %v468, %v468
    %v533 = vpack.c.bf16 %v469, %v469
    %v534 = vpack.c.bf16 %v470, %v470
    %v535 = vpack.c.bf16 %v471, %v471
    %v536 = vpack.c.bf16 %v472, %v472
    %v537 = vpack.c.bf16 %v473, %v473
    %v538 = vpack.c.bf16 %v474, %v474
    %v539 = vpack.c.bf16 %v475, %v475
    %v540 = vpack.c.bf16 %v476, %v476
    %v541 = vpack.c.bf16 %v477, %v477
    %v542 = vpack.c.bf16 %v478, %v478
    %v543 = vpack.c.bf16 %v479, %v479
    %v544 = vpack.c.bf16 %v480, %v480
    %v545 = vpack.c.bf16 %v481, %v481
    %v546 = vpack.c.bf16 %v482, %v482
    %v547 = vpack.c.bf16 %v483, %v483
    %v548 = vpack.c.bf16 %v484, %v484
    %v549 = vpack.c.bf16 %v485, %v485
    %v550 = vpack.c.bf16 %v486, %v486
    %v551 = vpack.c.bf16 %v487, %v487
    %v552 = vpack.c.bf16 %v488, %v488
    %v553 = vpack.c.bf16 %v489, %v489
    %v554 = vpack.c.bf16 %v490, %v490
    %v555 = vpack.c.bf16 %v491, %v491
    %v556 = vpack.c.bf16 %v492, %v492
    %v557 = vpack.c.bf16 %v493, %v493
    %v558 = vpack.c.bf16 %v494, %v494
    %v559 = vpack.c.bf16 %v495, %v495
    %v560 = vpack.c.bf16 %v496, %v496
    %v561 = vpack.c.bf16 %v497, %v497
    %v562 = vpack.c.bf16 %v498, %v498
    %v563 = vpack.c.bf16 %v499, %v499
    %v564 = vpack.c.bf16 %v500, %v500
    %v565 = vpack.c.bf16 %v501, %v501
    %v566 = vpack.c.bf16 %v502, %v502
    %v567 = vpack.c.bf16 %v503, %v503
    %v568 = vpack.c.bf16 %v504, %v504
    %v569 = vpack.c.bf16 %v505, %v505
    %v570 = vpack.c.bf16 %v506, %v506
    %v571 = vpack.c.bf16 %v507, %v507
    %v572 = vpack.c.bf16 %v508, %v508
    %v573 = vpack.c.bf16 %v509, %v509
    %v574 = vpack.c.bf16 %v510, %v510
    %v575 = vpack.c.bf16 %v511, %v511
    %v576 = vpack.c.bf16 %v512, %v512
    %v577 = vpack.c.bf16 %v513, %v513
    %v578 = vpack.c.bf16 %v514, %v514
    %v579 = vpack.c.bf16 %v515, %v515
    %v580 = vpack.c.bf16 %v516, %v516
    %v581 = vpack.c.bf16 %v517, %v517
    %v582 = vpack.c.bf16 %v518, %v518
    %v583 = vpack.c.bf16 %v519, %v519
    %v584 = vpack.c.bf16 %v520, %v520
    %v585 = vpack.c.bf16 %v521, %v521
    %v586 = vpack.c.bf16 %v522, %v522
    %v587 = vpack.c.bf16 %v523, %v523
    %v588 = vpack.c.bf16 %v524, %v524
    %v589 = vpack.c.bf16 %v525, %v525
    %v590 = vpack.c.bf16 %v526, %v526
    %v591 = vpack.c.bf16 %v527, %v527
    %v592 = vpack.c.bf16 %v528, %v528
    %v593 = vpack.c.bf16 %v529, %v529
    %v594 = vpack.c.bf16 %v530, %v530
    %595 = vst [vmem:[#allocation4 + $0x4] sm:$0xf] %v531
    %596 = vst [vmem:[#allocation4 + $0x28] sm:$0xf] %v532
    %597 = vst [vmem:[#allocation4 + $0x4c] sm:$0xf] %v533
    %598 = vst [vmem:[#allocation4 + $0x70] sm:$0xf] %v534
    %599 = vst [vmem:[#allocation4 + $0x94] sm:$0xf] %v535
    %600 = vst [vmem:[#allocation4 + $0xb8] sm:$0xf] %v536
    %601 = vst [vmem:[#allocation4 + $0xdc] sm:$0xf] %v537
    %602 = vst [vmem:[#allocation4 + $0x100] sm:$0xf] %v538
    %603 = vst [vmem:[#allocation4 + $0x124] sm:$0xf] %v539
    %604 = vst [vmem:[#allocation4 + $0x148] sm:$0xf] %v540
    %605 = vst [vmem:[#allocation4 + $0x16c] sm:$0xf] %v541
    %606 = vst [vmem:[#allocation4 + $0x190] sm:$0xf] %v542
    %607 = vst [vmem:[#allocation4 + $0x1b4] sm:$0xf] %v543
    %608 = vst [vmem:[#allocation4 + $0x1d8] sm:$0xf] %v544
    %609 = vst [vmem:[#allocation4 + $0x1fc] sm:$0xf] %v545
    %610 = vst [vmem:[#allocation4 + $0x220] sm:$0xf] %v546
    %611 = vst [vmem:[#allocation4 + $0x244] sm:$0xf] %v547
    %612 = vst [vmem:[#allocation4 + $0x268] sm:$0xf] %v548
    %613 = vst [vmem:[#allocation4 + $0x28c] sm:$0xf] %v549
    %614 = vst [vmem:[#allocation4 + $0x2b0] sm:$0xf] %v550
    %615 = vst [vmem:[#allocation4 + $0x2d4] sm:$0xf] %v551
    %616 = vst [vmem:[#allocation4 + $0x2f8] sm:$0xf] %v552
    %617 = vst [vmem:[#allocation4 + $0x31c] sm:$0xf] %v553
    %618 = vst [vmem:[#allocation4 + $0x340] sm:$0xf] %v554
    %619 = vst [vmem:[#allocation4 + $0x364] sm:$0xf] %v555
    %620 = vst [vmem:[#allocation4 + $0x388] sm:$0xf] %v556
    %621 = vst [vmem:[#allocation4 + $0x3ac] sm:$0xf] %v557
    %622 = vst [vmem:[#allocation4 + $0x3d0] sm:$0xf] %v558
    %623 = vst [vmem:[#allocation4 + $0x3f4] sm:$0xf] %v559
    %624 = vst [vmem:[#allocation4 + $0x418] sm:$0xf] %v560
    %625 = vst [vmem:[#allocation4 + $0x43c] sm:$0xf] %v561
    %626 = vst [vmem:[#allocation4 + $0x460] sm:$0xf] %v562
    %627 = vst [vmem:[#allocation4 + $0x484] sm:$0xf] %v563
    %628 = vst [vmem:[#allocation4 + $0x4a8] sm:$0xf] %v564
    %629 = vst [vmem:[#allocation4 + $0x4cc] sm:$0xf] %v565
    %630 = vst [vmem:[#allocation4 + $0x4f0] sm:$0xf] %v566
    %631 = vst [vmem:[#allocation4 + $0x514] sm:$0xf] %v567
    %632 = vst [vmem:[#allocation4 + $0x538] sm:$0xf] %v568
    %633 = vst [vmem:[#allocation4 + $0x55c] sm:$0xf] %v569
    %634 = vst [vmem:[#allocation4 + $0x580] sm:$0xf] %v570
    %635 = vst [vmem:[#allocation4 + $0x5a4] sm:$0xf] %v571
    %636 = vst [vmem:[#allocation4 + $0x5c8] sm:$0xf] %v572
    %637 = vst [vmem:[#allocation4 + $0x5ec] sm:$0xf] %v573
    %638 = vst [vmem:[#allocation4 + $0x610] sm:$0xf] %v574
    %639 = vst [vmem:[#allocation4 + $0x634] sm:$0xf] %v575
    %640 = vst [vmem:[#allocation4 + $0x658] sm:$0xf] %v576
    %641 = vst [vmem:[#allocation4 + $0x67c] sm:$0xf] %v577
    %642 = vst [vmem:[#allocation4 + $0x6a0] sm:$0xf] %v578
    %643 = vst [vmem:[#allocation4 + $0x6c4] sm:$0xf] %v579
    %644 = vst [vmem:[#allocation4 + $0x6e8] sm:$0xf] %v580
    %645 = vst [vmem:[#allocation4 + $0x70c] sm:$0xf] %v581
    %646 = vst [vmem:[#allocation4 + $0x730] sm:$0xf] %v582
    %647 = vst [vmem:[#allocation4 + $0x754] sm:$0xf] %v583
    %648 = vst [vmem:[#allocation4 + $0x778] sm:$0xf] %v584
    %649 = vst [vmem:[#allocation4 + $0x79c] sm:$0xf] %v585
    %650 = vst [vmem:[#allocation4 + $0x7c0] sm:$0xf] %v586
    %651 = vst [vmem:[#allocation4 + $0x7e4] sm:$0xf] %v587
    %652 = vst [vmem:[#allocation4 + $0x808] sm:$0xf] %v588
    %653 = vst [vmem:[#allocation4 + $0x82c] sm:$0xf] %v589
    %654 = vst [vmem:[#allocation4 + $0x850] sm:$0xf] %v590
    %655 = vst [vmem:[#allocation4 + $0x874] sm:$0xf] %v591
    %656 = vst [vmem:[#allocation4 + $0x898] sm:$0xf] %v592
    %657 = vst [vmem:[#allocation4 + $0x8bc] sm:$0xf] %v593
    %658 = vst [vmem:[#allocation4 + $0x8e0] sm:$0xf] %v594
    %v659 = vld [vmem:[#allocation2 + $0x2] sm:$0xff]
    %v660 = vld [vmem:[#allocation2 + $0xa] sm:$0xff]
    %v661 = vld [vmem:[#allocation2 + $0x1a] sm:$0xff]
    %v662 = vld [vmem:[#allocation2 + $0x22] sm:$0xff]
    %v663 = vld [vmem:[#allocation2 + $0x32] sm:$0xff]
    %v664 = vld [vmem:[#allocation2 + $0x3a] sm:$0xff]
    %v665 = vld [vmem:[#allocation2 + $0x4a] sm:$0xff]
    %v666 = vld [vmem:[#allocation2 + $0x52] sm:$0xff]
    %v667 = vld [vmem:[#allocation2 + $0x62] sm:$0xff]
    %v668 = vld [vmem:[#allocation2 + $0x6a] sm:$0xff]
    %v669 = vld [vmem:[#allocation2 + $0x7a] sm:$0xff]
    %v670 = vld [vmem:[#allocation2 + $0x82] sm:$0xff]
    %v671 = vld [vmem:[#allocation2 + $0x92] sm:$0xff]
    %v672 = vld [vmem:[#allocation2 + $0x9a] sm:$0xff]
    %v673 = vld [vmem:[#allocation2 + $0xaa] sm:$0xff]
    %v674 = vld [vmem:[#allocation2 + $0xb2] sm:$0xff]
    %v675 = vld [vmem:[#allocation2 + $0xc2] sm:$0xff]
    %v676 = vld [vmem:[#allocation2 + $0xca] sm:$0xff]
    %v677 = vld [vmem:[#allocation2 + $0xda] sm:$0xff]
    %v678 = vld [vmem:[#allocation2 + $0xe2] sm:$0xff]
    %v679 = vld [vmem:[#allocation2 + $0xf2] sm:$0xff]
    %v680 = vld [vmem:[#allocation2 + $0xfa] sm:$0xff]
    %v681 = vld [vmem:[#allocation2 + $0x10a] sm:$0xff]
    %v682 = vld [vmem:[#allocation2 + $0x112] sm:$0xff]
    %v683 = vld [vmem:[#allocation2 + $0x122] sm:$0xff]
    %v684 = vld [vmem:[#allocation2 + $0x12a] sm:$0xff]
    %v685 = vld [vmem:[#allocation2 + $0x13a] sm:$0xff]
    %v686 = vld [vmem:[#allocation2 + $0x142] sm:$0xff]
    %v687 = vld [vmem:[#allocation2 + $0x152] sm:$0xff]
    %v688 = vld [vmem:[#allocation2 + $0x15a] sm:$0xff]
    %v689 = vld [vmem:[#allocation2 + $0x16a] sm:$0xff]
    %v690 = vld [vmem:[#allocation2 + $0x172] sm:$0xff]
    %v691 = vld [vmem:[#allocation2 + $0x1b2] sm:$0xff]
    %v692 = vld [vmem:[#allocation2 + $0x1ba] sm:$0xff]
    %v693 = vld [vmem:[#allocation2 + $0x1ca] sm:$0xff]
    %v694 = vld [vmem:[#allocation2 + $0x1d2] sm:$0xff]
    %v695 = vld [vmem:[#allocation2 + $0x1e2] sm:$0xff]
    %v696 = vld [vmem:[#allocation2 + $0x1ea] sm:$0xff]
    %v697 = vld [vmem:[#allocation2 + $0x1fa] sm:$0xff]
    %v698 = vld [vmem:[#allocation2 + $0x202] sm:$0xff]
    %v699 = vld [vmem:[#allocation2 + $0x212] sm:$0xff]
    %v700 = vld [vmem:[#allocation2 + $0x21a] sm:$0xff]
    %v701 = vld [vmem:[#allocation2 + $0x22a] sm:$0xff]
    %v702 = vld [vmem:[#allocation2 + $0x232] sm:$0xff]
    %v703 = vld [vmem:[#allocation2 + $0x242] sm:$0xff]
    %v704 = vld [vmem:[#allocation2 + $0x24a] sm:$0xff]
    %v705 = vld [vmem:[#allocation2 + $0x25a] sm:$0xff]
    %v706 = vld [vmem:[#allocation2 + $0x262] sm:$0xff]
    %v707 = vld [vmem:[#allocation2 + $0x272] sm:$0xff]
    %v708 = vld [vmem:[#allocation2 + $0x27a] sm:$0xff]
    %v709 = vld [vmem:[#allocation2 + $0x28a] sm:$0xff]
    %v710 = vld [vmem:[#allocation2 + $0x292] sm:$0xff]
    %v711 = vld [vmem:[#allocation2 + $0x2a2] sm:$0xff]
    %v712 = vld [vmem:[#allocation2 + $0x2aa] sm:$0xff]
    %v713 = vld [vmem:[#allocation2 + $0x2ba] sm:$0xff]
    %v714 = vld [vmem:[#allocation2 + $0x2c2] sm:$0xff]
    %v715 = vld [vmem:[#allocation2 + $0x2d2] sm:$0xff]
    %v716 = vld [vmem:[#allocation2 + $0x2da] sm:$0xff]
    %v717 = vld [vmem:[#allocation2 + $0x2ea] sm:$0xff]
    %v718 = vld [vmem:[#allocation2 + $0x2f2] sm:$0xff]
    %v719 = vld [vmem:[#allocation2 + $0x302] sm:$0xff]
    %v720 = vld [vmem:[#allocation2 + $0x30a] sm:$0xff]
    %v721 = vld [vmem:[#allocation2 + $0x31a] sm:$0xff]
    %v722 = vld [vmem:[#allocation2 + $0x322] sm:$0xff]
    %v723 = vpack.c.bf16 %v659, %v659
    %v724 = vpack.c.bf16 %v660, %v660
    %v725 = vpack.c.bf16 %v661, %v661
    %v726 = vpack.c.bf16 %v662, %v662
    %v727 = vpack.c.bf16 %v663, %v663
    %v728 = vpack.c.bf16 %v664, %v664
    %v729 = vpack.c.bf16 %v665, %v665
    %v730 = vpack.c.bf16 %v666, %v666
    %v731 = vpack.c.bf16 %v667, %v667
    %v732 = vpack.c.bf16 %v668, %v668
    %v733 = vpack.c.bf16 %v669, %v669
    %v734 = vpack.c.bf16 %v670, %v670
    %v735 = vpack.c.bf16 %v671, %v671
    %v736 = vpack.c.bf16 %v672, %v672
    %v737 = vpack.c.bf16 %v673, %v673
    %v738 = vpack.c.bf16 %v674, %v674
    %v739 = vpack.c.bf16 %v675, %v675
    %v740 = vpack.c.bf16 %v676, %v676
    %v741 = vpack.c.bf16 %v677, %v677
    %v742 = vpack.c.bf16 %v678, %v678
    %v743 = vpack.c.bf16 %v679, %v679
    %v744 = vpack.c.bf16 %v680, %v680
    %v745 = vpack.c.bf16 %v681, %v681
    %v746 = vpack.c.bf16 %v682, %v682
    %v747 = vpack.c.bf16 %v683, %v683
    %v748 = vpack.c.bf16 %v684, %v684
    %v749 = vpack.c.bf16 %v685, %v685
    %v750 = vpack.c.bf16 %v686, %v686
    %v751 = vpack.c.bf16 %v687, %v687
    %v752 = vpack.c.bf16 %v688, %v688
    %v753 = vpack.c.bf16 %v689, %v689
    %v754 = vpack.c.bf16 %v690, %v690
    %v755 = vpack.c.bf16 %v691, %v691
    %v756 = vpack.c.bf16 %v692, %v692
    %v757 = vpack.c.bf16 %v693, %v693
    %v758 = vpack.c.bf16 %v694, %v694
    %v759 = vpack.c.bf16 %v695, %v695
    %v760 = vpack.c.bf16 %v696, %v696
    %v761 = vpack.c.bf16 %v697, %v697
    %v762 = vpack.c.bf16 %v698, %v698
    %v763 = vpack.c.bf16 %v699, %v699
    %v764 = vpack.c.bf16 %v700, %v700
    %v765 = vpack.c.bf16 %v701, %v701
    %v766 = vpack.c.bf16 %v702, %v702
    %v767 = vpack.c.bf16 %v703, %v703
    %v768 = vpack.c.bf16 %v704, %v704
    %v769 = vpack.c.bf16 %v705, %v705
    %v770 = vpack.c.bf16 %v706, %v706
    %v771 = vpack.c.bf16 %v707, %v707
    %v772 = vpack.c.bf16 %v708, %v708
    %v773 = vpack.c.bf16 %v709, %v709
    %v774 = vpack.c.bf16 %v710, %v710
    %v775 = vpack.c.bf16 %v711, %v711
    %v776 = vpack.c.bf16 %v712, %v712
    %v777 = vpack.c.bf16 %v713, %v713
    %v778 = vpack.c.bf16 %v714, %v714
    %v779 = vpack.c.bf16 %v715, %v715
    %v780 = vpack.c.bf16 %v716, %v716
    %v781 = vpack.c.bf16 %v717, %v717
    %v782 = vpack.c.bf16 %v718, %v718
    %v783 = vpack.c.bf16 %v719, %v719
    %v784 = vpack.c.bf16 %v720, %v720
    %v785 = vpack.c.bf16 %v721, %v721
    %v786 = vpack.c.bf16 %v722, %v722
    %787 = vst [vmem:[#allocation4 + $0x8] sm:$0xf] %v723
    %788 = vst [vmem:[#allocation4 + $0x2c] sm:$0xf] %v724
    %789 = vst [vmem:[#allocation4 + $0x50] sm:$0xf] %v725
    %790 = vst [vmem:[#allocation4 + $0x74] sm:$0xf] %v726
    %791 = vst [vmem:[#allocation4 + $0x98] sm:$0xf] %v727
    %792 = vst [vmem:[#allocation4 + $0xbc] sm:$0xf] %v728
    %793 = vst [vmem:[#allocation4 + $0xe0] sm:$0xf] %v729
    %794 = vst [vmem:[#allocation4 + $0x104] sm:$0xf] %v730
    %795 = vst [vmem:[#allocation4 + $0x128] sm:$0xf] %v731
    %796 = vst [vmem:[#allocation4 + $0x14c] sm:$0xf] %v732
    %797 = vst [vmem:[#allocation4 + $0x170] sm:$0xf] %v733
    %798 = vst [vmem:[#allocation4 + $0x194] sm:$0xf] %v734
    %799 = vst [vmem:[#allocation4 + $0x1b8] sm:$0xf] %v735
    %800 = vst [vmem:[#allocation4 + $0x1dc] sm:$0xf] %v736
    %801 = vst [vmem:[#allocation4 + $0x200] sm:$0xf] %v737
    %802 = vst [vmem:[#allocation4 + $0x224] sm:$0xf] %v738
    %803 = vst [vmem:[#allocation4 + $0x248] sm:$0xf] %v739
    %804 = vst [vmem:[#allocation4 + $0x26c] sm:$0xf] %v740
    %805 = vst [vmem:[#allocation4 + $0x290] sm:$0xf] %v741
    %806 = vst [vmem:[#allocation4 + $0x2b4] sm:$0xf] %v742
    %807 = vst [vmem:[#allocation4 + $0x2d8] sm:$0xf] %v743
    %808 = vst [vmem:[#allocation4 + $0x2fc] sm:$0xf] %v744
    %809 = vst [vmem:[#allocation4 + $0x320] sm:$0xf] %v745
    %810 = vst [vmem:[#allocation4 + $0x344] sm:$0xf] %v746
    %811 = vst [vmem:[#allocation4 + $0x368] sm:$0xf] %v747
    %812 = vst [vmem:[#allocation4 + $0x38c] sm:$0xf] %v748
    %813 = vst [vmem:[#allocation4 + $0x3b0] sm:$0xf] %v749
    %814 = vst [vmem:[#allocation4 + $0x3d4] sm:$0xf] %v750
    %815 = vst [vmem:[#allocation4 + $0x3f8] sm:$0xf] %v751
    %816 = vst [vmem:[#allocation4 + $0x41c] sm:$0xf] %v752
    %817 = vst [vmem:[#allocation4 + $0x440] sm:$0xf] %v753
    %818 = vst [vmem:[#allocation4 + $0x464] sm:$0xf] %v754
    %819 = vst [vmem:[#allocation4 + $0x488] sm:$0xf] %v755
    %820 = vst [vmem:[#allocation4 + $0x4ac] sm:$0xf] %v756
    %821 = vst [vmem:[#allocation4 + $0x4d0] sm:$0xf] %v757
    %822 = vst [vmem:[#allocation4 + $0x4f4] sm:$0xf] %v758
    %823 = vst [vmem:[#allocation4 + $0x518] sm:$0xf] %v759
    %824 = vst [vmem:[#allocation4 + $0x53c] sm:$0xf] %v760
    %825 = vst [vmem:[#allocation4 + $0x560] sm:$0xf] %v761
    %826 = vst [vmem:[#allocation4 + $0x584] sm:$0xf] %v762
    %827 = vst [vmem:[#allocation4 + $0x5a8] sm:$0xf] %v763
    %828 = vst [vmem:[#allocation4 + $0x5cc] sm:$0xf] %v764
    %829 = vst [vmem:[#allocation4 + $0x5f0] sm:$0xf] %v765
    %830 = vst [vmem:[#allocation4 + $0x614] sm:$0xf] %v766
    %831 = vst [vmem:[#allocation4 + $0x638] sm:$0xf] %v767
    %832 = vst [vmem:[#allocation4 + $0x65c] sm:$0xf] %v768
    %833 = vst [vmem:[#allocation4 + $0x680] sm:$0xf] %v769
    %834 = vst [vmem:[#allocation4 + $0x6a4] sm:$0xf] %v770
    %835 = vst [vmem:[#allocation4 + $0x6c8] sm:$0xf] %v771
    %836 = vst [vmem:[#allocation4 + $0x6ec] sm:$0xf] %v772
    %837 = vst [vmem:[#allocation4 + $0x710] sm:$0xf] %v773
    %838 = vst [vmem:[#allocation4 + $0x734] sm:$0xf] %v774
    %839 = vst [vmem:[#allocation4 + $0x758] sm:$0xf] %v775
    %840 = vst [vmem:[#allocation4 + $0x77c] sm:$0xf] %v776
    %841 = vst [vmem:[#allocation4 + $0x7a0] sm:$0xf] %v777
    %842 = vst [vmem:[#allocation4 + $0x7c4] sm:$0xf] %v778
    %843 = vst [vmem:[#allocation4 + $0x7e8] sm:$0xf] %v779
    %844 = vst [vmem:[#allocation4 + $0x80c] sm:$0xf] %v780
    %845 = vst [vmem:[#allocation4 + $0x830] sm:$0xf] %v781
    %846 = vst [vmem:[#allocation4 + $0x854] sm:$0xf] %v782
    %847 = vst [vmem:[#allocation4 + $0x878] sm:$0xf] %v783
    %848 = vst [vmem:[#allocation4 + $0x89c] sm:$0xf] %v784
    %849 = vst [vmem:[#allocation4 + $0x8c0] sm:$0xf] %v785
    %850 = vst [vmem:[#allocation4 + $0x8e4] sm:$0xf] %v786
    %v851 = vld [vmem:[%s209] sm:$0xff]
    %v852 = vld [vmem:[%s209 + $0x8] sm:$0xff]
    %v853 = vld [vmem:[%s209 + $0x18] sm:$0xff]
    %v854 = vld [vmem:[%s209 + $0x20] sm:$0xff]
    %v855 = vld [vmem:[%s209 + $0x30] sm:$0xff]
    %v856 = vld [vmem:[%s209 + $0x38] sm:$0xff]
    %v857 = vld [vmem:[%s209 + $0x48] sm:$0xff]
    %v858 = vld [vmem:[%s209 + $0x50] sm:$0xff]
    %v859 = vld [vmem:[%s209 + $0x60] sm:$0xff]
    %v860 = vld [vmem:[%s209 + $0x68] sm:$0xff]
    %v861 = vld [vmem:[%s209 + $0x78] sm:$0xff]
    %v862 = vld [vmem:[%s209 + $0x80] sm:$0xff]
    %v863 = vld [vmem:[%s209 + $0x90] sm:$0xff]
    %v864 = vld [vmem:[%s209 + $0x98] sm:$0xff]
    %v865 = vld [vmem:[%s209 + $0xa8] sm:$0xff]
    %v866 = vld [vmem:[%s209 + $0xb0] sm:$0xff]
    %v867 = vld [vmem:[%s209 + $0xc0] sm:$0xff]
    %v868 = vld [vmem:[%s209 + $0xc8] sm:$0xff]
    %v869 = vld [vmem:[%s209 + $0xd8] sm:$0xff]
    %v870 = vld [vmem:[%s209 + $0xe0] sm:$0xff]
    %v871 = vld [vmem:[%s209 + $0xf0] sm:$0xff]
    %v872 = vld [vmem:[%s209 + $0xf8] sm:$0xff]
    %v873 = vld [vmem:[%s209 + $0x108] sm:$0xff]
    %v874 = vld [vmem:[%s209 + $0x110] sm:$0xff]
    %v875 = vld [vmem:[%s209 + $0x120] sm:$0xff]
    %v876 = vld [vmem:[%s209 + $0x128] sm:$0xff]
    %v877 = vld [vmem:[%s209 + $0x138] sm:$0xff]
    %v878 = vld [vmem:[%s209 + $0x140] sm:$0xff]
    %v879 = vld [vmem:[%s209 + $0x150] sm:$0xff]
    %v880 = vld [vmem:[%s209 + $0x158] sm:$0xff]
    %v881 = vld [vmem:[%s209 + $0x168] sm:$0xff]
    %v882 = vld [vmem:[%s209 + $0x170] sm:$0xff]
    %v883 = vld [vmem:[%s209 + $0x1b0] sm:$0xff]
    %v884 = vld [vmem:[%s209 + $0x1b8] sm:$0xff]
    %v885 = vld [vmem:[%s209 + $0x1c8] sm:$0xff]
    %v886 = vld [vmem:[%s209 + $0x1d0] sm:$0xff]
    %v887 = vld [vmem:[%s209 + $0x1e0] sm:$0xff]
    %v888 = vld [vmem:[%s209 + $0x1e8] sm:$0xff]
    %v889 = vld [vmem:[%s209 + $0x1f8] sm:$0xff]
    %v890 = vld [vmem:[%s209 + $0x200] sm:$0xff]
    %v891 = vld [vmem:[%s209 + $0x210] sm:$0xff]
    %v892 = vld [vmem:[%s209 + $0x218] sm:$0xff]
    %v893 = vld [vmem:[%s209 + $0x228] sm:$0xff]
    %v894 = vld [vmem:[%s209 + $0x230] sm:$0xff]
    %v895 = vld [vmem:[%s209 + $0x240] sm:$0xff]
    %v896 = vld [vmem:[%s209 + $0x248] sm:$0xff]
    %v897 = vld [vmem:[%s209 + $0x258] sm:$0xff]
    %v898 = vld [vmem:[%s209 + $0x260] sm:$0xff]
    %v899 = vld [vmem:[%s209 + $0x270] sm:$0xff]
    %v900 = vld [vmem:[%s209 + $0x278] sm:$0xff]
    %v901 = vld [vmem:[%s209 + $0x288] sm:$0xff]
    %v902 = vld [vmem:[%s209 + $0x290] sm:$0xff]
    %v903 = vld [vmem:[%s209 + $0x2a0] sm:$0xff]
    %v904 = vld [vmem:[%s209 + $0x2a8] sm:$0xff]
    %v905 = vld [vmem:[%s209 + $0x2b8] sm:$0xff]
    %v906 = vld [vmem:[%s209 + $0x2c0] sm:$0xff]
    %v907 = vld [vmem:[%s209 + $0x2d0] sm:$0xff]
    %v908 = vld [vmem:[%s209 + $0x2d8] sm:$0xff]
    %v909 = vld [vmem:[%s209 + $0x2e8] sm:$0xff]
    %v910 = vld [vmem:[%s209 + $0x2f0] sm:$0xff]
    %v911 = vld [vmem:[%s209 + $0x300] sm:$0xff]
    %v912 = vld [vmem:[%s209 + $0x308] sm:$0xff]
    %v913 = vld [vmem:[%s209 + $0x318] sm:$0xff]
    %v914 = vld [vmem:[%s209 + $0x320] sm:$0xff]
    %v915 = vpack.c.bf16 %v851, %v851
    %v916 = vpack.c.bf16 %v852, %v852
    %v917 = vpack.c.bf16 %v853, %v853
    %v918 = vpack.c.bf16 %v854, %v854
    %v919 = vpack.c.bf16 %v855, %v855
    %v920 = vpack.c.bf16 %v856, %v856
    %v921 = vpack.c.bf16 %v857, %v857
    %v922 = vpack.c.bf16 %v858, %v858
    %v923 = vpack.c.bf16 %v859, %v859
    %v924 = vpack.c.bf16 %v860, %v860
    %v925 = vpack.c.bf16 %v861, %v861
    %v926 = vpack.c.bf16 %v862, %v862
    %v927 = vpack.c.bf16 %v863, %v863
    %v928 = vpack.c.bf16 %v864, %v864
    %v929 = vpack.c.bf16 %v865, %v865
    %v930 = vpack.c.bf16 %v866, %v866
    %v931 = vpack.c.bf16 %v867, %v867
    %v932 = vpack.c.bf16 %v868, %v868
    %v933 = vpack.c.bf16 %v869, %v869
    %v934 = vpack.c.bf16 %v870, %v870
    %v935 = vpack.c.bf16 %v871, %v871
    %v936 = vpack.c.bf16 %v872, %v872
    %v937 = vpack.c.bf16 %v873, %v873
    %v938 = vpack.c.bf16 %v874, %v874
    %v939 = vpack.c.bf16 %v875, %v875
    %v940 = vpack.c.bf16 %v876, %v876
    %v941 = vpack.c.bf16 %v877, %v877
    %v942 = vpack.c.bf16 %v878, %v878
    %v943 = vpack.c.bf16 %v879, %v879
    %v944 = vpack.c.bf16 %v880, %v880
    %v945 = vpack.c.bf16 %v881, %v881
    %v946 = vpack.c.bf16 %v882, %v882
    %v947 = vpack.c.bf16 %v883, %v883
    %v948 = vpack.c.bf16 %v884, %v884
    %v949 = vpack.c.bf16 %v885, %v885
    %v950 = vpack.c.bf16 %v886, %v886
    %v951 = vpack.c.bf16 %v887, %v887
    %v952 = vpack.c.bf16 %v888, %v888
    %v953 = vpack.c.bf16 %v889, %v889
    %v954 = vpack.c.bf16 %v890, %v890
    %v955 = vpack.c.bf16 %v891, %v891
    %v956 = vpack.c.bf16 %v892, %v892
    %v957 = vpack.c.bf16 %v893, %v893
    %v958 = vpack.c.bf16 %v894, %v894
    %v959 = vpack.c.bf16 %v895, %v895
    %v960 = vpack.c.bf16 %v896, %v896
    %v961 = vpack.c.bf16 %v897, %v897
    %v962 = vpack.c.bf16 %v898, %v898
    %v963 = vpack.c.bf16 %v899, %v899
    %v964 = vpack.c.bf16 %v900, %v900
    %v965 = vpack.c.bf16 %v901, %v901
    %v966 = vpack.c.bf16 %v902, %v902
    %v967 = vpack.c.bf16 %v903, %v903
    %v968 = vpack.c.bf16 %v904, %v904
    %v969 = vpack.c.bf16 %v905, %v905
    %v970 = vpack.c.bf16 %v906, %v906
    %v971 = vpack.c.bf16 %v907, %v907
    %v972 = vpack.c.bf16 %v908, %v908
    %v973 = vpack.c.bf16 %v909, %v909
    %v974 = vpack.c.bf16 %v910, %v910
    %v975 = vpack.c.bf16 %v911, %v911
    %v976 = vpack.c.bf16 %v912, %v912
    %v977 = vpack.c.bf16 %v913, %v913
    %v978 = vpack.c.bf16 %v914, %v914
    %979 = vst [vmem:[#allocation4 + $0xc] sm:$0xf] %v915
    %980 = vst [vmem:[#allocation4 + $0x30] sm:$0xf] %v916
    %981 = vst [vmem:[#allocation4 + $0x54] sm:$0xf] %v917
    %982 = vst [vmem:[#allocation4 + $0x78] sm:$0xf] %v918
    %983 = vst [vmem:[#allocation4 + $0x9c] sm:$0xf] %v919
    %984 = vst [vmem:[#allocation4 + $0xc0] sm:$0xf] %v920
    %985 = vst [vmem:[#allocation4 + $0xe4] sm:$0xf] %v921
    %986 = vst [vmem:[#allocation4 + $0x108] sm:$0xf] %v922
    %987 = vst [vmem:[#allocation4 + $0x12c] sm:$0xf] %v923
    %988 = vst [vmem:[#allocation4 + $0x150] sm:$0xf] %v924
    %989 = vst [vmem:[#allocation4 + $0x174] sm:$0xf] %v925
    %990 = vst [vmem:[#allocation4 + $0x198] sm:$0xf] %v926
    %991 = vst [vmem:[#allocation4 + $0x1bc] sm:$0xf] %v927
    %992 = vst [vmem:[#allocation4 + $0x1e0] sm:$0xf] %v928
    %993 = vst [vmem:[#allocation4 + $0x204] sm:$0xf] %v929
    %994 = vst [vmem:[#allocation4 + $0x228] sm:$0xf] %v930
    %995 = vst [vmem:[#allocation4 + $0x24c] sm:$0xf] %v931
    %996 = vst [vmem:[#allocation4 + $0x270] sm:$0xf] %v932
    %997 = vst [vmem:[#allocation4 + $0x294] sm:$0xf] %v933
    %998 = vst [vmem:[#allocation4 + $0x2b8] sm:$0xf] %v934
    %999 = vst [vmem:[#allocation4 + $0x2dc] sm:$0xf] %v935
    %1000 = vst [vmem:[#allocation4 + $0x300] sm:$0xf] %v936
    %1001 = vst [vmem:[#allocation4 + $0x324] sm:$0xf] %v937
    %1002 = vst [vmem:[#allocation4 + $0x348] sm:$0xf] %v938
    %1003 = vst [vmem:[#allocation4 + $0x36c] sm:$0xf] %v939
    %1004 = vst [vmem:[#allocation4 + $0x390] sm:$0xf] %v940
    %1005 = vst [vmem:[#allocation4 + $0x3b4] sm:$0xf] %v941
    %1006 = vst [vmem:[#allocation4 + $0x3d8] sm:$0xf] %v942
    %1007 = vst [vmem:[#allocation4 + $0x3fc] sm:$0xf] %v943
    %1008 = vst [vmem:[#allocation4 + $0x420] sm:$0xf] %v944
    %1009 = vst [vmem:[#allocation4 + $0x444] sm:$0xf] %v945
    %1010 = vst [vmem:[#allocation4 + $0x468] sm:$0xf] %v946
    %1011 = vst [vmem:[#allocation4 + $0x48c] sm:$0xf] %v947
    %1012 = vst [vmem:[#allocation4 + $0x4b0] sm:$0xf] %v948
    %1013 = vst [vmem:[#allocation4 + $0x4d4] sm:$0xf] %v949
    %1014 = vst [vmem:[#allocation4 + $0x4f8] sm:$0xf] %v950
    %1015 = vst [vmem:[#allocation4 + $0x51c] sm:$0xf] %v951
    %1016 = vst [vmem:[#allocation4 + $0x540] sm:$0xf] %v952
    %1017 = vst [vmem:[#allocation4 + $0x564] sm:$0xf] %v953
    %1018 = vst [vmem:[#allocation4 + $0x588] sm:$0xf] %v954
    %1019 = vst [vmem:[#allocation4 + $0x5ac] sm:$0xf] %v955
    %1020 = vst [vmem:[#allocation4 + $0x5d0] sm:$0xf] %v956
    %1021 = vst [vmem:[#allocation4 + $0x5f4] sm:$0xf] %v957
    %1022 = vst [vmem:[#allocation4 + $0x618] sm:$0xf] %v958
    %1023 = vst [vmem:[#allocation4 + $0x63c] sm:$0xf] %v959
    %1024 = vst [vmem:[#allocation4 + $0x660] sm:$0xf] %v960
    %1025 = vst [vmem:[#allocation4 + $0x684] sm:$0xf] %v961
    %1026 = vst [vmem:[#allocation4 + $0x6a8] sm:$0xf] %v962
    %1027 = vst [vmem:[#allocation4 + $0x6cc] sm:$0xf] %v963
    %1028 = vst [vmem:[#allocation4 + $0x6f0] sm:$0xf] %v964
    %1029 = vst [vmem:[#allocation4 + $0x714] sm:$0xf] %v965
    %1030 = vst [vmem:[#allocation4 + $0x738] sm:$0xf] %v966
    %1031 = vst [vmem:[#allocation4 + $0x75c] sm:$0xf] %v967
    %1032 = vst [vmem:[#allocation4 + $0x780] sm:$0xf] %v968
    %1033 = vst [vmem:[#allocation4 + $0x7a4] sm:$0xf] %v969
    %1034 = vst [vmem:[#allocation4 + $0x7c8] sm:$0xf] %v970
    %1035 = vst [vmem:[#allocation4 + $0x7ec] sm:$0xf] %v971
    %1036 = vst [vmem:[#allocation4 + $0x810] sm:$0xf] %v972
    %1037 = vst [vmem:[#allocation4 + $0x834] sm:$0xf] %v973
    %1038 = vst [vmem:[#allocation4 + $0x858] sm:$0xf] %v974
    %1039 = vst [vmem:[#allocation4 + $0x87c] sm:$0xf] %v975
    %1040 = vst [vmem:[#allocation4 + $0x8a0] sm:$0xf] %v976
    %1041 = vst [vmem:[#allocation4 + $0x8c4] sm:$0xf] %v977
    %1042 = vst [vmem:[#allocation4 + $0x8e8] sm:$0xf] %v978
    %v1043 = vld [vmem:[%s209 + $0x1] sm:$0xff]
    %v1044 = vld [vmem:[%s209 + $0x9] sm:$0xff]
    %v1045 = vld [vmem:[%s209 + $0x19] sm:$0xff]
    %v1046 = vld [vmem:[%s209 + $0x21] sm:$0xff]
    %v1047 = vld [vmem:[%s209 + $0x31] sm:$0xff]
    %v1048 = vld [vmem:[%s209 + $0x39] sm:$0xff]
    %v1049 = vld [vmem:[%s209 + $0x49] sm:$0xff]
    %v1050 = vld [vmem:[%s209 + $0x51] sm:$0xff]
    %v1051 = vld [vmem:[%s209 + $0x61] sm:$0xff]
    %v1052 = vld [vmem:[%s209 + $0x69] sm:$0xff]
    %v1053 = vld [vmem:[%s209 + $0x79] sm:$0xff]
    %v1054 = vld [vmem:[%s209 + $0x81] sm:$0xff]
    %v1055 = vld [vmem:[%s209 + $0x91] sm:$0xff]
    %v1056 = vld [vmem:[%s209 + $0x99] sm:$0xff]
    %v1057 = vld [vmem:[%s209 + $0xa9] sm:$0xff]
    %v1058 = vld [vmem:[%s209 + $0xb1] sm:$0xff]
    %v1059 = vld [vmem:[%s209 + $0xc1] sm:$0xff]
    %v1060 = vld [vmem:[%s209 + $0xc9] sm:$0xff]
    %v1061 = vld [vmem:[%s209 + $0xd9] sm:$0xff]
    %v1062 = vld [vmem:[%s209 + $0xe1] sm:$0xff]
    %v1063 = vld [vmem:[%s209 + $0xf1] sm:$0xff]
    %v1064 = vld [vmem:[%s209 + $0xf9] sm:$0xff]
    %v1065 = vld [vmem:[%s209 + $0x109] sm:$0xff]
    %v1066 = vld [vmem:[%s209 + $0x111] sm:$0xff]
    %v1067 = vld [vmem:[%s209 + $0x121] sm:$0xff]
    %v1068 = vld [vmem:[%s209 + $0x129] sm:$0xff]
    %v1069 = vld [vmem:[%s209 + $0x139] sm:$0xff]
    %v1070 = vld [vmem:[%s209 + $0x141] sm:$0xff]
    %v1071 = vld [vmem:[%s209 + $0x151] sm:$0xff]
    %v1072 = vld [vmem:[%s209 + $0x159] sm:$0xff]
    %v1073 = vld [vmem:[%s209 + $0x169] sm:$0xff]
    %v1074 = vld [vmem:[%s209 + $0x171] sm:$0xff]
    %v1075 = vld [vmem:[%s209 + $0x1b1] sm:$0xff]
    %v1076 = vld [vmem:[%s209 + $0x1b9] sm:$0xff]
    %v1077 = vld [vmem:[%s209 + $0x1c9] sm:$0xff]
    %v1078 = vld [vmem:[%s209 + $0x1d1] sm:$0xff]
    %v1079 = vld [vmem:[%s209 + $0x1e1] sm:$0xff]
    %v1080 = vld [vmem:[%s209 + $0x1e9] sm:$0xff]
    %v1081 = vld [vmem:[%s209 + $0x1f9] sm:$0xff]
    %v1082 = vld [vmem:[%s209 + $0x201] sm:$0xff]
    %v1083 = vld [vmem:[%s209 + $0x211] sm:$0xff]
    %v1084 = vld [vmem:[%s209 + $0x219] sm:$0xff]
    %v1085 = vld [vmem:[%s209 + $0x229] sm:$0xff]
    %v1086 = vld [vmem:[%s209 + $0x231] sm:$0xff]
    %v1087 = vld [vmem:[%s209 + $0x241] sm:$0xff]
    %v1088 = vld [vmem:[%s209 + $0x249] sm:$0xff]
    %v1089 = vld [vmem:[%s209 + $0x259] sm:$0xff]
    %v1090 = vld [vmem:[%s209 + $0x261] sm:$0xff]
    %v1091 = vld [vmem:[%s209 + $0x271] sm:$0xff]
    %v1092 = vld [vmem:[%s209 + $0x279] sm:$0xff]
    %v1093 = vld [vmem:[%s209 + $0x289] sm:$0xff]
    %v1094 = vld [vmem:[%s209 + $0x291] sm:$0xff]
    %v1095 = vld [vmem:[%s209 + $0x2a1] sm:$0xff]
    %v1096 = vld [vmem:[%s209 + $0x2a9] sm:$0xff]
    %v1097 = vld [vmem:[%s209 + $0x2b9] sm:$0xff]
    %v1098 = vld [vmem:[%s209 + $0x2c1] sm:$0xff]
    %v1099 = vld [vmem:[%s209 + $0x2d1] sm:$0xff]
    %v1100 = vld [vmem:[%s209 + $0x2d9] sm:$0xff]
    %v1101 = vld [vmem:[%s209 + $0x2e9] sm:$0xff]
    %v1102 = vld [vmem:[%s209 + $0x2f1] sm:$0xff]
    %v1103 = vld [vmem:[%s209 + $0x301] sm:$0xff]
    %v1104 = vld [vmem:[%s209 + $0x309] sm:$0xff]
    %v1105 = vld [vmem:[%s209 + $0x319] sm:$0xff]
    %v1106 = vld [vmem:[%s209 + $0x321] sm:$0xff]
    %v1107 = vpack.c.bf16 %v1043, %v1043
    %v1108 = vpack.c.bf16 %v1044, %v1044
    %v1109 = vpack.c.bf16 %v1045, %v1045
    %v1110 = vpack.c.bf16 %v1046, %v1046
    %v1111 = vpack.c.bf16 %v1047, %v1047
    %v1112 = vpack.c.bf16 %v1048, %v1048
    %v1113 = vpack.c.bf16 %v1049, %v1049
    %v1114 = vpack.c.bf16 %v1050, %v1050
    %v1115 = vpack.c.bf16 %v1051, %v1051
    %v1116 = vpack.c.bf16 %v1052, %v1052
    %v1117 = vpack.c.bf16 %v1053, %v1053
    %v1118 = vpack.c.bf16 %v1054, %v1054
    %v1119 = vpack.c.bf16 %v1055, %v1055
    %v1120 = vpack.c.bf16 %v1056, %v1056
    %v1121 = vpack.c.bf16 %v1057, %v1057
    %v1122 = vpack.c.bf16 %v1058, %v1058
    %v1123 = vpack.c.bf16 %v1059, %v1059
    %v1124 = vpack.c.bf16 %v1060, %v1060
    %v1125 = vpack.c.bf16 %v1061, %v1061
    %v1126 = vpack.c.bf16 %v1062, %v1062
    %v1127 = vpack.c.bf16 %v1063, %v1063
    %v1128 = vpack.c.bf16 %v1064, %v1064
    %v1129 = vpack.c.bf16 %v1065, %v1065
    %v1130 = vpack.c.bf16 %v1066, %v1066
    %v1131 = vpack.c.bf16 %v1067, %v1067
    %v1132 = vpack.c.bf16 %v1068, %v1068
    %v1133 = vpack.c.bf16 %v1069, %v1069
    %v1134 = vpack.c.bf16 %v1070, %v1070
    %v1135 = vpack.c.bf16 %v1071, %v1071
    %v1136 = vpack.c.bf16 %v1072, %v1072
    %v1137 = vpack.c.bf16 %v1073, %v1073
    %v1138 = vpack.c.bf16 %v1074, %v1074
    %v1139 = vpack.c.bf16 %v1075, %v1075
    %v1140 = vpack.c.bf16 %v1076, %v1076
    %v1141 = vpack.c.bf16 %v1077, %v1077
    %v1142 = vpack.c.bf16 %v1078, %v1078
    %v1143 = vpack.c.bf16 %v1079, %v1079
    %v1144 = vpack.c.bf16 %v1080, %v1080
    %v1145 = vpack.c.bf16 %v1081, %v1081
    %v1146 = vpack.c.bf16 %v1082, %v1082
    %v1147 = vpack.c.bf16 %v1083, %v1083
    %v1148 = vpack.c.bf16 %v1084, %v1084
    %v1149 = vpack.c.bf16 %v1085, %v1085
    %v1150 = vpack.c.bf16 %v1086, %v1086
    %v1151 = vpack.c.bf16 %v1087, %v1087
    %v1152 = vpack.c.bf16 %v1088, %v1088
    %v1153 = vpack.c.bf16 %v1089, %v1089
    %v1154 = vpack.c.bf16 %v1090, %v1090
    %v1155 = vpack.c.bf16 %v1091, %v1091
    %v1156 = vpack.c.bf16 %v1092, %v1092
    %v1157 = vpack.c.bf16 %v1093, %v1093
    %v1158 = vpack.c.bf16 %v1094, %v1094
    %v1159 = vpack.c.bf16 %v1095, %v1095
    %v1160 = vpack.c.bf16 %v1096, %v1096
    %v1161 = vpack.c.bf16 %v1097, %v1097
    %v1162 = vpack.c.bf16 %v1098, %v1098
    %v1163 = vpack.c.bf16 %v1099, %v1099
    %v1164 = vpack.c.bf16 %v1100, %v1100
    %v1165 = vpack.c.bf16 %v1101, %v1101
    %v1166 = vpack.c.bf16 %v1102, %v1102
    %v1167 = vpack.c.bf16 %v1103, %v1103
    %v1168 = vpack.c.bf16 %v1104, %v1104
    %v1169 = vpack.c.bf16 %v1105, %v1105
    %v1170 = vpack.c.bf16 %v1106, %v1106
    %1171 = vst [vmem:[#allocation4 + $0x10] sm:$0xf] %v1107
    %1172 = vst [vmem:[#allocation4 + $0x34] sm:$0xf] %v1108
    %1173 = vst [vmem:[#allocation4 + $0x58] sm:$0xf] %v1109
    %1174 = vst [vmem:[#allocation4 + $0x7c] sm:$0xf] %v1110
    %1175 = vst [vmem:[#allocation4 + $0xa0] sm:$0xf] %v1111
    %1176 = vst [vmem:[#allocation4 + $0xc4] sm:$0xf] %v1112
    %1177 = vst [vmem:[#allocation4 + $0xe8] sm:$0xf] %v1113
    %1178 = vst [vmem:[#allocation4 + $0x10c] sm:$0xf] %v1114
    %1179 = vst [vmem:[#allocation4 + $0x130] sm:$0xf] %v1115
    %1180 = vst [vmem:[#allocation4 + $0x154] sm:$0xf] %v1116
    %1181 = vst [vmem:[#allocation4 + $0x178] sm:$0xf] %v1117
    %1182 = vst [vmem:[#allocation4 + $0x19c] sm:$0xf] %v1118
    %1183 = vst [vmem:[#allocation4 + $0x1c0] sm:$0xf] %v1119
    %1184 = vst [vmem:[#allocation4 + $0x1e4] sm:$0xf] %v1120
    %1185 = vst [vmem:[#allocation4 + $0x208] sm:$0xf] %v1121
    %1186 = vst [vmem:[#allocation4 + $0x22c] sm:$0xf] %v1122
    %1187 = vst [vmem:[#allocation4 + $0x250] sm:$0xf] %v1123
    %1188 = vst [vmem:[#allocation4 + $0x274] sm:$0xf] %v1124
    %1189 = vst [vmem:[#allocation4 + $0x298] sm:$0xf] %v1125
    %1190 = vst [vmem:[#allocation4 + $0x2bc] sm:$0xf] %v1126
    %1191 = vst [vmem:[#allocation4 + $0x2e0] sm:$0xf] %v1127
    %1192 = vst [vmem:[#allocation4 + $0x304] sm:$0xf] %v1128
    %1193 = vst [vmem:[#allocation4 + $0x328] sm:$0xf] %v1129
    %1194 = vst [vmem:[#allocation4 + $0x34c] sm:$0xf] %v1130
    %1195 = vst [vmem:[#allocation4 + $0x370] sm:$0xf] %v1131
    %1196 = vst [vmem:[#allocation4 + $0x394] sm:$0xf] %v1132
    %1197 = vst [vmem:[#allocation4 + $0x3b8] sm:$0xf] %v1133
    %1198 = vst [vmem:[#allocation4 + $0x3dc] sm:$0xf] %v1134
    %1199 = vst [vmem:[#allocation4 + $0x400] sm:$0xf] %v1135
    %1200 = vst [vmem:[#allocation4 + $0x424] sm:$0xf] %v1136
    %1201 = vst [vmem:[#allocation4 + $0x448] sm:$0xf] %v1137
    %1202 = vst [vmem:[#allocation4 + $0x46c] sm:$0xf] %v1138
    %1203 = vst [vmem:[#allocation4 + $0x490] sm:$0xf] %v1139
    %1204 = vst [vmem:[#allocation4 + $0x4b4] sm:$0xf] %v1140
    %1205 = vst [vmem:[#allocation4 + $0x4d8] sm:$0xf] %v1141
    %1206 = vst [vmem:[#allocation4 + $0x4fc] sm:$0xf] %v1142
    %1207 = vst [vmem:[#allocation4 + $0x520] sm:$0xf] %v1143
    %1208 = vst [vmem:[#allocation4 + $0x544] sm:$0xf] %v1144
    %1209 = vst [vmem:[#allocation4 + $0x568] sm:$0xf] %v1145
    %1210 = vst [vmem:[#allocation4 + $0x58c] sm:$0xf] %v1146
    %1211 = vst [vmem:[#allocation4 + $0x5b0] sm:$0xf] %v1147
    %1212 = vst [vmem:[#allocation4 + $0x5d4] sm:$0xf] %v1148
    %1213 = vst [vmem:[#allocation4 + $0x5f8] sm:$0xf] %v1149
    %1214 = vst [vmem:[#allocation4 + $0x61c] sm:$0xf] %v1150
    %1215 = vst [vmem:[#allocation4 + $0x640] sm:$0xf] %v1151
    %1216 = vst [vmem:[#allocation4 + $0x664] sm:$0xf] %v1152
    %1217 = vst [vmem:[#allocation4 + $0x688] sm:$0xf] %v1153
    %1218 = vst [vmem:[#allocation4 + $0x6ac] sm:$0xf] %v1154
    %1219 = vst [vmem:[#allocation4 + $0x6d0] sm:$0xf] %v1155
    %1220 = vst [vmem:[#allocation4 + $0x6f4] sm:$0xf] %v1156
    %1221 = vst [vmem:[#allocation4 + $0x718] sm:$0xf] %v1157
    %1222 = vst [vmem:[#allocation4 + $0x73c] sm:$0xf] %v1158
    %1223 = vst [vmem:[#allocation4 + $0x760] sm:$0xf] %v1159
    %1224 = vst [vmem:[#allocation4 + $0x784] sm:$0xf] %v1160
    %1225 = vst [vmem:[#allocation4 + $0x7a8] sm:$0xf] %v1161
    %1226 = vst [vmem:[#allocation4 + $0x7cc] sm:$0xf] %v1162
    %1227 = vst [vmem:[#allocation4 + $0x7f0] sm:$0xf] %v1163
    %1228 = vst [vmem:[#allocation4 + $0x814] sm:$0xf] %v1164
    %1229 = vst [vmem:[#allocation4 + $0x838] sm:$0xf] %v1165
    %1230 = vst [vmem:[#allocation4 + $0x85c] sm:$0xf] %v1166
    %1231 = vst [vmem:[#allocation4 + $0x880] sm:$0xf] %v1167
    %1232 = vst [vmem:[#allocation4 + $0x8a4] sm:$0xf] %v1168
    %1233 = vst [vmem:[#allocation4 + $0x8c8] sm:$0xf] %v1169
    %1234 = vst [vmem:[#allocation4 + $0x8ec] sm:$0xf] %v1170
    %v1235 = vld [vmem:[%s209 + $0x2] sm:$0xff]
    %v1236 = vld [vmem:[%s209 + $0xa] sm:$0xff]
    %v1237 = vld [vmem:[%s209 + $0x1a] sm:$0xff]
    %v1238 = vld [vmem:[%s209 + $0x22] sm:$0xff]
    %v1239 = vld [vmem:[%s209 + $0x32] sm:$0xff]
    %v1240 = vld [vmem:[%s209 + $0x3a] sm:$0xff]
    %v1241 = vld [vmem:[%s209 + $0x4a] sm:$0xff]
    %v1242 = vld [vmem:[%s209 + $0x52] sm:$0xff]
    %v1243 = vld [vmem:[%s209 + $0x62] sm:$0xff]
    %v1244 = vld [vmem:[%s209 + $0x6a] sm:$0xff]
    %v1245 = vld [vmem:[%s209 + $0x7a] sm:$0xff]
    %v1246 = vld [vmem:[%s209 + $0x82] sm:$0xff]
    %v1247 = vld [vmem:[%s209 + $0x92] sm:$0xff]
    %v1248 = vld [vmem:[%s209 + $0x9a] sm:$0xff]
    %v1249 = vld [vmem:[%s209 + $0xaa] sm:$0xff]
    %v1250 = vld [vmem:[%s209 + $0xb2] sm:$0xff]
    %v1251 = vld [vmem:[%s209 + $0xc2] sm:$0xff]
    %v1252 = vld [vmem:[%s209 + $0xca] sm:$0xff]
    %v1253 = vld [vmem:[%s209 + $0xda] sm:$0xff]
    %v1254 = vld [vmem:[%s209 + $0xe2] sm:$0xff]
    %v1255 = vld [vmem:[%s209 + $0xf2] sm:$0xff]
    %v1256 = vld [vmem:[%s209 + $0xfa] sm:$0xff]
    %v1257 = vld [vmem:[%s209 + $0x10a] sm:$0xff]
    %v1258 = vld [vmem:[%s209 + $0x112] sm:$0xff]
    %v1259 = vld [vmem:[%s209 + $0x122] sm:$0xff]
    %v1260 = vld [vmem:[%s209 + $0x12a] sm:$0xff]
    %v1261 = vld [vmem:[%s209 + $0x13a] sm:$0xff]
    %v1262 = vld [vmem:[%s209 + $0x142] sm:$0xff]
    %v1263 = vld [vmem:[%s209 + $0x152] sm:$0xff]
    %v1264 = vld [vmem:[%s209 + $0x15a] sm:$0xff]
    %v1265 = vld [vmem:[%s209 + $0x16a] sm:$0xff]
    %v1266 = vld [vmem:[%s209 + $0x172] sm:$0xff]
    %v1267 = vld [vmem:[%s209 + $0x1b2] sm:$0xff]
    %v1268 = vld [vmem:[%s209 + $0x1ba] sm:$0xff]
    %v1269 = vld [vmem:[%s209 + $0x1ca] sm:$0xff]
    %v1270 = vld [vmem:[%s209 + $0x1d2] sm:$0xff]
    %v1271 = vld [vmem:[%s209 + $0x1e2] sm:$0xff]
    %v1272 = vld [vmem:[%s209 + $0x1ea] sm:$0xff]
    %v1273 = vld [vmem:[%s209 + $0x1fa] sm:$0xff]
    %v1274 = vld [vmem:[%s209 + $0x202] sm:$0xff]
    %v1275 = vld [vmem:[%s209 + $0x212] sm:$0xff]
    %v1276 = vld [vmem:[%s209 + $0x21a] sm:$0xff]
    %v1277 = vld [vmem:[%s209 + $0x22a] sm:$0xff]
    %v1278 = vld [vmem:[%s209 + $0x232] sm:$0xff]
    %v1279 = vld [vmem:[%s209 + $0x242] sm:$0xff]
    %v1280 = vld [vmem:[%s209 + $0x24a] sm:$0xff]
    %v1281 = vld [vmem:[%s209 + $0x25a] sm:$0xff]
    %v1282 = vld [vmem:[%s209 + $0x262] sm:$0xff]
    %v1283 = vld [vmem:[%s209 + $0x272] sm:$0xff]
    %v1284 = vld [vmem:[%s209 + $0x27a] sm:$0xff]
    %v1285 = vld [vmem:[%s209 + $0x28a] sm:$0xff]
    %v1286 = vld [vmem:[%s209 + $0x292] sm:$0xff]
    %v1287 = vld [vmem:[%s209 + $0x2a2] sm:$0xff]
    %v1288 = vld [vmem:[%s209 + $0x2aa] sm:$0xff]
    %v1289 = vld [vmem:[%s209 + $0x2ba] sm:$0xff]
    %v1290 = vld [vmem:[%s209 + $0x2c2] sm:$0xff]
    %v1291 = vld [vmem:[%s209 + $0x2d2] sm:$0xff]
    %v1292 = vld [vmem:[%s209 + $0x2da] sm:$0xff]
    %v1293 = vld [vmem:[%s209 + $0x2ea] sm:$0xff]
    %v1294 = vld [vmem:[%s209 + $0x2f2] sm:$0xff]
    %v1295 = vld [vmem:[%s209 + $0x302] sm:$0xff]
    %v1296 = vld [vmem:[%s209 + $0x30a] sm:$0xff]
    %v1297 = vld [vmem:[%s209 + $0x31a] sm:$0xff]
    %v1298 = vld [vmem:[%s209 + $0x322] sm:$0xff]
    %v1299 = vpack.c.bf16 %v1235, %v1235
    %v1300 = vpack.c.bf16 %v1236, %v1236
    %v1301 = vpack.c.bf16 %v1237, %v1237
    %v1302 = vpack.c.bf16 %v1238, %v1238
    %v1303 = vpack.c.bf16 %v1239, %v1239
    %v1304 = vpack.c.bf16 %v1240, %v1240
    %v1305 = vpack.c.bf16 %v1241, %v1241
    %v1306 = vpack.c.bf16 %v1242, %v1242
    %v1307 = vpack.c.bf16 %v1243, %v1243
    %v1308 = vpack.c.bf16 %v1244, %v1244
    %v1309 = vpack.c.bf16 %v1245, %v1245
    %v1310 = vpack.c.bf16 %v1246, %v1246
    %v1311 = vpack.c.bf16 %v1247, %v1247
    %v1312 = vpack.c.bf16 %v1248, %v1248
    %v1313 = vpack.c.bf16 %v1249, %v1249
    %v1314 = vpack.c.bf16 %v1250, %v1250
    %v1315 = vpack.c.bf16 %v1251, %v1251
    %v1316 = vpack.c.bf16 %v1252, %v1252
    %v1317 = vpack.c.bf16 %v1253, %v1253
    %v1318 = vpack.c.bf16 %v1254, %v1254
    %v1319 = vpack.c.bf16 %v1255, %v1255
    %v1320 = vpack.c.bf16 %v1256, %v1256
    %v1321 = vpack.c.bf16 %v1257, %v1257
    %v1322 = vpack.c.bf16 %v1258, %v1258
    %v1323 = vpack.c.bf16 %v1259, %v1259
    %v1324 = vpack.c.bf16 %v1260, %v1260
    %v1325 = vpack.c.bf16 %v1261, %v1261
    %v1326 = vpack.c.bf16 %v1262, %v1262
    %v1327 = vpack.c.bf16 %v1263, %v1263
    %v1328 = vpack.c.bf16 %v1264, %v1264
    %v1329 = vpack.c.bf16 %v1265, %v1265
    %v1330 = vpack.c.bf16 %v1266, %v1266
    %v1331 = vpack.c.bf16 %v1267, %v1267
    %v1332 = vpack.c.bf16 %v1268, %v1268
    %v1333 = vpack.c.bf16 %v1269, %v1269
    %v1334 = vpack.c.bf16 %v1270, %v1270
    %v1335 = vpack.c.bf16 %v1271, %v1271
    %v1336 = vpack.c.bf16 %v1272, %v1272
    %v1337 = vpack.c.bf16 %v1273, %v1273
    %v1338 = vpack.c.bf16 %v1274, %v1274
    %v1339 = vpack.c.bf16 %v1275, %v1275
    %v1340 = vpack.c.bf16 %v1276, %v1276
    %v1341 = vpack.c.bf16 %v1277, %v1277
    %v1342 = vpack.c.bf16 %v1278, %v1278
    %v1343 = vpack.c.bf16 %v1279, %v1279
    %v1344 = vpack.c.bf16 %v1280, %v1280
    %v1345 = vpack.c.bf16 %v1281, %v1281
    %v1346 = vpack.c.bf16 %v1282, %v1282
    %v1347 = vpack.c.bf16 %v1283, %v1283
    %v1348 = vpack.c.bf16 %v1284, %v1284
    %v1349 = vpack.c.bf16 %v1285, %v1285
    %v1350 = vpack.c.bf16 %v1286, %v1286
    %v1351 = vpack.c.bf16 %v1287, %v1287
    %v1352 = vpack.c.bf16 %v1288, %v1288
    %v1353 = vpack.c.bf16 %v1289, %v1289
    %v1354 = vpack.c.bf16 %v1290, %v1290
    %v1355 = vpack.c.bf16 %v1291, %v1291
    %v1356 = vpack.c.bf16 %v1292, %v1292
    %v1357 = vpack.c.bf16 %v1293, %v1293
    %v1358 = vpack.c.bf16 %v1294, %v1294
    %v1359 = vpack.c.bf16 %v1295, %v1295
    %v1360 = vpack.c.bf16 %v1296, %v1296
    %v1361 = vpack.c.bf16 %v1297, %v1297
    %v1362 = vpack.c.bf16 %v1298, %v1298
    %1363 = vst [vmem:[#allocation4 + $0x14] sm:$0xf] %v1299
    %1364 = vst [vmem:[#allocation4 + $0x38] sm:$0xf] %v1300
    %1365 = vst [vmem:[#allocation4 + $0x5c] sm:$0xf] %v1301
    %1366 = vst [vmem:[#allocation4 + $0x80] sm:$0xf] %v1302
    %1367 = vst [vmem:[#allocation4 + $0xa4] sm:$0xf] %v1303
    %1368 = vst [vmem:[#allocation4 + $0xc8] sm:$0xf] %v1304
    %1369 = vst [vmem:[#allocation4 + $0xec] sm:$0xf] %v1305
    %1370 = vst [vmem:[#allocation4 + $0x110] sm:$0xf] %v1306
    %1371 = vst [vmem:[#allocation4 + $0x134] sm:$0xf] %v1307
    %1372 = vst [vmem:[#allocation4 + $0x158] sm:$0xf] %v1308
    %1373 = vst [vmem:[#allocation4 + $0x17c] sm:$0xf] %v1309
    %1374 = vst [vmem:[#allocation4 + $0x1a0] sm:$0xf] %v1310
    %1375 = vst [vmem:[#allocation4 + $0x1c4] sm:$0xf] %v1311
    %1376 = vst [vmem:[#allocation4 + $0x1e8] sm:$0xf] %v1312
    %1377 = vst [vmem:[#allocation4 + $0x20c] sm:$0xf] %v1313
    %1378 = vst [vmem:[#allocation4 + $0x230] sm:$0xf] %v1314
    %1379 = vst [vmem:[#allocation4 + $0x254] sm:$0xf] %v1315
    %1380 = vst [vmem:[#allocation4 + $0x278] sm:$0xf] %v1316
    %1381 = vst [vmem:[#allocation4 + $0x29c] sm:$0xf] %v1317
    %1382 = vst [vmem:[#allocation4 + $0x2c0] sm:$0xf] %v1318
    %1383 = vst [vmem:[#allocation4 + $0x2e4] sm:$0xf] %v1319
    %1384 = vst [vmem:[#allocation4 + $0x308] sm:$0xf] %v1320
    %1385 = vst [vmem:[#allocation4 + $0x32c] sm:$0xf] %v1321
    %1386 = vst [vmem:[#allocation4 + $0x350] sm:$0xf] %v1322
    %1387 = vst [vmem:[#allocation4 + $0x374] sm:$0xf] %v1323
    %1388 = vst [vmem:[#allocation4 + $0x398] sm:$0xf] %v1324
    %1389 = vst [vmem:[#allocation4 + $0x3bc] sm:$0xf] %v1325
    %1390 = vst [vmem:[#allocation4 + $0x3e0] sm:$0xf] %v1326
    %1391 = vst [vmem:[#allocation4 + $0x404] sm:$0xf] %v1327
    %1392 = vst [vmem:[#allocation4 + $0x428] sm:$0xf] %v1328
    %1393 = vst [vmem:[#allocation4 + $0x44c] sm:$0xf] %v1329
    %1394 = vst [vmem:[#allocation4 + $0x470] sm:$0xf] %v1330
    %1395 = vst [vmem:[#allocation4 + $0x494] sm:$0xf] %v1331
    %1396 = vst [vmem:[#allocation4 + $0x4b8] sm:$0xf] %v1332
    %1397 = vst [vmem:[#allocation4 + $0x4dc] sm:$0xf] %v1333
    %1398 = vst [vmem:[#allocation4 + $0x500] sm:$0xf] %v1334
    %1399 = vst [vmem:[#allocation4 + $0x524] sm:$0xf] %v1335
    %1400 = vst [vmem:[#allocation4 + $0x548] sm:$0xf] %v1336
    %1401 = vst [vmem:[#allocation4 + $0x56c] sm:$0xf] %v1337
    %1402 = vst [vmem:[#allocation4 + $0x590] sm:$0xf] %v1338
    %1403 = vst [vmem:[#allocation4 + $0x5b4] sm:$0xf] %v1339
    %1404 = vst [vmem:[#allocation4 + $0x5d8] sm:$0xf] %v1340
    %1405 = vst [vmem:[#allocation4 + $0x5fc] sm:$0xf] %v1341
    %1406 = vst [vmem:[#allocation4 + $0x620] sm:$0xf] %v1342
    %1407 = vst [vmem:[#allocation4 + $0x644] sm:$0xf] %v1343
    %1408 = vst [vmem:[#allocation4 + $0x668] sm:$0xf] %v1344
    %1409 = vst [vmem:[#allocation4 + $0x68c] sm:$0xf] %v1345
    %1410 = vst [vmem:[#allocation4 + $0x6b0] sm:$0xf] %v1346
    %1411 = vst [vmem:[#allocation4 + $0x6d4] sm:$0xf] %v1347
    %1412 = vst [vmem:[#allocation4 + $0x6f8] sm:$0xf] %v1348
    %1413 = vst [vmem:[#allocation4 + $0x71c] sm:$0xf] %v1349
    %1414 = vst [vmem:[#allocation4 + $0x740] sm:$0xf] %v1350
    %1415 = vst [vmem:[#allocation4 + $0x764] sm:$0xf] %v1351
    %1416 = vst [vmem:[#allocation4 + $0x788] sm:$0xf] %v1352
    %1417 = vst [vmem:[#allocation4 + $0x7ac] sm:$0xf] %v1353
    %1418 = vst [vmem:[#allocation4 + $0x7d0] sm:$0xf] %v1354
    %1419 = vst [vmem:[#allocation4 + $0x7f4] sm:$0xf] %v1355
    %1420 = vst [vmem:[#allocation4 + $0x818] sm:$0xf] %v1356
    %1421 = vst [vmem:[#allocation4 + $0x83c] sm:$0xf] %v1357
    %1422 = vst [vmem:[#allocation4 + $0x860] sm:$0xf] %v1358
    %1423 = vst [vmem:[#allocation4 + $0x884] sm:$0xf] %v1359
    %1424 = vst [vmem:[#allocation4 + $0x8a8] sm:$0xf] %v1360
    %1425 = vst [vmem:[#allocation4 + $0x8cc] sm:$0xf] %v1361
    %1426 = vst [vmem:[#allocation4 + $0x8f0] sm:$0xf] %v1362
    %s1427 = scalar_lea.vmem [#allocation2], 48
    %v1428 = vld [vmem:[%s1427] sm:$0xff]
    %v1429 = vld [vmem:[%s1427 + $0x8] sm:$0xff]
    %v1430 = vld [vmem:[%s1427 + $0x18] sm:$0xff]
    %v1431 = vld [vmem:[%s1427 + $0x20] sm:$0xff]
    %v1432 = vld [vmem:[%s1427 + $0x30] sm:$0xff]
    %v1433 = vld [vmem:[%s1427 + $0x38] sm:$0xff]
    %v1434 = vld [vmem:[%s1427 + $0x48] sm:$0xff]
    %v1435 = vld [vmem:[%s1427 + $0x50] sm:$0xff]
    %v1436 = vld [vmem:[%s1427 + $0x60] sm:$0xff]
    %v1437 = vld [vmem:[%s1427 + $0x68] sm:$0xff]
    %v1438 = vld [vmem:[%s1427 + $0x78] sm:$0xff]
    %v1439 = vld [vmem:[%s1427 + $0x80] sm:$0xff]
    %v1440 = vld [vmem:[%s1427 + $0x90] sm:$0xff]
    %v1441 = vld [vmem:[%s1427 + $0x98] sm:$0xff]
    %v1442 = vld [vmem:[%s1427 + $0xa8] sm:$0xff]
    %v1443 = vld [vmem:[%s1427 + $0xb0] sm:$0xff]
    %v1444 = vld [vmem:[%s1427 + $0xc0] sm:$0xff]
    %v1445 = vld [vmem:[%s1427 + $0xc8] sm:$0xff]
    %v1446 = vld [vmem:[%s1427 + $0xd8] sm:$0xff]
    %v1447 = vld [vmem:[%s1427 + $0xe0] sm:$0xff]
    %v1448 = vld [vmem:[%s1427 + $0xf0] sm:$0xff]
    %v1449 = vld [vmem:[%s1427 + $0xf8] sm:$0xff]
    %v1450 = vld [vmem:[%s1427 + $0x108] sm:$0xff]
    %v1451 = vld [vmem:[%s1427 + $0x110] sm:$0xff]
    %v1452 = vld [vmem:[%s1427 + $0x120] sm:$0xff]
    %v1453 = vld [vmem:[%s1427 + $0x128] sm:$0xff]
    %v1454 = vld [vmem:[%s1427 + $0x138] sm:$0xff]
    %v1455 = vld [vmem:[%s1427 + $0x140] sm:$0xff]
    %v1456 = vld [vmem:[%s1427 + $0x150] sm:$0xff]
    %v1457 = vld [vmem:[%s1427 + $0x158] sm:$0xff]
    %v1458 = vld [vmem:[%s1427 + $0x168] sm:$0xff]
    %v1459 = vld [vmem:[%s1427 + $0x170] sm:$0xff]
    %v1460 = vld [vmem:[%s1427 + $0x1b0] sm:$0xff]
    %v1461 = vld [vmem:[%s1427 + $0x1b8] sm:$0xff]
    %v1462 = vld [vmem:[%s1427 + $0x1c8] sm:$0xff]
    %v1463 = vld [vmem:[%s1427 + $0x1d0] sm:$0xff]
    %v1464 = vld [vmem:[%s1427 + $0x1e0] sm:$0xff]
    %v1465 = vld [vmem:[%s1427 + $0x1e8] sm:$0xff]
    %v1466 = vld [vmem:[%s1427 + $0x1f8] sm:$0xff]
    %v1467 = vld [vmem:[%s1427 + $0x200] sm:$0xff]
    %v1468 = vld [vmem:[%s1427 + $0x210] sm:$0xff]
    %v1469 = vld [vmem:[%s1427 + $0x218] sm:$0xff]
    %v1470 = vld [vmem:[%s1427 + $0x228] sm:$0xff]
    %v1471 = vld [vmem:[%s1427 + $0x230] sm:$0xff]
    %v1472 = vld [vmem:[%s1427 + $0x240] sm:$0xff]
    %v1473 = vld [vmem:[%s1427 + $0x248] sm:$0xff]
    %v1474 = vld [vmem:[%s1427 + $0x258] sm:$0xff]
    %v1475 = vld [vmem:[%s1427 + $0x260] sm:$0xff]
    %v1476 = vld [vmem:[%s1427 + $0x270] sm:$0xff]
    %v1477 = vld [vmem:[%s1427 + $0x278] sm:$0xff]
    %v1478 = vld [vmem:[%s1427 + $0x288] sm:$0xff]
    %v1479 = vld [vmem:[%s1427 + $0x290] sm:$0xff]
    %v1480 = vld [vmem:[%s1427 + $0x2a0] sm:$0xff]
    %v1481 = vld [vmem:[%s1427 + $0x2a8] sm:$0xff]
    %v1482 = vld [vmem:[%s1427 + $0x2b8] sm:$0xff]
    %v1483 = vld [vmem:[%s1427 + $0x2c0] sm:$0xff]
    %v1484 = vld [vmem:[%s1427 + $0x2d0] sm:$0xff]
    %v1485 = vld [vmem:[%s1427 + $0x2d8] sm:$0xff]
    %v1486 = vld [vmem:[%s1427 + $0x2e8] sm:$0xff]
    %v1487 = vld [vmem:[%s1427 + $0x2f0] sm:$0xff]
    %v1488 = vld [vmem:[%s1427 + $0x300] sm:$0xff]
    %v1489 = vld [vmem:[%s1427 + $0x308] sm:$0xff]
    %v1490 = vld [vmem:[%s1427 + $0x318] sm:$0xff]
    %v1491 = vld [vmem:[%s1427 + $0x320] sm:$0xff]
    %v1492 = vpack.c.bf16 %v1428, %v1428
    %v1493 = vpack.c.bf16 %v1429, %v1429
    %v1494 = vpack.c.bf16 %v1430, %v1430
    %v1495 = vpack.c.bf16 %v1431, %v1431
    %v1496 = vpack.c.bf16 %v1432, %v1432
    %v1497 = vpack.c.bf16 %v1433, %v1433
    %v1498 = vpack.c.bf16 %v1434, %v1434
    %v1499 = vpack.c.bf16 %v1435, %v1435
    %v1500 = vpack.c.bf16 %v1436, %v1436
    %v1501 = vpack.c.bf16 %v1437, %v1437
    %v1502 = vpack.c.bf16 %v1438, %v1438
    %v1503 = vpack.c.bf16 %v1439, %v1439
    %v1504 = vpack.c.bf16 %v1440, %v1440
    %v1505 = vpack.c.bf16 %v1441, %v1441
    %v1506 = vpack.c.bf16 %v1442, %v1442
    %v1507 = vpack.c.bf16 %v1443, %v1443
    %v1508 = vpack.c.bf16 %v1444, %v1444
    %v1509 = vpack.c.bf16 %v1445, %v1445
    %v1510 = vpack.c.bf16 %v1446, %v1446
    %v1511 = vpack.c.bf16 %v1447, %v1447
    %v1512 = vpack.c.bf16 %v1448, %v1448
    %v1513 = vpack.c.bf16 %v1449, %v1449
    %v1514 = vpack.c.bf16 %v1450, %v1450
    %v1515 = vpack.c.bf16 %v1451, %v1451
    %v1516 = vpack.c.bf16 %v1452, %v1452
    %v1517 = vpack.c.bf16 %v1453, %v1453
    %v1518 = vpack.c.bf16 %v1454, %v1454
    %v1519 = vpack.c.bf16 %v1455, %v1455
    %v1520 = vpack.c.bf16 %v1456, %v1456
    %v1521 = vpack.c.bf16 %v1457, %v1457
    %v1522 = vpack.c.bf16 %v1458, %v1458
    %v1523 = vpack.c.bf16 %v1459, %v1459
    %v1524 = vpack.c.bf16 %v1460, %v1460
    %v1525 = vpack.c.bf16 %v1461, %v1461
    %v1526 = vpack.c.bf16 %v1462, %v1462
    %v1527 = vpack.c.bf16 %v1463, %v1463
    %v1528 = vpack.c.bf16 %v1464, %v1464
    %v1529 = vpack.c.bf16 %v1465, %v1465
    %v1530 = vpack.c.bf16 %v1466, %v1466
    %v1531 = vpack.c.bf16 %v1467, %v1467
    %v1532 = vpack.c.bf16 %v1468, %v1468
    %v1533 = vpack.c.bf16 %v1469, %v1469
    %v1534 = vpack.c.bf16 %v1470, %v1470
    %v1535 = vpack.c.bf16 %v1471, %v1471
    %v1536 = vpack.c.bf16 %v1472, %v1472
    %v1537 = vpack.c.bf16 %v1473, %v1473
    %v1538 = vpack.c.bf16 %v1474, %v1474
    %v1539 = vpack.c.bf16 %v1475, %v1475
    %v1540 = vpack.c.bf16 %v1476, %v1476
    %v1541 = vpack.c.bf16 %v1477, %v1477
    %v1542 = vpack.c.bf16 %v1478, %v1478
    %v1543 = vpack.c.bf16 %v1479, %v1479
    %v1544 = vpack.c.bf16 %v1480, %v1480
    %v1545 = vpack.c.bf16 %v1481, %v1481
    %v1546 = vpack.c.bf16 %v1482, %v1482
    %v1547 = vpack.c.bf16 %v1483, %v1483
    %v1548 = vpack.c.bf16 %v1484, %v1484
    %v1549 = vpack.c.bf16 %v1485, %v1485
    %v1550 = vpack.c.bf16 %v1486, %v1486
    %v1551 = vpack.c.bf16 %v1487, %v1487
    %v1552 = vpack.c.bf16 %v1488, %v1488
    %v1553 = vpack.c.bf16 %v1489, %v1489
    %v1554 = vpack.c.bf16 %v1490, %v1490
    %v1555 = vpack.c.bf16 %v1491, %v1491
    %1556 = vst [vmem:[#allocation4 + $0x18] sm:$0xf] %v1492
    %1557 = vst [vmem:[#allocation4 + $0x3c] sm:$0xf] %v1493
    %1558 = vst [vmem:[#allocation4 + $0x60] sm:$0xf] %v1494
    %1559 = vst [vmem:[#allocation4 + $0x84] sm:$0xf] %v1495
    %1560 = vst [vmem:[#allocation4 + $0xa8] sm:$0xf] %v1496
    %1561 = vst [vmem:[#allocation4 + $0xcc] sm:$0xf] %v1497
    %1562 = vst [vmem:[#allocation4 + $0xf0] sm:$0xf] %v1498
    %1563 = vst [vmem:[#allocation4 + $0x114] sm:$0xf] %v1499
    %1564 = vst [vmem:[#allocation4 + $0x138] sm:$0xf] %v1500
    %1565 = vst [vmem:[#allocation4 + $0x15c] sm:$0xf] %v1501
    %1566 = vst [vmem:[#allocation4 + $0x180] sm:$0xf] %v1502
    %1567 = vst [vmem:[#allocation4 + $0x1a4] sm:$0xf] %v1503
    %1568 = vst [vmem:[#allocation4 + $0x1c8] sm:$0xf] %v1504
    %1569 = vst [vmem:[#allocation4 + $0x1ec] sm:$0xf] %v1505
    %1570 = vst [vmem:[#allocation4 + $0x210] sm:$0xf] %v1506
    %1571 = vst [vmem:[#allocation4 + $0x234] sm:$0xf] %v1507
    %1572 = vst [vmem:[#allocation4 + $0x258] sm:$0xf] %v1508
    %1573 = vst [vmem:[#allocation4 + $0x27c] sm:$0xf] %v1509
    %1574 = vst [vmem:[#allocation4 + $0x2a0] sm:$0xf] %v1510
    %1575 = vst [vmem:[#allocation4 + $0x2c4] sm:$0xf] %v1511
    %1576 = vst [vmem:[#allocation4 + $0x2e8] sm:$0xf] %v1512
    %1577 = vst [vmem:[#allocation4 + $0x30c] sm:$0xf] %v1513
    %1578 = vst [vmem:[#allocation4 + $0x330] sm:$0xf] %v1514
    %1579 = vst [vmem:[#allocation4 + $0x354] sm:$0xf] %v1515
    %1580 = vst [vmem:[#allocation4 + $0x378] sm:$0xf] %v1516
    %1581 = vst [vmem:[#allocation4 + $0x39c] sm:$0xf] %v1517
    %1582 = vst [vmem:[#allocation4 + $0x3c0] sm:$0xf] %v1518
    %1583 = vst [vmem:[#allocation4 + $0x3e4] sm:$0xf] %v1519
    %1584 = vst [vmem:[#allocation4 + $0x408] sm:$0xf] %v1520
    %1585 = vst [vmem:[#allocation4 + $0x42c] sm:$0xf] %v1521
    %1586 = vst [vmem:[#allocation4 + $0x450] sm:$0xf] %v1522
    %1587 = vst [vmem:[#allocation4 + $0x474] sm:$0xf] %v1523
    %1588 = vst [vmem:[#allocation4 + $0x498] sm:$0xf] %v1524
    %1589 = vst [vmem:[#allocation4 + $0x4bc] sm:$0xf] %v1525
    %1590 = vst [vmem:[#allocation4 + $0x4e0] sm:$0xf] %v1526
    %1591 = vst [vmem:[#allocation4 + $0x504] sm:$0xf] %v1527
    %1592 = vst [vmem:[#allocation4 + $0x528] sm:$0xf] %v1528
    %1593 = vst [vmem:[#allocation4 + $0x54c] sm:$0xf] %v1529
    %1594 = vst [vmem:[#allocation4 + $0x570] sm:$0xf] %v1530
    %1595 = vst [vmem:[#allocation4 + $0x594] sm:$0xf] %v1531
    %1596 = vst [vmem:[#allocation4 + $0x5b8] sm:$0xf] %v1532
    %1597 = vst [vmem:[#allocation4 + $0x5dc] sm:$0xf] %v1533
    %1598 = vst [vmem:[#allocation4 + $0x600] sm:$0xf] %v1534
    %1599 = vst [vmem:[#allocation4 + $0x624] sm:$0xf] %v1535
    %1600 = vst [vmem:[#allocation4 + $0x648] sm:$0xf] %v1536
    %1601 = vst [vmem:[#allocation4 + $0x66c] sm:$0xf] %v1537
    %1602 = vst [vmem:[#allocation4 + $0x690] sm:$0xf] %v1538
    %1603 = vst [vmem:[#allocation4 + $0x6b4] sm:$0xf] %v1539
    %1604 = vst [vmem:[#allocation4 + $0x6d8] sm:$0xf] %v1540
    %1605 = vst [vmem:[#allocation4 + $0x6fc] sm:$0xf] %v1541
    %1606 = vst [vmem:[#allocation4 + $0x720] sm:$0xf] %v1542
    %1607 = vst [vmem:[#allocation4 + $0x744] sm:$0xf] %v1543
    %1608 = vst [vmem:[#allocation4 + $0x768] sm:$0xf] %v1544
    %1609 = vst [vmem:[#allocation4 + $0x78c] sm:$0xf] %v1545
    %1610 = vst [vmem:[#allocation4 + $0x7b0] sm:$0xf] %v1546
    %1611 = vst [vmem:[#allocation4 + $0x7d4] sm:$0xf] %v1547
    %1612 = vst [vmem:[#allocation4 + $0x7f8] sm:$0xf] %v1548
    %1613 = vst [vmem:[#allocation4 + $0x81c] sm:$0xf] %v1549
    %1614 = vst [vmem:[#allocation4 + $0x840] sm:$0xf] %v1550
    %1615 = vst [vmem:[#allocation4 + $0x864] sm:$0xf] %v1551
    %1616 = vst [vmem:[#allocation4 + $0x888] sm:$0xf] %v1552
    %1617 = vst [vmem:[#allocation4 + $0x8ac] sm:$0xf] %v1553
    %1618 = vst [vmem:[#allocation4 + $0x8d0] sm:$0xf] %v1554
    %1619 = vst [vmem:[#allocation4 + $0x8f4] sm:$0xf] %v1555
    %v1620 = vld [vmem:[%s1427 + $0x1] sm:$0xff]
    %v1621 = vld [vmem:[%s1427 + $0x9] sm:$0xff]
    %v1622 = vld [vmem:[%s1427 + $0x19] sm:$0xff]
    %v1623 = vld [vmem:[%s1427 + $0x21] sm:$0xff]
    %v1624 = vld [vmem:[%s1427 + $0x31] sm:$0xff]
    %v1625 = vld [vmem:[%s1427 + $0x39] sm:$0xff]
    %v1626 = vld [vmem:[%s1427 + $0x49] sm:$0xff]
    %v1627 = vld [vmem:[%s1427 + $0x51] sm:$0xff]
    %v1628 = vld [vmem:[%s1427 + $0x61] sm:$0xff]
    %v1629 = vld [vmem:[%s1427 + $0x69] sm:$0xff]
    %v1630 = vld [vmem:[%s1427 + $0x79] sm:$0xff]
    %v1631 = vld [vmem:[%s1427 + $0x81] sm:$0xff]
    %v1632 = vld [vmem:[%s1427 + $0x91] sm:$0xff]
    %v1633 = vld [vmem:[%s1427 + $0x99] sm:$0xff]
    %v1634 = vld [vmem:[%s1427 + $0xa9] sm:$0xff]
    %v1635 = vld [vmem:[%s1427 + $0xb1] sm:$0xff]
    %v1636 = vld [vmem:[%s1427 + $0xc1] sm:$0xff]
    %v1637 = vld [vmem:[%s1427 + $0xc9] sm:$0xff]
    %v1638 = vld [vmem:[%s1427 + $0xd9] sm:$0xff]
    %v1639 = vld [vmem:[%s1427 + $0xe1] sm:$0xff]
    %v1640 = vld [vmem:[%s1427 + $0xf1] sm:$0xff]
    %v1641 = vld [vmem:[%s1427 + $0xf9] sm:$0xff]
    %v1642 = vld [vmem:[%s1427 + $0x109] sm:$0xff]
    %v1643 = vld [vmem:[%s1427 + $0x111] sm:$0xff]
    %v1644 = vld [vmem:[%s1427 + $0x121] sm:$0xff]
    %v1645 = vld [vmem:[%s1427 + $0x129] sm:$0xff]
    %v1646 = vld [vmem:[%s1427 + $0x139] sm:$0xff]
    %v1647 = vld [vmem:[%s1427 + $0x141] sm:$0xff]
    %v1648 = vld [vmem:[%s1427 + $0x151] sm:$0xff]
    %v1649 = vld [vmem:[%s1427 + $0x159] sm:$0xff]
    %v1650 = vld [vmem:[%s1427 + $0x169] sm:$0xff]
    %v1651 = vld [vmem:[%s1427 + $0x171] sm:$0xff]
    %v1652 = vld [vmem:[%s1427 + $0x1b1] sm:$0xff]
    %v1653 = vld [vmem:[%s1427 + $0x1b9] sm:$0xff]
    %v1654 = vld [vmem:[%s1427 + $0x1c9] sm:$0xff]
    %v1655 = vld [vmem:[%s1427 + $0x1d1] sm:$0xff]
    %v1656 = vld [vmem:[%s1427 + $0x1e1] sm:$0xff]
    %v1657 = vld [vmem:[%s1427 + $0x1e9] sm:$0xff]
    %v1658 = vld [vmem:[%s1427 + $0x1f9] sm:$0xff]
    %v1659 = vld [vmem:[%s1427 + $0x201] sm:$0xff]
    %v1660 = vld [vmem:[%s1427 + $0x211] sm:$0xff]
    %v1661 = vld [vmem:[%s1427 + $0x219] sm:$0xff]
    %v1662 = vld [vmem:[%s1427 + $0x229] sm:$0xff]
    %v1663 = vld [vmem:[%s1427 + $0x231] sm:$0xff]
    %v1664 = vld [vmem:[%s1427 + $0x241] sm:$0xff]
    %v1665 = vld [vmem:[%s1427 + $0x249] sm:$0xff]
    %v1666 = vld [vmem:[%s1427 + $0x259] sm:$0xff]
    %v1667 = vld [vmem:[%s1427 + $0x261] sm:$0xff]
    %v1668 = vld [vmem:[%s1427 + $0x271] sm:$0xff]
    %v1669 = vld [vmem:[%s1427 + $0x279] sm:$0xff]
    %v1670 = vld [vmem:[%s1427 + $0x289] sm:$0xff]
    %v1671 = vld [vmem:[%s1427 + $0x291] sm:$0xff]
    %v1672 = vld [vmem:[%s1427 + $0x2a1] sm:$0xff]
    %v1673 = vld [vmem:[%s1427 + $0x2a9] sm:$0xff]
    %v1674 = vld [vmem:[%s1427 + $0x2b9] sm:$0xff]
    %v1675 = vld [vmem:[%s1427 + $0x2c1] sm:$0xff]
    %v1676 = vld [vmem:[%s1427 + $0x2d1] sm:$0xff]
    %v1677 = vld [vmem:[%s1427 + $0x2d9] sm:$0xff]
    %v1678 = vld [vmem:[%s1427 + $0x2e9] sm:$0xff]
    %v1679 = vld [vmem:[%s1427 + $0x2f1] sm:$0xff]
    %v1680 = vld [vmem:[%s1427 + $0x301] sm:$0xff]
    %v1681 = vld [vmem:[%s1427 + $0x309] sm:$0xff]
    %v1682 = vld [vmem:[%s1427 + $0x319] sm:$0xff]
    %v1683 = vld [vmem:[%s1427 + $0x321] sm:$0xff]
    %v1684 = vpack.c.bf16 %v1620, %v1620
    %v1685 = vpack.c.bf16 %v1621, %v1621
    %v1686 = vpack.c.bf16 %v1622, %v1622
    %v1687 = vpack.c.bf16 %v1623, %v1623
    %v1688 = vpack.c.bf16 %v1624, %v1624
    %v1689 = vpack.c.bf16 %v1625, %v1625
    %v1690 = vpack.c.bf16 %v1626, %v1626
    %v1691 = vpack.c.bf16 %v1627, %v1627
    %v1692 = vpack.c.bf16 %v1628, %v1628
    %v1693 = vpack.c.bf16 %v1629, %v1629
    %v1694 = vpack.c.bf16 %v1630, %v1630
    %v1695 = vpack.c.bf16 %v1631, %v1631
    %v1696 = vpack.c.bf16 %v1632, %v1632
    %v1697 = vpack.c.bf16 %v1633, %v1633
    %v1698 = vpack.c.bf16 %v1634, %v1634
    %v1699 = vpack.c.bf16 %v1635, %v1635
    %v1700 = vpack.c.bf16 %v1636, %v1636
    %v1701 = vpack.c.bf16 %v1637, %v1637
    %v1702 = vpack.c.bf16 %v1638, %v1638
    %v1703 = vpack.c.bf16 %v1639, %v1639
    %v1704 = vpack.c.bf16 %v1640, %v1640
    %v1705 = vpack.c.bf16 %v1641, %v1641
    %v1706 = vpack.c.bf16 %v1642, %v1642
    %v1707 = vpack.c.bf16 %v1643, %v1643
    %v1708 = vpack.c.bf16 %v1644, %v1644
    %v1709 = vpack.c.bf16 %v1645, %v1645
    %v1710 = vpack.c.bf16 %v1646, %v1646
    %v1711 = vpack.c.bf16 %v1647, %v1647
    %v1712 = vpack.c.bf16 %v1648, %v1648
    %v1713 = vpack.c.bf16 %v1649, %v1649
    %v1714 = vpack.c.bf16 %v1650, %v1650
    %v1715 = vpack.c.bf16 %v1651, %v1651
    %v1716 = vpack.c.bf16 %v1652, %v1652
    %v1717 = vpack.c.bf16 %v1653, %v1653
    %v1718 = vpack.c.bf16 %v1654, %v1654
    %v1719 = vpack.c.bf16 %v1655, %v1655
    %v1720 = vpack.c.bf16 %v1656, %v1656
    %v1721 = vpack.c.bf16 %v1657, %v1657
    %v1722 = vpack.c.bf16 %v1658, %v1658
    %v1723 = vpack.c.bf16 %v1659, %v1659
    %v1724 = vpack.c.bf16 %v1660, %v1660
    %v1725 = vpack.c.bf16 %v1661, %v1661
    %v1726 = vpack.c.bf16 %v1662, %v1662
    %v1727 = vpack.c.bf16 %v1663, %v1663
    %v1728 = vpack.c.bf16 %v1664, %v1664
    %v1729 = vpack.c.bf16 %v1665, %v1665
    %v1730 = vpack.c.bf16 %v1666, %v1666
    %v1731 = vpack.c.bf16 %v1667, %v1667
    %v1732 = vpack.c.bf16 %v1668, %v1668
    %v1733 = vpack.c.bf16 %v1669, %v1669
    %v1734 = vpack.c.bf16 %v1670, %v1670
    %v1735 = vpack.c.bf16 %v1671, %v1671
    %v1736 = vpack.c.bf16 %v1672, %v1672
    %v1737 = vpack.c.bf16 %v1673, %v1673
    %v1738 = vpack.c.bf16 %v1674, %v1674
    %v1739 = vpack.c.bf16 %v1675, %v1675
    %v1740 = vpack.c.bf16 %v1676, %v1676
    %v1741 = vpack.c.bf16 %v1677, %v1677
    %v1742 = vpack.c.bf16 %v1678, %v1678
    %v1743 = vpack.c.bf16 %v1679, %v1679
    %v1744 = vpack.c.bf16 %v1680, %v1680
    %v1745 = vpack.c.bf16 %v1681, %v1681
    %v1746 = vpack.c.bf16 %v1682, %v1682
    %v1747 = vpack.c.bf16 %v1683, %v1683
    %1748 = vst [vmem:[#allocation4 + $0x1c] sm:$0xf] %v1684
    %1749 = vst [vmem:[#allocation4 + $0x40] sm:$0xf] %v1685
    %1750 = vst [vmem:[#allocation4 + $0x64] sm:$0xf] %v1686
    %1751 = vst [vmem:[#allocation4 + $0x88] sm:$0xf] %v1687
    %1752 = vst [vmem:[#allocation4 + $0xac] sm:$0xf] %v1688
    %1753 = vst [vmem:[#allocation4 + $0xd0] sm:$0xf] %v1689
    %1754 = vst [vmem:[#allocation4 + $0xf4] sm:$0xf] %v1690
    %1755 = vst [vmem:[#allocation4 + $0x118] sm:$0xf] %v1691
    %1756 = vst [vmem:[#allocation4 + $0x13c] sm:$0xf] %v1692
    %1757 = vst [vmem:[#allocation4 + $0x160] sm:$0xf] %v1693
    %1758 = vst [vmem:[#allocation4 + $0x184] sm:$0xf] %v1694
    %1759 = vst [vmem:[#allocation4 + $0x1a8] sm:$0xf] %v1695
    %1760 = vst [vmem:[#allocation4 + $0x1cc] sm:$0xf] %v1696
    %1761 = vst [vmem:[#allocation4 + $0x1f0] sm:$0xf] %v1697
    %1762 = vst [vmem:[#allocation4 + $0x214] sm:$0xf] %v1698
    %1763 = vst [vmem:[#allocation4 + $0x238] sm:$0xf] %v1699
    %1764 = vst [vmem:[#allocation4 + $0x25c] sm:$0xf] %v1700
    %1765 = vst [vmem:[#allocation4 + $0x280] sm:$0xf] %v1701
    %1766 = vst [vmem:[#allocation4 + $0x2a4] sm:$0xf] %v1702
    %1767 = vst [vmem:[#allocation4 + $0x2c8] sm:$0xf] %v1703
    %1768 = vst [vmem:[#allocation4 + $0x2ec] sm:$0xf] %v1704
    %1769 = vst [vmem:[#allocation4 + $0x310] sm:$0xf] %v1705
    %1770 = vst [vmem:[#allocation4 + $0x334] sm:$0xf] %v1706
    %1771 = vst [vmem:[#allocation4 + $0x358] sm:$0xf] %v1707
    %1772 = vst [vmem:[#allocation4 + $0x37c] sm:$0xf] %v1708
    %1773 = vst [vmem:[#allocation4 + $0x3a0] sm:$0xf] %v1709
    %1774 = vst [vmem:[#allocation4 + $0x3c4] sm:$0xf] %v1710
    %1775 = vst [vmem:[#allocation4 + $0x3e8] sm:$0xf] %v1711
    %1776 = vst [vmem:[#allocation4 + $0x40c] sm:$0xf] %v1712
    %1777 = vst [vmem:[#allocation4 + $0x430] sm:$0xf] %v1713
    %1778 = vst [vmem:[#allocation4 + $0x454] sm:$0xf] %v1714
    %1779 = vst [vmem:[#allocation4 + $0x478] sm:$0xf] %v1715
    %1780 = vst [vmem:[#allocation4 + $0x49c] sm:$0xf] %v1716
    %1781 = vst [vmem:[#allocation4 + $0x4c0] sm:$0xf] %v1717
    %1782 = vst [vmem:[#allocation4 + $0x4e4] sm:$0xf] %v1718
    %1783 = vst [vmem:[#allocation4 + $0x508] sm:$0xf] %v1719
    %1784 = vst [vmem:[#allocation4 + $0x52c] sm:$0xf] %v1720
    %1785 = vst [vmem:[#allocation4 + $0x550] sm:$0xf] %v1721
    %1786 = vst [vmem:[#allocation4 + $0x574] sm:$0xf] %v1722
    %1787 = vst [vmem:[#allocation4 + $0x598] sm:$0xf] %v1723
    %1788 = vst [vmem:[#allocation4 + $0x5bc] sm:$0xf] %v1724
    %1789 = vst [vmem:[#allocation4 + $0x5e0] sm:$0xf] %v1725
    %1790 = vst [vmem:[#allocation4 + $0x604] sm:$0xf] %v1726
    %1791 = vst [vmem:[#allocation4 + $0x628] sm:$0xf] %v1727
    %1792 = vst [vmem:[#allocation4 + $0x64c] sm:$0xf] %v1728
    %1793 = vst [vmem:[#allocation4 + $0x670] sm:$0xf] %v1729
    %1794 = vst [vmem:[#allocation4 + $0x694] sm:$0xf] %v1730
    %1795 = vst [vmem:[#allocation4 + $0x6b8] sm:$0xf] %v1731
    %1796 = vst [vmem:[#allocation4 + $0x6dc] sm:$0xf] %v1732
    %1797 = vst [vmem:[#allocation4 + $0x700] sm:$0xf] %v1733
    %1798 = vst [vmem:[#allocation4 + $0x724] sm:$0xf] %v1734
    %1799 = vst [vmem:[#allocation4 + $0x748] sm:$0xf] %v1735
    %1800 = vst [vmem:[#allocation4 + $0x76c] sm:$0xf] %v1736
    %1801 = vst [vmem:[#allocation4 + $0x790] sm:$0xf] %v1737
    %1802 = vst [vmem:[#allocation4 + $0x7b4] sm:$0xf] %v1738
    %1803 = vst [vmem:[#allocation4 + $0x7d8] sm:$0xf] %v1739
    %1804 = vst [vmem:[#allocation4 + $0x7fc] sm:$0xf] %v1740
    %1805 = vst [vmem:[#allocation4 + $0x820] sm:$0xf] %v1741
    %1806 = vst [vmem:[#allocation4 + $0x844] sm:$0xf] %v1742
    %1807 = vst [vmem:[#allocation4 + $0x868] sm:$0xf] %v1743
    %1808 = vst [vmem:[#allocation4 + $0x88c] sm:$0xf] %v1744
    %1809 = vst [vmem:[#allocation4 + $0x8b0] sm:$0xf] %v1745
    %1810 = vst [vmem:[#allocation4 + $0x8d4] sm:$0xf] %v1746
    %1811 = vst [vmem:[#allocation4 + $0x8f8] sm:$0xf] %v1747
    %v1812 = vld [vmem:[%s1427 + $0x2] sm:$0xff]
    %v1813 = vld [vmem:[%s1427 + $0xa] sm:$0xff]
    %v1814 = vld [vmem:[%s1427 + $0x1a] sm:$0xff]
    %v1815 = vld [vmem:[%s1427 + $0x22] sm:$0xff]
    %v1816 = vld [vmem:[%s1427 + $0x32] sm:$0xff]
    %v1817 = vld [vmem:[%s1427 + $0x3a] sm:$0xff]
    %v1818 = vld [vmem:[%s1427 + $0x4a] sm:$0xff]
    %v1819 = vld [vmem:[%s1427 + $0x52] sm:$0xff]
    %v1820 = vld [vmem:[%s1427 + $0x62] sm:$0xff]
    %v1821 = vld [vmem:[%s1427 + $0x6a] sm:$0xff]
    %v1822 = vld [vmem:[%s1427 + $0x7a] sm:$0xff]
    %v1823 = vld [vmem:[%s1427 + $0x82] sm:$0xff]
    %v1824 = vld [vmem:[%s1427 + $0x92] sm:$0xff]
    %v1825 = vld [vmem:[%s1427 + $0x9a] sm:$0xff]
    %v1826 = vld [vmem:[%s1427 + $0xaa] sm:$0xff]
    %v1827 = vld [vmem:[%s1427 + $0xb2] sm:$0xff]
    %v1828 = vld [vmem:[%s1427 + $0xc2] sm:$0xff]
    %v1829 = vld [vmem:[%s1427 + $0xca] sm:$0xff]
    %v1830 = vld [vmem:[%s1427 + $0xda] sm:$0xff]
    %v1831 = vld [vmem:[%s1427 + $0xe2] sm:$0xff]
    %v1832 = vld [vmem:[%s1427 + $0xf2] sm:$0xff]
    %v1833 = vld [vmem:[%s1427 + $0xfa] sm:$0xff]
    %v1834 = vld [vmem:[%s1427 + $0x10a] sm:$0xff]
    %v1835 = vld [vmem:[%s1427 + $0x112] sm:$0xff]
    %v1836 = vld [vmem:[%s1427 + $0x122] sm:$0xff]
    %v1837 = vld [vmem:[%s1427 + $0x12a] sm:$0xff]
    %v1838 = vld [vmem:[%s1427 + $0x13a] sm:$0xff]
    %v1839 = vld [vmem:[%s1427 + $0x142] sm:$0xff]
    %v1840 = vld [vmem:[%s1427 + $0x152] sm:$0xff]
    %v1841 = vld [vmem:[%s1427 + $0x15a] sm:$0xff]
    %v1842 = vld [vmem:[%s1427 + $0x16a] sm:$0xff]
    %v1843 = vld [vmem:[%s1427 + $0x172] sm:$0xff]
    %v1844 = vld [vmem:[%s1427 + $0x1b2] sm:$0xff]
    %v1845 = vld [vmem:[%s1427 + $0x1ba] sm:$0xff]
    %v1846 = vld [vmem:[%s1427 + $0x1ca] sm:$0xff]
    %v1847 = vld [vmem:[%s1427 + $0x1d2] sm:$0xff]
    %v1848 = vld [vmem:[%s1427 + $0x1e2] sm:$0xff]
    %v1849 = vld [vmem:[%s1427 + $0x1ea] sm:$0xff]
    %v1850 = vld [vmem:[%s1427 + $0x1fa] sm:$0xff]
    %v1851 = vld [vmem:[%s1427 + $0x202] sm:$0xff]
    %v1852 = vld [vmem:[%s1427 + $0x212] sm:$0xff]
    %v1853 = vld [vmem:[%s1427 + $0x21a] sm:$0xff]
    %v1854 = vld [vmem:[%s1427 + $0x22a] sm:$0xff]
    %v1855 = vld [vmem:[%s1427 + $0x232] sm:$0xff]
    %v1856 = vld [vmem:[%s1427 + $0x242] sm:$0xff]
    %v1857 = vld [vmem:[%s1427 + $0x24a] sm:$0xff]
    %v1858 = vld [vmem:[%s1427 + $0x25a] sm:$0xff]
    %v1859 = vld [vmem:[%s1427 + $0x262] sm:$0xff]
    %v1860 = vld [vmem:[%s1427 + $0x272] sm:$0xff]
    %v1861 = vld [vmem:[%s1427 + $0x27a] sm:$0xff]
    %v1862 = vld [vmem:[%s1427 + $0x28a] sm:$0xff]
    %v1863 = vld [vmem:[%s1427 + $0x292] sm:$0xff]
    %v1864 = vld [vmem:[%s1427 + $0x2a2] sm:$0xff]
    %v1865 = vld [vmem:[%s1427 + $0x2aa] sm:$0xff]
    %v1866 = vld [vmem:[%s1427 + $0x2ba] sm:$0xff]
    %v1867 = vld [vmem:[%s1427 + $0x2c2] sm:$0xff]
    %v1868 = vld [vmem:[%s1427 + $0x2d2] sm:$0xff]
    %v1869 = vld [vmem:[%s1427 + $0x2da] sm:$0xff]
    %v1870 = vld [vmem:[%s1427 + $0x2ea] sm:$0xff]
    %v1871 = vld [vmem:[%s1427 + $0x2f2] sm:$0xff]
    %v1872 = vld [vmem:[%s1427 + $0x302] sm:$0xff]
    %v1873 = vld [vmem:[%s1427 + $0x30a] sm:$0xff]
    %v1874 = vld [vmem:[%s1427 + $0x31a] sm:$0xff]
    %v1875 = vld [vmem:[%s1427 + $0x322] sm:$0xff]
    %v1876 = vpack.c.bf16 %v1812, %v1812
    %v1877 = vpack.c.bf16 %v1813, %v1813
    %v1878 = vpack.c.bf16 %v1814, %v1814
    %v1879 = vpack.c.bf16 %v1815, %v1815
    %v1880 = vpack.c.bf16 %v1816, %v1816
    %v1881 = vpack.c.bf16 %v1817, %v1817
    %v1882 = vpack.c.bf16 %v1818, %v1818
    %v1883 = vpack.c.bf16 %v1819, %v1819
    %v1884 = vpack.c.bf16 %v1820, %v1820
    %v1885 = vpack.c.bf16 %v1821, %v1821
    %v1886 = vpack.c.bf16 %v1822, %v1822
    %v1887 = vpack.c.bf16 %v1823, %v1823
    %v1888 = vpack.c.bf16 %v1824, %v1824
    %v1889 = vpack.c.bf16 %v1825, %v1825
    %v1890 = vpack.c.bf16 %v1826, %v1826
    %v1891 = vpack.c.bf16 %v1827, %v1827
    %v1892 = vpack.c.bf16 %v1828, %v1828
    %v1893 = vpack.c.bf16 %v1829, %v1829
    %v1894 = vpack.c.bf16 %v1830, %v1830
    %v1895 = vpack.c.bf16 %v1831, %v1831
    %v1896 = vpack.c.bf16 %v1832, %v1832
    %v1897 = vpack.c.bf16 %v1833, %v1833
    %v1898 = vpack.c.bf16 %v1834, %v1834
    %v1899 = vpack.c.bf16 %v1835, %v1835
    %v1900 = vpack.c.bf16 %v1836, %v1836
    %v1901 = vpack.c.bf16 %v1837, %v1837
    %v1902 = vpack.c.bf16 %v1838, %v1838
    %v1903 = vpack.c.bf16 %v1839, %v1839
    %v1904 = vpack.c.bf16 %v1840, %v1840
    %v1905 = vpack.c.bf16 %v1841, %v1841
    %v1906 = vpack.c.bf16 %v1842, %v1842
    %v1907 = vpack.c.bf16 %v1843, %v1843
    %v1908 = vpack.c.bf16 %v1844, %v1844
    %v1909 = vpack.c.bf16 %v1845, %v1845
    %v1910 = vpack.c.bf16 %v1846, %v1846
    %v1911 = vpack.c.bf16 %v1847, %v1847
    %v1912 = vpack.c.bf16 %v1848, %v1848
    %v1913 = vpack.c.bf16 %v1849, %v1849
    %v1914 = vpack.c.bf16 %v1850, %v1850
    %v1915 = vpack.c.bf16 %v1851, %v1851
    %v1916 = vpack.c.bf16 %v1852, %v1852
    %v1917 = vpack.c.bf16 %v1853, %v1853
    %v1918 = vpack.c.bf16 %v1854, %v1854
    %v1919 = vpack.c.bf16 %v1855, %v1855
    %v1920 = vpack.c.bf16 %v1856, %v1856
    %v1921 = vpack.c.bf16 %v1857, %v1857
    %v1922 = vpack.c.bf16 %v1858, %v1858
    %v1923 = vpack.c.bf16 %v1859, %v1859
    %v1924 = vpack.c.bf16 %v1860, %v1860
    %v1925 = vpack.c.bf16 %v1861, %v1861
    %v1926 = vpack.c.bf16 %v1862, %v1862
    %v1927 = vpack.c.bf16 %v1863, %v1863
    %v1928 = vpack.c.bf16 %v1864, %v1864
    %v1929 = vpack.c.bf16 %v1865, %v1865
    %v1930 = vpack.c.bf16 %v1866, %v1866
    %v1931 = vpack.c.bf16 %v1867, %v1867
    %v1932 = vpack.c.bf16 %v1868, %v1868
    %v1933 = vpack.c.bf16 %v1869, %v1869
    %v1934 = vpack.c.bf16 %v1870, %v1870
    %v1935 = vpack.c.bf16 %v1871, %v1871
    %v1936 = vpack.c.bf16 %v1872, %v1872
    %v1937 = vpack.c.bf16 %v1873, %v1873
    %v1938 = vpack.c.bf16 %v1874, %v1874
    %v1939 = vpack.c.bf16 %v1875, %v1875
    %1940 = vst [vmem:[#allocation4 + $0x20] sm:$0xf] %v1876
    %1941 = vst [vmem:[#allocation4 + $0x44] sm:$0xf] %v1877
    %1942 = vst [vmem:[#allocation4 + $0x68] sm:$0xf] %v1878
    %1943 = vst [vmem:[#allocation4 + $0x8c] sm:$0xf] %v1879
    %1944 = vst [vmem:[#allocation4 + $0xb0] sm:$0xf] %v1880
    %1945 = vst [vmem:[#allocation4 + $0xd4] sm:$0xf] %v1881
    %1946 = vst [vmem:[#allocation4 + $0xf8] sm:$0xf] %v1882
    %1947 = vst [vmem:[#allocation4 + $0x11c] sm:$0xf] %v1883
    %1948 = vst [vmem:[#allocation4 + $0x140] sm:$0xf] %v1884
    %1949 = vst [vmem:[#allocation4 + $0x164] sm:$0xf] %v1885
    %1950 = vst [vmem:[#allocation4 + $0x188] sm:$0xf] %v1886
    %1951 = vst [vmem:[#allocation4 + $0x1ac] sm:$0xf] %v1887
    %1952 = vst [vmem:[#allocation4 + $0x1d0] sm:$0xf] %v1888
    %1953 = vst [vmem:[#allocation4 + $0x1f4] sm:$0xf] %v1889
    %1954 = vst [vmem:[#allocation4 + $0x218] sm:$0xf] %v1890
    %1955 = vst [vmem:[#allocation4 + $0x23c] sm:$0xf] %v1891
    %1956 = vst [vmem:[#allocation4 + $0x260] sm:$0xf] %v1892
    %1957 = vst [vmem:[#allocation4 + $0x284] sm:$0xf] %v1893
    %1958 = vst [vmem:[#allocation4 + $0x2a8] sm:$0xf] %v1894
    %1959 = vst [vmem:[#allocation4 + $0x2cc] sm:$0xf] %v1895
    %1960 = vst [vmem:[#allocation4 + $0x2f0] sm:$0xf] %v1896
    %1961 = vst [vmem:[#allocation4 + $0x314] sm:$0xf] %v1897
    %1962 = vst [vmem:[#allocation4 + $0x338] sm:$0xf] %v1898
    %1963 = vst [vmem:[#allocation4 + $0x35c] sm:$0xf] %v1899
    %1964 = vst [vmem:[#allocation4 + $0x380] sm:$0xf] %v1900
    %1965 = vst [vmem:[#allocation4 + $0x3a4] sm:$0xf] %v1901
    %1966 = vst [vmem:[#allocation4 + $0x3c8] sm:$0xf] %v1902
    %1967 = vst [vmem:[#allocation4 + $0x3ec] sm:$0xf] %v1903
    %1968 = vst [vmem:[#allocation4 + $0x410] sm:$0xf] %v1904
    %1969 = vst [vmem:[#allocation4 + $0x434] sm:$0xf] %v1905
    %1970 = vst [vmem:[#allocation4 + $0x458] sm:$0xf] %v1906
    %1971 = vst [vmem:[#allocation4 + $0x47c] sm:$0xf] %v1907
    %1972 = vst [vmem:[#allocation4 + $0x4a0] sm:$0xf] %v1908
    %1973 = vst [vmem:[#allocation4 + $0x4c4] sm:$0xf] %v1909
    %1974 = vst [vmem:[#allocation4 + $0x4e8] sm:$0xf] %v1910
    %1975 = vst [vmem:[#allocation4 + $0x50c] sm:$0xf] %v1911
    %1976 = vst [vmem:[#allocation4 + $0x530] sm:$0xf] %v1912
    %1977 = vst [vmem:[#allocation4 + $0x554] sm:$0xf] %v1913
    %1978 = vst [vmem:[#allocation4 + $0x578] sm:$0xf] %v1914
    %1979 = vst [vmem:[#allocation4 + $0x59c] sm:$0xf] %v1915
    %1980 = vst [vmem:[#allocation4 + $0x5c0] sm:$0xf] %v1916
    %1981 = vst [vmem:[#allocation4 + $0x5e4] sm:$0xf] %v1917
    %1982 = vst [vmem:[#allocation4 + $0x608] sm:$0xf] %v1918
    %1983 = vst [vmem:[#allocation4 + $0x62c] sm:$0xf] %v1919
    %1984 = vst [vmem:[#allocation4 + $0x650] sm:$0xf] %v1920
    %1985 = vst [vmem:[#allocation4 + $0x674] sm:$0xf] %v1921
    %1986 = vst [vmem:[#allocation4 + $0x698] sm:$0xf] %v1922
    %1987 = vst [vmem:[#allocation4 + $0x6bc] sm:$0xf] %v1923
    %1988 = vst [vmem:[#allocation4 + $0x6e0] sm:$0xf] %v1924
    %1989 = vst [vmem:[#allocation4 + $0x704] sm:$0xf] %v1925
    %1990 = vst [vmem:[#allocation4 + $0x728] sm:$0xf] %v1926
    %1991 = vst [vmem:[#allocation4 + $0x74c] sm:$0xf] %v1927
    %1992 = vst [vmem:[#allocation4 + $0x770] sm:$0xf] %v1928
    %1993 = vst [vmem:[#allocation4 + $0x794] sm:$0xf] %v1929
    %1994 = vst [vmem:[#allocation4 + $0x7b8] sm:$0xf] %v1930
    %1995 = vst [vmem:[#allocation4 + $0x7dc] sm:$0xf] %v1931
    %1996 = vst [vmem:[#allocation4 + $0x800] sm:$0xf] %v1932
    %1997 = vst [vmem:[#allocation4 + $0x824] sm:$0xf] %v1933
    %1998 = vst [vmem:[#allocation4 + $0x848] sm:$0xf] %v1934
    %1999 = vst [vmem:[#allocation4 + $0x86c] sm:$0xf] %v1935
    %2000 = vst [vmem:[#allocation4 + $0x890] sm:$0xf] %v1936
    %2001 = vst [vmem:[#allocation4 + $0x8b4] sm:$0xf] %v1937
    %2002 = vst [vmem:[#allocation4 + $0x8d8] sm:$0xf] %v1938
    %2003 = vst [vmem:[#allocation4 + $0x8fc] sm:$0xf] %v1939
    %v2004 = vld [vmem:[#allocation4] sm:$0xff]
    %v2005 = vld [vmem:[#allocation4 + $0x8] sm:$0xff]
    %v2006 = vld [vmem:[#allocation4 + $0x10] sm:$0xff]
    %v2007 = vld [vmem:[#allocation4 + $0x18] sm:$0xff]
    %v2008 = vld [vmem:[#allocation4 + $0x20] sm:$0xf]
    %v2009 = vld [vmem:[#allocation4 + $0x24] sm:$0xff]
    %v2010 = vld [vmem:[#allocation4 + $0x2c] sm:$0xff]
    %v2011 = vld [vmem:[#allocation4 + $0x34] sm:$0xff]
    %v2012 = vld [vmem:[#allocation4 + $0x3c] sm:$0xff]
    %v2013 = vld [vmem:[#allocation4 + $0x44] sm:$0xf]
    %v2014 = vld [vmem:[#allocation4 + $0x48] sm:$0xff]
    %v2015 = vld [vmem:[#allocation4 + $0x50] sm:$0xff]
    %v2016 = vld [vmem:[#allocation4 + $0x58] sm:$0xff]
    %v2017 = vld [vmem:[#allocation4 + $0x60] sm:$0xff]
    %v2018 = vld [vmem:[#allocation4 + $0x68] sm:$0xf]
    %v2019 = vld [vmem:[#allocation4 + $0x6c] sm:$0xff]
    %v2020 = vld [vmem:[#allocation4 + $0x74] sm:$0xff]
    %v2021 = vld [vmem:[#allocation4 + $0x7c] sm:$0xff]
    %v2022 = vld [vmem:[#allocation4 + $0x84] sm:$0xff]
    %v2023 = vld [vmem:[#allocation4 + $0x8c] sm:$0xf]
    %v2024 = vld [vmem:[#allocation4 + $0x90] sm:$0xff]
    %v2025 = vld [vmem:[#allocation4 + $0x98] sm:$0xff]
    %v2026 = vld [vmem:[#allocation4 + $0xa0] sm:$0xff]
    %v2027 = vld [vmem:[#allocation4 + $0xa8] sm:$0xff]
    %v2028 = vld [vmem:[#allocation4 + $0xb0] sm:$0xf]
    %v2029 = vld [vmem:[#allocation4 + $0xb4] sm:$0xff]
    %v2030 = vld [vmem:[#allocation4 + $0xbc] sm:$0xff]
    %v2031 = vld [vmem:[#allocation4 + $0xc4] sm:$0xff]
    %v2032 = vld [vmem:[#allocation4 + $0xcc] sm:$0xff]
    %v2033 = vld [vmem:[#allocation4 + $0xd4] sm:$0xf]
    %v2034 = vld [vmem:[#allocation4 + $0xd8] sm:$0xff]
    %v2035 = vld [vmem:[#allocation4 + $0xe0] sm:$0xff]
    %v2036 = vld [vmem:[#allocation4 + $0xe8] sm:$0xff]
    %v2037 = vld [vmem:[#allocation4 + $0xf0] sm:$0xff]
    %v2038 = vld [vmem:[#allocation4 + $0xf8] sm:$0xf]
    %v2039 = vld [vmem:[#allocation4 + $0xfc] sm:$0xff]
    %v2040 = vld [vmem:[#allocation4 + $0x104] sm:$0xff]
    %v2041 = vld [vmem:[#allocation4 + $0x10c] sm:$0xff]
    %v2042 = vld [vmem:[#allocation4 + $0x114] sm:$0xff]
    %v2043 = vld [vmem:[#allocation4 + $0x11c] sm:$0xf]
    %v2044 = vld [vmem:[#allocation4 + $0x120] sm:$0xff]
    %v2045 = vld [vmem:[#allocation4 + $0x128] sm:$0xff]
    %v2046 = vld [vmem:[#allocation4 + $0x130] sm:$0xff]
    %v2047 = vld [vmem:[#allocation4 + $0x138] sm:$0xff]
    %v2048 = vld [vmem:[#allocation4 + $0x140] sm:$0xf]
    %v2049 = vld [vmem:[#allocation4 + $0x144] sm:$0xff]
    %v2050 = vld [vmem:[#allocation4 + $0x14c] sm:$0xff]
    %v2051 = vld [vmem:[#allocation4 + $0x154] sm:$0xff]
    %v2052 = vld [vmem:[#allocation4 + $0x15c] sm:$0xff]
    %v2053 = vld [vmem:[#allocation4 + $0x164] sm:$0xf]
    %v2054 = vld [vmem:[#allocation4 + $0x168] sm:$0xff]
    %v2055 = vld [vmem:[#allocation4 + $0x170] sm:$0xff]
    %v2056 = vld [vmem:[#allocation4 + $0x178] sm:$0xff]
    %v2057 = vld [vmem:[#allocation4 + $0x180] sm:$0xff]
    %v2058 = vld [vmem:[#allocation4 + $0x188] sm:$0xf]
    %v2059 = vld [vmem:[#allocation4 + $0x18c] sm:$0xff]
    %v2060 = vld [vmem:[#allocation4 + $0x194] sm:$0xff]
    %v2061 = vld [vmem:[#allocation4 + $0x19c] sm:$0xff]
    %v2062 = vld [vmem:[#allocation4 + $0x1a4] sm:$0xff]
    %v2063 = vld [vmem:[#allocation4 + $0x1ac] sm:$0xf]
    %v2064 = vld [vmem:[#allocation4 + $0x1b0] sm:$0xff]
    %v2065 = vld [vmem:[#allocation4 + $0x1b8] sm:$0xff]
    %v2066 = vld [vmem:[#allocation4 + $0x1c0] sm:$0xff]
    %v2067 = vld [vmem:[#allocation4 + $0x1c8] sm:$0xff]
    %v2068 = vld [vmem:[#allocation4 + $0x1d0] sm:$0xf]
    %v2069 = vld [vmem:[#allocation4 + $0x1d4] sm:$0xff]
    %v2070 = vld [vmem:[#allocation4 + $0x1dc] sm:$0xff]
    %v2071 = vld [vmem:[#allocation4 + $0x1e4] sm:$0xff]
    %v2072 = vld [vmem:[#allocation4 + $0x1ec] sm:$0xff]
    %v2073 = vld [vmem:[#allocation4 + $0x1f4] sm:$0xf]
    %v2074 = vld [vmem:[#allocation4 + $0x1f8] sm:$0xff]
    %v2075 = vld [vmem:[#allocation4 + $0x200] sm:$0xff]
    %v2076 = vld [vmem:[#allocation4 + $0x208] sm:$0xff]
    %v2077 = vld [vmem:[#allocation4 + $0x210] sm:$0xff]
    %v2078 = vld [vmem:[#allocation4 + $0x218] sm:$0xf]
    %v2079 = vld [vmem:[#allocation4 + $0x21c] sm:$0xff]
    %v2080 = vld [vmem:[#allocation4 + $0x224] sm:$0xff]
    %v2081 = vld [vmem:[#allocation4 + $0x22c] sm:$0xff]
    %v2082 = vld [vmem:[#allocation4 + $0x234] sm:$0xff]
    %v2083 = vld [vmem:[#allocation4 + $0x23c] sm:$0xf]
    %v2084 = vld [vmem:[#allocation4 + $0x240] sm:$0xff]
    %v2085 = vld [vmem:[#allocation4 + $0x248] sm:$0xff]
    %v2086 = vld [vmem:[#allocation4 + $0x250] sm:$0xff]
    %v2087 = vld [vmem:[#allocation4 + $0x258] sm:$0xff]
    %v2088 = vld [vmem:[#allocation4 + $0x260] sm:$0xf]
    %v2089 = vld [vmem:[#allocation4 + $0x264] sm:$0xff]
    %v2090 = vld [vmem:[#allocation4 + $0x26c] sm:$0xff]
    %v2091 = vld [vmem:[#allocation4 + $0x274] sm:$0xff]
    %v2092 = vld [vmem:[#allocation4 + $0x27c] sm:$0xff]
    %v2093 = vld [vmem:[#allocation4 + $0x284] sm:$0xf]
    %v2094 = vld [vmem:[#allocation4 + $0x288] sm:$0xff]
    %v2095 = vld [vmem:[#allocation4 + $0x290] sm:$0xff]
    %v2096 = vld [vmem:[#allocation4 + $0x298] sm:$0xff]
    %v2097 = vld [vmem:[#allocation4 + $0x2a0] sm:$0xff]
    %v2098 = vld [vmem:[#allocation4 + $0x2a8] sm:$0xf]
    %v2099 = vld [vmem:[#allocation4 + $0x2ac] sm:$0xff]
    %v2100 = vld [vmem:[#allocation4 + $0x2b4] sm:$0xff]
    %v2101 = vld [vmem:[#allocation4 + $0x2bc] sm:$0xff]
    %v2102 = vld [vmem:[#allocation4 + $0x2c4] sm:$0xff]
    %v2103 = vld [vmem:[#allocation4 + $0x2cc] sm:$0xf]
    %v2104 = vld [vmem:[#allocation4 + $0x2d0] sm:$0xff]
    %v2105 = vld [vmem:[#allocation4 + $0x2d8] sm:$0xff]
    %v2106 = vld [vmem:[#allocation4 + $0x2e0] sm:$0xff]
    %v2107 = vld [vmem:[#allocation4 + $0x2e8] sm:$0xff]
    %v2108 = vld [vmem:[#allocation4 + $0x2f0] sm:$0xf]
    %v2109 = vld [vmem:[#allocation4 + $0x2f4] sm:$0xff]
    %v2110 = vld [vmem:[#allocation4 + $0x2fc] sm:$0xff]
    %v2111 = vld [vmem:[#allocation4 + $0x304] sm:$0xff]
    %v2112 = vld [vmem:[#allocation4 + $0x30c] sm:$0xff]
    %v2113 = vld [vmem:[#allocation4 + $0x314] sm:$0xf]
    %v2114 = vld [vmem:[#allocation4 + $0x318] sm:$0xff]
    %v2115 = vld [vmem:[#allocation4 + $0x320] sm:$0xff]
    %v2116 = vld [vmem:[#allocation4 + $0x328] sm:$0xff]
    %v2117 = vld [vmem:[#allocation4 + $0x330] sm:$0xff]
    %v2118 = vld [vmem:[#allocation4 + $0x338] sm:$0xf]
    %v2119 = vld [vmem:[#allocation4 + $0x33c] sm:$0xff]
    %v2120 = vld [vmem:[#allocation4 + $0x344] sm:$0xff]
    %v2121 = vld [vmem:[#allocation4 + $0x34c] sm:$0xff]
    %v2122 = vld [vmem:[#allocation4 + $0x354] sm:$0xff]
    %v2123 = vld [vmem:[#allocation4 + $0x35c] sm:$0xf]
    %v2124 = vld [vmem:[#allocation4 + $0x360] sm:$0xff]
    %v2125 = vld [vmem:[#allocation4 + $0x368] sm:$0xff]
    %v2126 = vld [vmem:[#allocation4 + $0x370] sm:$0xff]
    %v2127 = vld [vmem:[#allocation4 + $0x378] sm:$0xff]
    %v2128 = vld [vmem:[#allocation4 + $0x380] sm:$0xf]
    %v2129 = vld [vmem:[#allocation4 + $0x384] sm:$0xff]
    %v2130 = vld [vmem:[#allocation4 + $0x38c] sm:$0xff]
    %v2131 = vld [vmem:[#allocation4 + $0x394] sm:$0xff]
    %v2132 = vld [vmem:[#allocation4 + $0x39c] sm:$0xff]
    %v2133 = vld [vmem:[#allocation4 + $0x3a4] sm:$0xf]
    %v2134 = vld [vmem:[#allocation4 + $0x3a8] sm:$0xff]
    %v2135 = vld [vmem:[#allocation4 + $0x3b0] sm:$0xff]
    %v2136 = vld [vmem:[#allocation4 + $0x3b8] sm:$0xff]
    %v2137 = vld [vmem:[#allocation4 + $0x3c0] sm:$0xff]
    %v2138 = vld [vmem:[#allocation4 + $0x3c8] sm:$0xf]
    %v2139 = vld [vmem:[#allocation4 + $0x3cc] sm:$0xff]
    %v2140 = vld [vmem:[#allocation4 + $0x3d4] sm:$0xff]
    %v2141 = vld [vmem:[#allocation4 + $0x3dc] sm:$0xff]
    %v2142 = vld [vmem:[#allocation4 + $0x3e4] sm:$0xff]
    %v2143 = vld [vmem:[#allocation4 + $0x3ec] sm:$0xf]
    %v2144 = vld [vmem:[#allocation4 + $0x3f0] sm:$0xff]
    %v2145 = vld [vmem:[#allocation4 + $0x3f8] sm:$0xff]
    %v2146 = vld [vmem:[#allocation4 + $0x400] sm:$0xff]
    %v2147 = vld [vmem:[#allocation4 + $0x408] sm:$0xff]
    %v2148 = vld [vmem:[#allocation4 + $0x410] sm:$0xf]
    %v2149 = vld [vmem:[#allocation4 + $0x414] sm:$0xff]
    %v2150 = vld [vmem:[#allocation4 + $0x41c] sm:$0xff]
    %v2151 = vld [vmem:[#allocation4 + $0x424] sm:$0xff]
    %v2152 = vld [vmem:[#allocation4 + $0x42c] sm:$0xff]
    %v2153 = vld [vmem:[#allocation4 + $0x434] sm:$0xf]
    %v2154 = vld [vmem:[#allocation4 + $0x438] sm:$0xff]
    %v2155 = vld [vmem:[#allocation4 + $0x440] sm:$0xff]
    %v2156 = vld [vmem:[#allocation4 + $0x448] sm:$0xff]
    %v2157 = vld [vmem:[#allocation4 + $0x450] sm:$0xff]
    %v2158 = vld [vmem:[#allocation4 + $0x458] sm:$0xf]
    %v2159 = vld [vmem:[#allocation4 + $0x45c] sm:$0xff]
    %v2160 = vld [vmem:[#allocation4 + $0x464] sm:$0xff]
    %v2161 = vld [vmem:[#allocation4 + $0x46c] sm:$0xff]
    %v2162 = vld [vmem:[#allocation4 + $0x474] sm:$0xff]
    %v2163 = vld [vmem:[#allocation4 + $0x47c] sm:$0xf]
    %v2164 = vld [vmem:[#allocation4 + $0x480] sm:$0xff]
    %v2165 = vld [vmem:[#allocation4 + $0x488] sm:$0xff]
    %v2166 = vld [vmem:[#allocation4 + $0x490] sm:$0xff]
    %v2167 = vld [vmem:[#allocation4 + $0x498] sm:$0xff]
    %v2168 = vld [vmem:[#allocation4 + $0x4a0] sm:$0xf]
    %v2169 = vld [vmem:[#allocation4 + $0x4a4] sm:$0xff]
    %v2170 = vld [vmem:[#allocation4 + $0x4ac] sm:$0xff]
    %v2171 = vld [vmem:[#allocation4 + $0x4b4] sm:$0xff]
    %v2172 = vld [vmem:[#allocation4 + $0x4bc] sm:$0xff]
    %v2173 = vld [vmem:[#allocation4 + $0x4c4] sm:$0xf]
    %v2174 = vld [vmem:[#allocation4 + $0x4c8] sm:$0xff]
    %v2175 = vld [vmem:[#allocation4 + $0x4d0] sm:$0xff]
    %v2176 = vld [vmem:[#allocation4 + $0x4d8] sm:$0xff]
    %v2177 = vld [vmem:[#allocation4 + $0x4e0] sm:$0xff]
    %v2178 = vld [vmem:[#allocation4 + $0x4e8] sm:$0xf]
    %v2179 = vld [vmem:[#allocation4 + $0x4ec] sm:$0xff]
    %v2180 = vld [vmem:[#allocation4 + $0x4f4] sm:$0xff]
    %v2181 = vld [vmem:[#allocation4 + $0x4fc] sm:$0xff]
    %v2182 = vld [vmem:[#allocation4 + $0x504] sm:$0xff]
    %v2183 = vld [vmem:[#allocation4 + $0x50c] sm:$0xf]
    %v2184 = vld [vmem:[#allocation4 + $0x510] sm:$0xff]
    %v2185 = vld [vmem:[#allocation4 + $0x518] sm:$0xff]
    %v2186 = vld [vmem:[#allocation4 + $0x520] sm:$0xff]
    %v2187 = vld [vmem:[#allocation4 + $0x528] sm:$0xff]
    %v2188 = vld [vmem:[#allocation4 + $0x530] sm:$0xf]
    %v2189 = vld [vmem:[#allocation4 + $0x534] sm:$0xff]
    %v2190 = vld [vmem:[#allocation4 + $0x53c] sm:$0xff]
    %v2191 = vld [vmem:[#allocation4 + $0x544] sm:$0xff]
    %v2192 = vld [vmem:[#allocation4 + $0x54c] sm:$0xff]
    %v2193 = vld [vmem:[#allocation4 + $0x554] sm:$0xf]
    %v2194 = vld [vmem:[#allocation4 + $0x558] sm:$0xff]
    %v2195 = vld [vmem:[#allocation4 + $0x560] sm:$0xff]
    %v2196 = vld [vmem:[#allocation4 + $0x568] sm:$0xff]
    %v2197 = vld [vmem:[#allocation4 + $0x570] sm:$0xff]
    %v2198 = vld [vmem:[#allocation4 + $0x578] sm:$0xf]
    %v2199 = vld [vmem:[#allocation4 + $0x57c] sm:$0xff]
    %v2200 = vld [vmem:[#allocation4 + $0x584] sm:$0xff]
    %v2201 = vld [vmem:[#allocation4 + $0x58c] sm:$0xff]
    %v2202 = vld [vmem:[#allocation4 + $0x594] sm:$0xff]
    %v2203 = vld [vmem:[#allocation4 + $0x59c] sm:$0xf]
    %v2204 = vld [vmem:[#allocation4 + $0x5a0] sm:$0xff]
    %v2205 = vld [vmem:[#allocation4 + $0x5a8] sm:$0xff]
    %v2206 = vld [vmem:[#allocation4 + $0x5b0] sm:$0xff]
    %v2207 = vld [vmem:[#allocation4 + $0x5b8] sm:$0xff]
    %v2208 = vld [vmem:[#allocation4 + $0x5c0] sm:$0xf]
    %v2209 = vld [vmem:[#allocation4 + $0x5c4] sm:$0xff]
    %v2210 = vld [vmem:[#allocation4 + $0x5cc] sm:$0xff]
    %v2211 = vld [vmem:[#allocation4 + $0x5d4] sm:$0xff]
    %v2212 = vld [vmem:[#allocation4 + $0x5dc] sm:$0xff]
    %v2213 = vld [vmem:[#allocation4 + $0x5e4] sm:$0xf]
    %v2214 = vld [vmem:[#allocation4 + $0x5e8] sm:$0xff]
    %v2215 = vld [vmem:[#allocation4 + $0x5f0] sm:$0xff]
    %v2216 = vld [vmem:[#allocation4 + $0x5f8] sm:$0xff]
    %v2217 = vld [vmem:[#allocation4 + $0x600] sm:$0xff]
    %v2218 = vld [vmem:[#allocation4 + $0x608] sm:$0xf]
    %v2219 = vld [vmem:[#allocation4 + $0x60c] sm:$0xff]
    %v2220 = vld [vmem:[#allocation4 + $0x614] sm:$0xff]
    %v2221 = vld [vmem:[#allocation4 + $0x61c] sm:$0xff]
    %v2222 = vld [vmem:[#allocation4 + $0x624] sm:$0xff]
    %v2223 = vld [vmem:[#allocation4 + $0x62c] sm:$0xf]
    %v2224 = vld [vmem:[#allocation4 + $0x630] sm:$0xff]
    %v2225 = vld [vmem:[#allocation4 + $0x638] sm:$0xff]
    %v2226 = vld [vmem:[#allocation4 + $0x640] sm:$0xff]
    %v2227 = vld [vmem:[#allocation4 + $0x648] sm:$0xff]
    %v2228 = vld [vmem:[#allocation4 + $0x650] sm:$0xf]
    %v2229 = vld [vmem:[#allocation4 + $0x654] sm:$0xff]
    %v2230 = vld [vmem:[#allocation4 + $0x65c] sm:$0xff]
    %v2231 = vld [vmem:[#allocation4 + $0x664] sm:$0xff]
    %v2232 = vld [vmem:[#allocation4 + $0x66c] sm:$0xff]
    %v2233 = vld [vmem:[#allocation4 + $0x674] sm:$0xf]
    %v2234 = vld [vmem:[#allocation4 + $0x678] sm:$0xff]
    %v2235 = vld [vmem:[#allocation4 + $0x680] sm:$0xff]
    %v2236 = vld [vmem:[#allocation4 + $0x688] sm:$0xff]
    %v2237 = vld [vmem:[#allocation4 + $0x690] sm:$0xff]
    %v2238 = vld [vmem:[#allocation4 + $0x698] sm:$0xf]
    %v2239 = vld [vmem:[#allocation4 + $0x69c] sm:$0xff]
    %v2240 = vld [vmem:[#allocation4 + $0x6a4] sm:$0xff]
    %v2241 = vld [vmem:[#allocation4 + $0x6ac] sm:$0xff]
    %v2242 = vld [vmem:[#allocation4 + $0x6b4] sm:$0xff]
    %v2243 = vld [vmem:[#allocation4 + $0x6bc] sm:$0xf]
    %v2244 = vld [vmem:[#allocation4 + $0x6c0] sm:$0xff]
    %v2245 = vld [vmem:[#allocation4 + $0x6c8] sm:$0xff]
    %v2246 = vld [vmem:[#allocation4 + $0x6d0] sm:$0xff]
    %v2247 = vld [vmem:[#allocation4 + $0x6d8] sm:$0xff]
    %v2248 = vld [vmem:[#allocation4 + $0x6e0] sm:$0xf]
    %v2249 = vld [vmem:[#allocation4 + $0x6e4] sm:$0xff]
    %v2250 = vld [vmem:[#allocation4 + $0x6ec] sm:$0xff]
    %v2251 = vld [vmem:[#allocation4 + $0x6f4] sm:$0xff]
    %v2252 = vld [vmem:[#allocation4 + $0x6fc] sm:$0xff]
    %v2253 = vld [vmem:[#allocation4 + $0x704] sm:$0xf]
    %v2254 = vld [vmem:[#allocation4 + $0x708] sm:$0xff]
    %v2255 = vld [vmem:[#allocation4 + $0x710] sm:$0xff]
    %v2256 = vld [vmem:[#allocation4 + $0x718] sm:$0xff]
    %v2257 = vld [vmem:[#allocation4 + $0x720] sm:$0xff]
    %v2258 = vld [vmem:[#allocation4 + $0x728] sm:$0xf]
    %v2259 = vld [vmem:[#allocation4 + $0x72c] sm:$0xff]
    %v2260 = vld [vmem:[#allocation4 + $0x734] sm:$0xff]
    %v2261 = vld [vmem:[#allocation4 + $0x73c] sm:$0xff]
    %v2262 = vld [vmem:[#allocation4 + $0x744] sm:$0xff]
    %v2263 = vld [vmem:[#allocation4 + $0x74c] sm:$0xf]
    %v2264 = vld [vmem:[#allocation4 + $0x750] sm:$0xff]
    %v2265 = vld [vmem:[#allocation4 + $0x758] sm:$0xff]
    %v2266 = vld [vmem:[#allocation4 + $0x760] sm:$0xff]
    %v2267 = vld [vmem:[#allocation4 + $0x768] sm:$0xff]
    %v2268 = vld [vmem:[#allocation4 + $0x770] sm:$0xf]
    %v2269 = vld [vmem:[#allocation4 + $0x774] sm:$0xff]
    %v2270 = vld [vmem:[#allocation4 + $0x77c] sm:$0xff]
    %v2271 = vld [vmem:[#allocation4 + $0x784] sm:$0xff]
    %v2272 = vld [vmem:[#allocation4 + $0x78c] sm:$0xff]
    %v2273 = vld [vmem:[#allocation4 + $0x794] sm:$0xf]
    %v2274 = vld [vmem:[#allocation4 + $0x798] sm:$0xff]
    %v2275 = vld [vmem:[#allocation4 + $0x7a0] sm:$0xff]
    %v2276 = vld [vmem:[#allocation4 + $0x7a8] sm:$0xff]
    %v2277 = vld [vmem:[#allocation4 + $0x7b0] sm:$0xff]
    %v2278 = vld [vmem:[#allocation4 + $0x7b8] sm:$0xf]
    %v2279 = vld [vmem:[#allocation4 + $0x7bc] sm:$0xff]
    %v2280 = vld [vmem:[#allocation4 + $0x7c4] sm:$0xff]
    %v2281 = vld [vmem:[#allocation4 + $0x7cc] sm:$0xff]
    %v2282 = vld [vmem:[#allocation4 + $0x7d4] sm:$0xff]
    %v2283 = vld [vmem:[#allocation4 + $0x7dc] sm:$0xf]
    %v2284 = vld [vmem:[#allocation4 + $0x7e0] sm:$0xff]
    %v2285 = vld [vmem:[#allocation4 + $0x7e8] sm:$0xff]
    %v2286 = vld [vmem:[#allocation4 + $0x7f0] sm:$0xff]
    %v2287 = vld [vmem:[#allocation4 + $0x7f8] sm:$0xff]
    %v2288 = vld [vmem:[#allocation4 + $0x800] sm:$0xf]
    %v2289 = vld [vmem:[#allocation4 + $0x804] sm:$0xff]
    %v2290 = vld [vmem:[#allocation4 + $0x80c] sm:$0xff]
    %v2291 = vld [vmem:[#allocation4 + $0x814] sm:$0xff]
    %v2292 = vld [vmem:[#allocation4 + $0x81c] sm:$0xff]
    %v2293 = vld [vmem:[#allocation4 + $0x824] sm:$0xf]
    %v2294 = vld [vmem:[#allocation4 + $0x828] sm:$0xff]
    %v2295 = vld [vmem:[#allocation4 + $0x830] sm:$0xff]
    %v2296 = vld [vmem:[#allocation4 + $0x838] sm:$0xff]
    %v2297 = vld [vmem:[#allocation4 + $0x840] sm:$0xff]
    %v2298 = vld [vmem:[#allocation4 + $0x848] sm:$0xf]
    %v2299 = vld [vmem:[#allocation4 + $0x84c] sm:$0xff]
    %v2300 = vld [vmem:[#allocation4 + $0x854] sm:$0xff]
    %v2301 = vld [vmem:[#allocation4 + $0x85c] sm:$0xff]
    %v2302 = vld [vmem:[#allocation4 + $0x864] sm:$0xff]
    %v2303 = vld [vmem:[#allocation4 + $0x86c] sm:$0xf]
    %v2304 = vld [vmem:[#allocation4 + $0x870] sm:$0xff]
    %v2305 = vld [vmem:[#allocation4 + $0x878] sm:$0xff]
    %v2306 = vld [vmem:[#allocation4 + $0x880] sm:$0xff]
    %v2307 = vld [vmem:[#allocation4 + $0x888] sm:$0xff]
    %v2308 = vld [vmem:[#allocation4 + $0x890] sm:$0xf]
    %v2309 = vld [vmem:[#allocation4 + $0x894] sm:$0xff]
    %v2310 = vld [vmem:[#allocation4 + $0x89c] sm:$0xff]
    %v2311 = vld [vmem:[#allocation4 + $0x8a4] sm:$0xff]
    %v2312 = vld [vmem:[#allocation4 + $0x8ac] sm:$0xff]
    %v2313 = vld [vmem:[#allocation4 + $0x8b4] sm:$0xf]
    %v2314 = vld [vmem:[#allocation4 + $0x8b8] sm:$0xff]
    %v2315 = vld [vmem:[#allocation4 + $0x8c0] sm:$0xff]
    %v2316 = vld [vmem:[#allocation4 + $0x8c8] sm:$0xff]
    %v2317 = vld [vmem:[#allocation4 + $0x8d0] sm:$0xff]
    %v2318 = vld [vmem:[#allocation4 + $0x8d8] sm:$0xf]
    %v2319 = vld [vmem:[#allocation4 + $0x8dc] sm:$0xff]
    %v2320 = vld [vmem:[#allocation4 + $0x8e4] sm:$0xff]
    %v2321 = vld [vmem:[#allocation4 + $0x8ec] sm:$0xff]
    %v2322 = vld [vmem:[#allocation4 + $0x8f4] sm:$0xff]
    %v2323 = vld [vmem:[#allocation4 + $0x8fc] sm:$0xf]
    %v2324 = vld [vmem:[%s1] sm:$0xf]
    %v2325 = vld [vmem:[%s1 + $0x4] sm:$0xf]
    %v2326 = vld [vmem:[%s1 + $0x8] sm:$0xf]
    %v2327 = vld [vmem:[%s1 + $0xc] sm:$0xf]
    %v2328 = vld [vmem:[%s1 + $0x10] sm:$0xf]
    %v2329 = vld [vmem:[%s1 + $0x14] sm:$0xf]
    %v2330 = vld [vmem:[%s1 + $0x18] sm:$0xf]
    %v2331 = vld [vmem:[%s1 + $0x1c] sm:$0xf]
    %v2332 = vld [vmem:[%s1 + $0x20] sm:$0xf]
    %v2333 = vld [vmem:[%s1 + $0x24] sm:$0xf]
    %v2334 = vld [vmem:[%s1 + $0x28] sm:$0xf]
    %v2335 = vld [vmem:[%s1 + $0x2c] sm:$0xf]
    %v2336 = vld [vmem:[%s1 + $0x30] sm:$0xf]
    %v2337 = vld [vmem:[%s1 + $0x34] sm:$0xf]
    %v2338 = vld [vmem:[%s1 + $0x38] sm:$0xf]
    %v2339 = vld [vmem:[%s1 + $0x3c] sm:$0xf]
    %v2340 = vld [vmem:[%s1 + $0x40] sm:$0xf]
    %v2341 = vld [vmem:[%s1 + $0x44] sm:$0xf]
    %v2342 = vld [vmem:[%s1 + $0x48] sm:$0xf]
    %v2343 = vld [vmem:[%s1 + $0x4c] sm:$0xf]
    %v2344 = vld [vmem:[%s1 + $0x50] sm:$0xf]
    %v2345 = vld [vmem:[%s1 + $0x54] sm:$0xf]
    %v2346 = vld [vmem:[%s1 + $0x58] sm:$0xf]
    %v2347 = vld [vmem:[%s1 + $0x5c] sm:$0xf]
    %v2348 = vld [vmem:[%s1 + $0x60] sm:$0xf]
    %v2349 = vld [vmem:[%s1 + $0x64] sm:$0xf]
    %v2350 = vld [vmem:[%s1 + $0x68] sm:$0xf]
    %v2351 = vld [vmem:[%s1 + $0x6c] sm:$0xf]
    %v2352 = vld [vmem:[%s1 + $0x70] sm:$0xf]
    %v2353 = vld [vmem:[%s1 + $0x74] sm:$0xf]
    %v2354 = vld [vmem:[%s1 + $0x78] sm:$0xf]
    %v2355 = vld [vmem:[%s1 + $0x7c] sm:$0xf]
    %v2356 = vld [vmem:[%s1 + $0x80] sm:$0xf]
    %v2357 = vld [vmem:[%s1 + $0x84] sm:$0xf]
    %v2358 = vld [vmem:[%s1 + $0x88] sm:$0xf]
    %v2359 = vld [vmem:[%s1 + $0x8c] sm:$0xf]
    %v2360 = vld [vmem:[%s1 + $0x90] sm:$0xf]
    %v2361 = vld [vmem:[%s1 + $0x94] sm:$0xf]
    %v2362 = vld [vmem:[%s1 + $0x98] sm:$0xf]
    %v2363 = vld [vmem:[%s1 + $0x9c] sm:$0xf]
    %v2364 = vld [vmem:[%s1 + $0xa0] sm:$0xf]
    %v2365 = vld [vmem:[%s1 + $0xa4] sm:$0xf]
    %v2366 = vld [vmem:[%s1 + $0xa8] sm:$0xf]
    %v2367 = vld [vmem:[%s1 + $0xac] sm:$0xf]
    %v2368 = vld [vmem:[%s1 + $0xb0] sm:$0xf]
    %v2369 = vld [vmem:[%s1 + $0xb4] sm:$0xf]
    %v2370 = vld [vmem:[%s1 + $0xb8] sm:$0xf]
    %v2371 = vld [vmem:[%s1 + $0xbc] sm:$0xf]
    %v2372 = vld [vmem:[%s1 + $0xc0] sm:$0xf]
    %v2373 = vld [vmem:[%s1 + $0xc4] sm:$0xf]
    %v2374 = vld [vmem:[%s1 + $0xc8] sm:$0xf]
    %v2375 = vld [vmem:[%s1 + $0xcc] sm:$0xf]
    %v2376 = vld [vmem:[%s1 + $0xd0] sm:$0xf]
    %v2377 = vld [vmem:[%s1 + $0xd4] sm:$0xf]
    %v2378 = vld [vmem:[%s1 + $0xd8] sm:$0xf]
    %v2379 = vld [vmem:[%s1 + $0xdc] sm:$0xf]
    %v2380 = vld [vmem:[%s1 + $0xe0] sm:$0xf]
    %v2381 = vld [vmem:[%s1 + $0xe4] sm:$0xf]
    %v2382 = vld [vmem:[%s1 + $0xe8] sm:$0xf]
    %v2383 = vld [vmem:[%s1 + $0xec] sm:$0xf]
    %v2384 = vld [vmem:[%s1 + $0xf0] sm:$0xf]
    %v2385 = vld [vmem:[%s1 + $0xf4] sm:$0xf]
    %v2386 = vld [vmem:[%s1 + $0xf8] sm:$0xf]
    %v2387 = vld [vmem:[%s1 + $0xfc] sm:$0xf]
    %v2388 = vld [vmem:[%s1 + $0x100] sm:$0xf]
    %v2389 = vld [vmem:[%s1 + $0x104] sm:$0xf]
    %v2390 = vld [vmem:[%s1 + $0x108] sm:$0xf]
    %v2391 = vld [vmem:[%s1 + $0x10c] sm:$0xf]
    %v2392 = vld [vmem:[%s1 + $0x110] sm:$0xf]
    %v2393 = vld [vmem:[%s1 + $0x114] sm:$0xf]
    %v2394 = vld [vmem:[%s1 + $0x118] sm:$0xf]
    %v2395 = vld [vmem:[%s1 + $0x11c] sm:$0xf]
    %v2396 = vld [vmem:[%s1 + $0x120] sm:$0xf]
    %v2397 = vld [vmem:[%s1 + $0x124] sm:$0xf]
    %v2398 = vld [vmem:[%s1 + $0x128] sm:$0xf]
    %v2399 = vld [vmem:[%s1 + $0x12c] sm:$0xf]
    %v2400 = vld [vmem:[%s1 + $0x130] sm:$0xf]
    %v2401 = vld [vmem:[%s1 + $0x134] sm:$0xf]
    %v2402 = vld [vmem:[%s1 + $0x138] sm:$0xf]
    %v2403 = vld [vmem:[%s1 + $0x13c] sm:$0xf]
    %v2404 = vld [vmem:[%s1 + $0x140] sm:$0xf]
    %v2405 = vld [vmem:[%s1 + $0x144] sm:$0xf]
    %v2406 = vld [vmem:[%s1 + $0x148] sm:$0xf]
    %v2407 = vld [vmem:[%s1 + $0x14c] sm:$0xf]
    %v2408 = vld [vmem:[%s1 + $0x150] sm:$0xf]
    %v2409 = vld [vmem:[%s1 + $0x154] sm:$0xf]
    %v2410 = vld [vmem:[%s1 + $0x158] sm:$0xf]
    %v2411 = vld [vmem:[%s1 + $0x15c] sm:$0xf]
    %v2412 = vld [vmem:[%s1 + $0x160] sm:$0xf]
    %v2413 = vld [vmem:[%s1 + $0x164] sm:$0xf]
    %v2414 = vld [vmem:[%s1 + $0x168] sm:$0xf]
    %v2415 = vld [vmem:[%s1 + $0x16c] sm:$0xf]
    %v2416 = vld [vmem:[%s1 + $0x170] sm:$0xf]
    %v2417 = vld [vmem:[%s1 + $0x174] sm:$0xf]
    %v2418 = vld [vmem:[%s1 + $0x178] sm:$0xf]
    %v2419 = vld [vmem:[%s1 + $0x17c] sm:$0xf]
    %v2420 = vld [vmem:[%s1 + $0x180] sm:$0xf]
    %v2421 = vld [vmem:[%s1 + $0x184] sm:$0xf]
    %v2422 = vld [vmem:[%s1 + $0x188] sm:$0xf]
    %v2423 = vld [vmem:[%s1 + $0x18c] sm:$0xf]
    %v2424 = vld [vmem:[%s1 + $0x190] sm:$0xf]
    %v2425 = vld [vmem:[%s1 + $0x194] sm:$0xf]
    %v2426 = vld [vmem:[%s1 + $0x198] sm:$0xf]
    %v2427 = vld [vmem:[%s1 + $0x19c] sm:$0xf]
    %v2428 = vld [vmem:[%s1 + $0x1a0] sm:$0xf]
    %v2429 = vld [vmem:[%s1 + $0x1a4] sm:$0xf]
    %v2430 = vld [vmem:[%s1 + $0x1a8] sm:$0xf]
    %v2431 = vld [vmem:[%s1 + $0x1ac] sm:$0xf]
    %v2432 = vld [vmem:[%s1 + $0x1b0] sm:$0xf]
    %v2433 = vld [vmem:[%s1 + $0x1b4] sm:$0xf]
    %v2434 = vld [vmem:[%s1 + $0x1b8] sm:$0xf]
    %v2435 = vld [vmem:[%s1 + $0x1bc] sm:$0xf]
    %v2436 = vld [vmem:[%s1 + $0x1c0] sm:$0xf]
    %v2437 = vld [vmem:[%s1 + $0x1c4] sm:$0xf]
    %v2438 = vld [vmem:[%s1 + $0x1c8] sm:$0xf]
    %v2439 = vld [vmem:[%s1 + $0x1cc] sm:$0xf]
    %v2440 = vld [vmem:[%s1 + $0x1d0] sm:$0xf]
    %v2441 = vld [vmem:[%s1 + $0x1d4] sm:$0xf]
    %v2442 = vld [vmem:[%s1 + $0x1d8] sm:$0xf]
    %v2443 = vld [vmem:[%s1 + $0x1dc] sm:$0xf]
    %v2444 = vld [vmem:[%s1 + $0x1e0] sm:$0xf]
    %v2445 = vld [vmem:[%s1 + $0x1e4] sm:$0xf]
    %v2446 = vld [vmem:[%s1 + $0x1e8] sm:$0xf]
    %v2447 = vld [vmem:[%s1 + $0x1ec] sm:$0xf]
    %v2448 = vld [vmem:[%s1 + $0x1f0] sm:$0xf]
    %v2449 = vld [vmem:[%s1 + $0x1f4] sm:$0xf]
    %v2450 = vld [vmem:[%s1 + $0x1f8] sm:$0xf]
    %v2451 = vld [vmem:[%s1 + $0x1fc] sm:$0xf]
    %v2452 = vld [vmem:[%s1 + $0x200] sm:$0xf]
    %v2453 = vld [vmem:[%s1 + $0x204] sm:$0xf]
    %v2454 = vld [vmem:[%s1 + $0x208] sm:$0xf]
    %v2455 = vld [vmem:[%s1 + $0x20c] sm:$0xf]
    %v2456 = vld [vmem:[%s1 + $0x210] sm:$0xf]
    %v2457 = vld [vmem:[%s1 + $0x214] sm:$0xf]
    %v2458 = vld [vmem:[%s1 + $0x218] sm:$0xf]
    %v2459 = vld [vmem:[%s1 + $0x21c] sm:$0xf]
    %v2460 = vld [vmem:[%s1 + $0x220] sm:$0xf]
    %v2461 = vld [vmem:[%s1 + $0x224] sm:$0xf]
    %v2462 = vld [vmem:[%s1 + $0x228] sm:$0xf]
    %v2463 = vld [vmem:[%s1 + $0x22c] sm:$0xf]
    %v2464 = vld [vmem:[%s1 + $0x230] sm:$0xf]
    %v2465 = vld [vmem:[%s1 + $0x234] sm:$0xf]
    %v2466 = vld [vmem:[%s1 + $0x238] sm:$0xf]
    %v2467 = vld [vmem:[%s1 + $0x23c] sm:$0xf]
    %v2468 = vld [vmem:[%s2] sm:$0x1]
    %v2470 = vperm.slane %v2468, 0
    %v2792 = vunpack.c.l.b16 %v2004
    %v2793 = vunpack.c.h.b16 %v2004
    %v2794 = vunpack.c.l.b16 %v2005
    %v2795 = vunpack.c.h.b16 %v2005
    %v2796 = vunpack.c.l.b16 %v2006
    %v2797 = vunpack.c.h.b16 %v2006
    %v2798 = vunpack.c.l.b16 %v2007
    %v2799 = vunpack.c.h.b16 %v2007
    %v2800 = vunpack.c.l.b16 %v2008
    %v2801 = vunpack.c.l.b16 %v2009
    %v2802 = vunpack.c.h.b16 %v2009
    %v2803 = vunpack.c.l.b16 %v2010
    %v2804 = vunpack.c.h.b16 %v2010
    %v2805 = vunpack.c.l.b16 %v2011
    %v2806 = vunpack.c.h.b16 %v2011
    %v2807 = vunpack.c.l.b16 %v2012
    %v2808 = vunpack.c.h.b16 %v2012
    %v2809 = vunpack.c.l.b16 %v2013
    %v2810 = vunpack.c.l.b16 %v2014
    %v2811 = vunpack.c.h.b16 %v2014
    %v2812 = vunpack.c.l.b16 %v2015
    %v2813 = vunpack.c.h.b16 %v2015
    %v2814 = vunpack.c.l.b16 %v2016
    %v2815 = vunpack.c.h.b16 %v2016
    %v2816 = vunpack.c.l.b16 %v2017
    %v2817 = vunpack.c.h.b16 %v2017
    %v2818 = vunpack.c.l.b16 %v2018
    %v2819 = vunpack.c.l.b16 %v2019
    %v2820 = vunpack.c.h.b16 %v2019
    %v2821 = vunpack.c.l.b16 %v2020
    %v2822 = vunpack.c.h.b16 %v2020
    %v2823 = vunpack.c.l.b16 %v2021
    %v2824 = vunpack.c.h.b16 %v2021
    %v2825 = vunpack.c.l.b16 %v2022
    %v2826 = vunpack.c.h.b16 %v2022
    %v2827 = vunpack.c.l.b16 %v2023
    %v2828 = vunpack.c.l.b16 %v2024
    %v2829 = vunpack.c.h.b16 %v2024
    %v2830 = vunpack.c.l.b16 %v2025
    %v2831 = vunpack.c.h.b16 %v2025
    %v2832 = vunpack.c.l.b16 %v2026
    %v2833 = vunpack.c.h.b16 %v2026
    %v2834 = vunpack.c.l.b16 %v2027
    %v2835 = vunpack.c.h.b16 %v2027
    %v2836 = vunpack.c.l.b16 %v2028
    %v2837 = vunpack.c.l.b16 %v2029
    %v2838 = vunpack.c.h.b16 %v2029
    %v2839 = vunpack.c.l.b16 %v2030
    %v2840 = vunpack.c.h.b16 %v2030
    %v2841 = vunpack.c.l.b16 %v2031
    %v2842 = vunpack.c.h.b16 %v2031
    %v2843 = vunpack.c.l.b16 %v2032
    %v2844 = vunpack.c.h.b16 %v2032
    %v2845 = vunpack.c.l.b16 %v2033
    %v2846 = vunpack.c.l.b16 %v2034
    %v2847 = vunpack.c.h.b16 %v2034
    %v2848 = vunpack.c.l.b16 %v2035
    %v2849 = vunpack.c.h.b16 %v2035
    %v2850 = vunpack.c.l.b16 %v2036
    %v2851 = vunpack.c.h.b16 %v2036
    %v2852 = vunpack.c.l.b16 %v2037
    %v2853 = vunpack.c.h.b16 %v2037
    %v2854 = vunpack.c.l.b16 %v2038
    %v2855 = vunpack.c.l.b16 %v2039
    %v2856 = vunpack.c.h.b16 %v2039
    %v2857 = vunpack.c.l.b16 %v2040
    %v2858 = vunpack.c.h.b16 %v2040
    %v2859 = vunpack.c.l.b16 %v2041
    %v2860 = vunpack.c.h.b16 %v2041
    %v2861 = vunpack.c.l.b16 %v2042
    %v2862 = vunpack.c.h.b16 %v2042
    %v2863 = vunpack.c.l.b16 %v2043
    %v2864 = vunpack.c.l.b16 %v2044
    %v2865 = vunpack.c.h.b16 %v2044
    %v2866 = vunpack.c.l.b16 %v2045
    %v2867 = vunpack.c.h.b16 %v2045
    %v2868 = vunpack.c.l.b16 %v2046
    %v2869 = vunpack.c.h.b16 %v2046
    %v2870 = vunpack.c.l.b16 %v2047
    %v2871 = vunpack.c.h.b16 %v2047
    %v2872 = vunpack.c.l.b16 %v2048
    %v2873 = vunpack.c.l.b16 %v2049
    %v2874 = vunpack.c.h.b16 %v2049
    %v2875 = vunpack.c.l.b16 %v2050
    %v2876 = vunpack.c.h.b16 %v2050
    %v2877 = vunpack.c.l.b16 %v2051
    %v2878 = vunpack.c.h.b16 %v2051
    %v2879 = vunpack.c.l.b16 %v2052
    %v2880 = vunpack.c.h.b16 %v2052
    %v2881 = vunpack.c.l.b16 %v2053
    %v2882 = vunpack.c.l.b16 %v2054
    %v2883 = vunpack.c.h.b16 %v2054
    %v2884 = vunpack.c.l.b16 %v2055
    %v2885 = vunpack.c.h.b16 %v2055
    %v2886 = vunpack.c.l.b16 %v2056
    %v2887 = vunpack.c.h.b16 %v2056
    %v2888 = vunpack.c.l.b16 %v2057
    %v2889 = vunpack.c.h.b16 %v2057
    %v2890 = vunpack.c.l.b16 %v2058
    %v2891 = vunpack.c.l.b16 %v2059
    %v2892 = vunpack.c.h.b16 %v2059
    %v2893 = vunpack.c.l.b16 %v2060
    %v2894 = vunpack.c.h.b16 %v2060
    %v2895 = vunpack.c.l.b16 %v2061
    %v2896 = vunpack.c.h.b16 %v2061
    %v2897 = vunpack.c.l.b16 %v2062
    %v2898 = vunpack.c.h.b16 %v2062
    %v2899 = vunpack.c.l.b16 %v2063
    %v2900 = vunpack.c.l.b16 %v2064
    %v2901 = vunpack.c.h.b16 %v2064
    %v2902 = vunpack.c.l.b16 %v2065
    %v2903 = vunpack.c.h.b16 %v2065
    %v2904 = vunpack.c.l.b16 %v2066
    %v2905 = vunpack.c.h.b16 %v2066
    %v2906 = vunpack.c.l.b16 %v2067
    %v2907 = vunpack.c.h.b16 %v2067
    %v2908 = vunpack.c.l.b16 %v2068
    %v2909 = vunpack.c.l.b16 %v2069
    %v2910 = vunpack.c.h.b16 %v2069
    %v2911 = vunpack.c.l.b16 %v2070
    %v2912 = vunpack.c.h.b16 %v2070
    %v2913 = vunpack.c.l.b16 %v2071
    %v2914 = vunpack.c.h.b16 %v2071
    %v2915 = vunpack.c.l.b16 %v2072
    %v2916 = vunpack.c.h.b16 %v2072
    %v2917 = vunpack.c.l.b16 %v2073
    %v2918 = vunpack.c.l.b16 %v2074
    %v2919 = vunpack.c.h.b16 %v2074
    %v2920 = vunpack.c.l.b16 %v2075
    %v2921 = vunpack.c.h.b16 %v2075
    %v2922 = vunpack.c.l.b16 %v2076
    %v2923 = vunpack.c.h.b16 %v2076
    %v2924 = vunpack.c.l.b16 %v2077
    %v2925 = vunpack.c.h.b16 %v2077
    %v2926 = vunpack.c.l.b16 %v2078
    %v2927 = vunpack.c.l.b16 %v2079
    %v2928 = vunpack.c.h.b16 %v2079
    %v2929 = vunpack.c.l.b16 %v2080
    %v2930 = vunpack.c.h.b16 %v2080
    %v2931 = vunpack.c.l.b16 %v2081
    %v2932 = vunpack.c.h.b16 %v2081
    %v2933 = vunpack.c.l.b16 %v2082
    %v2934 = vunpack.c.h.b16 %v2082
    %v2935 = vunpack.c.l.b16 %v2083
    %v2936 = vunpack.c.l.b16 %v2084
    %v2937 = vunpack.c.h.b16 %v2084
    %v2938 = vunpack.c.l.b16 %v2085
    %v2939 = vunpack.c.h.b16 %v2085
    %v2940 = vunpack.c.l.b16 %v2086
    %v2941 = vunpack.c.h.b16 %v2086
    %v2942 = vunpack.c.l.b16 %v2087
    %v2943 = vunpack.c.h.b16 %v2087
    %v2944 = vunpack.c.l.b16 %v2088
    %v2945 = vunpack.c.l.b16 %v2089
    %v2946 = vunpack.c.h.b16 %v2089
    %v2947 = vunpack.c.l.b16 %v2090
    %v2948 = vunpack.c.h.b16 %v2090
    %v2949 = vunpack.c.l.b16 %v2091
    %v2950 = vunpack.c.h.b16 %v2091
    %v2951 = vunpack.c.l.b16 %v2092
    %v2952 = vunpack.c.h.b16 %v2092
    %v2953 = vunpack.c.l.b16 %v2093
    %v2954 = vunpack.c.l.b16 %v2094
    %v2955 = vunpack.c.h.b16 %v2094
    %v2956 = vunpack.c.l.b16 %v2095
    %v2957 = vunpack.c.h.b16 %v2095
    %v2958 = vunpack.c.l.b16 %v2096
    %v2959 = vunpack.c.h.b16 %v2096
    %v2960 = vunpack.c.l.b16 %v2097
    %v2961 = vunpack.c.h.b16 %v2097
    %v2962 = vunpack.c.l.b16 %v2098
    %v2963 = vunpack.c.l.b16 %v2099
    %v2964 = vunpack.c.h.b16 %v2099
    %v2965 = vunpack.c.l.b16 %v2100
    %v2966 = vunpack.c.h.b16 %v2100
    %v2967 = vunpack.c.l.b16 %v2101
    %v2968 = vunpack.c.h.b16 %v2101
    %v2969 = vunpack.c.l.b16 %v2102
    %v2970 = vunpack.c.h.b16 %v2102
    %v2971 = vunpack.c.l.b16 %v2103
    %v2972 = vunpack.c.l.b16 %v2104
    %v2973 = vunpack.c.h.b16 %v2104
    %v2974 = vunpack.c.l.b16 %v2105
    %v2975 = vunpack.c.h.b16 %v2105
    %v2976 = vunpack.c.l.b16 %v2106
    %v2977 = vunpack.c.h.b16 %v2106
    %v2978 = vunpack.c.l.b16 %v2107
    %v2979 = vunpack.c.h.b16 %v2107
    %v2980 = vunpack.c.l.b16 %v2108
    %v2981 = vunpack.c.l.b16 %v2109
    %v2982 = vunpack.c.h.b16 %v2109
    %v2983 = vunpack.c.l.b16 %v2110
    %v2984 = vunpack.c.h.b16 %v2110
    %v2985 = vunpack.c.l.b16 %v2111
    %v2986 = vunpack.c.h.b16 %v2111
    %v2987 = vunpack.c.l.b16 %v2112
    %v2988 = vunpack.c.h.b16 %v2112
    %v2989 = vunpack.c.l.b16 %v2113
    %v2990 = vunpack.c.l.b16 %v2114
    %v2991 = vunpack.c.h.b16 %v2114
    %v2992 = vunpack.c.l.b16 %v2115
    %v2993 = vunpack.c.h.b16 %v2115
    %v2994 = vunpack.c.l.b16 %v2116
    %v2995 = vunpack.c.h.b16 %v2116
    %v2996 = vunpack.c.l.b16 %v2117
    %v2997 = vunpack.c.h.b16 %v2117
    %v2998 = vunpack.c.l.b16 %v2118
    %v2999 = vunpack.c.l.b16 %v2119
    %v3000 = vunpack.c.h.b16 %v2119
    %v3001 = vunpack.c.l.b16 %v2120
    %v3002 = vunpack.c.h.b16 %v2120
    %v3003 = vunpack.c.l.b16 %v2121
    %v3004 = vunpack.c.h.b16 %v2121
    %v3005 = vunpack.c.l.b16 %v2122
    %v3006 = vunpack.c.h.b16 %v2122
    %v3007 = vunpack.c.l.b16 %v2123
    %v3008 = vunpack.c.l.b16 %v2124
    %v3009 = vunpack.c.h.b16 %v2124
    %v3010 = vunpack.c.l.b16 %v2125
    %v3011 = vunpack.c.h.b16 %v2125
    %v3012 = vunpack.c.l.b16 %v2126
    %v3013 = vunpack.c.h.b16 %v2126
    %v3014 = vunpack.c.l.b16 %v2127
    %v3015 = vunpack.c.h.b16 %v2127
    %v3016 = vunpack.c.l.b16 %v2128
    %v3017 = vunpack.c.l.b16 %v2129
    %v3018 = vunpack.c.h.b16 %v2129
    %v3019 = vunpack.c.l.b16 %v2130
    %v3020 = vunpack.c.h.b16 %v2130
    %v3021 = vunpack.c.l.b16 %v2131
    %v3022 = vunpack.c.h.b16 %v2131
    %v3023 = vunpack.c.l.b16 %v2132
    %v3024 = vunpack.c.h.b16 %v2132
    %v3025 = vunpack.c.l.b16 %v2133
    %v3026 = vunpack.c.l.b16 %v2134
    %v3027 = vunpack.c.h.b16 %v2134
    %v3028 = vunpack.c.l.b16 %v2135
    %v3029 = vunpack.c.h.b16 %v2135
    %v3030 = vunpack.c.l.b16 %v2136
    %v3031 = vunpack.c.h.b16 %v2136
    %v3032 = vunpack.c.l.b16 %v2137
    %v3033 = vunpack.c.h.b16 %v2137
    %v3034 = vunpack.c.l.b16 %v2138
    %v3035 = vunpack.c.l.b16 %v2139
    %v3036 = vunpack.c.h.b16 %v2139
    %v3037 = vunpack.c.l.b16 %v2140
    %v3038 = vunpack.c.h.b16 %v2140
    %v3039 = vunpack.c.l.b16 %v2141
    %v3040 = vunpack.c.h.b16 %v2141
    %v3041 = vunpack.c.l.b16 %v2142
    %v3042 = vunpack.c.h.b16 %v2142
    %v3043 = vunpack.c.l.b16 %v2143
    %v3044 = vunpack.c.l.b16 %v2144
    %v3045 = vunpack.c.h.b16 %v2144
    %v3046 = vunpack.c.l.b16 %v2145
    %v3047 = vunpack.c.h.b16 %v2145
    %v3048 = vunpack.c.l.b16 %v2146
    %v3049 = vunpack.c.h.b16 %v2146
    %v3050 = vunpack.c.l.b16 %v2147
    %v3051 = vunpack.c.h.b16 %v2147
    %v3052 = vunpack.c.l.b16 %v2148
    %v3053 = vunpack.c.l.b16 %v2149
    %v3054 = vunpack.c.h.b16 %v2149
    %v3055 = vunpack.c.l.b16 %v2150
    %v3056 = vunpack.c.h.b16 %v2150
    %v3057 = vunpack.c.l.b16 %v2151
    %v3058 = vunpack.c.h.b16 %v2151
    %v3059 = vunpack.c.l.b16 %v2152
    %v3060 = vunpack.c.h.b16 %v2152
    %v3061 = vunpack.c.l.b16 %v2153
    %v3062 = vunpack.c.l.b16 %v2154
    %v3063 = vunpack.c.h.b16 %v2154
    %v3064 = vunpack.c.l.b16 %v2155
    %v3065 = vunpack.c.h.b16 %v2155
    %v3066 = vunpack.c.l.b16 %v2156
    %v3067 = vunpack.c.h.b16 %v2156
    %v3068 = vunpack.c.l.b16 %v2157
    %v3069 = vunpack.c.h.b16 %v2157
    %v3070 = vunpack.c.l.b16 %v2158
    %v3071 = vunpack.c.l.b16 %v2159
    %v3072 = vunpack.c.h.b16 %v2159
    %v3073 = vunpack.c.l.b16 %v2160
    %v3074 = vunpack.c.h.b16 %v2160
    %v3075 = vunpack.c.l.b16 %v2161
    %v3076 = vunpack.c.h.b16 %v2161
    %v3077 = vunpack.c.l.b16 %v2162
    %v3078 = vunpack.c.h.b16 %v2162
    %v3079 = vunpack.c.l.b16 %v2163
    %v3080 = vunpack.c.l.b16 %v2164
    %v3081 = vunpack.c.h.b16 %v2164
    %v3082 = vunpack.c.l.b16 %v2165
    %v3083 = vunpack.c.h.b16 %v2165
    %v3084 = vunpack.c.l.b16 %v2166
    %v3085 = vunpack.c.h.b16 %v2166
    %v3086 = vunpack.c.l.b16 %v2167
    %v3087 = vunpack.c.h.b16 %v2167
    %v3088 = vunpack.c.l.b16 %v2168
    %v3089 = vunpack.c.l.b16 %v2169
    %v3090 = vunpack.c.h.b16 %v2169
    %v3091 = vunpack.c.l.b16 %v2170
    %v3092 = vunpack.c.h.b16 %v2170
    %v3093 = vunpack.c.l.b16 %v2171
    %v3094 = vunpack.c.h.b16 %v2171
    %v3095 = vunpack.c.l.b16 %v2172
    %v3096 = vunpack.c.h.b16 %v2172
    %v3097 = vunpack.c.l.b16 %v2173
    %v3098 = vunpack.c.l.b16 %v2174
    %v3099 = vunpack.c.h.b16 %v2174
    %v3100 = vunpack.c.l.b16 %v2175
    %v3101 = vunpack.c.h.b16 %v2175
    %v3102 = vunpack.c.l.b16 %v2176
    %v3103 = vunpack.c.h.b16 %v2176
    %v3104 = vunpack.c.l.b16 %v2177
    %v3105 = vunpack.c.h.b16 %v2177
    %v3106 = vunpack.c.l.b16 %v2178
    %v3107 = vunpack.c.l.b16 %v2179
    %v3108 = vunpack.c.h.b16 %v2179
    %v3109 = vunpack.c.l.b16 %v2180
    %v3110 = vunpack.c.h.b16 %v2180
    %v3111 = vunpack.c.l.b16 %v2181
    %v3112 = vunpack.c.h.b16 %v2181
    %v3113 = vunpack.c.l.b16 %v2182
    %v3114 = vunpack.c.h.b16 %v2182
    %v3115 = vunpack.c.l.b16 %v2183
    %v3116 = vunpack.c.l.b16 %v2184
    %v3117 = vunpack.c.h.b16 %v2184
    %v3118 = vunpack.c.l.b16 %v2185
    %v3119 = vunpack.c.h.b16 %v2185
    %v3120 = vunpack.c.l.b16 %v2186
    %v3121 = vunpack.c.h.b16 %v2186
    %v3122 = vunpack.c.l.b16 %v2187
    %v3123 = vunpack.c.h.b16 %v2187
    %v3124 = vunpack.c.l.b16 %v2188
    %v3125 = vunpack.c.l.b16 %v2189
    %v3126 = vunpack.c.h.b16 %v2189
    %v3127 = vunpack.c.l.b16 %v2190
    %v3128 = vunpack.c.h.b16 %v2190
    %v3129 = vunpack.c.l.b16 %v2191
    %v3130 = vunpack.c.h.b16 %v2191
    %v3131 = vunpack.c.l.b16 %v2192
    %v3132 = vunpack.c.h.b16 %v2192
    %v3133 = vunpack.c.l.b16 %v2193
    %v3134 = vunpack.c.l.b16 %v2194
    %v3135 = vunpack.c.h.b16 %v2194
    %v3136 = vunpack.c.l.b16 %v2195
    %v3137 = vunpack.c.h.b16 %v2195
    %v3138 = vunpack.c.l.b16 %v2196
    %v3139 = vunpack.c.h.b16 %v2196
    %v3140 = vunpack.c.l.b16 %v2197
    %v3141 = vunpack.c.h.b16 %v2197
    %v3142 = vunpack.c.l.b16 %v2198
    %v3143 = vunpack.c.l.b16 %v2199
    %v3144 = vunpack.c.h.b16 %v2199
    %v3145 = vunpack.c.l.b16 %v2200
    %v3146 = vunpack.c.h.b16 %v2200
    %v3147 = vunpack.c.l.b16 %v2201
    %v3148 = vunpack.c.h.b16 %v2201
    %v3149 = vunpack.c.l.b16 %v2202
    %v3150 = vunpack.c.h.b16 %v2202
    %v3151 = vunpack.c.l.b16 %v2203
    %v3152 = vunpack.c.l.b16 %v2204
    %v3153 = vunpack.c.h.b16 %v2204
    %v3154 = vunpack.c.l.b16 %v2205
    %v3155 = vunpack.c.h.b16 %v2205
    %v3156 = vunpack.c.l.b16 %v2206
    %v3157 = vunpack.c.h.b16 %v2206
    %v3158 = vunpack.c.l.b16 %v2207
    %v3159 = vunpack.c.h.b16 %v2207
    %v3160 = vunpack.c.l.b16 %v2208
    %v3161 = vunpack.c.l.b16 %v2209
    %v3162 = vunpack.c.h.b16 %v2209
    %v3163 = vunpack.c.l.b16 %v2210
    %v3164 = vunpack.c.h.b16 %v2210
    %v3165 = vunpack.c.l.b16 %v2211
    %v3166 = vunpack.c.h.b16 %v2211
    %v3167 = vunpack.c.l.b16 %v2212
    %v3168 = vunpack.c.h.b16 %v2212
    %v3169 = vunpack.c.l.b16 %v2213
    %v3170 = vunpack.c.l.b16 %v2214
    %v3171 = vunpack.c.h.b16 %v2214
    %v3172 = vunpack.c.l.b16 %v2215
    %v3173 = vunpack.c.h.b16 %v2215
    %v3174 = vunpack.c.l.b16 %v2216
    %v3175 = vunpack.c.h.b16 %v2216
    %v3176 = vunpack.c.l.b16 %v2217
    %v3177 = vunpack.c.h.b16 %v2217
    %v3178 = vunpack.c.l.b16 %v2218
    %v3179 = vunpack.c.l.b16 %v2219
    %v3180 = vunpack.c.h.b16 %v2219
    %v3181 = vunpack.c.l.b16 %v2220
    %v3182 = vunpack.c.h.b16 %v2220
    %v3183 = vunpack.c.l.b16 %v2221
    %v3184 = vunpack.c.h.b16 %v2221
    %v3185 = vunpack.c.l.b16 %v2222
    %v3186 = vunpack.c.h.b16 %v2222
    %v3187 = vunpack.c.l.b16 %v2223
    %v3188 = vunpack.c.l.b16 %v2224
    %v3189 = vunpack.c.h.b16 %v2224
    %v3190 = vunpack.c.l.b16 %v2225
    %v3191 = vunpack.c.h.b16 %v2225
    %v3192 = vunpack.c.l.b16 %v2226
    %v3193 = vunpack.c.h.b16 %v2226
    %v3194 = vunpack.c.l.b16 %v2227
    %v3195 = vunpack.c.h.b16 %v2227
    %v3196 = vunpack.c.l.b16 %v2228
    %v3197 = vunpack.c.l.b16 %v2229
    %v3198 = vunpack.c.h.b16 %v2229
    %v3199 = vunpack.c.l.b16 %v2230
    %v3200 = vunpack.c.h.b16 %v2230
    %v3201 = vunpack.c.l.b16 %v2231
    %v3202 = vunpack.c.h.b16 %v2231
    %v3203 = vunpack.c.l.b16 %v2232
    %v3204 = vunpack.c.h.b16 %v2232
    %v3205 = vunpack.c.l.b16 %v2233
    %v3206 = vunpack.c.l.b16 %v2234
    %v3207 = vunpack.c.h.b16 %v2234
    %v3208 = vunpack.c.l.b16 %v2235
    %v3209 = vunpack.c.h.b16 %v2235
    %v3210 = vunpack.c.l.b16 %v2236
    %v3211 = vunpack.c.h.b16 %v2236
    %v3212 = vunpack.c.l.b16 %v2237
    %v3213 = vunpack.c.h.b16 %v2237
    %v3214 = vunpack.c.l.b16 %v2238
    %v3215 = vunpack.c.l.b16 %v2239
    %v3216 = vunpack.c.h.b16 %v2239
    %v3217 = vunpack.c.l.b16 %v2240
    %v3218 = vunpack.c.h.b16 %v2240
    %v3219 = vunpack.c.l.b16 %v2241
    %v3220 = vunpack.c.h.b16 %v2241
    %v3221 = vunpack.c.l.b16 %v2242
    %v3222 = vunpack.c.h.b16 %v2242
    %v3223 = vunpack.c.l.b16 %v2243
    %v3224 = vunpack.c.l.b16 %v2244
    %v3225 = vunpack.c.h.b16 %v2244
    %v3226 = vunpack.c.l.b16 %v2245
    %v3227 = vunpack.c.h.b16 %v2245
    %v3228 = vunpack.c.l.b16 %v2246
    %v3229 = vunpack.c.h.b16 %v2246
    %v3230 = vunpack.c.l.b16 %v2247
    %v3231 = vunpack.c.h.b16 %v2247
    %v3232 = vunpack.c.l.b16 %v2248
    %v3233 = vunpack.c.l.b16 %v2249
    %v3234 = vunpack.c.h.b16 %v2249
    %v3235 = vunpack.c.l.b16 %v2250
    %v3236 = vunpack.c.h.b16 %v2250
    %v3237 = vunpack.c.l.b16 %v2251
    %v3238 = vunpack.c.h.b16 %v2251
    %v3239 = vunpack.c.l.b16 %v2252
    %v3240 = vunpack.c.h.b16 %v2252
    %v3241 = vunpack.c.l.b16 %v2253
    %v3242 = vunpack.c.l.b16 %v2254
    %v3243 = vunpack.c.h.b16 %v2254
    %v3244 = vunpack.c.l.b16 %v2255
    %v3245 = vunpack.c.h.b16 %v2255
    %v3246 = vunpack.c.l.b16 %v2256
    %v3247 = vunpack.c.h.b16 %v2256
    %v3248 = vunpack.c.l.b16 %v2257
    %v3249 = vunpack.c.h.b16 %v2257
    %v3250 = vunpack.c.l.b16 %v2258
    %v3251 = vunpack.c.l.b16 %v2259
    %v3252 = vunpack.c.h.b16 %v2259
    %v3253 = vunpack.c.l.b16 %v2260
    %v3254 = vunpack.c.h.b16 %v2260
    %v3255 = vunpack.c.l.b16 %v2261
    %v3256 = vunpack.c.h.b16 %v2261
    %v3257 = vunpack.c.l.b16 %v2262
    %v3258 = vunpack.c.h.b16 %v2262
    %v3259 = vunpack.c.l.b16 %v2263
    %v3260 = vunpack.c.l.b16 %v2264
    %v3261 = vunpack.c.h.b16 %v2264
    %v3262 = vunpack.c.l.b16 %v2265
    %v3263 = vunpack.c.h.b16 %v2265
    %v3264 = vunpack.c.l.b16 %v2266
    %v3265 = vunpack.c.h.b16 %v2266
    %v3266 = vunpack.c.l.b16 %v2267
    %v3267 = vunpack.c.h.b16 %v2267
    %v3268 = vunpack.c.l.b16 %v2268
    %v3269 = vunpack.c.l.b16 %v2269
    %v3270 = vunpack.c.h.b16 %v2269
    %v3271 = vunpack.c.l.b16 %v2270
    %v3272 = vunpack.c.h.b16 %v2270
    %v3273 = vunpack.c.l.b16 %v2271
    %v3274 = vunpack.c.h.b16 %v2271
    %v3275 = vunpack.c.l.b16 %v2272
    %v3276 = vunpack.c.h.b16 %v2272
    %v3277 = vunpack.c.l.b16 %v2273
    %v3278 = vunpack.c.l.b16 %v2274
    %v3279 = vunpack.c.h.b16 %v2274
    %v3280 = vunpack.c.l.b16 %v2275
    %v3281 = vunpack.c.h.b16 %v2275
    %v3282 = vunpack.c.l.b16 %v2276
    %v3283 = vunpack.c.h.b16 %v2276
    %v3284 = vunpack.c.l.b16 %v2277
    %v3285 = vunpack.c.h.b16 %v2277
    %v3286 = vunpack.c.l.b16 %v2278
    %v3287 = vunpack.c.l.b16 %v2279
    %v3288 = vunpack.c.h.b16 %v2279
    %v3289 = vunpack.c.l.b16 %v2280
    %v3290 = vunpack.c.h.b16 %v2280
    %v3291 = vunpack.c.l.b16 %v2281
    %v3292 = vunpack.c.h.b16 %v2281
    %v3293 = vunpack.c.l.b16 %v2282
    %v3294 = vunpack.c.h.b16 %v2282
    %v3295 = vunpack.c.l.b16 %v2283
    %v3296 = vunpack.c.l.b16 %v2284
    %v3297 = vunpack.c.h.b16 %v2284
    %v3298 = vunpack.c.l.b16 %v2285
    %v3299 = vunpack.c.h.b16 %v2285
    %v3300 = vunpack.c.l.b16 %v2286
    %v3301 = vunpack.c.h.b16 %v2286
    %v3302 = vunpack.c.l.b16 %v2287
    %v3303 = vunpack.c.h.b16 %v2287
    %v3304 = vunpack.c.l.b16 %v2288
    %v3305 = vunpack.c.l.b16 %v2289
    %v3306 = vunpack.c.h.b16 %v2289
    %v3307 = vunpack.c.l.b16 %v2290
    %v3308 = vunpack.c.h.b16 %v2290
    %v3309 = vunpack.c.l.b16 %v2291
    %v3310 = vunpack.c.h.b16 %v2291
    %v3311 = vunpack.c.l.b16 %v2292
    %v3312 = vunpack.c.h.b16 %v2292
    %v3313 = vunpack.c.l.b16 %v2293
    %v3314 = vunpack.c.l.b16 %v2294
    %v3315 = vunpack.c.h.b16 %v2294
    %v3316 = vunpack.c.l.b16 %v2295
    %v3317 = vunpack.c.h.b16 %v2295
    %v3318 = vunpack.c.l.b16 %v2296
    %v3319 = vunpack.c.h.b16 %v2296
    %v3320 = vunpack.c.l.b16 %v2297
    %v3321 = vunpack.c.h.b16 %v2297
    %v3322 = vunpack.c.l.b16 %v2298
    %v3323 = vunpack.c.l.b16 %v2299
    %v3324 = vunpack.c.h.b16 %v2299
    %v3325 = vunpack.c.l.b16 %v2300
    %v3326 = vunpack.c.h.b16 %v2300
    %v3327 = vunpack.c.l.b16 %v2301
    %v3328 = vunpack.c.h.b16 %v2301
    %v3329 = vunpack.c.l.b16 %v2302
    %v3330 = vunpack.c.h.b16 %v2302
    %v3331 = vunpack.c.l.b16 %v2303
    %v3332 = vunpack.c.l.b16 %v2304
    %v3333 = vunpack.c.h.b16 %v2304
    %v3334 = vunpack.c.l.b16 %v2305
    %v3335 = vunpack.c.h.b16 %v2305
    %v3336 = vunpack.c.l.b16 %v2306
    %v3337 = vunpack.c.h.b16 %v2306
    %v3338 = vunpack.c.l.b16 %v2307
    %v3339 = vunpack.c.h.b16 %v2307
    %v3340 = vunpack.c.l.b16 %v2308
    %v3341 = vunpack.c.l.b16 %v2309
    %v3342 = vunpack.c.h.b16 %v2309
    %v3343 = vunpack.c.l.b16 %v2310
    %v3344 = vunpack.c.h.b16 %v2310
    %v3345 = vunpack.c.l.b16 %v2311
    %v3346 = vunpack.c.h.b16 %v2311
    %v3347 = vunpack.c.l.b16 %v2312
    %v3348 = vunpack.c.h.b16 %v2312
    %v3349 = vunpack.c.l.b16 %v2313
    %v3350 = vunpack.c.l.b16 %v2314
    %v3351 = vunpack.c.h.b16 %v2314
    %v3352 = vunpack.c.l.b16 %v2315
    %v3353 = vunpack.c.h.b16 %v2315
    %v3354 = vunpack.c.l.b16 %v2316
    %v3355 = vunpack.c.h.b16 %v2316
    %v3356 = vunpack.c.l.b16 %v2317
    %v3357 = vunpack.c.h.b16 %v2317
    %v3358 = vunpack.c.l.b16 %v2318
    %v3359 = vunpack.c.l.b16 %v2319
    %v3360 = vunpack.c.h.b16 %v2319
    %v3361 = vunpack.c.l.b16 %v2320
    %v3362 = vunpack.c.h.b16 %v2320
    %v3363 = vunpack.c.l.b16 %v2321
    %v3364 = vunpack.c.h.b16 %v2321
    %v3365 = vunpack.c.l.b16 %v2322
    %v3366 = vunpack.c.h.b16 %v2322
    %v3367 = vunpack.c.l.b16 %v2323
    %v3368 = vpack.c.b16 %v2801, %v2792
    %v3369 = vpack.c.b16 %v2802, %v2793
    %v3370 = vpack.c.b16 %v2803, %v2794
    %v3371 = vpack.c.b16 %v2804, %v2795
    %v3372 = vpack.c.b16 %v2805, %v2796
    %v3373 = vpack.c.b16 %v2806, %v2797
    %v3374 = vpack.c.b16 %v2807, %v2798
    %v3375 = vpack.c.b16 %v2808, %v2799
    %v3376 = vpack.c.b16 %v2809, %v2800
    %v3377 = vpack.c.b16 %v2819, %v2810
    %v3378 = vpack.c.b16 %v2820, %v2811
    %v3379 = vpack.c.b16 %v2821, %v2812
    %v3380 = vpack.c.b16 %v2822, %v2813
    %v3381 = vpack.c.b16 %v2823, %v2814
    %v3382 = vpack.c.b16 %v2824, %v2815
    %v3383 = vpack.c.b16 %v2825, %v2816
    %v3384 = vpack.c.b16 %v2826, %v2817
    %v3385 = vpack.c.b16 %v2827, %v2818
    %v3386 = vpack.c.b16 %v2837, %v2828
    %v3387 = vpack.c.b16 %v2838, %v2829
    %v3388 = vpack.c.b16 %v2839, %v2830
    %v3389 = vpack.c.b16 %v2840, %v2831
    %v3390 = vpack.c.b16 %v2841, %v2832
    %v3391 = vpack.c.b16 %v2842, %v2833
    %v3392 = vpack.c.b16 %v2843, %v2834
    %v3393 = vpack.c.b16 %v2844, %v2835
    %v3394 = vpack.c.b16 %v2845, %v2836
    %v3395 = vpack.c.b16 %v2855, %v2846
    %v3396 = vpack.c.b16 %v2856, %v2847
    %v3397 = vpack.c.b16 %v2857, %v2848
    %v3398 = vpack.c.b16 %v2858, %v2849
    %v3399 = vpack.c.b16 %v2859, %v2850
    %v3400 = vpack.c.b16 %v2860, %v2851
    %v3401 = vpack.c.b16 %v2861, %v2852
    %v3402 = vpack.c.b16 %v2862, %v2853
    %v3403 = vpack.c.b16 %v2863, %v2854
    %v3404 = vpack.c.b16 %v2873, %v2864
    %v3405 = vpack.c.b16 %v2874, %v2865
    %v3406 = vpack.c.b16 %v2875, %v2866
    %v3407 = vpack.c.b16 %v2876, %v2867
    %v3408 = vpack.c.b16 %v2877, %v2868
    %v3409 = vpack.c.b16 %v2878, %v2869
    %v3410 = vpack.c.b16 %v2879, %v2870
    %v3411 = vpack.c.b16 %v2880, %v2871
    %v3412 = vpack.c.b16 %v2881, %v2872
    %v3413 = vpack.c.b16 %v2891, %v2882
    %v3414 = vpack.c.b16 %v2892, %v2883
    %v3415 = vpack.c.b16 %v2893, %v2884
    %v3416 = vpack.c.b16 %v2894, %v2885
    %v3417 = vpack.c.b16 %v2895, %v2886
    %v3418 = vpack.c.b16 %v2896, %v2887
    %v3419 = vpack.c.b16 %v2897, %v2888
    %v3420 = vpack.c.b16 %v2898, %v2889
    %v3421 = vpack.c.b16 %v2899, %v2890
    %v3422 = vpack.c.b16 %v2909, %v2900
    %v3423 = vpack.c.b16 %v2910, %v2901
    %v3424 = vpack.c.b16 %v2911, %v2902
    %v3425 = vpack.c.b16 %v2912, %v2903
    %v3426 = vpack.c.b16 %v2913, %v2904
    %v3427 = vpack.c.b16 %v2914, %v2905
    %v3428 = vpack.c.b16 %v2915, %v2906
    %v3429 = vpack.c.b16 %v2916, %v2907
    %v3430 = vpack.c.b16 %v2917, %v2908
    %v3431 = vpack.c.b16 %v2927, %v2918
    %v3432 = vpack.c.b16 %v2928, %v2919
    %v3433 = vpack.c.b16 %v2929, %v2920
    %v3434 = vpack.c.b16 %v2930, %v2921
    %v3435 = vpack.c.b16 %v2931, %v2922
    %v3436 = vpack.c.b16 %v2932, %v2923
    %v3437 = vpack.c.b16 %v2933, %v2924
    %v3438 = vpack.c.b16 %v2934, %v2925
    %v3439 = vpack.c.b16 %v2935, %v2926
    %v3440 = vpack.c.b16 %v2945, %v2936
    %v3441 = vpack.c.b16 %v2946, %v2937
    %v3442 = vpack.c.b16 %v2947, %v2938
    %v3443 = vpack.c.b16 %v2948, %v2939
    %v3444 = vpack.c.b16 %v2949, %v2940
    %v3445 = vpack.c.b16 %v2950, %v2941
    %v3446 = vpack.c.b16 %v2951, %v2942
    %v3447 = vpack.c.b16 %v2952, %v2943
    %v3448 = vpack.c.b16 %v2953, %v2944
    %v3449 = vpack.c.b16 %v2963, %v2954
    %v3450 = vpack.c.b16 %v2964, %v2955
    %v3451 = vpack.c.b16 %v2965, %v2956
    %v3452 = vpack.c.b16 %v2966, %v2957
    %v3453 = vpack.c.b16 %v2967, %v2958
    %v3454 = vpack.c.b16 %v2968, %v2959
    %v3455 = vpack.c.b16 %v2969, %v2960
    %v3456 = vpack.c.b16 %v2970, %v2961
    %v3457 = vpack.c.b16 %v2971, %v2962
    %v3458 = vpack.c.b16 %v2981, %v2972
    %v3459 = vpack.c.b16 %v2982, %v2973
    %v3460 = vpack.c.b16 %v2983, %v2974
    %v3461 = vpack.c.b16 %v2984, %v2975
    %v3462 = vpack.c.b16 %v2985, %v2976
    %v3463 = vpack.c.b16 %v2986, %v2977
    %v3464 = vpack.c.b16 %v2987, %v2978
    %v3465 = vpack.c.b16 %v2988, %v2979
    %v3466 = vpack.c.b16 %v2989, %v2980
    %v3467 = vpack.c.b16 %v2999, %v2990
    %v3468 = vpack.c.b16 %v3000, %v2991
    %v3469 = vpack.c.b16 %v3001, %v2992
    %v3470 = vpack.c.b16 %v3002, %v2993
    %v3471 = vpack.c.b16 %v3003, %v2994
    %v3472 = vpack.c.b16 %v3004, %v2995
    %v3473 = vpack.c.b16 %v3005, %v2996
    %v3474 = vpack.c.b16 %v3006, %v2997
    %v3475 = vpack.c.b16 %v3007, %v2998
    %v3476 = vpack.c.b16 %v3017, %v3008
    %v3477 = vpack.c.b16 %v3018, %v3009
    %v3478 = vpack.c.b16 %v3019, %v3010
    %v3479 = vpack.c.b16 %v3020, %v3011
    %v3480 = vpack.c.b16 %v3021, %v3012
    %v3481 = vpack.c.b16 %v3022, %v3013
    %v3482 = vpack.c.b16 %v3023, %v3014
    %v3483 = vpack.c.b16 %v3024, %v3015
    %v3484 = vpack.c.b16 %v3025, %v3016
    %v3485 = vpack.c.b16 %v3035, %v3026
    %v3486 = vpack.c.b16 %v3036, %v3027
    %v3487 = vpack.c.b16 %v3037, %v3028
    %v3488 = vpack.c.b16 %v3038, %v3029
    %v3489 = vpack.c.b16 %v3039, %v3030
    %v3490 = vpack.c.b16 %v3040, %v3031
    %v3491 = vpack.c.b16 %v3041, %v3032
    %v3492 = vpack.c.b16 %v3042, %v3033
    %v3493 = vpack.c.b16 %v3043, %v3034
    %v3494 = vpack.c.b16 %v3053, %v3044
    %v3495 = vpack.c.b16 %v3054, %v3045
    %v3496 = vpack.c.b16 %v3055, %v3046
    %v3497 = vpack.c.b16 %v3056, %v3047
    %v3498 = vpack.c.b16 %v3057, %v3048
    %v3499 = vpack.c.b16 %v3058, %v3049
    %v3500 = vpack.c.b16 %v3059, %v3050
    %v3501 = vpack.c.b16 %v3060, %v3051
    %v3502 = vpack.c.b16 %v3061, %v3052
    %v3503 = vpack.c.b16 %v3071, %v3062
    %v3504 = vpack.c.b16 %v3072, %v3063
    %v3505 = vpack.c.b16 %v3073, %v3064
    %v3506 = vpack.c.b16 %v3074, %v3065
    %v3507 = vpack.c.b16 %v3075, %v3066
    %v3508 = vpack.c.b16 %v3076, %v3067
    %v3509 = vpack.c.b16 %v3077, %v3068
    %v3510 = vpack.c.b16 %v3078, %v3069
    %v3511 = vpack.c.b16 %v3079, %v3070
    %v3512 = vpack.c.b16 %v3089, %v3080
    %v3513 = vpack.c.b16 %v3090, %v3081
    %v3514 = vpack.c.b16 %v3091, %v3082
    %v3515 = vpack.c.b16 %v3092, %v3083
    %v3516 = vpack.c.b16 %v3093, %v3084
    %v3517 = vpack.c.b16 %v3094, %v3085
    %v3518 = vpack.c.b16 %v3095, %v3086
    %v3519 = vpack.c.b16 %v3096, %v3087
    %v3520 = vpack.c.b16 %v3097, %v3088
    %v3521 = vpack.c.b16 %v3107, %v3098
    %v3522 = vpack.c.b16 %v3108, %v3099
    %v3523 = vpack.c.b16 %v3109, %v3100
    %v3524 = vpack.c.b16 %v3110, %v3101
    %v3525 = vpack.c.b16 %v3111, %v3102
    %v3526 = vpack.c.b16 %v3112, %v3103
    %v3527 = vpack.c.b16 %v3113, %v3104
    %v3528 = vpack.c.b16 %v3114, %v3105
    %v3529 = vpack.c.b16 %v3115, %v3106
    %v3530 = vpack.c.b16 %v3125, %v3116
    %v3531 = vpack.c.b16 %v3126, %v3117
    %v3532 = vpack.c.b16 %v3127, %v3118
    %v3533 = vpack.c.b16 %v3128, %v3119
    %v3534 = vpack.c.b16 %v3129, %v3120
    %v3535 = vpack.c.b16 %v3130, %v3121
    %v3536 = vpack.c.b16 %v3131, %v3122
    %v3537 = vpack.c.b16 %v3132, %v3123
    %v3538 = vpack.c.b16 %v3133, %v3124
    %v3539 = vpack.c.b16 %v3143, %v3134
    %v3540 = vpack.c.b16 %v3144, %v3135
    %v3541 = vpack.c.b16 %v3145, %v3136
    %v3542 = vpack.c.b16 %v3146, %v3137
    %v3543 = vpack.c.b16 %v3147, %v3138
    %v3544 = vpack.c.b16 %v3148, %v3139
    %v3545 = vpack.c.b16 %v3149, %v3140
    %v3546 = vpack.c.b16 %v3150, %v3141
    %v3547 = vpack.c.b16 %v3151, %v3142
    %v3548 = vpack.c.b16 %v3161, %v3152
    %v3549 = vpack.c.b16 %v3162, %v3153
    %v3550 = vpack.c.b16 %v3163, %v3154
    %v3551 = vpack.c.b16 %v3164, %v3155
    %v3552 = vpack.c.b16 %v3165, %v3156
    %v3553 = vpack.c.b16 %v3166, %v3157
    %v3554 = vpack.c.b16 %v3167, %v3158
    %v3555 = vpack.c.b16 %v3168, %v3159
    %v3556 = vpack.c.b16 %v3169, %v3160
    %v3557 = vpack.c.b16 %v3179, %v3170
    %v3558 = vpack.c.b16 %v3180, %v3171
    %v3559 = vpack.c.b16 %v3181, %v3172
    %v3560 = vpack.c.b16 %v3182, %v3173
    %v3561 = vpack.c.b16 %v3183, %v3174
    %v3562 = vpack.c.b16 %v3184, %v3175
    %v3563 = vpack.c.b16 %v3185, %v3176
    %v3564 = vpack.c.b16 %v3186, %v3177
    %v3565 = vpack.c.b16 %v3187, %v3178
    %v3566 = vpack.c.b16 %v3197, %v3188
    %v3567 = vpack.c.b16 %v3198, %v3189
    %v3568 = vpack.c.b16 %v3199, %v3190
    %v3569 = vpack.c.b16 %v3200, %v3191
    %v3570 = vpack.c.b16 %v3201, %v3192
    %v3571 = vpack.c.b16 %v3202, %v3193
    %v3572 = vpack.c.b16 %v3203, %v3194
    %v3573 = vpack.c.b16 %v3204, %v3195
    %v3574 = vpack.c.b16 %v3205, %v3196
    %v3575 = vpack.c.b16 %v3215, %v3206
    %v3576 = vpack.c.b16 %v3216, %v3207
    %v3577 = vpack.c.b16 %v3217, %v3208
    %v3578 = vpack.c.b16 %v3218, %v3209
    %v3579 = vpack.c.b16 %v3219, %v3210
    %v3580 = vpack.c.b16 %v3220, %v3211
    %v3581 = vpack.c.b16 %v3221, %v3212
    %v3582 = vpack.c.b16 %v3222, %v3213
    %v3583 = vpack.c.b16 %v3223, %v3214
    %v3584 = vpack.c.b16 %v3233, %v3224
    %v3585 = vpack.c.b16 %v3234, %v3225
    %v3586 = vpack.c.b16 %v3235, %v3226
    %v3587 = vpack.c.b16 %v3236, %v3227
    %v3588 = vpack.c.b16 %v3237, %v3228
    %v3589 = vpack.c.b16 %v3238, %v3229
    %v3590 = vpack.c.b16 %v3239, %v3230
    %v3591 = vpack.c.b16 %v3240, %v3231
    %v3592 = vpack.c.b16 %v3241, %v3232
    %v3593 = vpack.c.b16 %v3251, %v3242
    %v3594 = vpack.c.b16 %v3252, %v3243
    %v3595 = vpack.c.b16 %v3253, %v3244
    %v3596 = vpack.c.b16 %v3254, %v3245
    %v3597 = vpack.c.b16 %v3255, %v3246
    %v3598 = vpack.c.b16 %v3256, %v3247
    %v3599 = vpack.c.b16 %v3257, %v3248
    %v3600 = vpack.c.b16 %v3258, %v3249
    %v3601 = vpack.c.b16 %v3259, %v3250
    %v3602 = vpack.c.b16 %v3269, %v3260
    %v3603 = vpack.c.b16 %v3270, %v3261
    %v3604 = vpack.c.b16 %v3271, %v3262
    %v3605 = vpack.c.b16 %v3272, %v3263
    %v3606 = vpack.c.b16 %v3273, %v3264
    %v3607 = vpack.c.b16 %v3274, %v3265
    %v3608 = vpack.c.b16 %v3275, %v3266
    %v3609 = vpack.c.b16 %v3276, %v3267
    %v3610 = vpack.c.b16 %v3277, %v3268
    %v3611 = vpack.c.b16 %v3287, %v3278
    %v3612 = vpack.c.b16 %v3288, %v3279
    %v3613 = vpack.c.b16 %v3289, %v3280
    %v3614 = vpack.c.b16 %v3290, %v3281
    %v3615 = vpack.c.b16 %v3291, %v3282
    %v3616 = vpack.c.b16 %v3292, %v3283
    %v3617 = vpack.c.b16 %v3293, %v3284
    %v3618 = vpack.c.b16 %v3294, %v3285
    %v3619 = vpack.c.b16 %v3295, %v3286
    %v3620 = vpack.c.b16 %v3305, %v3296
    %v3621 = vpack.c.b16 %v3306, %v3297
    %v3622 = vpack.c.b16 %v3307, %v3298
    %v3623 = vpack.c.b16 %v3308, %v3299
    %v3624 = vpack.c.b16 %v3309, %v3300
    %v3625 = vpack.c.b16 %v3310, %v3301
    %v3626 = vpack.c.b16 %v3311, %v3302
    %v3627 = vpack.c.b16 %v3312, %v3303
    %v3628 = vpack.c.b16 %v3313, %v3304
    %v3629 = vpack.c.b16 %v3323, %v3314
    %v3630 = vpack.c.b16 %v3324, %v3315
    %v3631 = vpack.c.b16 %v3325, %v3316
    %v3632 = vpack.c.b16 %v3326, %v3317
    %v3633 = vpack.c.b16 %v3327, %v3318
    %v3634 = vpack.c.b16 %v3328, %v3319
    %v3635 = vpack.c.b16 %v3329, %v3320
    %v3636 = vpack.c.b16 %v3330, %v3321
    %v3637 = vpack.c.b16 %v3331, %v3322
    %v3638 = vpack.c.b16 %v3341, %v3332
    %v3639 = vpack.c.b16 %v3342, %v3333
    %v3640 = vpack.c.b16 %v3343, %v3334
    %v3641 = vpack.c.b16 %v3344, %v3335
    %v3642 = vpack.c.b16 %v3345, %v3336
    %v3643 = vpack.c.b16 %v3346, %v3337
    %v3644 = vpack.c.b16 %v3347, %v3338
    %v3645 = vpack.c.b16 %v3348, %v3339
    %v3646 = vpack.c.b16 %v3349, %v3340
    %v3647 = vpack.c.b16 %v3359, %v3350
    %v3648 = vpack.c.b16 %v3360, %v3351
    %v3649 = vpack.c.b16 %v3361, %v3352
    %v3650 = vpack.c.b16 %v3362, %v3353
    %v3651 = vpack.c.b16 %v3363, %v3354
    %v3652 = vpack.c.b16 %v3364, %v3355
    %v3653 = vpack.c.b16 %v3365, %v3356
    %v3654 = vpack.c.b16 %v3366, %v3357
    %v3655 = vpack.c.b16 %v3367, %v3358
    %v4088 = vunpack.c.l.b16 %v2324
    %v4089 = vunpack.c.l.b16 %v2325
    %v4090 = vunpack.c.l.b16 %v2326
    %v4091 = vunpack.c.l.b16 %v2327
    %v4092 = vunpack.c.l.b16 %v2328
    %v4093 = vunpack.c.l.b16 %v2329
    %v4094 = vunpack.c.l.b16 %v2330
    %v4095 = vunpack.c.l.b16 %v2331
    %v4096 = vunpack.c.l.b16 %v2332
    %v4097 = vunpack.c.l.b16 %v2333
    %v4098 = vunpack.c.l.b16 %v2334
    %v4099 = vunpack.c.l.b16 %v2335
    %v4100 = vunpack.c.l.b16 %v2336
    %v4101 = vunpack.c.l.b16 %v2337
    %v4102 = vunpack.c.l.b16 %v2338
    %v4103 = vunpack.c.l.b16 %v2339
    %v4104 = vunpack.c.l.b16 %v2340
    %v4105 = vunpack.c.l.b16 %v2341
    %v4106 = vunpack.c.l.b16 %v2342
    %v4107 = vunpack.c.l.b16 %v2343
    %v4108 = vunpack.c.l.b16 %v2344
    %v4109 = vunpack.c.l.b16 %v2345
    %v4110 = vunpack.c.l.b16 %v2346
    %v4111 = vunpack.c.l.b16 %v2347
    %v4112 = vunpack.c.l.b16 %v2348
    %v4113 = vunpack.c.l.b16 %v2349
    %v4114 = vunpack.c.l.b16 %v2350
    %v4115 = vunpack.c.l.b16 %v2351
    %v4116 = vunpack.c.l.b16 %v2352
    %v4117 = vunpack.c.l.b16 %v2353
    %v4118 = vunpack.c.l.b16 %v2354
    %v4119 = vunpack.c.l.b16 %v2355
    %v4120 = vunpack.c.l.b16 %v2356
    %v4121 = vunpack.c.l.b16 %v2357
    %v4122 = vunpack.c.l.b16 %v2358
    %v4123 = vunpack.c.l.b16 %v2359
    %v4124 = vunpack.c.l.b16 %v2360
    %v4125 = vunpack.c.l.b16 %v2361
    %v4126 = vunpack.c.l.b16 %v2362
    %v4127 = vunpack.c.l.b16 %v2363
    %v4128 = vunpack.c.l.b16 %v2364
    %v4129 = vunpack.c.l.b16 %v2365
    %v4130 = vunpack.c.l.b16 %v2366
    %v4131 = vunpack.c.l.b16 %v2367
    %v4132 = vunpack.c.l.b16 %v2368
    %v4133 = vunpack.c.l.b16 %v2369
    %v4134 = vunpack.c.l.b16 %v2370
    %v4135 = vunpack.c.l.b16 %v2371
    %v4136 = vunpack.c.l.b16 %v2372
    %v4137 = vunpack.c.l.b16 %v2373
    %v4138 = vunpack.c.l.b16 %v2374
    %v4139 = vunpack.c.l.b16 %v2375
    %v4140 = vunpack.c.l.b16 %v2376
    %v4141 = vunpack.c.l.b16 %v2377
    %v4142 = vunpack.c.l.b16 %v2378
    %v4143 = vunpack.c.l.b16 %v2379
    %v4144 = vunpack.c.l.b16 %v2380
    %v4145 = vunpack.c.l.b16 %v2381
    %v4146 = vunpack.c.l.b16 %v2382
    %v4147 = vunpack.c.l.b16 %v2383
    %v4148 = vunpack.c.l.b16 %v2384
    %v4149 = vunpack.c.l.b16 %v2385
    %v4150 = vunpack.c.l.b16 %v2386
    %v4151 = vunpack.c.l.b16 %v2387
    %v4152 = vunpack.c.l.b16 %v2388
    %v4153 = vunpack.c.l.b16 %v2389
    %v4154 = vunpack.c.l.b16 %v2390
    %v4155 = vunpack.c.l.b16 %v2391
    %v4156 = vunpack.c.l.b16 %v2392
    %v4157 = vunpack.c.l.b16 %v2393
    %v4158 = vunpack.c.l.b16 %v2394
    %v4159 = vunpack.c.l.b16 %v2395
    %v4160 = vunpack.c.l.b16 %v2396
    %v4161 = vunpack.c.l.b16 %v2397
    %v4162 = vunpack.c.l.b16 %v2398
    %v4163 = vunpack.c.l.b16 %v2399
    %v4164 = vunpack.c.l.b16 %v2400
    %v4165 = vunpack.c.l.b16 %v2401
    %v4166 = vunpack.c.l.b16 %v2402
    %v4167 = vunpack.c.l.b16 %v2403
    %v4168 = vunpack.c.l.b16 %v2404
    %v4169 = vunpack.c.l.b16 %v2405
    %v4170 = vunpack.c.l.b16 %v2406
    %v4171 = vunpack.c.l.b16 %v2407
    %v4172 = vunpack.c.l.b16 %v2408
    %v4173 = vunpack.c.l.b16 %v2409
    %v4174 = vunpack.c.l.b16 %v2410
    %v4175 = vunpack.c.l.b16 %v2411
    %v4176 = vunpack.c.l.b16 %v2412
    %v4177 = vunpack.c.l.b16 %v2413
    %v4178 = vunpack.c.l.b16 %v2414
    %v4179 = vunpack.c.l.b16 %v2415
    %v4180 = vunpack.c.l.b16 %v2416
    %v4181 = vunpack.c.l.b16 %v2417
    %v4182 = vunpack.c.l.b16 %v2418
    %v4183 = vunpack.c.l.b16 %v2419
    %v4184 = vunpack.c.l.b16 %v2420
    %v4185 = vunpack.c.l.b16 %v2421
    %v4186 = vunpack.c.l.b16 %v2422
    %v4187 = vunpack.c.l.b16 %v2423
    %v4188 = vunpack.c.l.b16 %v2424
    %v4189 = vunpack.c.l.b16 %v2425
    %v4190 = vunpack.c.l.b16 %v2426
    %v4191 = vunpack.c.l.b16 %v2427
    %v4192 = vunpack.c.l.b16 %v2428
    %v4193 = vunpack.c.l.b16 %v2429
    %v4194 = vunpack.c.l.b16 %v2430
    %v4195 = vunpack.c.l.b16 %v2431
    %v4196 = vunpack.c.l.b16 %v2432
    %v4197 = vunpack.c.l.b16 %v2433
    %v4198 = vunpack.c.l.b16 %v2434
    %v4199 = vunpack.c.l.b16 %v2435
    %v4200 = vunpack.c.l.b16 %v2436
    %v4201 = vunpack.c.l.b16 %v2437
    %v4202 = vunpack.c.l.b16 %v2438
    %v4203 = vunpack.c.l.b16 %v2439
    %v4204 = vunpack.c.l.b16 %v2440
    %v4205 = vunpack.c.l.b16 %v2441
    %v4206 = vunpack.c.l.b16 %v2442
    %v4207 = vunpack.c.l.b16 %v2443
    %v4208 = vunpack.c.l.b16 %v2444
    %v4209 = vunpack.c.l.b16 %v2445
    %v4210 = vunpack.c.l.b16 %v2446
    %v4211 = vunpack.c.l.b16 %v2447
    %v4212 = vunpack.c.l.b16 %v2448
    %v4213 = vunpack.c.l.b16 %v2449
    %v4214 = vunpack.c.l.b16 %v2450
    %v4215 = vunpack.c.l.b16 %v2451
    %v4216 = vunpack.c.l.b16 %v2452
    %v4217 = vunpack.c.l.b16 %v2453
    %v4218 = vunpack.c.l.b16 %v2454
    %v4219 = vunpack.c.l.b16 %v2455
    %v4220 = vunpack.c.l.b16 %v2456
    %v4221 = vunpack.c.l.b16 %v2457
    %v4222 = vunpack.c.l.b16 %v2458
    %v4223 = vunpack.c.l.b16 %v2459
    %v4224 = vunpack.c.l.b16 %v2460
    %v4225 = vunpack.c.l.b16 %v2461
    %v4226 = vunpack.c.l.b16 %v2462
    %v4227 = vunpack.c.l.b16 %v2463
    %v4228 = vunpack.c.l.b16 %v2464
    %v4229 = vunpack.c.l.b16 %v2465
    %v4230 = vunpack.c.l.b16 %v2466
    %v4231 = vunpack.c.l.b16 %v2467
    %v4232 = vpack.c.b16 %v4089, %v4088
    %v4233 = vpack.c.b16 %v4091, %v4090
    %v4234 = vpack.c.b16 %v4093, %v4092
    %v4235 = vpack.c.b16 %v4095, %v4094
    %v4236 = vpack.c.b16 %v4097, %v4096
    %v4237 = vpack.c.b16 %v4099, %v4098
    %v4238 = vpack.c.b16 %v4101, %v4100
    %v4239 = vpack.c.b16 %v4103, %v4102
    %v4240 = vpack.c.b16 %v4105, %v4104
    %v4241 = vpack.c.b16 %v4107, %v4106
    %v4242 = vpack.c.b16 %v4109, %v4108
    %v4243 = vpack.c.b16 %v4111, %v4110
    %v4244 = vpack.c.b16 %v4113, %v4112
    %v4245 = vpack.c.b16 %v4115, %v4114
    %v4246 = vpack.c.b16 %v4117, %v4116
    %v4247 = vpack.c.b16 %v4119, %v4118
    %v4248 = vpack.c.b16 %v4121, %v4120
    %v4249 = vpack.c.b16 %v4123, %v4122
    %v4250 = vpack.c.b16 %v4125, %v4124
    %v4251 = vpack.c.b16 %v4127, %v4126
    %v4252 = vpack.c.b16 %v4129, %v4128
    %v4253 = vpack.c.b16 %v4131, %v4130
    %v4254 = vpack.c.b16 %v4133, %v4132
    %v4255 = vpack.c.b16 %v4135, %v4134
    %v4256 = vpack.c.b16 %v4137, %v4136
    %v4257 = vpack.c.b16 %v4139, %v4138
    %v4258 = vpack.c.b16 %v4141, %v4140
    %v4259 = vpack.c.b16 %v4143, %v4142
    %v4260 = vpack.c.b16 %v4145, %v4144
    %v4261 = vpack.c.b16 %v4147, %v4146
    %v4262 = vpack.c.b16 %v4149, %v4148
    %v4263 = vpack.c.b16 %v4151, %v4150
    %v4264 = vpack.c.b16 %v4153, %v4152
    %v4265 = vpack.c.b16 %v4155, %v4154
    %v4266 = vpack.c.b16 %v4157, %v4156
    %v4267 = vpack.c.b16 %v4159, %v4158
    %v4268 = vpack.c.b16 %v4161, %v4160
    %v4269 = vpack.c.b16 %v4163, %v4162
    %v4270 = vpack.c.b16 %v4165, %v4164
    %v4271 = vpack.c.b16 %v4167, %v4166
    %v4272 = vpack.c.b16 %v4169, %v4168
    %v4273 = vpack.c.b16 %v4171, %v4170
    %v4274 = vpack.c.b16 %v4173, %v4172
    %v4275 = vpack.c.b16 %v4175, %v4174
    %v4276 = vpack.c.b16 %v4177, %v4176
    %v4277 = vpack.c.b16 %v4179, %v4178
    %v4278 = vpack.c.b16 %v4181, %v4180
    %v4279 = vpack.c.b16 %v4183, %v4182
    %v4280 = vpack.c.b16 %v4185, %v4184
    %v4281 = vpack.c.b16 %v4187, %v4186
    %v4282 = vpack.c.b16 %v4189, %v4188
    %v4283 = vpack.c.b16 %v4191, %v4190
    %v4284 = vpack.c.b16 %v4193, %v4192
    %v4285 = vpack.c.b16 %v4195, %v4194
    %v4286 = vpack.c.b16 %v4197, %v4196
    %v4287 = vpack.c.b16 %v4199, %v4198
    %v4288 = vpack.c.b16 %v4201, %v4200
    %v4289 = vpack.c.b16 %v4203, %v4202
    %v4290 = vpack.c.b16 %v4205, %v4204
    %v4291 = vpack.c.b16 %v4207, %v4206
    %v4292 = vpack.c.b16 %v4209, %v4208
    %v4293 = vpack.c.b16 %v4211, %v4210
    %v4294 = vpack.c.b16 %v4213, %v4212
    %v4295 = vpack.c.b16 %v4215, %v4214
    %v4296 = vpack.c.b16 %v4217, %v4216
    %v4297 = vpack.c.b16 %v4219, %v4218
    %v4298 = vpack.c.b16 %v4221, %v4220
    %v4299 = vpack.c.b16 %v4223, %v4222
    %v4300 = vpack.c.b16 %v4225, %v4224
    %v4301 = vpack.c.b16 %v4227, %v4226
    %v4302 = vpack.c.b16 %v4229, %v4228
    %v4303 = vpack.c.b16 %v4231, %v4230
    %4376 = vmatpush.bf16.msra.mxu0 %v4239
    %4377 = vmatpush.bf16.msra.mxu0 %v4238
    %4378 = vmatpush.bf16.msra.mxu0 %v4237
    %4379 = vmatpush.bf16.msra.mxu0 %v4236
    %4380 = vmatpush.bf16.msra.mxu0 %v4235
    %4381 = vmatpush.bf16.msra.mxu0 %v4234
    %4382 = vmatpush.bf16.msra.mxu0 %v4233
    %4383 = vmatpush.bf16.msra.mxu0 %v4232
    %4384 = vmatmul.bf16.gmra.mxu0 %v3368
    %v4385 = vpop.f32.mrf.mxu0
    %v4386 = vadd.f32 %v2470, %v4385
    %v4387 = vpop.f32.mrf.mxu0
    %v4388 = vadd.f32 %v2470, %v4387
    %4389 = vmatmul.bf16.gmra.mxu0 %v3377
    %v4390 = vpop.f32.mrf.mxu0
    %v4391 = vadd.f32 %v2470, %v4390
    %v4392 = vpop.f32.mrf.mxu0
    %v4393 = vadd.f32 %v2470, %v4392
    %4394 = vmatmul.bf16.gmra.mxu0 %v3386
    %v4395 = vpop.f32.mrf.mxu0
    %v4396 = vadd.f32 %v2470, %v4395
    %v4397 = vpop.f32.mrf.mxu0
    %v4398 = vadd.f32 %v2470, %v4397
    %4399 = vmatmul.bf16.gmra.mxu0 %v3395
    %v4400 = vpop.f32.mrf.mxu0
    %v4401 = vadd.f32 %v2470, %v4400
    %v4402 = vpop.f32.mrf.mxu0
    %v4403 = vadd.f32 %v2470, %v4402
    %4404 = vmatmul.bf16.gmra.mxu0 %v3404
    %v4405 = vpop.f32.mrf.mxu0
    %v4406 = vadd.f32 %v2470, %v4405
    %v4407 = vpop.f32.mrf.mxu0
    %v4408 = vadd.f32 %v2470, %v4407
    %4409 = vmatmul.bf16.gmra.mxu0 %v3413
    %v4410 = vpop.f32.mrf.mxu0
    %v4411 = vadd.f32 %v2470, %v4410
    %v4412 = vpop.f32.mrf.mxu0
    %v4413 = vadd.f32 %v2470, %v4412
    %4414 = vmatmul.bf16.gmra.mxu0 %v3422
    %v4415 = vpop.f32.mrf.mxu0
    %v4416 = vadd.f32 %v2470, %v4415
    %v4417 = vpop.f32.mrf.mxu0
    %v4418 = vadd.f32 %v2470, %v4417
    %4419 = vmatmul.bf16.gmra.mxu0 %v3431
    %v4420 = vpop.f32.mrf.mxu0
    %v4421 = vadd.f32 %v2470, %v4420
    %v4422 = vpop.f32.mrf.mxu0
    %v4423 = vadd.f32 %v2470, %v4422
    %4424 = vmatmul.bf16.gmra.mxu0 %v3440
    %v4425 = vpop.f32.mrf.mxu0
    %v4426 = vadd.f32 %v2470, %v4425
    %v4427 = vpop.f32.mrf.mxu0
    %v4428 = vadd.f32 %v2470, %v4427
    %4429 = vmatmul.bf16.gmra.mxu0 %v3449
    %v4430 = vpop.f32.mrf.mxu0
    %v4431 = vadd.f32 %v2470, %v4430
    %v4432 = vpop.f32.mrf.mxu0
    %v4433 = vadd.f32 %v2470, %v4432
    %4434 = vmatmul.bf16.gmra.mxu0 %v3458
    %v4435 = vpop.f32.mrf.mxu0
    %v4436 = vadd.f32 %v2470, %v4435
    %v4437 = vpop.f32.mrf.mxu0
    %v4438 = vadd.f32 %v2470, %v4437
    %4439 = vmatmul.bf16.gmra.mxu0 %v3467
    %v4440 = vpop.f32.mrf.mxu0
    %v4441 = vadd.f32 %v2470, %v4440
    %v4442 = vpop.f32.mrf.mxu0
    %v4443 = vadd.f32 %v2470, %v4442
    %4444 = vmatmul.bf16.gmra.mxu0 %v3476
    %v4445 = vpop.f32.mrf.mxu0
    %v4446 = vadd.f32 %v2470, %v4445
    %v4447 = vpop.f32.mrf.mxu0
    %v4448 = vadd.f32 %v2470, %v4447
    %4449 = vmatmul.bf16.gmra.mxu0 %v3485
    %v4450 = vpop.f32.mrf.mxu0
    %v4451 = vadd.f32 %v2470, %v4450
    %v4452 = vpop.f32.mrf.mxu0
    %v4453 = vadd.f32 %v2470, %v4452
    %4454 = vmatmul.bf16.gmra.mxu0 %v3494
    %v4455 = vpop.f32.mrf.mxu0
    %v4456 = vadd.f32 %v2470, %v4455
    %v4457 = vpop.f32.mrf.mxu0
    %v4458 = vadd.f32 %v2470, %v4457
    %4459 = vmatmul.bf16.gmra.mxu0 %v3503
    %v4460 = vpop.f32.mrf.mxu0
    %v4461 = vadd.f32 %v2470, %v4460
    %v4462 = vpop.f32.mrf.mxu0
    %v4463 = vadd.f32 %v2470, %v4462
    %4464 = vmatmul.bf16.gmra.mxu0 %v3512
    %v4465 = vpop.f32.mrf.mxu0
    %v4466 = vadd.f32 %v2470, %v4465
    %v4467 = vpop.f32.mrf.mxu0
    %v4468 = vadd.f32 %v2470, %v4467
    %4469 = vmatmul.bf16.gmra.mxu0 %v3521
    %v4470 = vpop.f32.mrf.mxu0
    %v4471 = vadd.f32 %v2470, %v4470
    %v4472 = vpop.f32.mrf.mxu0
    %v4473 = vadd.f32 %v2470, %v4472
    %4474 = vmatmul.bf16.gmra.mxu0 %v3530
    %v4475 = vpop.f32.mrf.mxu0
    %v4476 = vadd.f32 %v2470, %v4475
    %v4477 = vpop.f32.mrf.mxu0
    %v4478 = vadd.f32 %v2470, %v4477
    %4479 = vmatmul.bf16.gmra.mxu0 %v3539
    %v4480 = vpop.f32.mrf.mxu0
    %v4481 = vadd.f32 %v2470, %v4480
    %v4482 = vpop.f32.mrf.mxu0
    %v4483 = vadd.f32 %v2470, %v4482
    %4484 = vmatmul.bf16.gmra.mxu0 %v3548
    %v4485 = vpop.f32.mrf.mxu0
    %v4486 = vadd.f32 %v2470, %v4485
    %v4487 = vpop.f32.mrf.mxu0
    %v4488 = vadd.f32 %v2470, %v4487
    %4489 = vmatmul.bf16.gmra.mxu0 %v3557
    %v4490 = vpop.f32.mrf.mxu0
    %v4491 = vadd.f32 %v2470, %v4490
    %v4492 = vpop.f32.mrf.mxu0
    %v4493 = vadd.f32 %v2470, %v4492
    %4494 = vmatmul.bf16.gmra.mxu0 %v3566
    %v4495 = vpop.f32.mrf.mxu0
    %v4496 = vadd.f32 %v2470, %v4495
    %v4497 = vpop.f32.mrf.mxu0
    %v4498 = vadd.f32 %v2470, %v4497
    %4499 = vmatmul.bf16.gmra.mxu0 %v3575
    %v4500 = vpop.f32.mrf.mxu0
    %v4501 = vadd.f32 %v2470, %v4500
    %v4502 = vpop.f32.mrf.mxu0
    %v4503 = vadd.f32 %v2470, %v4502
    %4504 = vmatmul.bf16.gmra.mxu0 %v3584
    %v4505 = vpop.f32.mrf.mxu0
    %v4506 = vadd.f32 %v2470, %v4505
    %v4507 = vpop.f32.mrf.mxu0
    %v4508 = vadd.f32 %v2470, %v4507
    %4509 = vmatmul.bf16.gmra.mxu0 %v3593
    %v4510 = vpop.f32.mrf.mxu0
    %v4511 = vadd.f32 %v2470, %v4510
    %v4512 = vpop.f32.mrf.mxu0
    %v4513 = vadd.f32 %v2470, %v4512
    %4514 = vmatmul.bf16.gmra.mxu0 %v3602
    %v4515 = vpop.f32.mrf.mxu0
    %v4516 = vadd.f32 %v2470, %v4515
    %v4517 = vpop.f32.mrf.mxu0
    %v4518 = vadd.f32 %v2470, %v4517
    %4519 = vmatmul.bf16.gmra.mxu0 %v3611
    %v4520 = vpop.f32.mrf.mxu0
    %v4521 = vadd.f32 %v2470, %v4520
    %v4522 = vpop.f32.mrf.mxu0
    %v4523 = vadd.f32 %v2470, %v4522
    %4524 = vmatmul.bf16.gmra.mxu0 %v3620
    %v4525 = vpop.f32.mrf.mxu0
    %v4526 = vadd.f32 %v2470, %v4525
    %v4527 = vpop.f32.mrf.mxu0
    %v4528 = vadd.f32 %v2470, %v4527
    %4529 = vmatmul.bf16.gmra.mxu0 %v3629
    %v4530 = vpop.f32.mrf.mxu0
    %v4531 = vadd.f32 %v2470, %v4530
    %v4532 = vpop.f32.mrf.mxu0
    %v4533 = vadd.f32 %v2470, %v4532
    %4534 = vmatmul.bf16.gmra.mxu0 %v3638
    %v4535 = vpop.f32.mrf.mxu0
    %v4536 = vadd.f32 %v2470, %v4535
    %v4537 = vpop.f32.mrf.mxu0
    %v4538 = vadd.f32 %v2470, %v4537
    %4539 = vmatmul.bf16.gmra.mxu0 %v3647
    %v4540 = vpop.f32.mrf.mxu0
    %v4541 = vadd.f32 %v2470, %v4540
    %v4542 = vpop.f32.mrf.mxu0
    %v4543 = vadd.f32 %v2470, %v4542
    %4544 = vdwg.mxu0
    %4545 = vmatpush.bf16.msra.mxu0 %v4247
    %4546 = vmatpush.bf16.msra.mxu0 %v4246
    %4547 = vmatpush.bf16.msra.mxu0 %v4245
    %4548 = vmatpush.bf16.msra.mxu0 %v4244
    %4549 = vmatpush.bf16.msra.mxu0 %v4243
    %4550 = vmatpush.bf16.msra.mxu0 %v4242
    %4551 = vmatpush.bf16.msra.mxu0 %v4241
    %4552 = vmatpush.bf16.msra.mxu0 %v4240
    %4553 = vmatmul.bf16.gmra.mxu0 %v3369
    %v4554 = vpop.f32.mrf.mxu0
    %v4555 = vadd.f32 %v4386, %v4554
    %v4556 = vpop.f32.mrf.mxu0
    %v4557 = vadd.f32 %v4388, %v4556
    %4558 = vmatmul.bf16.gmra.mxu0 %v3378
    %v4559 = vpop.f32.mrf.mxu0
    %v4560 = vadd.f32 %v4391, %v4559
    %v4561 = vpop.f32.mrf.mxu0
    %v4562 = vadd.f32 %v4393, %v4561
    %4563 = vmatmul.bf16.gmra.mxu0 %v3387
    %v4564 = vpop.f32.mrf.mxu0
    %v4565 = vadd.f32 %v4396, %v4564
    %v4566 = vpop.f32.mrf.mxu0
    %v4567 = vadd.f32 %v4398, %v4566
    %4568 = vmatmul.bf16.gmra.mxu0 %v3396
    %v4569 = vpop.f32.mrf.mxu0
    %v4570 = vadd.f32 %v4401, %v4569
    %v4571 = vpop.f32.mrf.mxu0
    %v4572 = vadd.f32 %v4403, %v4571
    %4573 = vmatmul.bf16.gmra.mxu0 %v3405
    %v4574 = vpop.f32.mrf.mxu0
    %v4575 = vadd.f32 %v4406, %v4574
    %v4576 = vpop.f32.mrf.mxu0
    %v4577 = vadd.f32 %v4408, %v4576
    %4578 = vmatmul.bf16.gmra.mxu0 %v3414
    %v4579 = vpop.f32.mrf.mxu0
    %v4580 = vadd.f32 %v4411, %v4579
    %v4581 = vpop.f32.mrf.mxu0
    %v4582 = vadd.f32 %v4413, %v4581
    %4583 = vmatmul.bf16.gmra.mxu0 %v3423
    %v4584 = vpop.f32.mrf.mxu0
    %v4585 = vadd.f32 %v4416, %v4584
    %v4586 = vpop.f32.mrf.mxu0
    %v4587 = vadd.f32 %v4418, %v4586
    %4588 = vmatmul.bf16.gmra.mxu0 %v3432
    %v4589 = vpop.f32.mrf.mxu0
    %v4590 = vadd.f32 %v4421, %v4589
    %v4591 = vpop.f32.mrf.mxu0
    %v4592 = vadd.f32 %v4423, %v4591
    %4593 = vmatmul.bf16.gmra.mxu0 %v3441
    %v4594 = vpop.f32.mrf.mxu0
    %v4595 = vadd.f32 %v4426, %v4594
    %v4596 = vpop.f32.mrf.mxu0
    %v4597 = vadd.f32 %v4428, %v4596
    %4598 = vmatmul.bf16.gmra.mxu0 %v3450
    %v4599 = vpop.f32.mrf.mxu0
    %v4600 = vadd.f32 %v4431, %v4599
    %v4601 = vpop.f32.mrf.mxu0
    %v4602 = vadd.f32 %v4433, %v4601
    %4603 = vmatmul.bf16.gmra.mxu0 %v3459
    %v4604 = vpop.f32.mrf.mxu0
    %v4605 = vadd.f32 %v4436, %v4604
    %v4606 = vpop.f32.mrf.mxu0
    %v4607 = vadd.f32 %v4438, %v4606
    %4608 = vmatmul.bf16.gmra.mxu0 %v3468
    %v4609 = vpop.f32.mrf.mxu0
    %v4610 = vadd.f32 %v4441, %v4609
    %v4611 = vpop.f32.mrf.mxu0
    %v4612 = vadd.f32 %v4443, %v4611
    %4613 = vmatmul.bf16.gmra.mxu0 %v3477
    %v4614 = vpop.f32.mrf.mxu0
    %v4615 = vadd.f32 %v4446, %v4614
    %v4616 = vpop.f32.mrf.mxu0
    %v4617 = vadd.f32 %v4448, %v4616
    %4618 = vmatmul.bf16.gmra.mxu0 %v3486
    %v4619 = vpop.f32.mrf.mxu0
    %v4620 = vadd.f32 %v4451, %v4619
    %v4621 = vpop.f32.mrf.mxu0
    %v4622 = vadd.f32 %v4453, %v4621
    %4623 = vmatmul.bf16.gmra.mxu0 %v3495
    %v4624 = vpop.f32.mrf.mxu0
    %v4625 = vadd.f32 %v4456, %v4624
    %v4626 = vpop.f32.mrf.mxu0
    %v4627 = vadd.f32 %v4458, %v4626
    %4628 = vmatmul.bf16.gmra.mxu0 %v3504
    %v4629 = vpop.f32.mrf.mxu0
    %v4630 = vadd.f32 %v4461, %v4629
    %v4631 = vpop.f32.mrf.mxu0
    %v4632 = vadd.f32 %v4463, %v4631
    %4633 = vmatmul.bf16.gmra.mxu0 %v3513
    %v4634 = vpop.f32.mrf.mxu0
    %v4635 = vadd.f32 %v4466, %v4634
    %v4636 = vpop.f32.mrf.mxu0
    %v4637 = vadd.f32 %v4468, %v4636
    %4638 = vmatmul.bf16.gmra.mxu0 %v3522
    %v4639 = vpop.f32.mrf.mxu0
    %v4640 = vadd.f32 %v4471, %v4639
    %v4641 = vpop.f32.mrf.mxu0
    %v4642 = vadd.f32 %v4473, %v4641
    %4643 = vmatmul.bf16.gmra.mxu0 %v3531
    %v4644 = vpop.f32.mrf.mxu0
    %v4645 = vadd.f32 %v4476, %v4644
    %v4646 = vpop.f32.mrf.mxu0
    %v4647 = vadd.f32 %v4478, %v4646
    %4648 = vmatmul.bf16.gmra.mxu0 %v3540
    %v4649 = vpop.f32.mrf.mxu0
    %v4650 = vadd.f32 %v4481, %v4649
    %v4651 = vpop.f32.mrf.mxu0
    %v4652 = vadd.f32 %v4483, %v4651
    %4653 = vmatmul.bf16.gmra.mxu0 %v3549
    %v4654 = vpop.f32.mrf.mxu0
    %v4655 = vadd.f32 %v4486, %v4654
    %v4656 = vpop.f32.mrf.mxu0
    %v4657 = vadd.f32 %v4488, %v4656
    %4658 = vmatmul.bf16.gmra.mxu0 %v3558
    %v4659 = vpop.f32.mrf.mxu0
    %v4660 = vadd.f32 %v4491, %v4659
    %v4661 = vpop.f32.mrf.mxu0
    %v4662 = vadd.f32 %v4493, %v4661
    %4663 = vmatmul.bf16.gmra.mxu0 %v3567
    %v4664 = vpop.f32.mrf.mxu0
    %v4665 = vadd.f32 %v4496, %v4664
    %v4666 = vpop.f32.mrf.mxu0
    %v4667 = vadd.f32 %v4498, %v4666
    %4668 = vmatmul.bf16.gmra.mxu0 %v3576
    %v4669 = vpop.f32.mrf.mxu0
    %v4670 = vadd.f32 %v4501, %v4669
    %v4671 = vpop.f32.mrf.mxu0
    %v4672 = vadd.f32 %v4503, %v4671
    %4673 = vmatmul.bf16.gmra.mxu0 %v3585
    %v4674 = vpop.f32.mrf.mxu0
    %v4675 = vadd.f32 %v4506, %v4674
    %v4676 = vpop.f32.mrf.mxu0
    %v4677 = vadd.f32 %v4508, %v4676
    %4678 = vmatmul.bf16.gmra.mxu0 %v3594
    %v4679 = vpop.f32.mrf.mxu0
    %v4680 = vadd.f32 %v4511, %v4679
    %v4681 = vpop.f32.mrf.mxu0
    %v4682 = vadd.f32 %v4513, %v4681
    %4683 = vmatmul.bf16.gmra.mxu0 %v3603
    %v4684 = vpop.f32.mrf.mxu0
    %v4685 = vadd.f32 %v4516, %v4684
    %v4686 = vpop.f32.mrf.mxu0
    %v4687 = vadd.f32 %v4518, %v4686
    %4688 = vmatmul.bf16.gmra.mxu0 %v3612
    %v4689 = vpop.f32.mrf.mxu0
    %v4690 = vadd.f32 %v4521, %v4689
    %v4691 = vpop.f32.mrf.mxu0
    %v4692 = vadd.f32 %v4523, %v4691
    %4693 = vmatmul.bf16.gmra.mxu0 %v3621
    %v4694 = vpop.f32.mrf.mxu0
    %v4695 = vadd.f32 %v4526, %v4694
    %v4696 = vpop.f32.mrf.mxu0
    %v4697 = vadd.f32 %v4528, %v4696
    %4698 = vmatmul.bf16.gmra.mxu0 %v3630
    %v4699 = vpop.f32.mrf.mxu0
    %v4700 = vadd.f32 %v4531, %v4699
    %v4701 = vpop.f32.mrf.mxu0
    %v4702 = vadd.f32 %v4533, %v4701
    %4703 = vmatmul.bf16.gmra.mxu0 %v3639
    %v4704 = vpop.f32.mrf.mxu0
    %v4705 = vadd.f32 %v4536, %v4704
    %v4706 = vpop.f32.mrf.mxu0
    %v4707 = vadd.f32 %v4538, %v4706
    %4708 = vmatmul.bf16.gmra.mxu0 %v3648
    %v4709 = vpop.f32.mrf.mxu0
    %v4710 = vadd.f32 %v4541, %v4709
    %v4711 = vpop.f32.mrf.mxu0
    %v4712 = vadd.f32 %v4543, %v4711
    %4713 = vdwg.mxu0
    %4714 = vmatpush.bf16.msra.mxu0 %v4255
    %4715 = vmatpush.bf16.msra.mxu0 %v4254
    %4716 = vmatpush.bf16.msra.mxu0 %v4253
    %4717 = vmatpush.bf16.msra.mxu0 %v4252
    %4718 = vmatpush.bf16.msra.mxu0 %v4251
    %4719 = vmatpush.bf16.msra.mxu0 %v4250
    %4720 = vmatpush.bf16.msra.mxu0 %v4249
    %4721 = vmatpush.bf16.msra.mxu0 %v4248
    %4722 = vmatmul.bf16.gmra.mxu0 %v3370
    %v4723 = vpop.f32.mrf.mxu0
    %v4724 = vadd.f32 %v4555, %v4723
    %v4725 = vpop.f32.mrf.mxu0
    %v4726 = vadd.f32 %v4557, %v4725
    %4727 = vmatmul.bf16.gmra.mxu0 %v3379
    %v4728 = vpop.f32.mrf.mxu0
    %v4729 = vadd.f32 %v4560, %v4728
    %v4730 = vpop.f32.mrf.mxu0
    %v4731 = vadd.f32 %v4562, %v4730
    %4732 = vmatmul.bf16.gmra.mxu0 %v3388
    %v4733 = vpop.f32.mrf.mxu0
    %v4734 = vadd.f32 %v4565, %v4733
    %v4735 = vpop.f32.mrf.mxu0
    %v4736 = vadd.f32 %v4567, %v4735
    %4737 = vmatmul.bf16.gmra.mxu0 %v3397
    %v4738 = vpop.f32.mrf.mxu0
    %v4739 = vadd.f32 %v4570, %v4738
    %v4740 = vpop.f32.mrf.mxu0
    %v4741 = vadd.f32 %v4572, %v4740
    %4742 = vmatmul.bf16.gmra.mxu0 %v3406
    %v4743 = vpop.f32.mrf.mxu0
    %v4744 = vadd.f32 %v4575, %v4743
    %v4745 = vpop.f32.mrf.mxu0
    %v4746 = vadd.f32 %v4577, %v4745
    %4747 = vmatmul.bf16.gmra.mxu0 %v3415
    %v4748 = vpop.f32.mrf.mxu0
    %v4749 = vadd.f32 %v4580, %v4748
    %v4750 = vpop.f32.mrf.mxu0
    %v4751 = vadd.f32 %v4582, %v4750
    %4752 = vmatmul.bf16.gmra.mxu0 %v3424
    %v4753 = vpop.f32.mrf.mxu0
    %v4754 = vadd.f32 %v4585, %v4753
    %v4755 = vpop.f32.mrf.mxu0
    %v4756 = vadd.f32 %v4587, %v4755
    %4757 = vmatmul.bf16.gmra.mxu0 %v3433
    %v4758 = vpop.f32.mrf.mxu0
    %v4759 = vadd.f32 %v4590, %v4758
    %v4760 = vpop.f32.mrf.mxu0
    %v4761 = vadd.f32 %v4592, %v4760
    %4762 = vmatmul.bf16.gmra.mxu0 %v3442
    %v4763 = vpop.f32.mrf.mxu0
    %v4764 = vadd.f32 %v4595, %v4763
    %v4765 = vpop.f32.mrf.mxu0
    %v4766 = vadd.f32 %v4597, %v4765
    %4767 = vmatmul.bf16.gmra.mxu0 %v3451
    %v4768 = vpop.f32.mrf.mxu0
    %v4769 = vadd.f32 %v4600, %v4768
    %v4770 = vpop.f32.mrf.mxu0
    %v4771 = vadd.f32 %v4602, %v4770
    %4772 = vmatmul.bf16.gmra.mxu0 %v3460
    %v4773 = vpop.f32.mrf.mxu0
    %v4774 = vadd.f32 %v4605, %v4773
    %v4775 = vpop.f32.mrf.mxu0
    %v4776 = vadd.f32 %v4607, %v4775
    %4777 = vmatmul.bf16.gmra.mxu0 %v3469
    %v4778 = vpop.f32.mrf.mxu0
    %v4779 = vadd.f32 %v4610, %v4778
    %v4780 = vpop.f32.mrf.mxu0
    %v4781 = vadd.f32 %v4612, %v4780
    %4782 = vmatmul.bf16.gmra.mxu0 %v3478
    %v4783 = vpop.f32.mrf.mxu0
    %v4784 = vadd.f32 %v4615, %v4783
    %v4785 = vpop.f32.mrf.mxu0
    %v4786 = vadd.f32 %v4617, %v4785
    %4787 = vmatmul.bf16.gmra.mxu0 %v3487
    %v4788 = vpop.f32.mrf.mxu0
    %v4789 = vadd.f32 %v4620, %v4788
    %v4790 = vpop.f32.mrf.mxu0
    %v4791 = vadd.f32 %v4622, %v4790
    %4792 = vmatmul.bf16.gmra.mxu0 %v3496
    %v4793 = vpop.f32.mrf.mxu0
    %v4794 = vadd.f32 %v4625, %v4793
    %v4795 = vpop.f32.mrf.mxu0
    %v4796 = vadd.f32 %v4627, %v4795
    %4797 = vmatmul.bf16.gmra.mxu0 %v3505
    %v4798 = vpop.f32.mrf.mxu0
    %v4799 = vadd.f32 %v4630, %v4798
    %v4800 = vpop.f32.mrf.mxu0
    %v4801 = vadd.f32 %v4632, %v4800
    %4802 = vmatmul.bf16.gmra.mxu0 %v3514
    %v4803 = vpop.f32.mrf.mxu0
    %v4804 = vadd.f32 %v4635, %v4803
    %v4805 = vpop.f32.mrf.mxu0
    %v4806 = vadd.f32 %v4637, %v4805
    %4807 = vmatmul.bf16.gmra.mxu0 %v3523
    %v4808 = vpop.f32.mrf.mxu0
    %v4809 = vadd.f32 %v4640, %v4808
    %v4810 = vpop.f32.mrf.mxu0
    %v4811 = vadd.f32 %v4642, %v4810
    %4812 = vmatmul.bf16.gmra.mxu0 %v3532
    %v4813 = vpop.f32.mrf.mxu0
    %v4814 = vadd.f32 %v4645, %v4813
    %v4815 = vpop.f32.mrf.mxu0
    %v4816 = vadd.f32 %v4647, %v4815
    %4817 = vmatmul.bf16.gmra.mxu0 %v3541
    %v4818 = vpop.f32.mrf.mxu0
    %v4819 = vadd.f32 %v4650, %v4818
    %v4820 = vpop.f32.mrf.mxu0
    %v4821 = vadd.f32 %v4652, %v4820
    %4822 = vmatmul.bf16.gmra.mxu0 %v3550
    %v4823 = vpop.f32.mrf.mxu0
    %v4824 = vadd.f32 %v4655, %v4823
    %v4825 = vpop.f32.mrf.mxu0
    %v4826 = vadd.f32 %v4657, %v4825
    %4827 = vmatmul.bf16.gmra.mxu0 %v3559
    %v4828 = vpop.f32.mrf.mxu0
    %v4829 = vadd.f32 %v4660, %v4828
    %v4830 = vpop.f32.mrf.mxu0
    %v4831 = vadd.f32 %v4662, %v4830
    %4832 = vmatmul.bf16.gmra.mxu0 %v3568
    %v4833 = vpop.f32.mrf.mxu0
    %v4834 = vadd.f32 %v4665, %v4833
    %v4835 = vpop.f32.mrf.mxu0
    %v4836 = vadd.f32 %v4667, %v4835
    %4837 = vmatmul.bf16.gmra.mxu0 %v3577
    %v4838 = vpop.f32.mrf.mxu0
    %v4839 = vadd.f32 %v4670, %v4838
    %v4840 = vpop.f32.mrf.mxu0
    %v4841 = vadd.f32 %v4672, %v4840
    %4842 = vmatmul.bf16.gmra.mxu0 %v3586
    %v4843 = vpop.f32.mrf.mxu0
    %v4844 = vadd.f32 %v4675, %v4843
    %v4845 = vpop.f32.mrf.mxu0
    %v4846 = vadd.f32 %v4677, %v4845
    %4847 = vmatmul.bf16.gmra.mxu0 %v3595
    %v4848 = vpop.f32.mrf.mxu0
    %v4849 = vadd.f32 %v4680, %v4848
    %v4850 = vpop.f32.mrf.mxu0
    %v4851 = vadd.f32 %v4682, %v4850
    %4852 = vmatmul.bf16.gmra.mxu0 %v3604
    %v4853 = vpop.f32.mrf.mxu0
    %v4854 = vadd.f32 %v4685, %v4853
    %v4855 = vpop.f32.mrf.mxu0
    %v4856 = vadd.f32 %v4687, %v4855
    %4857 = vmatmul.bf16.gmra.mxu0 %v3613
    %v4858 = vpop.f32.mrf.mxu0
    %v4859 = vadd.f32 %v4690, %v4858
    %v4860 = vpop.f32.mrf.mxu0
    %v4861 = vadd.f32 %v4692, %v4860
    %4862 = vmatmul.bf16.gmra.mxu0 %v3622
    %v4863 = vpop.f32.mrf.mxu0
    %v4864 = vadd.f32 %v4695, %v4863
    %v4865 = vpop.f32.mrf.mxu0
    %v4866 = vadd.f32 %v4697, %v4865
    %4867 = vmatmul.bf16.gmra.mxu0 %v3631
    %v4868 = vpop.f32.mrf.mxu0
    %v4869 = vadd.f32 %v4700, %v4868
    %v4870 = vpop.f32.mrf.mxu0
    %v4871 = vadd.f32 %v4702, %v4870
    %4872 = vmatmul.bf16.gmra.mxu0 %v3640
    %v4873 = vpop.f32.mrf.mxu0
    %v4874 = vadd.f32 %v4705, %v4873
    %v4875 = vpop.f32.mrf.mxu0
    %v4876 = vadd.f32 %v4707, %v4875
    %4877 = vmatmul.bf16.gmra.mxu0 %v3649
    %v4878 = vpop.f32.mrf.mxu0
    %v4879 = vadd.f32 %v4710, %v4878
    %v4880 = vpop.f32.mrf.mxu0
    %v4881 = vadd.f32 %v4712, %v4880
    %4882 = vdwg.mxu0
    %4883 = vmatpush.bf16.msra.mxu0 %v4263
    %4884 = vmatpush.bf16.msra.mxu0 %v4262
    %4885 = vmatpush.bf16.msra.mxu0 %v4261
    %4886 = vmatpush.bf16.msra.mxu0 %v4260
    %4887 = vmatpush.bf16.msra.mxu0 %v4259
    %4888 = vmatpush.bf16.msra.mxu0 %v4258
    %4889 = vmatpush.bf16.msra.mxu0 %v4257
    %4890 = vmatpush.bf16.msra.mxu0 %v4256
    %4891 = vmatmul.bf16.gmra.mxu0 %v3371
    %v4892 = vpop.f32.mrf.mxu0
    %v4893 = vadd.f32 %v4724, %v4892
    %v4894 = vpop.f32.mrf.mxu0
    %v4895 = vadd.f32 %v4726, %v4894
    %4896 = vmatmul.bf16.gmra.mxu0 %v3380
    %v4897 = vpop.f32.mrf.mxu0
    %v4898 = vadd.f32 %v4729, %v4897
    %v4899 = vpop.f32.mrf.mxu0
    %v4900 = vadd.f32 %v4731, %v4899
    %4901 = vmatmul.bf16.gmra.mxu0 %v3389
    %v4902 = vpop.f32.mrf.mxu0
    %v4903 = vadd.f32 %v4734, %v4902
    %v4904 = vpop.f32.mrf.mxu0
    %v4905 = vadd.f32 %v4736, %v4904
    %4906 = vmatmul.bf16.gmra.mxu0 %v3398
    %v4907 = vpop.f32.mrf.mxu0
    %v4908 = vadd.f32 %v4739, %v4907
    %v4909 = vpop.f32.mrf.mxu0
    %v4910 = vadd.f32 %v4741, %v4909
    %4911 = vmatmul.bf16.gmra.mxu0 %v3407
    %v4912 = vpop.f32.mrf.mxu0
    %v4913 = vadd.f32 %v4744, %v4912
    %v4914 = vpop.f32.mrf.mxu0
    %v4915 = vadd.f32 %v4746, %v4914
    %4916 = vmatmul.bf16.gmra.mxu0 %v3416
    %v4917 = vpop.f32.mrf.mxu0
    %v4918 = vadd.f32 %v4749, %v4917
    %v4919 = vpop.f32.mrf.mxu0
    %v4920 = vadd.f32 %v4751, %v4919
    %4921 = vmatmul.bf16.gmra.mxu0 %v3425
    %v4922 = vpop.f32.mrf.mxu0
    %v4923 = vadd.f32 %v4754, %v4922
    %v4924 = vpop.f32.mrf.mxu0
    %v4925 = vadd.f32 %v4756, %v4924
    %4926 = vmatmul.bf16.gmra.mxu0 %v3434
    %v4927 = vpop.f32.mrf.mxu0
    %v4928 = vadd.f32 %v4759, %v4927
    %v4929 = vpop.f32.mrf.mxu0
    %v4930 = vadd.f32 %v4761, %v4929
    %4931 = vmatmul.bf16.gmra.mxu0 %v3443
    %v4932 = vpop.f32.mrf.mxu0
    %v4933 = vadd.f32 %v4764, %v4932
    %v4934 = vpop.f32.mrf.mxu0
    %v4935 = vadd.f32 %v4766, %v4934
    %4936 = vmatmul.bf16.gmra.mxu0 %v3452
    %v4937 = vpop.f32.mrf.mxu0
    %v4938 = vadd.f32 %v4769, %v4937
    %v4939 = vpop.f32.mrf.mxu0
    %v4940 = vadd.f32 %v4771, %v4939
    %4941 = vmatmul.bf16.gmra.mxu0 %v3461
    %v4942 = vpop.f32.mrf.mxu0
    %v4943 = vadd.f32 %v4774, %v4942
    %v4944 = vpop.f32.mrf.mxu0
    %v4945 = vadd.f32 %v4776, %v4944
    %4946 = vmatmul.bf16.gmra.mxu0 %v3470
    %v4947 = vpop.f32.mrf.mxu0
    %v4948 = vadd.f32 %v4779, %v4947
    %v4949 = vpop.f32.mrf.mxu0
    %v4950 = vadd.f32 %v4781, %v4949
    %4951 = vmatmul.bf16.gmra.mxu0 %v3479
    %v4952 = vpop.f32.mrf.mxu0
    %v4953 = vadd.f32 %v4784, %v4952
    %v4954 = vpop.f32.mrf.mxu0
    %v4955 = vadd.f32 %v4786, %v4954
    %4956 = vmatmul.bf16.gmra.mxu0 %v3488
    %v4957 = vpop.f32.mrf.mxu0
    %v4958 = vadd.f32 %v4789, %v4957
    %v4959 = vpop.f32.mrf.mxu0
    %v4960 = vadd.f32 %v4791, %v4959
    %4961 = vmatmul.bf16.gmra.mxu0 %v3497
    %v4962 = vpop.f32.mrf.mxu0
    %v4963 = vadd.f32 %v4794, %v4962
    %v4964 = vpop.f32.mrf.mxu0
    %v4965 = vadd.f32 %v4796, %v4964
    %4966 = vmatmul.bf16.gmra.mxu0 %v3506
    %v4967 = vpop.f32.mrf.mxu0
    %v4968 = vadd.f32 %v4799, %v4967
    %v4969 = vpop.f32.mrf.mxu0
    %v4970 = vadd.f32 %v4801, %v4969
    %4971 = vmatmul.bf16.gmra.mxu0 %v3515
    %v4972 = vpop.f32.mrf.mxu0
    %v4973 = vadd.f32 %v4804, %v4972
    %v4974 = vpop.f32.mrf.mxu0
    %v4975 = vadd.f32 %v4806, %v4974
    %4976 = vmatmul.bf16.gmra.mxu0 %v3524
    %v4977 = vpop.f32.mrf.mxu0
    %v4978 = vadd.f32 %v4809, %v4977
    %v4979 = vpop.f32.mrf.mxu0
    %v4980 = vadd.f32 %v4811, %v4979
    %4981 = vmatmul.bf16.gmra.mxu0 %v3533
    %v4982 = vpop.f32.mrf.mxu0
    %v4983 = vadd.f32 %v4814, %v4982
    %v4984 = vpop.f32.mrf.mxu0
    %v4985 = vadd.f32 %v4816, %v4984
    %4986 = vmatmul.bf16.gmra.mxu0 %v3542
    %v4987 = vpop.f32.mrf.mxu0
    %v4988 = vadd.f32 %v4819, %v4987
    %v4989 = vpop.f32.mrf.mxu0
    %v4990 = vadd.f32 %v4821, %v4989
    %4991 = vmatmul.bf16.gmra.mxu0 %v3551
    %v4992 = vpop.f32.mrf.mxu0
    %v4993 = vadd.f32 %v4824, %v4992
    %v4994 = vpop.f32.mrf.mxu0
    %v4995 = vadd.f32 %v4826, %v4994
    %4996 = vmatmul.bf16.gmra.mxu0 %v3560
    %v4997 = vpop.f32.mrf.mxu0
    %v4998 = vadd.f32 %v4829, %v4997
    %v4999 = vpop.f32.mrf.mxu0
    %v5000 = vadd.f32 %v4831, %v4999
    %5001 = vmatmul.bf16.gmra.mxu0 %v3569
    %v5002 = vpop.f32.mrf.mxu0
    %v5003 = vadd.f32 %v4834, %v5002
    %v5004 = vpop.f32.mrf.mxu0
    %v5005 = vadd.f32 %v4836, %v5004
    %5006 = vmatmul.bf16.gmra.mxu0 %v3578
    %v5007 = vpop.f32.mrf.mxu0
    %v5008 = vadd.f32 %v4839, %v5007
    %v5009 = vpop.f32.mrf.mxu0
    %v5010 = vadd.f32 %v4841, %v5009
    %5011 = vmatmul.bf16.gmra.mxu0 %v3587
    %v5012 = vpop.f32.mrf.mxu0
    %v5013 = vadd.f32 %v4844, %v5012
    %v5014 = vpop.f32.mrf.mxu0
    %v5015 = vadd.f32 %v4846, %v5014
    %5016 = vmatmul.bf16.gmra.mxu0 %v3596
    %v5017 = vpop.f32.mrf.mxu0
    %v5018 = vadd.f32 %v4849, %v5017
    %v5019 = vpop.f32.mrf.mxu0
    %v5020 = vadd.f32 %v4851, %v5019
    %5021 = vmatmul.bf16.gmra.mxu0 %v3605
    %v5022 = vpop.f32.mrf.mxu0
    %v5023 = vadd.f32 %v4854, %v5022
    %v5024 = vpop.f32.mrf.mxu0
    %v5025 = vadd.f32 %v4856, %v5024
    %5026 = vmatmul.bf16.gmra.mxu0 %v3614
    %v5027 = vpop.f32.mrf.mxu0
    %v5028 = vadd.f32 %v4859, %v5027
    %v5029 = vpop.f32.mrf.mxu0
    %v5030 = vadd.f32 %v4861, %v5029
    %5031 = vmatmul.bf16.gmra.mxu0 %v3623
    %v5032 = vpop.f32.mrf.mxu0
    %v5033 = vadd.f32 %v4864, %v5032
    %v5034 = vpop.f32.mrf.mxu0
    %v5035 = vadd.f32 %v4866, %v5034
    %5036 = vmatmul.bf16.gmra.mxu0 %v3632
    %v5037 = vpop.f32.mrf.mxu0
    %v5038 = vadd.f32 %v4869, %v5037
    %v5039 = vpop.f32.mrf.mxu0
    %v5040 = vadd.f32 %v4871, %v5039
    %5041 = vmatmul.bf16.gmra.mxu0 %v3641
    %v5042 = vpop.f32.mrf.mxu0
    %v5043 = vadd.f32 %v4874, %v5042
    %v5044 = vpop.f32.mrf.mxu0
    %v5045 = vadd.f32 %v4876, %v5044
    %5046 = vmatmul.bf16.gmra.mxu0 %v3650
    %v5047 = vpop.f32.mrf.mxu0
    %v5048 = vadd.f32 %v4879, %v5047
    %v5049 = vpop.f32.mrf.mxu0
    %v5050 = vadd.f32 %v4881, %v5049
    %5051 = vdwg.mxu0
    %5052 = vmatpush.bf16.msra.mxu0 %v4271
    %5053 = vmatpush.bf16.msra.mxu0 %v4270
    %5054 = vmatpush.bf16.msra.mxu0 %v4269
    %5055 = vmatpush.bf16.msra.mxu0 %v4268
    %5056 = vmatpush.bf16.msra.mxu0 %v4267
    %5057 = vmatpush.bf16.msra.mxu0 %v4266
    %5058 = vmatpush.bf16.msra.mxu0 %v4265
    %5059 = vmatpush.bf16.msra.mxu0 %v4264
    %5060 = vmatmul.bf16.gmra.mxu0 %v3372
    %v5061 = vpop.f32.mrf.mxu0
    %v5062 = vadd.f32 %v4893, %v5061
    %v5063 = vpop.f32.mrf.mxu0
    %v5064 = vadd.f32 %v4895, %v5063
    %5065 = vmatmul.bf16.gmra.mxu0 %v3381
    %v5066 = vpop.f32.mrf.mxu0
    %v5067 = vadd.f32 %v4898, %v5066
    %v5068 = vpop.f32.mrf.mxu0
    %v5069 = vadd.f32 %v4900, %v5068
    %5070 = vmatmul.bf16.gmra.mxu0 %v3390
    %v5071 = vpop.f32.mrf.mxu0
    %v5072 = vadd.f32 %v4903, %v5071
    %v5073 = vpop.f32.mrf.mxu0
    %v5074 = vadd.f32 %v4905, %v5073
    %5075 = vmatmul.bf16.gmra.mxu0 %v3399
    %v5076 = vpop.f32.mrf.mxu0
    %v5077 = vadd.f32 %v4908, %v5076
    %v5078 = vpop.f32.mrf.mxu0
    %v5079 = vadd.f32 %v4910, %v5078
    %5080 = vmatmul.bf16.gmra.mxu0 %v3408
    %v5081 = vpop.f32.mrf.mxu0
    %v5082 = vadd.f32 %v4913, %v5081
    %v5083 = vpop.f32.mrf.mxu0
    %v5084 = vadd.f32 %v4915, %v5083
    %5085 = vmatmul.bf16.gmra.mxu0 %v3417
    %v5086 = vpop.f32.mrf.mxu0
    %v5087 = vadd.f32 %v4918, %v5086
    %v5088 = vpop.f32.mrf.mxu0
    %v5089 = vadd.f32 %v4920, %v5088
    %5090 = vmatmul.bf16.gmra.mxu0 %v3426
    %v5091 = vpop.f32.mrf.mxu0
    %v5092 = vadd.f32 %v4923, %v5091
    %v5093 = vpop.f32.mrf.mxu0
    %v5094 = vadd.f32 %v4925, %v5093
    %5095 = vmatmul.bf16.gmra.mxu0 %v3435
    %v5096 = vpop.f32.mrf.mxu0
    %v5097 = vadd.f32 %v4928, %v5096
    %v5098 = vpop.f32.mrf.mxu0
    %v5099 = vadd.f32 %v4930, %v5098
    %5100 = vmatmul.bf16.gmra.mxu0 %v3444
    %v5101 = vpop.f32.mrf.mxu0
    %v5102 = vadd.f32 %v4933, %v5101
    %v5103 = vpop.f32.mrf.mxu0
    %v5104 = vadd.f32 %v4935, %v5103
    %5105 = vmatmul.bf16.gmra.mxu0 %v3453
    %v5106 = vpop.f32.mrf.mxu0
    %v5107 = vadd.f32 %v4938, %v5106
    %v5108 = vpop.f32.mrf.mxu0
    %v5109 = vadd.f32 %v4940, %v5108
    %5110 = vmatmul.bf16.gmra.mxu0 %v3462
    %v5111 = vpop.f32.mrf.mxu0
    %v5112 = vadd.f32 %v4943, %v5111
    %v5113 = vpop.f32.mrf.mxu0
    %v5114 = vadd.f32 %v4945, %v5113
    %5115 = vmatmul.bf16.gmra.mxu0 %v3471
    %v5116 = vpop.f32.mrf.mxu0
    %v5117 = vadd.f32 %v4948, %v5116
    %v5118 = vpop.f32.mrf.mxu0
    %v5119 = vadd.f32 %v4950, %v5118
    %5120 = vmatmul.bf16.gmra.mxu0 %v3480
    %v5121 = vpop.f32.mrf.mxu0
    %v5122 = vadd.f32 %v4953, %v5121
    %v5123 = vpop.f32.mrf.mxu0
    %v5124 = vadd.f32 %v4955, %v5123
    %5125 = vmatmul.bf16.gmra.mxu0 %v3489
    %v5126 = vpop.f32.mrf.mxu0
    %v5127 = vadd.f32 %v4958, %v5126
    %v5128 = vpop.f32.mrf.mxu0
    %v5129 = vadd.f32 %v4960, %v5128
    %5130 = vmatmul.bf16.gmra.mxu0 %v3498
    %v5131 = vpop.f32.mrf.mxu0
    %v5132 = vadd.f32 %v4963, %v5131
    %v5133 = vpop.f32.mrf.mxu0
    %v5134 = vadd.f32 %v4965, %v5133
    %5135 = vmatmul.bf16.gmra.mxu0 %v3507
    %v5136 = vpop.f32.mrf.mxu0
    %v5137 = vadd.f32 %v4968, %v5136
    %v5138 = vpop.f32.mrf.mxu0
    %v5139 = vadd.f32 %v4970, %v5138
    %5140 = vmatmul.bf16.gmra.mxu0 %v3516
    %v5141 = vpop.f32.mrf.mxu0
    %v5142 = vadd.f32 %v4973, %v5141
    %v5143 = vpop.f32.mrf.mxu0
    %v5144 = vadd.f32 %v4975, %v5143
    %5145 = vmatmul.bf16.gmra.mxu0 %v3525
    %v5146 = vpop.f32.mrf.mxu0
    %v5147 = vadd.f32 %v4978, %v5146
    %v5148 = vpop.f32.mrf.mxu0
    %v5149 = vadd.f32 %v4980, %v5148
    %5150 = vmatmul.bf16.gmra.mxu0 %v3534
    %v5151 = vpop.f32.mrf.mxu0
    %v5152 = vadd.f32 %v4983, %v5151
    %v5153 = vpop.f32.mrf.mxu0
    %v5154 = vadd.f32 %v4985, %v5153
    %5155 = vmatmul.bf16.gmra.mxu0 %v3543
    %v5156 = vpop.f32.mrf.mxu0
    %v5157 = vadd.f32 %v4988, %v5156
    %v5158 = vpop.f32.mrf.mxu0
    %v5159 = vadd.f32 %v4990, %v5158
    %5160 = vmatmul.bf16.gmra.mxu0 %v3552
    %v5161 = vpop.f32.mrf.mxu0
    %v5162 = vadd.f32 %v4993, %v5161
    %v5163 = vpop.f32.mrf.mxu0
    %v5164 = vadd.f32 %v4995, %v5163
    %5165 = vmatmul.bf16.gmra.mxu0 %v3561
    %v5166 = vpop.f32.mrf.mxu0
    %v5167 = vadd.f32 %v4998, %v5166
    %v5168 = vpop.f32.mrf.mxu0
    %v5169 = vadd.f32 %v5000, %v5168
    %5170 = vmatmul.bf16.gmra.mxu0 %v3570
    %v5171 = vpop.f32.mrf.mxu0
    %v5172 = vadd.f32 %v5003, %v5171
    %v5173 = vpop.f32.mrf.mxu0
    %v5174 = vadd.f32 %v5005, %v5173
    %5175 = vmatmul.bf16.gmra.mxu0 %v3579
    %v5176 = vpop.f32.mrf.mxu0
    %v5177 = vadd.f32 %v5008, %v5176
    %v5178 = vpop.f32.mrf.mxu0
    %v5179 = vadd.f32 %v5010, %v5178
    %5180 = vmatmul.bf16.gmra.mxu0 %v3588
    %v5181 = vpop.f32.mrf.mxu0
    %v5182 = vadd.f32 %v5013, %v5181
    %v5183 = vpop.f32.mrf.mxu0
    %v5184 = vadd.f32 %v5015, %v5183
    %5185 = vmatmul.bf16.gmra.mxu0 %v3597
    %v5186 = vpop.f32.mrf.mxu0
    %v5187 = vadd.f32 %v5018, %v5186
    %v5188 = vpop.f32.mrf.mxu0
    %v5189 = vadd.f32 %v5020, %v5188
    %5190 = vmatmul.bf16.gmra.mxu0 %v3606
    %v5191 = vpop.f32.mrf.mxu0
    %v5192 = vadd.f32 %v5023, %v5191
    %v5193 = vpop.f32.mrf.mxu0
    %v5194 = vadd.f32 %v5025, %v5193
    %5195 = vmatmul.bf16.gmra.mxu0 %v3615
    %v5196 = vpop.f32.mrf.mxu0
    %v5197 = vadd.f32 %v5028, %v5196
    %v5198 = vpop.f32.mrf.mxu0
    %v5199 = vadd.f32 %v5030, %v5198
    %5200 = vmatmul.bf16.gmra.mxu0 %v3624
    %v5201 = vpop.f32.mrf.mxu0
    %v5202 = vadd.f32 %v5033, %v5201
    %v5203 = vpop.f32.mrf.mxu0
    %v5204 = vadd.f32 %v5035, %v5203
    %5205 = vmatmul.bf16.gmra.mxu0 %v3633
    %v5206 = vpop.f32.mrf.mxu0
    %v5207 = vadd.f32 %v5038, %v5206
    %v5208 = vpop.f32.mrf.mxu0
    %v5209 = vadd.f32 %v5040, %v5208
    %5210 = vmatmul.bf16.gmra.mxu0 %v3642
    %v5211 = vpop.f32.mrf.mxu0
    %v5212 = vadd.f32 %v5043, %v5211
    %v5213 = vpop.f32.mrf.mxu0
    %v5214 = vadd.f32 %v5045, %v5213
    %5215 = vmatmul.bf16.gmra.mxu0 %v3651
    %v5216 = vpop.f32.mrf.mxu0
    %v5217 = vadd.f32 %v5048, %v5216
    %v5218 = vpop.f32.mrf.mxu0
    %v5219 = vadd.f32 %v5050, %v5218
    %5220 = vdwg.mxu0
    %5221 = vmatpush.bf16.msra.mxu0 %v4279
    %5222 = vmatpush.bf16.msra.mxu0 %v4278
    %5223 = vmatpush.bf16.msra.mxu0 %v4277
    %5224 = vmatpush.bf16.msra.mxu0 %v4276
    %5225 = vmatpush.bf16.msra.mxu0 %v4275
    %5226 = vmatpush.bf16.msra.mxu0 %v4274
    %5227 = vmatpush.bf16.msra.mxu0 %v4273
    %5228 = vmatpush.bf16.msra.mxu0 %v4272
    %5229 = vmatmul.bf16.gmra.mxu0 %v3373
    %v5230 = vpop.f32.mrf.mxu0
    %v5231 = vadd.f32 %v5062, %v5230
    %v5232 = vpop.f32.mrf.mxu0
    %v5233 = vadd.f32 %v5064, %v5232
    %5234 = vmatmul.bf16.gmra.mxu0 %v3382
    %v5235 = vpop.f32.mrf.mxu0
    %v5236 = vadd.f32 %v5067, %v5235
    %v5237 = vpop.f32.mrf.mxu0
    %v5238 = vadd.f32 %v5069, %v5237
    %5239 = vmatmul.bf16.gmra.mxu0 %v3391
    %v5240 = vpop.f32.mrf.mxu0
    %v5241 = vadd.f32 %v5072, %v5240
    %v5242 = vpop.f32.mrf.mxu0
    %v5243 = vadd.f32 %v5074, %v5242
    %5244 = vmatmul.bf16.gmra.mxu0 %v3400
    %v5245 = vpop.f32.mrf.mxu0
    %v5246 = vadd.f32 %v5077, %v5245
    %v5247 = vpop.f32.mrf.mxu0
    %v5248 = vadd.f32 %v5079, %v5247
    %5249 = vmatmul.bf16.gmra.mxu0 %v3409
    %v5250 = vpop.f32.mrf.mxu0
    %v5251 = vadd.f32 %v5082, %v5250
    %v5252 = vpop.f32.mrf.mxu0
    %v5253 = vadd.f32 %v5084, %v5252
    %5254 = vmatmul.bf16.gmra.mxu0 %v3418
    %v5255 = vpop.f32.mrf.mxu0
    %v5256 = vadd.f32 %v5087, %v5255
    %v5257 = vpop.f32.mrf.mxu0
    %v5258 = vadd.f32 %v5089, %v5257
    %5259 = vmatmul.bf16.gmra.mxu0 %v3427
    %v5260 = vpop.f32.mrf.mxu0
    %v5261 = vadd.f32 %v5092, %v5260
    %v5262 = vpop.f32.mrf.mxu0
    %v5263 = vadd.f32 %v5094, %v5262
    %5264 = vmatmul.bf16.gmra.mxu0 %v3436
    %v5265 = vpop.f32.mrf.mxu0
    %v5266 = vadd.f32 %v5097, %v5265
    %v5267 = vpop.f32.mrf.mxu0
    %v5268 = vadd.f32 %v5099, %v5267
    %5269 = vmatmul.bf16.gmra.mxu0 %v3445
    %v5270 = vpop.f32.mrf.mxu0
    %v5271 = vadd.f32 %v5102, %v5270
    %v5272 = vpop.f32.mrf.mxu0
    %v5273 = vadd.f32 %v5104, %v5272
    %5274 = vmatmul.bf16.gmra.mxu0 %v3454
    %v5275 = vpop.f32.mrf.mxu0
    %v5276 = vadd.f32 %v5107, %v5275
    %v5277 = vpop.f32.mrf.mxu0
    %v5278 = vadd.f32 %v5109, %v5277
    %5279 = vmatmul.bf16.gmra.mxu0 %v3463
    %v5280 = vpop.f32.mrf.mxu0
    %v5281 = vadd.f32 %v5112, %v5280
    %v5282 = vpop.f32.mrf.mxu0
    %v5283 = vadd.f32 %v5114, %v5282
    %5284 = vmatmul.bf16.gmra.mxu0 %v3472
    %v5285 = vpop.f32.mrf.mxu0
    %v5286 = vadd.f32 %v5117, %v5285
    %v5287 = vpop.f32.mrf.mxu0
    %v5288 = vadd.f32 %v5119, %v5287
    %5289 = vmatmul.bf16.gmra.mxu0 %v3481
    %v5290 = vpop.f32.mrf.mxu0
    %v5291 = vadd.f32 %v5122, %v5290
    %v5292 = vpop.f32.mrf.mxu0
    %v5293 = vadd.f32 %v5124, %v5292
    %5294 = vmatmul.bf16.gmra.mxu0 %v3490
    %v5295 = vpop.f32.mrf.mxu0
    %v5296 = vadd.f32 %v5127, %v5295
    %v5297 = vpop.f32.mrf.mxu0
    %v5298 = vadd.f32 %v5129, %v5297
    %5299 = vmatmul.bf16.gmra.mxu0 %v3499
    %v5300 = vpop.f32.mrf.mxu0
    %v5301 = vadd.f32 %v5132, %v5300
    %v5302 = vpop.f32.mrf.mxu0
    %v5303 = vadd.f32 %v5134, %v5302
    %5304 = vmatmul.bf16.gmra.mxu0 %v3508
    %v5305 = vpop.f32.mrf.mxu0
    %v5306 = vadd.f32 %v5137, %v5305
    %v5307 = vpop.f32.mrf.mxu0
    %v5308 = vadd.f32 %v5139, %v5307
    %5309 = vmatmul.bf16.gmra.mxu0 %v3517
    %v5310 = vpop.f32.mrf.mxu0
    %v5311 = vadd.f32 %v5142, %v5310
    %v5312 = vpop.f32.mrf.mxu0
    %v5313 = vadd.f32 %v5144, %v5312
    %5314 = vmatmul.bf16.gmra.mxu0 %v3526
    %v5315 = vpop.f32.mrf.mxu0
    %v5316 = vadd.f32 %v5147, %v5315
    %v5317 = vpop.f32.mrf.mxu0
    %v5318 = vadd.f32 %v5149, %v5317
    %5319 = vmatmul.bf16.gmra.mxu0 %v3535
    %v5320 = vpop.f32.mrf.mxu0
    %v5321 = vadd.f32 %v5152, %v5320
    %v5322 = vpop.f32.mrf.mxu0
    %v5323 = vadd.f32 %v5154, %v5322
    %5324 = vmatmul.bf16.gmra.mxu0 %v3544
    %v5325 = vpop.f32.mrf.mxu0
    %v5326 = vadd.f32 %v5157, %v5325
    %v5327 = vpop.f32.mrf.mxu0
    %v5328 = vadd.f32 %v5159, %v5327
    %5329 = vmatmul.bf16.gmra.mxu0 %v3553
    %v5330 = vpop.f32.mrf.mxu0
    %v5331 = vadd.f32 %v5162, %v5330
    %v5332 = vpop.f32.mrf.mxu0
    %v5333 = vadd.f32 %v5164, %v5332
    %5334 = vmatmul.bf16.gmra.mxu0 %v3562
    %v5335 = vpop.f32.mrf.mxu0
    %v5336 = vadd.f32 %v5167, %v5335
    %v5337 = vpop.f32.mrf.mxu0
    %v5338 = vadd.f32 %v5169, %v5337
    %5339 = vmatmul.bf16.gmra.mxu0 %v3571
    %v5340 = vpop.f32.mrf.mxu0
    %v5341 = vadd.f32 %v5172, %v5340
    %v5342 = vpop.f32.mrf.mxu0
    %v5343 = vadd.f32 %v5174, %v5342
    %5344 = vmatmul.bf16.gmra.mxu0 %v3580
    %v5345 = vpop.f32.mrf.mxu0
    %v5346 = vadd.f32 %v5177, %v5345
    %v5347 = vpop.f32.mrf.mxu0
    %v5348 = vadd.f32 %v5179, %v5347
    %5349 = vmatmul.bf16.gmra.mxu0 %v3589
    %v5350 = vpop.f32.mrf.mxu0
    %v5351 = vadd.f32 %v5182, %v5350
    %v5352 = vpop.f32.mrf.mxu0
    %v5353 = vadd.f32 %v5184, %v5352
    %5354 = vmatmul.bf16.gmra.mxu0 %v3598
    %v5355 = vpop.f32.mrf.mxu0
    %v5356 = vadd.f32 %v5187, %v5355
    %v5357 = vpop.f32.mrf.mxu0
    %v5358 = vadd.f32 %v5189, %v5357
    %5359 = vmatmul.bf16.gmra.mxu0 %v3607
    %v5360 = vpop.f32.mrf.mxu0
    %v5361 = vadd.f32 %v5192, %v5360
    %v5362 = vpop.f32.mrf.mxu0
    %v5363 = vadd.f32 %v5194, %v5362
    %5364 = vmatmul.bf16.gmra.mxu0 %v3616
    %v5365 = vpop.f32.mrf.mxu0
    %v5366 = vadd.f32 %v5197, %v5365
    %v5367 = vpop.f32.mrf.mxu0
    %v5368 = vadd.f32 %v5199, %v5367
    %5369 = vmatmul.bf16.gmra.mxu0 %v3625
    %v5370 = vpop.f32.mrf.mxu0
    %v5371 = vadd.f32 %v5202, %v5370
    %v5372 = vpop.f32.mrf.mxu0
    %v5373 = vadd.f32 %v5204, %v5372
    %5374 = vmatmul.bf16.gmra.mxu0 %v3634
    %v5375 = vpop.f32.mrf.mxu0
    %v5376 = vadd.f32 %v5207, %v5375
    %v5377 = vpop.f32.mrf.mxu0
    %v5378 = vadd.f32 %v5209, %v5377
    %5379 = vmatmul.bf16.gmra.mxu0 %v3643
    %v5380 = vpop.f32.mrf.mxu0
    %v5381 = vadd.f32 %v5212, %v5380
    %v5382 = vpop.f32.mrf.mxu0
    %v5383 = vadd.f32 %v5214, %v5382
    %5384 = vmatmul.bf16.gmra.mxu0 %v3652
    %v5385 = vpop.f32.mrf.mxu0
    %v5386 = vadd.f32 %v5217, %v5385
    %v5387 = vpop.f32.mrf.mxu0
    %v5388 = vadd.f32 %v5219, %v5387
    %5389 = vdwg.mxu0
    %5390 = vmatpush.bf16.msra.mxu0 %v4287
    %5391 = vmatpush.bf16.msra.mxu0 %v4286
    %5392 = vmatpush.bf16.msra.mxu0 %v4285
    %5393 = vmatpush.bf16.msra.mxu0 %v4284
    %5394 = vmatpush.bf16.msra.mxu0 %v4283
    %5395 = vmatpush.bf16.msra.mxu0 %v4282
    %5396 = vmatpush.bf16.msra.mxu0 %v4281
    %5397 = vmatpush.bf16.msra.mxu0 %v4280
    %5398 = vmatmul.bf16.gmra.mxu0 %v3374
    %v5399 = vpop.f32.mrf.mxu0
    %v5400 = vadd.f32 %v5231, %v5399
    %v5401 = vpop.f32.mrf.mxu0
    %v5402 = vadd.f32 %v5233, %v5401
    %5403 = vmatmul.bf16.gmra.mxu0 %v3383
    %v5404 = vpop.f32.mrf.mxu0
    %v5405 = vadd.f32 %v5236, %v5404
    %v5406 = vpop.f32.mrf.mxu0
    %v5407 = vadd.f32 %v5238, %v5406
    %5408 = vmatmul.bf16.gmra.mxu0 %v3392
    %v5409 = vpop.f32.mrf.mxu0
    %v5410 = vadd.f32 %v5241, %v5409
    %v5411 = vpop.f32.mrf.mxu0
    %v5412 = vadd.f32 %v5243, %v5411
    %5413 = vmatmul.bf16.gmra.mxu0 %v3401
    %v5414 = vpop.f32.mrf.mxu0
    %v5415 = vadd.f32 %v5246, %v5414
    %v5416 = vpop.f32.mrf.mxu0
    %v5417 = vadd.f32 %v5248, %v5416
    %5418 = vmatmul.bf16.gmra.mxu0 %v3410
    %v5419 = vpop.f32.mrf.mxu0
    %v5420 = vadd.f32 %v5251, %v5419
    %v5421 = vpop.f32.mrf.mxu0
    %v5422 = vadd.f32 %v5253, %v5421
    %5423 = vmatmul.bf16.gmra.mxu0 %v3419
    %v5424 = vpop.f32.mrf.mxu0
    %v5425 = vadd.f32 %v5256, %v5424
    %v5426 = vpop.f32.mrf.mxu0
    %v5427 = vadd.f32 %v5258, %v5426
    %5428 = vmatmul.bf16.gmra.mxu0 %v3428
    %v5429 = vpop.f32.mrf.mxu0
    %v5430 = vadd.f32 %v5261, %v5429
    %v5431 = vpop.f32.mrf.mxu0
    %v5432 = vadd.f32 %v5263, %v5431
    %5433 = vmatmul.bf16.gmra.mxu0 %v3437
    %v5434 = vpop.f32.mrf.mxu0
    %v5435 = vadd.f32 %v5266, %v5434
    %v5436 = vpop.f32.mrf.mxu0
    %v5437 = vadd.f32 %v5268, %v5436
    %5438 = vmatmul.bf16.gmra.mxu0 %v3446
    %v5439 = vpop.f32.mrf.mxu0
    %v5440 = vadd.f32 %v5271, %v5439
    %v5441 = vpop.f32.mrf.mxu0
    %v5442 = vadd.f32 %v5273, %v5441
    %5443 = vmatmul.bf16.gmra.mxu0 %v3455
    %v5444 = vpop.f32.mrf.mxu0
    %v5445 = vadd.f32 %v5276, %v5444
    %v5446 = vpop.f32.mrf.mxu0
    %v5447 = vadd.f32 %v5278, %v5446
    %5448 = vmatmul.bf16.gmra.mxu0 %v3464
    %v5449 = vpop.f32.mrf.mxu0
    %v5450 = vadd.f32 %v5281, %v5449
    %v5451 = vpop.f32.mrf.mxu0
    %v5452 = vadd.f32 %v5283, %v5451
    %5453 = vmatmul.bf16.gmra.mxu0 %v3473
    %v5454 = vpop.f32.mrf.mxu0
    %v5455 = vadd.f32 %v5286, %v5454
    %v5456 = vpop.f32.mrf.mxu0
    %v5457 = vadd.f32 %v5288, %v5456
    %5458 = vmatmul.bf16.gmra.mxu0 %v3482
    %v5459 = vpop.f32.mrf.mxu0
    %v5460 = vadd.f32 %v5291, %v5459
    %v5461 = vpop.f32.mrf.mxu0
    %v5462 = vadd.f32 %v5293, %v5461
    %5463 = vmatmul.bf16.gmra.mxu0 %v3491
    %v5464 = vpop.f32.mrf.mxu0
    %v5465 = vadd.f32 %v5296, %v5464
    %v5466 = vpop.f32.mrf.mxu0
    %v5467 = vadd.f32 %v5298, %v5466
    %5468 = vmatmul.bf16.gmra.mxu0 %v3500
    %v5469 = vpop.f32.mrf.mxu0
    %v5470 = vadd.f32 %v5301, %v5469
    %v5471 = vpop.f32.mrf.mxu0
    %v5472 = vadd.f32 %v5303, %v5471
    %5473 = vmatmul.bf16.gmra.mxu0 %v3509
    %v5474 = vpop.f32.mrf.mxu0
    %v5475 = vadd.f32 %v5306, %v5474
    %v5476 = vpop.f32.mrf.mxu0
    %v5477 = vadd.f32 %v5308, %v5476
    %5478 = vmatmul.bf16.gmra.mxu0 %v3518
    %v5479 = vpop.f32.mrf.mxu0
    %v5480 = vadd.f32 %v5311, %v5479
    %v5481 = vpop.f32.mrf.mxu0
    %v5482 = vadd.f32 %v5313, %v5481
    %5483 = vmatmul.bf16.gmra.mxu0 %v3527
    %v5484 = vpop.f32.mrf.mxu0
    %v5485 = vadd.f32 %v5316, %v5484
    %v5486 = vpop.f32.mrf.mxu0
    %v5487 = vadd.f32 %v5318, %v5486
    %5488 = vmatmul.bf16.gmra.mxu0 %v3536
    %v5489 = vpop.f32.mrf.mxu0
    %v5490 = vadd.f32 %v5321, %v5489
    %v5491 = vpop.f32.mrf.mxu0
    %v5492 = vadd.f32 %v5323, %v5491
    %5493 = vmatmul.bf16.gmra.mxu0 %v3545
    %v5494 = vpop.f32.mrf.mxu0
    %v5495 = vadd.f32 %v5326, %v5494
    %v5496 = vpop.f32.mrf.mxu0
    %v5497 = vadd.f32 %v5328, %v5496
    %5498 = vmatmul.bf16.gmra.mxu0 %v3554
    %v5499 = vpop.f32.mrf.mxu0
    %v5500 = vadd.f32 %v5331, %v5499
    %v5501 = vpop.f32.mrf.mxu0
    %v5502 = vadd.f32 %v5333, %v5501
    %5503 = vmatmul.bf16.gmra.mxu0 %v3563
    %v5504 = vpop.f32.mrf.mxu0
    %v5505 = vadd.f32 %v5336, %v5504
    %v5506 = vpop.f32.mrf.mxu0
    %v5507 = vadd.f32 %v5338, %v5506
    %5508 = vmatmul.bf16.gmra.mxu0 %v3572
    %v5509 = vpop.f32.mrf.mxu0
    %v5510 = vadd.f32 %v5341, %v5509
    %v5511 = vpop.f32.mrf.mxu0
    %v5512 = vadd.f32 %v5343, %v5511
    %5513 = vmatmul.bf16.gmra.mxu0 %v3581
    %v5514 = vpop.f32.mrf.mxu0
    %v5515 = vadd.f32 %v5346, %v5514
    %v5516 = vpop.f32.mrf.mxu0
    %v5517 = vadd.f32 %v5348, %v5516
    %5518 = vmatmul.bf16.gmra.mxu0 %v3590
    %v5519 = vpop.f32.mrf.mxu0
    %v5520 = vadd.f32 %v5351, %v5519
    %v5521 = vpop.f32.mrf.mxu0
    %v5522 = vadd.f32 %v5353, %v5521
    %5523 = vmatmul.bf16.gmra.mxu0 %v3599
    %v5524 = vpop.f32.mrf.mxu0
    %v5525 = vadd.f32 %v5356, %v5524
    %v5526 = vpop.f32.mrf.mxu0
    %v5527 = vadd.f32 %v5358, %v5526
    %5528 = vmatmul.bf16.gmra.mxu0 %v3608
    %v5529 = vpop.f32.mrf.mxu0
    %v5530 = vadd.f32 %v5361, %v5529
    %v5531 = vpop.f32.mrf.mxu0
    %v5532 = vadd.f32 %v5363, %v5531
    %5533 = vmatmul.bf16.gmra.mxu0 %v3617
    %v5534 = vpop.f32.mrf.mxu0
    %v5535 = vadd.f32 %v5366, %v5534
    %v5536 = vpop.f32.mrf.mxu0
    %v5537 = vadd.f32 %v5368, %v5536
    %5538 = vmatmul.bf16.gmra.mxu0 %v3626
    %v5539 = vpop.f32.mrf.mxu0
    %v5540 = vadd.f32 %v5371, %v5539
    %v5541 = vpop.f32.mrf.mxu0
    %v5542 = vadd.f32 %v5373, %v5541
    %5543 = vmatmul.bf16.gmra.mxu0 %v3635
    %v5544 = vpop.f32.mrf.mxu0
    %v5545 = vadd.f32 %v5376, %v5544
    %v5546 = vpop.f32.mrf.mxu0
    %v5547 = vadd.f32 %v5378, %v5546
    %5548 = vmatmul.bf16.gmra.mxu0 %v3644
    %v5549 = vpop.f32.mrf.mxu0
    %v5550 = vadd.f32 %v5381, %v5549
    %v5551 = vpop.f32.mrf.mxu0
    %v5552 = vadd.f32 %v5383, %v5551
    %5553 = vmatmul.bf16.gmra.mxu0 %v3653
    %v5554 = vpop.f32.mrf.mxu0
    %v5555 = vadd.f32 %v5386, %v5554
    %v5556 = vpop.f32.mrf.mxu0
    %v5557 = vadd.f32 %v5388, %v5556
    %5558 = vdwg.mxu0
    %5559 = vmatpush.bf16.msra.mxu0 %v4295
    %5560 = vmatpush.bf16.msra.mxu0 %v4294
    %5561 = vmatpush.bf16.msra.mxu0 %v4293
    %5562 = vmatpush.bf16.msra.mxu0 %v4292
    %5563 = vmatpush.bf16.msra.mxu0 %v4291
    %5564 = vmatpush.bf16.msra.mxu0 %v4290
    %5565 = vmatpush.bf16.msra.mxu0 %v4289
    %5566 = vmatpush.bf16.msra.mxu0 %v4288
    %5567 = vmatmul.bf16.gmra.mxu0 %v3375
    %v5568 = vpop.f32.mrf.mxu0
    %v5569 = vadd.f32 %v5400, %v5568
    %v5570 = vpop.f32.mrf.mxu0
    %v5571 = vadd.f32 %v5402, %v5570
    %5572 = vmatmul.bf16.gmra.mxu0 %v3384
    %v5573 = vpop.f32.mrf.mxu0
    %v5574 = vadd.f32 %v5405, %v5573
    %v5575 = vpop.f32.mrf.mxu0
    %v5576 = vadd.f32 %v5407, %v5575
    %5577 = vmatmul.bf16.gmra.mxu0 %v3393
    %v5578 = vpop.f32.mrf.mxu0
    %v5579 = vadd.f32 %v5410, %v5578
    %v5580 = vpop.f32.mrf.mxu0
    %v5581 = vadd.f32 %v5412, %v5580
    %5582 = vmatmul.bf16.gmra.mxu0 %v3402
    %v5583 = vpop.f32.mrf.mxu0
    %v5584 = vadd.f32 %v5415, %v5583
    %v5585 = vpop.f32.mrf.mxu0
    %v5586 = vadd.f32 %v5417, %v5585
    %5587 = vmatmul.bf16.gmra.mxu0 %v3411
    %v5588 = vpop.f32.mrf.mxu0
    %v5589 = vadd.f32 %v5420, %v5588
    %v5590 = vpop.f32.mrf.mxu0
    %v5591 = vadd.f32 %v5422, %v5590
    %5592 = vmatmul.bf16.gmra.mxu0 %v3420
    %v5593 = vpop.f32.mrf.mxu0
    %v5594 = vadd.f32 %v5425, %v5593
    %v5595 = vpop.f32.mrf.mxu0
    %v5596 = vadd.f32 %v5427, %v5595
    %5597 = vmatmul.bf16.gmra.mxu0 %v3429
    %v5598 = vpop.f32.mrf.mxu0
    %v5599 = vadd.f32 %v5430, %v5598
    %v5600 = vpop.f32.mrf.mxu0
    %v5601 = vadd.f32 %v5432, %v5600
    %5602 = vmatmul.bf16.gmra.mxu0 %v3438
    %v5603 = vpop.f32.mrf.mxu0
    %v5604 = vadd.f32 %v5435, %v5603
    %v5605 = vpop.f32.mrf.mxu0
    %v5606 = vadd.f32 %v5437, %v5605
    %5607 = vmatmul.bf16.gmra.mxu0 %v3447
    %v5608 = vpop.f32.mrf.mxu0
    %v5609 = vadd.f32 %v5440, %v5608
    %v5610 = vpop.f32.mrf.mxu0
    %v5611 = vadd.f32 %v5442, %v5610
    %5612 = vmatmul.bf16.gmra.mxu0 %v3456
    %v5613 = vpop.f32.mrf.mxu0
    %v5614 = vadd.f32 %v5445, %v5613
    %v5615 = vpop.f32.mrf.mxu0
    %v5616 = vadd.f32 %v5447, %v5615
    %5617 = vmatmul.bf16.gmra.mxu0 %v3465
    %v5618 = vpop.f32.mrf.mxu0
    %v5619 = vadd.f32 %v5450, %v5618
    %v5620 = vpop.f32.mrf.mxu0
    %v5621 = vadd.f32 %v5452, %v5620
    %5622 = vmatmul.bf16.gmra.mxu0 %v3474
    %v5623 = vpop.f32.mrf.mxu0
    %v5624 = vadd.f32 %v5455, %v5623
    %v5625 = vpop.f32.mrf.mxu0
    %v5626 = vadd.f32 %v5457, %v5625
    %5627 = vmatmul.bf16.gmra.mxu0 %v3483
    %v5628 = vpop.f32.mrf.mxu0
    %v5629 = vadd.f32 %v5460, %v5628
    %v5630 = vpop.f32.mrf.mxu0
    %v5631 = vadd.f32 %v5462, %v5630
    %5632 = vmatmul.bf16.gmra.mxu0 %v3492
    %v5633 = vpop.f32.mrf.mxu0
    %v5634 = vadd.f32 %v5465, %v5633
    %v5635 = vpop.f32.mrf.mxu0
    %v5636 = vadd.f32 %v5467, %v5635
    %5637 = vmatmul.bf16.gmra.mxu0 %v3501
    %v5638 = vpop.f32.mrf.mxu0
    %v5639 = vadd.f32 %v5470, %v5638
    %v5640 = vpop.f32.mrf.mxu0
    %v5641 = vadd.f32 %v5472, %v5640
    %5642 = vmatmul.bf16.gmra.mxu0 %v3510
    %v5643 = vpop.f32.mrf.mxu0
    %v5644 = vadd.f32 %v5475, %v5643
    %v5645 = vpop.f32.mrf.mxu0
    %v5646 = vadd.f32 %v5477, %v5645
    %5647 = vmatmul.bf16.gmra.mxu0 %v3519
    %v5648 = vpop.f32.mrf.mxu0
    %v5649 = vadd.f32 %v5480, %v5648
    %v5650 = vpop.f32.mrf.mxu0
    %v5651 = vadd.f32 %v5482, %v5650
    %5652 = vmatmul.bf16.gmra.mxu0 %v3528
    %v5653 = vpop.f32.mrf.mxu0
    %v5654 = vadd.f32 %v5485, %v5653
    %v5655 = vpop.f32.mrf.mxu0
    %v5656 = vadd.f32 %v5487, %v5655
    %5657 = vmatmul.bf16.gmra.mxu0 %v3537
    %v5658 = vpop.f32.mrf.mxu0
    %v5659 = vadd.f32 %v5490, %v5658
    %v5660 = vpop.f32.mrf.mxu0
    %v5661 = vadd.f32 %v5492, %v5660
    %5662 = vmatmul.bf16.gmra.mxu0 %v3546
    %v5663 = vpop.f32.mrf.mxu0
    %v5664 = vadd.f32 %v5495, %v5663
    %v5665 = vpop.f32.mrf.mxu0
    %v5666 = vadd.f32 %v5497, %v5665
    %5667 = vmatmul.bf16.gmra.mxu0 %v3555
    %v5668 = vpop.f32.mrf.mxu0
    %v5669 = vadd.f32 %v5500, %v5668
    %v5670 = vpop.f32.mrf.mxu0
    %v5671 = vadd.f32 %v5502, %v5670
    %5672 = vmatmul.bf16.gmra.mxu0 %v3564
    %v5673 = vpop.f32.mrf.mxu0
    %v5674 = vadd.f32 %v5505, %v5673
    %v5675 = vpop.f32.mrf.mxu0
    %v5676 = vadd.f32 %v5507, %v5675
    %5677 = vmatmul.bf16.gmra.mxu0 %v3573
    %v5678 = vpop.f32.mrf.mxu0
    %v5679 = vadd.f32 %v5510, %v5678
    %v5680 = vpop.f32.mrf.mxu0
    %v5681 = vadd.f32 %v5512, %v5680
    %5682 = vmatmul.bf16.gmra.mxu0 %v3582
    %v5683 = vpop.f32.mrf.mxu0
    %v5684 = vadd.f32 %v5515, %v5683
    %v5685 = vpop.f32.mrf.mxu0
    %v5686 = vadd.f32 %v5517, %v5685
    %5687 = vmatmul.bf16.gmra.mxu0 %v3591
    %v5688 = vpop.f32.mrf.mxu0
    %v5689 = vadd.f32 %v5520, %v5688
    %v5690 = vpop.f32.mrf.mxu0
    %v5691 = vadd.f32 %v5522, %v5690
    %5692 = vmatmul.bf16.gmra.mxu0 %v3600
    %v5693 = vpop.f32.mrf.mxu0
    %v5694 = vadd.f32 %v5525, %v5693
    %v5695 = vpop.f32.mrf.mxu0
    %v5696 = vadd.f32 %v5527, %v5695
    %5697 = vmatmul.bf16.gmra.mxu0 %v3609
    %v5698 = vpop.f32.mrf.mxu0
    %v5699 = vadd.f32 %v5530, %v5698
    %v5700 = vpop.f32.mrf.mxu0
    %v5701 = vadd.f32 %v5532, %v5700
    %5702 = vmatmul.bf16.gmra.mxu0 %v3618
    %v5703 = vpop.f32.mrf.mxu0
    %v5704 = vadd.f32 %v5535, %v5703
    %v5705 = vpop.f32.mrf.mxu0
    %v5706 = vadd.f32 %v5537, %v5705
    %5707 = vmatmul.bf16.gmra.mxu0 %v3627
    %v5708 = vpop.f32.mrf.mxu0
    %v5709 = vadd.f32 %v5540, %v5708
    %v5710 = vpop.f32.mrf.mxu0
    %v5711 = vadd.f32 %v5542, %v5710
    %5712 = vmatmul.bf16.gmra.mxu0 %v3636
    %v5713 = vpop.f32.mrf.mxu0
    %v5714 = vadd.f32 %v5545, %v5713
    %v5715 = vpop.f32.mrf.mxu0
    %v5716 = vadd.f32 %v5547, %v5715
    %5717 = vmatmul.bf16.gmra.mxu0 %v3645
    %v5718 = vpop.f32.mrf.mxu0
    %v5719 = vadd.f32 %v5550, %v5718
    %v5720 = vpop.f32.mrf.mxu0
    %v5721 = vadd.f32 %v5552, %v5720
    %5722 = vmatmul.bf16.gmra.mxu0 %v3654
    %v5723 = vpop.f32.mrf.mxu0
    %v5724 = vadd.f32 %v5555, %v5723
    %v5725 = vpop.f32.mrf.mxu0
    %v5726 = vadd.f32 %v5557, %v5725
    %5727 = vdwg.mxu0
    %5728 = vmatpush.bf16.msra.mxu0 %v4303
    %5729 = vmatpush.bf16.msra.mxu0 %v4302
    %5730 = vmatpush.bf16.msra.mxu0 %v4301
    %5731 = vmatpush.bf16.msra.mxu0 %v4300
    %5732 = vmatpush.bf16.msra.mxu0 %v4299
    %5733 = vmatpush.bf16.msra.mxu0 %v4298
    %5734 = vmatpush.bf16.msra.mxu0 %v4297
    %5735 = vmatpush.bf16.msra.mxu0 %v4296
    %5736 = vmatmul.bf16.gmra.mxu0 %v3376
    %v5737 = vpop.f32.mrf.mxu0
    %v5738 = vadd.f32 %v5569, %v5737
    %v5739 = vpop.f32.mrf.mxu0
    %v5740 = vadd.f32 %v5571, %v5739
    %5741 = vmatmul.bf16.gmra.mxu0 %v3385
    %v5742 = vpop.f32.mrf.mxu0
    %v5743 = vadd.f32 %v5574, %v5742
    %v5744 = vpop.f32.mrf.mxu0
    %v5745 = vadd.f32 %v5576, %v5744
    %5746 = vmatmul.bf16.gmra.mxu0 %v3394
    %v5747 = vpop.f32.mrf.mxu0
    %v5748 = vadd.f32 %v5579, %v5747
    %v5749 = vpop.f32.mrf.mxu0
    %v5750 = vadd.f32 %v5581, %v5749
    %5751 = vmatmul.bf16.gmra.mxu0 %v3403
    %v5752 = vpop.f32.mrf.mxu0
    %v5753 = vadd.f32 %v5584, %v5752
    %v5754 = vpop.f32.mrf.mxu0
    %v5755 = vadd.f32 %v5586, %v5754
    %5756 = vmatmul.bf16.gmra.mxu0 %v3412
    %v5757 = vpop.f32.mrf.mxu0
    %v5758 = vadd.f32 %v5589, %v5757
    %v5759 = vpop.f32.mrf.mxu0
    %v5760 = vadd.f32 %v5591, %v5759
    %5761 = vmatmul.bf16.gmra.mxu0 %v3421
    %v5762 = vpop.f32.mrf.mxu0
    %v5763 = vadd.f32 %v5594, %v5762
    %v5764 = vpop.f32.mrf.mxu0
    %v5765 = vadd.f32 %v5596, %v5764
    %5766 = vmatmul.bf16.gmra.mxu0 %v3430
    %v5767 = vpop.f32.mrf.mxu0
    %v5768 = vadd.f32 %v5599, %v5767
    %v5769 = vpop.f32.mrf.mxu0
    %v5770 = vadd.f32 %v5601, %v5769
    %5771 = vmatmul.bf16.gmra.mxu0 %v3439
    %v5772 = vpop.f32.mrf.mxu0
    %v5773 = vadd.f32 %v5604, %v5772
    %v5774 = vpop.f32.mrf.mxu0
    %v5775 = vadd.f32 %v5606, %v5774
    %5776 = vmatmul.bf16.gmra.mxu0 %v3448
    %v5777 = vpop.f32.mrf.mxu0
    %v5778 = vadd.f32 %v5609, %v5777
    %v5779 = vpop.f32.mrf.mxu0
    %v5780 = vadd.f32 %v5611, %v5779
    %5781 = vmatmul.bf16.gmra.mxu0 %v3457
    %v5782 = vpop.f32.mrf.mxu0
    %v5783 = vadd.f32 %v5614, %v5782
    %v5784 = vpop.f32.mrf.mxu0
    %v5785 = vadd.f32 %v5616, %v5784
    %5786 = vmatmul.bf16.gmra.mxu0 %v3466
    %v5787 = vpop.f32.mrf.mxu0
    %v5788 = vadd.f32 %v5619, %v5787
    %v5789 = vpop.f32.mrf.mxu0
    %v5790 = vadd.f32 %v5621, %v5789
    %5791 = vmatmul.bf16.gmra.mxu0 %v3475
    %v5792 = vpop.f32.mrf.mxu0
    %v5793 = vadd.f32 %v5624, %v5792
    %v5794 = vpop.f32.mrf.mxu0
    %v5795 = vadd.f32 %v5626, %v5794
    %5796 = vmatmul.bf16.gmra.mxu0 %v3484
    %v5797 = vpop.f32.mrf.mxu0
    %v5798 = vadd.f32 %v5629, %v5797
    %v5799 = vpop.f32.mrf.mxu0
    %v5800 = vadd.f32 %v5631, %v5799
    %5801 = vmatmul.bf16.gmra.mxu0 %v3493
    %v5802 = vpop.f32.mrf.mxu0
    %v5803 = vadd.f32 %v5634, %v5802
    %v5804 = vpop.f32.mrf.mxu0
    %v5805 = vadd.f32 %v5636, %v5804
    %5806 = vmatmul.bf16.gmra.mxu0 %v3502
    %v5807 = vpop.f32.mrf.mxu0
    %v5808 = vadd.f32 %v5639, %v5807
    %v5809 = vpop.f32.mrf.mxu0
    %v5810 = vadd.f32 %v5641, %v5809
    %5811 = vmatmul.bf16.gmra.mxu0 %v3511
    %v5812 = vpop.f32.mrf.mxu0
    %v5813 = vadd.f32 %v5644, %v5812
    %v5814 = vpop.f32.mrf.mxu0
    %v5815 = vadd.f32 %v5646, %v5814
    %5816 = vmatmul.bf16.gmra.mxu0 %v3520
    %v5817 = vpop.f32.mrf.mxu0
    %v5818 = vadd.f32 %v5649, %v5817
    %v5819 = vpop.f32.mrf.mxu0
    %v5820 = vadd.f32 %v5651, %v5819
    %5821 = vmatmul.bf16.gmra.mxu0 %v3529
    %v5822 = vpop.f32.mrf.mxu0
    %v5823 = vadd.f32 %v5654, %v5822
    %v5824 = vpop.f32.mrf.mxu0
    %v5825 = vadd.f32 %v5656, %v5824
    %5826 = vmatmul.bf16.gmra.mxu0 %v3538
    %v5827 = vpop.f32.mrf.mxu0
    %v5828 = vadd.f32 %v5659, %v5827
    %v5829 = vpop.f32.mrf.mxu0
    %v5830 = vadd.f32 %v5661, %v5829
    %5831 = vmatmul.bf16.gmra.mxu0 %v3547
    %v5832 = vpop.f32.mrf.mxu0
    %v5833 = vadd.f32 %v5664, %v5832
    %v5834 = vpop.f32.mrf.mxu0
    %v5835 = vadd.f32 %v5666, %v5834
    %5836 = vmatmul.bf16.gmra.mxu0 %v3556
    %v5837 = vpop.f32.mrf.mxu0
    %v5838 = vadd.f32 %v5669, %v5837
    %v5839 = vpop.f32.mrf.mxu0
    %v5840 = vadd.f32 %v5671, %v5839
    %5841 = vmatmul.bf16.gmra.mxu0 %v3565
    %v5842 = vpop.f32.mrf.mxu0
    %v5843 = vadd.f32 %v5674, %v5842
    %v5844 = vpop.f32.mrf.mxu0
    %v5845 = vadd.f32 %v5676, %v5844
    %5846 = vmatmul.bf16.gmra.mxu0 %v3574
    %v5847 = vpop.f32.mrf.mxu0
    %v5848 = vadd.f32 %v5679, %v5847
    %v5849 = vpop.f32.mrf.mxu0
    %v5850 = vadd.f32 %v5681, %v5849
    %5851 = vmatmul.bf16.gmra.mxu0 %v3583
    %v5852 = vpop.f32.mrf.mxu0
    %v5853 = vadd.f32 %v5684, %v5852
    %v5854 = vpop.f32.mrf.mxu0
    %v5855 = vadd.f32 %v5686, %v5854
    %5856 = vmatmul.bf16.gmra.mxu0 %v3592
    %v5857 = vpop.f32.mrf.mxu0
    %v5858 = vadd.f32 %v5689, %v5857
    %v5859 = vpop.f32.mrf.mxu0
    %v5860 = vadd.f32 %v5691, %v5859
    %5861 = vmatmul.bf16.gmra.mxu0 %v3601
    %v5862 = vpop.f32.mrf.mxu0
    %v5863 = vadd.f32 %v5694, %v5862
    %v5864 = vpop.f32.mrf.mxu0
    %v5865 = vadd.f32 %v5696, %v5864
    %5866 = vmatmul.bf16.gmra.mxu0 %v3610
    %v5867 = vpop.f32.mrf.mxu0
    %v5868 = vadd.f32 %v5699, %v5867
    %v5869 = vpop.f32.mrf.mxu0
    %v5870 = vadd.f32 %v5701, %v5869
    %5871 = vmatmul.bf16.gmra.mxu0 %v3619
    %v5872 = vpop.f32.mrf.mxu0
    %v5873 = vadd.f32 %v5704, %v5872
    %v5874 = vpop.f32.mrf.mxu0
    %v5875 = vadd.f32 %v5706, %v5874
    %5876 = vmatmul.bf16.gmra.mxu0 %v3628
    %v5877 = vpop.f32.mrf.mxu0
    %v5878 = vadd.f32 %v5709, %v5877
    %v5879 = vpop.f32.mrf.mxu0
    %v5880 = vadd.f32 %v5711, %v5879
    %5881 = vmatmul.bf16.gmra.mxu0 %v3637
    %v5882 = vpop.f32.mrf.mxu0
    %v5883 = vadd.f32 %v5714, %v5882
    %v5884 = vpop.f32.mrf.mxu0
    %v5885 = vadd.f32 %v5716, %v5884
    %5886 = vmatmul.bf16.gmra.mxu0 %v3646
    %v5887 = vpop.f32.mrf.mxu0
    %v5888 = vadd.f32 %v5719, %v5887
    %v5889 = vpop.f32.mrf.mxu0
    %v5890 = vadd.f32 %v5721, %v5889
    %5891 = vmatmul.bf16.gmra.mxu0 %v3655
    %v5892 = vpop.f32.mrf.mxu0
    %v5893 = vadd.f32 %v5724, %v5892
    %v5894 = vpop.f32.mrf.mxu0
    %v5895 = vadd.f32 %v5726, %v5894
    %5896 = vdwg.mxu0
    %v5897 = vmax.f32 %v5738, 0.0
    %v5898 = vmax.f32 %v5740, 0.0
    %v5899 = vmax.f32 %v5743, 0.0
    %v5900 = vmax.f32 %v5745, 0.0
    %v5901 = vmax.f32 %v5748, 0.0
    %v5902 = vmax.f32 %v5750, 0.0
    %v5903 = vmax.f32 %v5753, 0.0
    %v5904 = vmax.f32 %v5755, 0.0
    %v5905 = vmax.f32 %v5758, 0.0
    %v5906 = vmax.f32 %v5760, 0.0
    %v5907 = vmax.f32 %v5763, 0.0
    %v5908 = vmax.f32 %v5765, 0.0
    %v5909 = vmax.f32 %v5768, 0.0
    %v5910 = vmax.f32 %v5770, 0.0
    %v5911 = vmax.f32 %v5773, 0.0
    %v5912 = vmax.f32 %v5775, 0.0
    %v5913 = vmax.f32 %v5778, 0.0
    %v5914 = vmax.f32 %v5780, 0.0
    %v5915 = vmax.f32 %v5783, 0.0
    %v5916 = vmax.f32 %v5785, 0.0
    %v5917 = vmax.f32 %v5788, 0.0
    %v5918 = vmax.f32 %v5790, 0.0
    %v5919 = vmax.f32 %v5793, 0.0
    %v5920 = vmax.f32 %v5795, 0.0
    %v5921 = vmax.f32 %v5798, 0.0
    %v5922 = vmax.f32 %v5800, 0.0
    %v5923 = vmax.f32 %v5803, 0.0
    %v5924 = vmax.f32 %v5805, 0.0
    %v5925 = vmax.f32 %v5808, 0.0
    %v5926 = vmax.f32 %v5810, 0.0
    %v5927 = vmax.f32 %v5813, 0.0
    %v5928 = vmax.f32 %v5815, 0.0
    %v5929 = vmax.f32 %v5818, 0.0
    %v5930 = vmax.f32 %v5820, 0.0
    %v5931 = vmax.f32 %v5823, 0.0
    %v5932 = vmax.f32 %v5825, 0.0
    %v5933 = vmax.f32 %v5828, 0.0
    %v5934 = vmax.f32 %v5830, 0.0
    %v5935 = vmax.f32 %v5833, 0.0
    %v5936 = vmax.f32 %v5835, 0.0
    %v5937 = vmax.f32 %v5838, 0.0
    %v5938 = vmax.f32 %v5840, 0.0
    %v5939 = vmax.f32 %v5843, 0.0
    %v5940 = vmax.f32 %v5845, 0.0
    %v5941 = vmax.f32 %v5848, 0.0
    %v5942 = vmax.f32 %v5850, 0.0
    %v5943 = vmax.f32 %v5853, 0.0
    %v5944 = vmax.f32 %v5855, 0.0
    %v5945 = vmax.f32 %v5858, 0.0
    %v5946 = vmax.f32 %v5860, 0.0
    %v5947 = vmax.f32 %v5863, 0.0
    %v5948 = vmax.f32 %v5865, 0.0
    %v5949 = vmax.f32 %v5868, 0.0
    %v5950 = vmax.f32 %v5870, 0.0
    %v5951 = vmax.f32 %v5873, 0.0
    %v5952 = vmax.f32 %v5875, 0.0
    %v5953 = vmax.f32 %v5878, 0.0
    %v5954 = vmax.f32 %v5880, 0.0
    %v5955 = vmax.f32 %v5883, 0.0
    %v5956 = vmax.f32 %v5885, 0.0
    %v5957 = vmax.f32 %v5888, 0.0
    %v5958 = vmax.f32 %v5890, 0.0
    %v5959 = vmax.f32 %v5893, 0.0
    %v5960 = vmax.f32 %v5895, 0.0
    %5961 = vst [vmem:[#allocation3] sm:$0xff] 0.0
    %5962 = vst [vmem:[#allocation3 + $0x8] sm:$0xff] 0.0
    %5963 = vst [vmem:[#allocation3 + $0x10] sm:$0x3] 0.0
    %5964 = vst [vmem:[#allocation3 + $0x18] sm:$0xff] 0.0
    %5965 = vst [vmem:[#allocation3 + $0x20] sm:$0xff] 0.0
    %5966 = vst [vmem:[#allocation3 + $0x28] sm:$0x3] 0.0
    %5967 = vst [vmem:[#allocation3 + $0x30] sm:$0xff] 0.0
    %5968 = vst [vmem:[#allocation3 + $0x38] sm:$0xff] 0.0
    %5969 = vst [vmem:[#allocation3 + $0x40] sm:$0x3] 0.0
    %5970 = vst [vmem:[#allocation3 + $0x48] sm:$0xff] 0.0
    %5971 = vst [vmem:[#allocation3 + $0x50] sm:$0xff] 0.0
    %5972 = vst [vmem:[#allocation3 + $0x58] sm:$0x3] 0.0
    %5973 = vst [vmem:[#allocation3 + $0x60] sm:$0xff] 0.0
    %5974 = vst [vmem:[#allocation3 + $0x68] sm:$0xff] 0.0
    %5975 = vst [vmem:[#allocation3 + $0x70] sm:$0x3] 0.0
    %5976 = vst [vmem:[#allocation3 + $0x78] sm:$0xff] 0.0
    %5977 = vst [vmem:[#allocation3 + $0x80] sm:$0xff] 0.0
    %5978 = vst [vmem:[#allocation3 + $0x88] sm:$0x3] 0.0
    %5979 = vst [vmem:[#allocation3 + $0x90] sm:$0xff] 0.0
    %5980 = vst [vmem:[#allocation3 + $0x98] sm:$0xff] 0.0
    %5981 = vst [vmem:[#allocation3 + $0xa0] sm:$0x3] 0.0
    %5982 = vst [vmem:[#allocation3 + $0xa8] sm:$0xff] 0.0
    %5983 = vst [vmem:[#allocation3 + $0xb0] sm:$0xff] 0.0
    %5984 = vst [vmem:[#allocation3 + $0xb8] sm:$0x3] 0.0
    %5985 = vst [vmem:[#allocation3 + $0xc0] sm:$0xff] 0.0
    %5986 = vst [vmem:[#allocation3 + $0xc8] sm:$0xff] 0.0
    %5987 = vst [vmem:[#allocation3 + $0xd0] sm:$0x3] 0.0
    %5988 = vst [vmem:[#allocation3 + $0xd8] sm:$0xff] 0.0
    %5989 = vst [vmem:[#allocation3 + $0xe0] sm:$0xff] 0.0
    %5990 = vst [vmem:[#allocation3 + $0xe8] sm:$0x3] 0.0
    %5991 = vst [vmem:[#allocation3 + $0xf0] sm:$0xff] 0.0
    %5992 = vst [vmem:[#allocation3 + $0xf8] sm:$0xff] 0.0
    %5993 = vst [vmem:[#allocation3 + $0x100] sm:$0x3] 0.0
    %5994 = vst [vmem:[#allocation3 + $0x108] sm:$0xff] 0.0
    %5995 = vst [vmem:[#allocation3 + $0x110] sm:$0xff] 0.0
    %5996 = vst [vmem:[#allocation3 + $0x118] sm:$0x3] 0.0
    %5997 = vst [vmem:[#allocation3 + $0x120] sm:$0xff] 0.0
    %5998 = vst [vmem:[#allocation3 + $0x128] sm:$0xff] 0.0
    %5999 = vst [vmem:[#allocation3 + $0x130] sm:$0x3] 0.0
    %6000 = vst [vmem:[#allocation3 + $0x138] sm:$0xff] 0.0
    %6001 = vst [vmem:[#allocation3 + $0x140] sm:$0xff] 0.0
    %6002 = vst [vmem:[#allocation3 + $0x148] sm:$0x3] 0.0
    %6003 = vst [vmem:[#allocation3 + $0x150] sm:$0xff] 0.0
    %6004 = vst [vmem:[#allocation3 + $0x158] sm:$0xff] 0.0
    %6005 = vst [vmem:[#allocation3 + $0x160] sm:$0x3] 0.0
    %6006 = vst [vmem:[#allocation3 + $0x168] sm:$0xff] 0.0
    %6007 = vst [vmem:[#allocation3 + $0x170] sm:$0xff] 0.0
    %6008 = vst [vmem:[#allocation3 + $0x178] sm:$0x3] 0.0
    %6009 = vst [vmem:[#allocation3 + $0x180] sm:$0xff] 0.0
    %6010 = vst [vmem:[#allocation3 + $0x188] sm:$0xff] 0.0
    %6011 = vst [vmem:[#allocation3 + $0x190] sm:$0x3] 0.0
    %6012 = vst [vmem:[#allocation3 + $0x198] sm:$0xff] 0.0
    %6013 = vst [vmem:[#allocation3 + $0x1a0] sm:$0xff] 0.0
    %6014 = vst [vmem:[#allocation3 + $0x1a8] sm:$0x3] 0.0
    %6015 = vst [vmem:[#allocation3 + $0x1b0] sm:$0xff] 0.0
    %6016 = vst [vmem:[#allocation3 + $0x1b8] sm:$0xff] 0.0
    %6017 = vst [vmem:[#allocation3 + $0x1c0] sm:$0x3] 0.0
    %6018 = vst [vmem:[#allocation3 + $0x1c8] sm:$0xff] 0.0
    %6019 = vst [vmem:[#allocation3 + $0x1d0] sm:$0xff] 0.0
    %6020 = vst [vmem:[#allocation3 + $0x1d8] sm:$0x3] 0.0
    %6021 = vst [vmem:[#allocation3 + $0x1e0] sm:$0xff] 0.0
    %6022 = vst [vmem:[#allocation3 + $0x1e8] sm:$0xff] 0.0
    %6023 = vst [vmem:[#allocation3 + $0x1f0] sm:$0x3] 0.0
    %6024 = vst [vmem:[#allocation3 + $0x1f8] sm:$0xff] 0.0
    %6025 = vst [vmem:[#allocation3 + $0x200] sm:$0xff] 0.0
    %6026 = vst [vmem:[#allocation3 + $0x208] sm:$0x3] 0.0
    %6027 = vst [vmem:[#allocation3 + $0x210] sm:$0xff] 0.0
    %6028 = vst [vmem:[#allocation3 + $0x218] sm:$0xff] 0.0
    %6029 = vst [vmem:[#allocation3 + $0x220] sm:$0x3] 0.0
    %6030 = vst [vmem:[#allocation3 + $0x228] sm:$0xff] 0.0
    %6031 = vst [vmem:[#allocation3 + $0x230] sm:$0xff] 0.0
    %6032 = vst [vmem:[#allocation3 + $0x238] sm:$0x3] 0.0
    %6033 = vst [vmem:[#allocation3 + $0x240] sm:$0xff] 0.0
    %6034 = vst [vmem:[#allocation3 + $0x248] sm:$0xff] 0.0
    %6035 = vst [vmem:[#allocation3 + $0x250] sm:$0x3] 0.0
    %6036 = vst [vmem:[#allocation3 + $0x258] sm:$0xff] 0.0
    %6037 = vst [vmem:[#allocation3 + $0x260] sm:$0xff] 0.0
    %6038 = vst [vmem:[#allocation3 + $0x268] sm:$0x3] 0.0
    %6039 = vst [vmem:[#allocation3 + $0x270] sm:$0xff] 0.0
    %6040 = vst [vmem:[#allocation3 + $0x278] sm:$0xff] 0.0
    %6041 = vst [vmem:[#allocation3 + $0x280] sm:$0x3] 0.0
    %6042 = vst [vmem:[#allocation3 + $0x288] sm:$0xff] 0.0
    %6043 = vst [vmem:[#allocation3 + $0x290] sm:$0xff] 0.0
    %6044 = vst [vmem:[#allocation3 + $0x298] sm:$0x3] 0.0
    %6045 = vst [vmem:[#allocation3 + $0x2a0] sm:$0xff] 0.0
    %6046 = vst [vmem:[#allocation3 + $0x2a8] sm:$0xff] 0.0
    %6047 = vst [vmem:[#allocation3 + $0x2b0] sm:$0x3] 0.0
    %6048 = vst [vmem:[#allocation3 + $0x2b8] sm:$0xff] 0.0
    %6049 = vst [vmem:[#allocation3 + $0x2c0] sm:$0xff] 0.0
    %6050 = vst [vmem:[#allocation3 + $0x2c8] sm:$0x3] 0.0
    %6051 = vst [vmem:[#allocation3 + $0x2d0] sm:$0xff] 0.0
    %6052 = vst [vmem:[#allocation3 + $0x2d8] sm:$0xff] 0.0
    %6053 = vst [vmem:[#allocation3 + $0x2e0] sm:$0x3] 0.0
    %6054 = vst [vmem:[#allocation3 + $0x2e8] sm:$0xff] 0.0
    %6055 = vst [vmem:[#allocation3 + $0x2f0] sm:$0xff] 0.0
    %6056 = vst [vmem:[#allocation3 + $0x2f8] sm:$0x3] 0.0
    %6057 = vst [vmem:[#allocation3 + $0x300] sm:$0xff] 0.0
    %6058 = vst [vmem:[#allocation3 + $0x308] sm:$0xff] 0.0
    %6059 = vst [vmem:[#allocation3 + $0x310] sm:$0x3] 0.0
    %6060 = vst [vmem:[#allocation3 + $0x318] sm:$0xff] 0.0
    %6061 = vst [vmem:[#allocation3 + $0x320] sm:$0xff] 0.0
    %6062 = vst [vmem:[#allocation3 + $0x328] sm:$0x3] 0.0
    %6063 = vst [vmem:[#allocation3 + $0x330] sm:$0xff] 0.0
    %6064 = vst [vmem:[#allocation3 + $0x338] sm:$0xff] 0.0
    %6065 = vst [vmem:[#allocation3 + $0x340] sm:$0x3] 0.0
    %6066 = vst [vmem:[#allocation3 + $0x348] sm:$0xff] 0.0
    %6067 = vst [vmem:[#allocation3 + $0x350] sm:$0xff] 0.0
    %6068 = vst [vmem:[#allocation3 + $0x358] sm:$0x3] 0.0
    %s6069 = scalar_lea.vmem [#allocation3], 24
    %6070 = vst [vmem:[%s6069 + $0x1] sm:$0xff] %v5897
    %6071 = vst [vmem:[%s6069 + $0x9] sm:$0xff] %v5898
    %6072 = vst [vmem:[%s6069 + $0x19] sm:$0xff] %v5899
    %6073 = vst [vmem:[%s6069 + $0x21] sm:$0xff] %v5900
    %6074 = vst [vmem:[%s6069 + $0x31] sm:$0xff] %v5901
    %6075 = vst [vmem:[%s6069 + $0x39] sm:$0xff] %v5902
    %6076 = vst [vmem:[%s6069 + $0x49] sm:$0xff] %v5903
    %6077 = vst [vmem:[%s6069 + $0x51] sm:$0xff] %v5904
    %6078 = vst [vmem:[%s6069 + $0x61] sm:$0xff] %v5905
    %6079 = vst [vmem:[%s6069 + $0x69] sm:$0xff] %v5906
    %6080 = vst [vmem:[%s6069 + $0x79] sm:$0xff] %v5907
    %6081 = vst [vmem:[%s6069 + $0x81] sm:$0xff] %v5908
    %6082 = vst [vmem:[%s6069 + $0x91] sm:$0xff] %v5909
    %6083 = vst [vmem:[%s6069 + $0x99] sm:$0xff] %v5910
    %6084 = vst [vmem:[%s6069 + $0xa9] sm:$0xff] %v5911
    %6085 = vst [vmem:[%s6069 + $0xb1] sm:$0xff] %v5912
    %6086 = vst [vmem:[%s6069 + $0xc1] sm:$0xff] %v5913
    %6087 = vst [vmem:[%s6069 + $0xc9] sm:$0xff] %v5914
    %6088 = vst [vmem:[%s6069 + $0xd9] sm:$0xff] %v5915
    %6089 = vst [vmem:[%s6069 + $0xe1] sm:$0xff] %v5916
    %6090 = vst [vmem:[%s6069 + $0xf1] sm:$0xff] %v5917
    %6091 = vst [vmem:[%s6069 + $0xf9] sm:$0xff] %v5918
    %6092 = vst [vmem:[%s6069 + $0x109] sm:$0xff] %v5919
    %6093 = vst [vmem:[%s6069 + $0x111] sm:$0xff] %v5920
    %6094 = vst [vmem:[%s6069 + $0x121] sm:$0xff] %v5921
    %6095 = vst [vmem:[%s6069 + $0x129] sm:$0xff] %v5922
    %6096 = vst [vmem:[%s6069 + $0x139] sm:$0xff] %v5923
    %6097 = vst [vmem:[%s6069 + $0x141] sm:$0xff] %v5924
    %6098 = vst [vmem:[%s6069 + $0x151] sm:$0xff] %v5925
    %6099 = vst [vmem:[%s6069 + $0x159] sm:$0xff] %v5926
    %6100 = vst [vmem:[%s6069 + $0x169] sm:$0xff] %v5927
    %6101 = vst [vmem:[%s6069 + $0x171] sm:$0xff] %v5928
    %6102 = vst [vmem:[%s6069 + $0x1b1] sm:$0xff] %v5929
    %6103 = vst [vmem:[%s6069 + $0x1b9] sm:$0xff] %v5930
    %6104 = vst [vmem:[%s6069 + $0x1c9] sm:$0xff] %v5931
    %6105 = vst [vmem:[%s6069 + $0x1d1] sm:$0xff] %v5932
    %6106 = vst [vmem:[%s6069 + $0x1e1] sm:$0xff] %v5933
    %6107 = vst [vmem:[%s6069 + $0x1e9] sm:$0xff] %v5934
    %6108 = vst [vmem:[%s6069 + $0x1f9] sm:$0xff] %v5935
    %6109 = vst [vmem:[%s6069 + $0x201] sm:$0xff] %v5936
    %6110 = vst [vmem:[%s6069 + $0x211] sm:$0xff] %v5937
    %6111 = vst [vmem:[%s6069 + $0x219] sm:$0xff] %v5938
    %6112 = vst [vmem:[%s6069 + $0x229] sm:$0xff] %v5939
    %6113 = vst [vmem:[%s6069 + $0x231] sm:$0xff] %v5940
    %6114 = vst [vmem:[%s6069 + $0x241] sm:$0xff] %v5941
    %6115 = vst [vmem:[%s6069 + $0x249] sm:$0xff] %v5942
    %6116 = vst [vmem:[%s6069 + $0x259] sm:$0xff] %v5943
    %6117 = vst [vmem:[%s6069 + $0x261] sm:$0xff] %v5944
    %6118 = vst [vmem:[%s6069 + $0x271] sm:$0xff] %v5945
    %6119 = vst [vmem:[%s6069 + $0x279] sm:$0xff] %v5946
    %6120 = vst [vmem:[%s6069 + $0x289] sm:$0xff] %v5947
    %6121 = vst [vmem:[%s6069 + $0x291] sm:$0xff] %v5948
    %6122 = vst [vmem:[%s6069 + $0x2a1] sm:$0xff] %v5949
    %6123 = vst [vmem:[%s6069 + $0x2a9] sm:$0xff] %v5950
    %6124 = vst [vmem:[%s6069 + $0x2b9] sm:$0xff] %v5951
    %6125 = vst [vmem:[%s6069 + $0x2c1] sm:$0xff] %v5952
    %6126 = vst [vmem:[%s6069 + $0x2d1] sm:$0xff] %v5953
    %6127 = vst [vmem:[%s6069 + $0x2d9] sm:$0xff] %v5954
    %6128 = vst [vmem:[%s6069 + $0x2e9] sm:$0xff] %v5955
    %6129 = vst [vmem:[%s6069 + $0x2f1] sm:$0xff] %v5956
    %6130 = vst [vmem:[%s6069 + $0x301] sm:$0xff] %v5957
    %6131 = vst [vmem:[%s6069 + $0x309] sm:$0xff] %v5958
    %6132 = vst [vmem:[%s6069 + $0x319] sm:$0xff] %v5959
    %6133 = vst [vmem:[%s6069 + $0x321] sm:$0xff] %v5960
    %v6134 = vld [vmem:[#allocation3] sm:$0xff]
    %v6135 = vld [vmem:[#allocation3 + $0x8] sm:$0xff]
    %v6136 = vld [vmem:[#allocation3 + $0x18] sm:$0xff]
    %v6137 = vld [vmem:[#allocation3 + $0x20] sm:$0xff]
    %v6138 = vld [vmem:[#allocation3 + $0x30] sm:$0xff]
    %v6139 = vld [vmem:[#allocation3 + $0x38] sm:$0xff]
    %v6140 = vld [vmem:[#allocation3 + $0x48] sm:$0xff]
    %v6141 = vld [vmem:[#allocation3 + $0x50] sm:$0xff]
    %v6142 = vld [vmem:[#allocation3 + $0x60] sm:$0xff]
    %v6143 = vld [vmem:[#allocation3 + $0x68] sm:$0xff]
    %v6144 = vld [vmem:[#allocation3 + $0x78] sm:$0xff]
    %v6145 = vld [vmem:[#allocation3 + $0x80] sm:$0xff]
    %v6146 = vld [vmem:[#allocation3 + $0x90] sm:$0xff]
    %v6147 = vld [vmem:[#allocation3 + $0x98] sm:$0xff]
    %v6148 = vld [vmem:[#allocation3 + $0xa8] sm:$0xff]
    %v6149 = vld [vmem:[#allocation3 + $0xb0] sm:$0xff]
    %v6150 = vld [vmem:[#allocation3 + $0xc0] sm:$0xff]
    %v6151 = vld [vmem:[#allocation3 + $0xc8] sm:$0xff]
    %v6152 = vld [vmem:[#allocation3 + $0xd8] sm:$0xff]
    %v6153 = vld [vmem:[#allocation3 + $0xe0] sm:$0xff]
    %v6154 = vld [vmem:[#allocation3 + $0xf0] sm:$0xff]
    %v6155 = vld [vmem:[#allocation3 + $0xf8] sm:$0xff]
    %v6156 = vld [vmem:[#allocation3 + $0x108] sm:$0xff]
    %v6157 = vld [vmem:[#allocation3 + $0x110] sm:$0xff]
    %v6158 = vld [vmem:[#allocation3 + $0x120] sm:$0xff]
    %v6159 = vld [vmem:[#allocation3 + $0x128] sm:$0xff]
    %v6160 = vld [vmem:[#allocation3 + $0x138] sm:$0xff]
    %v6161 = vld [vmem:[#allocation3 + $0x140] sm:$0xff]
    %v6162 = vld [vmem:[#allocation3 + $0x150] sm:$0xff]
    %v6163 = vld [vmem:[#allocation3 + $0x158] sm:$0xff]
    %v6164 = vld [vmem:[#allocation3 + $0x168] sm:$0xff]
    %v6165 = vld [vmem:[#allocation3 + $0x170] sm:$0xff]
    %v6166 = vld [vmem:[#allocation3 + $0x1b0] sm:$0xff]
    %v6167 = vld [vmem:[#allocation3 + $0x1b8] sm:$0xff]
    %v6168 = vld [vmem:[#allocation3 + $0x1c8] sm:$0xff]
    %v6169 = vld [vmem:[#allocation3 + $0x1d0] sm:$0xff]
    %v6170 = vld [vmem:[#allocation3 + $0x1e0] sm:$0xff]
    %v6171 = vld [vmem:[#allocation3 + $0x1e8] sm:$0xff]
    %v6172 = vld [vmem:[#allocation3 + $0x1f8] sm:$0xff]
    %v6173 = vld [vmem:[#allocation3 + $0x200] sm:$0xff]
    %v6174 = vld [vmem:[#allocation3 + $0x210] sm:$0xff]
    %v6175 = vld [vmem:[#allocation3 + $0x218] sm:$0xff]
    %v6176 = vld [vmem:[#allocation3 + $0x228] sm:$0xff]
    %v6177 = vld [vmem:[#allocation3 + $0x230] sm:$0xff]
    %v6178 = vld [vmem:[#allocation3 + $0x240] sm:$0xff]
    %v6179 = vld [vmem:[#allocation3 + $0x248] sm:$0xff]
    %v6180 = vld [vmem:[#allocation3 + $0x258] sm:$0xff]
    %v6181 = vld [vmem:[#allocation3 + $0x260] sm:$0xff]
    %v6182 = vld [vmem:[#allocation3 + $0x270] sm:$0xff]
    %v6183 = vld [vmem:[#allocation3 + $0x278] sm:$0xff]
    %v6184 = vld [vmem:[#allocation3 + $0x288] sm:$0xff]
    %v6185 = vld [vmem:[#allocation3 + $0x290] sm:$0xff]
    %v6186 = vld [vmem:[#allocation3 + $0x2a0] sm:$0xff]
    %v6187 = vld [vmem:[#allocation3 + $0x2a8] sm:$0xff]
    %v6188 = vld [vmem:[#allocation3 + $0x2b8] sm:$0xff]
    %v6189 = vld [vmem:[#allocation3 + $0x2c0] sm:$0xff]
    %v6190 = vld [vmem:[#allocation3 + $0x2d0] sm:$0xff]
    %v6191 = vld [vmem:[#allocation3 + $0x2d8] sm:$0xff]
    %v6192 = vld [vmem:[#allocation3 + $0x2e8] sm:$0xff]
    %v6193 = vld [vmem:[#allocation3 + $0x2f0] sm:$0xff]
    %v6194 = vld [vmem:[#allocation3 + $0x300] sm:$0xff]
    %v6195 = vld [vmem:[#allocation3 + $0x308] sm:$0xff]
    %v6196 = vld [vmem:[#allocation3 + $0x318] sm:$0xff]
    %v6197 = vld [vmem:[#allocation3 + $0x320] sm:$0xff]
    %v6198 = vpack.c.bf16 %v6134, %v6134
    %v6199 = vpack.c.bf16 %v6135, %v6135
    %v6200 = vpack.c.bf16 %v6136, %v6136
    %v6201 = vpack.c.bf16 %v6137, %v6137
    %v6202 = vpack.c.bf16 %v6138, %v6138
    %v6203 = vpack.c.bf16 %v6139, %v6139
    %v6204 = vpack.c.bf16 %v6140, %v6140
    %v6205 = vpack.c.bf16 %v6141, %v6141
    %v6206 = vpack.c.bf16 %v6142, %v6142
    %v6207 = vpack.c.bf16 %v6143, %v6143
    %v6208 = vpack.c.bf16 %v6144, %v6144
    %v6209 = vpack.c.bf16 %v6145, %v6145
    %v6210 = vpack.c.bf16 %v6146, %v6146
    %v6211 = vpack.c.bf16 %v6147, %v6147
    %v6212 = vpack.c.bf16 %v6148, %v6148
    %v6213 = vpack.c.bf16 %v6149, %v6149
    %v6214 = vpack.c.bf16 %v6150, %v6150
    %v6215 = vpack.c.bf16 %v6151, %v6151
    %v6216 = vpack.c.bf16 %v6152, %v6152
    %v6217 = vpack.c.bf16 %v6153, %v6153
    %v6218 = vpack.c.bf16 %v6154, %v6154
    %v6219 = vpack.c.bf16 %v6155, %v6155
    %v6220 = vpack.c.bf16 %v6156, %v6156
    %v6221 = vpack.c.bf16 %v6157, %v6157
    %v6222 = vpack.c.bf16 %v6158, %v6158
    %v6223 = vpack.c.bf16 %v6159, %v6159
    %v6224 = vpack.c.bf16 %v6160, %v6160
    %v6225 = vpack.c.bf16 %v6161, %v6161
    %v6226 = vpack.c.bf16 %v6162, %v6162
    %v6227 = vpack.c.bf16 %v6163, %v6163
    %v6228 = vpack.c.bf16 %v6164, %v6164
    %v6229 = vpack.c.bf16 %v6165, %v6165
    %v6230 = vpack.c.bf16 %v6166, %v6166
    %v6231 = vpack.c.bf16 %v6167, %v6167
    %v6232 = vpack.c.bf16 %v6168, %v6168
    %v6233 = vpack.c.bf16 %v6169, %v6169
    %v6234 = vpack.c.bf16 %v6170, %v6170
    %v6235 = vpack.c.bf16 %v6171, %v6171
    %v6236 = vpack.c.bf16 %v6172, %v6172
    %v6237 = vpack.c.bf16 %v6173, %v6173
    %v6238 = vpack.c.bf16 %v6174, %v6174
    %v6239 = vpack.c.bf16 %v6175, %v6175
    %v6240 = vpack.c.bf16 %v6176, %v6176
    %v6241 = vpack.c.bf16 %v6177, %v6177
    %v6242 = vpack.c.bf16 %v6178, %v6178
    %v6243 = vpack.c.bf16 %v6179, %v6179
    %v6244 = vpack.c.bf16 %v6180, %v6180
    %v6245 = vpack.c.bf16 %v6181, %v6181
    %v6246 = vpack.c.bf16 %v6182, %v6182
    %v6247 = vpack.c.bf16 %v6183, %v6183
    %v6248 = vpack.c.bf16 %v6184, %v6184
    %v6249 = vpack.c.bf16 %v6185, %v6185
    %v6250 = vpack.c.bf16 %v6186, %v6186
    %v6251 = vpack.c.bf16 %v6187, %v6187
    %v6252 = vpack.c.bf16 %v6188, %v6188
    %v6253 = vpack.c.bf16 %v6189, %v6189
    %v6254 = vpack.c.bf16 %v6190, %v6190
    %v6255 = vpack.c.bf16 %v6191, %v6191
    %v6256 = vpack.c.bf16 %v6192, %v6192
    %v6257 = vpack.c.bf16 %v6193, %v6193
    %v6258 = vpack.c.bf16 %v6194, %v6194
    %v6259 = vpack.c.bf16 %v6195, %v6195
    %v6260 = vpack.c.bf16 %v6196, %v6196
    %v6261 = vpack.c.bf16 %v6197, %v6197
    %6262 = vst [vmem:[#allocation5] sm:$0xf] %v6198
    %6263 = vst [vmem:[#allocation5 + $0x24] sm:$0xf] %v6199
    %6264 = vst [vmem:[#allocation5 + $0x48] sm:$0xf] %v6200
    %6265 = vst [vmem:[#allocation5 + $0x6c] sm:$0xf] %v6201
    %6266 = vst [vmem:[#allocation5 + $0x90] sm:$0xf] %v6202
    %6267 = vst [vmem:[#allocation5 + $0xb4] sm:$0xf] %v6203
    %6268 = vst [vmem:[#allocation5 + $0xd8] sm:$0xf] %v6204
    %6269 = vst [vmem:[#allocation5 + $0xfc] sm:$0xf] %v6205
    %6270 = vst [vmem:[#allocation5 + $0x120] sm:$0xf] %v6206
    %6271 = vst [vmem:[#allocation5 + $0x144] sm:$0xf] %v6207
    %6272 = vst [vmem:[#allocation5 + $0x168] sm:$0xf] %v6208
    %6273 = vst [vmem:[#allocation5 + $0x18c] sm:$0xf] %v6209
    %6274 = vst [vmem:[#allocation5 + $0x1b0] sm:$0xf] %v6210
    %6275 = vst [vmem:[#allocation5 + $0x1d4] sm:$0xf] %v6211
    %6276 = vst [vmem:[#allocation5 + $0x1f8] sm:$0xf] %v6212
    %6277 = vst [vmem:[#allocation5 + $0x21c] sm:$0xf] %v6213
    %6278 = vst [vmem:[#allocation5 + $0x240] sm:$0xf] %v6214
    %6279 = vst [vmem:[#allocation5 + $0x264] sm:$0xf] %v6215
    %6280 = vst [vmem:[#allocation5 + $0x288] sm:$0xf] %v6216
    %6281 = vst [vmem:[#allocation5 + $0x2ac] sm:$0xf] %v6217
    %6282 = vst [vmem:[#allocation5 + $0x2d0] sm:$0xf] %v6218
    %6283 = vst [vmem:[#allocation5 + $0x2f4] sm:$0xf] %v6219
    %6284 = vst [vmem:[#allocation5 + $0x318] sm:$0xf] %v6220
    %6285 = vst [vmem:[#allocation5 + $0x33c] sm:$0xf] %v6221
    %6286 = vst [vmem:[#allocation5 + $0x360] sm:$0xf] %v6222
    %6287 = vst [vmem:[#allocation5 + $0x384] sm:$0xf] %v6223
    %6288 = vst [vmem:[#allocation5 + $0x3a8] sm:$0xf] %v6224
    %6289 = vst [vmem:[#allocation5 + $0x3cc] sm:$0xf] %v6225
    %6290 = vst [vmem:[#allocation5 + $0x3f0] sm:$0xf] %v6226
    %6291 = vst [vmem:[#allocation5 + $0x414] sm:$0xf] %v6227
    %6292 = vst [vmem:[#allocation5 + $0x438] sm:$0xf] %v6228
    %6293 = vst [vmem:[#allocation5 + $0x45c] sm:$0xf] %v6229
    %6294 = vst [vmem:[#allocation5 + $0x480] sm:$0xf] %v6230
    %6295 = vst [vmem:[#allocation5 + $0x4a4] sm:$0xf] %v6231
    %6296 = vst [vmem:[#allocation5 + $0x4c8] sm:$0xf] %v6232
    %6297 = vst [vmem:[#allocation5 + $0x4ec] sm:$0xf] %v6233
    %6298 = vst [vmem:[#allocation5 + $0x510] sm:$0xf] %v6234
    %6299 = vst [vmem:[#allocation5 + $0x534] sm:$0xf] %v6235
    %6300 = vst [vmem:[#allocation5 + $0x558] sm:$0xf] %v6236
    %6301 = vst [vmem:[#allocation5 + $0x57c] sm:$0xf] %v6237
    %6302 = vst [vmem:[#allocation5 + $0x5a0] sm:$0xf] %v6238
    %6303 = vst [vmem:[#allocation5 + $0x5c4] sm:$0xf] %v6239
    %6304 = vst [vmem:[#allocation5 + $0x5e8] sm:$0xf] %v6240
    %6305 = vst [vmem:[#allocation5 + $0x60c] sm:$0xf] %v6241
    %6306 = vst [vmem:[#allocation5 + $0x630] sm:$0xf] %v6242
    %6307 = vst [vmem:[#allocation5 + $0x654] sm:$0xf] %v6243
    %6308 = vst [vmem:[#allocation5 + $0x678] sm:$0xf] %v6244
    %6309 = vst [vmem:[#allocation5 + $0x69c] sm:$0xf] %v6245
    %6310 = vst [vmem:[#allocation5 + $0x6c0] sm:$0xf] %v6246
    %6311 = vst [vmem:[#allocation5 + $0x6e4] sm:$0xf] %v6247
    %6312 = vst [vmem:[#allocation5 + $0x708] sm:$0xf] %v6248
    %6313 = vst [vmem:[#allocation5 + $0x72c] sm:$0xf] %v6249
    %6314 = vst [vmem:[#allocation5 + $0x750] sm:$0xf] %v6250
    %6315 = vst [vmem:[#allocation5 + $0x774] sm:$0xf] %v6251
    %6316 = vst [vmem:[#allocation5 + $0x798] sm:$0xf] %v6252
    %6317 = vst [vmem:[#allocation5 + $0x7bc] sm:$0xf] %v6253
    %6318 = vst [vmem:[#allocation5 + $0x7e0] sm:$0xf] %v6254
    %6319 = vst [vmem:[#allocation5 + $0x804] sm:$0xf] %v6255
    %6320 = vst [vmem:[#allocation5 + $0x828] sm:$0xf] %v6256
    %6321 = vst [vmem:[#allocation5 + $0x84c] sm:$0xf] %v6257
    %6322 = vst [vmem:[#allocation5 + $0x870] sm:$0xf] %v6258
    %6323 = vst [vmem:[#allocation5 + $0x894] sm:$0xf] %v6259
    %6324 = vst [vmem:[#allocation5 + $0x8b8] sm:$0xf] %v6260
    %6325 = vst [vmem:[#allocation5 + $0x8dc] sm:$0xf] %v6261
    %v6326 = vld [vmem:[#allocation3 + $0x1] sm:$0xff]
    %v6327 = vld [vmem:[#allocation3 + $0x9] sm:$0xff]
    %v6328 = vld [vmem:[#allocation3 + $0x19] sm:$0xff]
    %v6329 = vld [vmem:[#allocation3 + $0x21] sm:$0xff]
    %v6330 = vld [vmem:[#allocation3 + $0x31] sm:$0xff]
    %v6331 = vld [vmem:[#allocation3 + $0x39] sm:$0xff]
    %v6332 = vld [vmem:[#allocation3 + $0x49] sm:$0xff]
    %v6333 = vld [vmem:[#allocation3 + $0x51] sm:$0xff]
    %v6334 = vld [vmem:[#allocation3 + $0x61] sm:$0xff]
    %v6335 = vld [vmem:[#allocation3 + $0x69] sm:$0xff]
    %v6336 = vld [vmem:[#allocation3 + $0x79] sm:$0xff]
    %v6337 = vld [vmem:[#allocation3 + $0x81] sm:$0xff]
    %v6338 = vld [vmem:[#allocation3 + $0x91] sm:$0xff]
    %v6339 = vld [vmem:[#allocation3 + $0x99] sm:$0xff]
    %v6340 = vld [vmem:[#allocation3 + $0xa9] sm:$0xff]
    %v6341 = vld [vmem:[#allocation3 + $0xb1] sm:$0xff]
    %v6342 = vld [vmem:[#allocation3 + $0xc1] sm:$0xff]
    %v6343 = vld [vmem:[#allocation3 + $0xc9] sm:$0xff]
    %v6344 = vld [vmem:[#allocation3 + $0xd9] sm:$0xff]
    %v6345 = vld [vmem:[#allocation3 + $0xe1] sm:$0xff]
    %v6346 = vld [vmem:[#allocation3 + $0xf1] sm:$0xff]
    %v6347 = vld [vmem:[#allocation3 + $0xf9] sm:$0xff]
    %v6348 = vld [vmem:[#allocation3 + $0x109] sm:$0xff]
    %v6349 = vld [vmem:[#allocation3 + $0x111] sm:$0xff]
    %v6350 = vld [vmem:[#allocation3 + $0x121] sm:$0xff]
    %v6351 = vld [vmem:[#allocation3 + $0x129] sm:$0xff]
    %v6352 = vld [vmem:[#allocation3 + $0x139] sm:$0xff]
    %v6353 = vld [vmem:[#allocation3 + $0x141] sm:$0xff]
    %v6354 = vld [vmem:[#allocation3 + $0x151] sm:$0xff]
    %v6355 = vld [vmem:[#allocation3 + $0x159] sm:$0xff]
    %v6356 = vld [vmem:[#allocation3 + $0x169] sm:$0xff]
    %v6357 = vld [vmem:[#allocation3 + $0x171] sm:$0xff]
    %v6358 = vld [vmem:[#allocation3 + $0x1b1] sm:$0xff]
    %v6359 = vld [vmem:[#allocation3 + $0x1b9] sm:$0xff]
    %v6360 = vld [vmem:[#allocation3 + $0x1c9] sm:$0xff]
    %v6361 = vld [vmem:[#allocation3 + $0x1d1] sm:$0xff]
    %v6362 = vld [vmem:[#allocation3 + $0x1e1] sm:$0xff]
    %v6363 = vld [vmem:[#allocation3 + $0x1e9] sm:$0xff]
    %v6364 = vld [vmem:[#allocation3 + $0x1f9] sm:$0xff]
    %v6365 = vld [vmem:[#allocation3 + $0x201] sm:$0xff]
    %v6366 = vld [vmem:[#allocation3 + $0x211] sm:$0xff]
    %v6367 = vld [vmem:[#allocation3 + $0x219] sm:$0xff]
    %v6368 = vld [vmem:[#allocation3 + $0x229] sm:$0xff]
    %v6369 = vld [vmem:[#allocation3 + $0x231] sm:$0xff]
    %v6370 = vld [vmem:[#allocation3 + $0x241] sm:$0xff]
    %v6371 = vld [vmem:[#allocation3 + $0x249] sm:$0xff]
    %v6372 = vld [vmem:[#allocation3 + $0x259] sm:$0xff]
    %v6373 = vld [vmem:[#allocation3 + $0x261] sm:$0xff]
    %v6374 = vld [vmem:[#allocation3 + $0x271] sm:$0xff]
    %v6375 = vld [vmem:[#allocation3 + $0x279] sm:$0xff]
    %v6376 = vld [vmem:[#allocation3 + $0x289] sm:$0xff]
    %v6377 = vld [vmem:[#allocation3 + $0x291] sm:$0xff]
    %v6378 = vld [vmem:[#allocation3 + $0x2a1] sm:$0xff]
    %v6379 = vld [vmem:[#allocation3 + $0x2a9] sm:$0xff]
    %v6380 = vld [vmem:[#allocation3 + $0x2b9] sm:$0xff]
    %v6381 = vld [vmem:[#allocation3 + $0x2c1] sm:$0xff]
    %v6382 = vld [vmem:[#allocation3 + $0x2d1] sm:$0xff]
    %v6383 = vld [vmem:[#allocation3 + $0x2d9] sm:$0xff]
    %v6384 = vld [vmem:[#allocation3 + $0x2e9] sm:$0xff]
    %v6385 = vld [vmem:[#allocation3 + $0x2f1] sm:$0xff]
    %v6386 = vld [vmem:[#allocation3 + $0x301] sm:$0xff]
    %v6387 = vld [vmem:[#allocation3 + $0x309] sm:$0xff]
    %v6388 = vld [vmem:[#allocation3 + $0x319] sm:$0xff]
    %v6389 = vld [vmem:[#allocation3 + $0x321] sm:$0xff]
    %v6390 = vpack.c.bf16 %v6326, %v6326
    %v6391 = vpack.c.bf16 %v6327, %v6327
    %v6392 = vpack.c.bf16 %v6328, %v6328
    %v6393 = vpack.c.bf16 %v6329, %v6329
    %v6394 = vpack.c.bf16 %v6330, %v6330
    %v6395 = vpack.c.bf16 %v6331, %v6331
    %v6396 = vpack.c.bf16 %v6332, %v6332
    %v6397 = vpack.c.bf16 %v6333, %v6333
    %v6398 = vpack.c.bf16 %v6334, %v6334
    %v6399 = vpack.c.bf16 %v6335, %v6335
    %v6400 = vpack.c.bf16 %v6336, %v6336
    %v6401 = vpack.c.bf16 %v6337, %v6337
    %v6402 = vpack.c.bf16 %v6338, %v6338
    %v6403 = vpack.c.bf16 %v6339, %v6339
    %v6404 = vpack.c.bf16 %v6340, %v6340
    %v6405 = vpack.c.bf16 %v6341, %v6341
    %v6406 = vpack.c.bf16 %v6342, %v6342
    %v6407 = vpack.c.bf16 %v6343, %v6343
    %v6408 = vpack.c.bf16 %v6344, %v6344
    %v6409 = vpack.c.bf16 %v6345, %v6345
    %v6410 = vpack.c.bf16 %v6346, %v6346
    %v6411 = vpack.c.bf16 %v6347, %v6347
    %v6412 = vpack.c.bf16 %v6348, %v6348
    %v6413 = vpack.c.bf16 %v6349, %v6349
    %v6414 = vpack.c.bf16 %v6350, %v6350
    %v6415 = vpack.c.bf16 %v6351, %v6351
    %v6416 = vpack.c.bf16 %v6352, %v6352
    %v6417 = vpack.c.bf16 %v6353, %v6353
    %v6418 = vpack.c.bf16 %v6354, %v6354
    %v6419 = vpack.c.bf16 %v6355, %v6355
    %v6420 = vpack.c.bf16 %v6356, %v6356
    %v6421 = vpack.c.bf16 %v6357, %v6357
    %v6422 = vpack.c.bf16 %v6358, %v6358
    %v6423 = vpack.c.bf16 %v6359, %v6359
    %v6424 = vpack.c.bf16 %v6360, %v6360
    %v6425 = vpack.c.bf16 %v6361, %v6361
    %v6426 = vpack.c.bf16 %v6362, %v6362
    %v6427 = vpack.c.bf16 %v6363, %v6363
    %v6428 = vpack.c.bf16 %v6364, %v6364
    %v6429 = vpack.c.bf16 %v6365, %v6365
    %v6430 = vpack.c.bf16 %v6366, %v6366
    %v6431 = vpack.c.bf16 %v6367, %v6367
    %v6432 = vpack.c.bf16 %v6368, %v6368
    %v6433 = vpack.c.bf16 %v6369, %v6369
    %v6434 = vpack.c.bf16 %v6370, %v6370
    %v6435 = vpack.c.bf16 %v6371, %v6371
    %v6436 = vpack.c.bf16 %v6372, %v6372
    %v6437 = vpack.c.bf16 %v6373, %v6373
    %v6438 = vpack.c.bf16 %v6374, %v6374
    %v6439 = vpack.c.bf16 %v6375, %v6375
    %v6440 = vpack.c.bf16 %v6376, %v6376
    %v6441 = vpack.c.bf16 %v6377, %v6377
    %v6442 = vpack.c.bf16 %v6378, %v6378
    %v6443 = vpack.c.bf16 %v6379, %v6379
    %v6444 = vpack.c.bf16 %v6380, %v6380
    %v6445 = vpack.c.bf16 %v6381, %v6381
    %v6446 = vpack.c.bf16 %v6382, %v6382
    %v6447 = vpack.c.bf16 %v6383, %v6383
    %v6448 = vpack.c.bf16 %v6384, %v6384
    %v6449 = vpack.c.bf16 %v6385, %v6385
    %v6450 = vpack.c.bf16 %v6386, %v6386
    %v6451 = vpack.c.bf16 %v6387, %v6387
    %v6452 = vpack.c.bf16 %v6388, %v6388
    %v6453 = vpack.c.bf16 %v6389, %v6389
    %6454 = vst [vmem:[#allocation5 + $0x4] sm:$0xf] %v6390
    %6455 = vst [vmem:[#allocation5 + $0x28] sm:$0xf] %v6391
    %6456 = vst [vmem:[#allocation5 + $0x4c] sm:$0xf] %v6392
    %6457 = vst [vmem:[#allocation5 + $0x70] sm:$0xf] %v6393
    %6458 = vst [vmem:[#allocation5 + $0x94] sm:$0xf] %v6394
    %6459 = vst [vmem:[#allocation5 + $0xb8] sm:$0xf] %v6395
    %6460 = vst [vmem:[#allocation5 + $0xdc] sm:$0xf] %v6396
    %6461 = vst [vmem:[#allocation5 + $0x100] sm:$0xf] %v6397
    %6462 = vst [vmem:[#allocation5 + $0x124] sm:$0xf] %v6398
    %6463 = vst [vmem:[#allocation5 + $0x148] sm:$0xf] %v6399
    %6464 = vst [vmem:[#allocation5 + $0x16c] sm:$0xf] %v6400
    %6465 = vst [vmem:[#allocation5 + $0x190] sm:$0xf] %v6401
    %6466 = vst [vmem:[#allocation5 + $0x1b4] sm:$0xf] %v6402
    %6467 = vst [vmem:[#allocation5 + $0x1d8] sm:$0xf] %v6403
    %6468 = vst [vmem:[#allocation5 + $0x1fc] sm:$0xf] %v6404
    %6469 = vst [vmem:[#allocation5 + $0x220] sm:$0xf] %v6405
    %6470 = vst [vmem:[#allocation5 + $0x244] sm:$0xf] %v6406
    %6471 = vst [vmem:[#allocation5 + $0x268] sm:$0xf] %v6407
    %6472 = vst [vmem:[#allocation5 + $0x28c] sm:$0xf] %v6408
    %6473 = vst [vmem:[#allocation5 + $0x2b0] sm:$0xf] %v6409
    %6474 = vst [vmem:[#allocation5 + $0x2d4] sm:$0xf] %v6410
    %6475 = vst [vmem:[#allocation5 + $0x2f8] sm:$0xf] %v6411
    %6476 = vst [vmem:[#allocation5 + $0x31c] sm:$0xf] %v6412
    %6477 = vst [vmem:[#allocation5 + $0x340] sm:$0xf] %v6413
    %6478 = vst [vmem:[#allocation5 + $0x364] sm:$0xf] %v6414
    %6479 = vst [vmem:[#allocation5 + $0x388] sm:$0xf] %v6415
    %6480 = vst [vmem:[#allocation5 + $0x3ac] sm:$0xf] %v6416
    %6481 = vst [vmem:[#allocation5 + $0x3d0] sm:$0xf] %v6417
    %6482 = vst [vmem:[#allocation5 + $0x3f4] sm:$0xf] %v6418
    %6483 = vst [vmem:[#allocation5 + $0x418] sm:$0xf] %v6419
    %6484 = vst [vmem:[#allocation5 + $0x43c] sm:$0xf] %v6420
    %6485 = vst [vmem:[#allocation5 + $0x460] sm:$0xf] %v6421
    %6486 = vst [vmem:[#allocation5 + $0x484] sm:$0xf] %v6422
    %6487 = vst [vmem:[#allocation5 + $0x4a8] sm:$0xf] %v6423
    %6488 = vst [vmem:[#allocation5 + $0x4cc] sm:$0xf] %v6424
    %6489 = vst [vmem:[#allocation5 + $0x4f0] sm:$0xf] %v6425
    %6490 = vst [vmem:[#allocation5 + $0x514] sm:$0xf] %v6426
    %6491 = vst [vmem:[#allocation5 + $0x538] sm:$0xf] %v6427
    %6492 = vst [vmem:[#allocation5 + $0x55c] sm:$0xf] %v6428
    %6493 = vst [vmem:[#allocation5 + $0x580] sm:$0xf] %v6429
    %6494 = vst [vmem:[#allocation5 + $0x5a4] sm:$0xf] %v6430
    %6495 = vst [vmem:[#allocation5 + $0x5c8] sm:$0xf] %v6431
    %6496 = vst [vmem:[#allocation5 + $0x5ec] sm:$0xf] %v6432
    %6497 = vst [vmem:[#allocation5 + $0x610] sm:$0xf] %v6433
    %6498 = vst [vmem:[#allocation5 + $0x634] sm:$0xf] %v6434
    %6499 = vst [vmem:[#allocation5 + $0x658] sm:$0xf] %v6435
    %6500 = vst [vmem:[#allocation5 + $0x67c] sm:$0xf] %v6436
    %6501 = vst [vmem:[#allocation5 + $0x6a0] sm:$0xf] %v6437
    %6502 = vst [vmem:[#allocation5 + $0x6c4] sm:$0xf] %v6438
    %6503 = vst [vmem:[#allocation5 + $0x6e8] sm:$0xf] %v6439
    %6504 = vst [vmem:[#allocation5 + $0x70c] sm:$0xf] %v6440
    %6505 = vst [vmem:[#allocation5 + $0x730] sm:$0xf] %v6441
    %6506 = vst [vmem:[#allocation5 + $0x754] sm:$0xf] %v6442
    %6507 = vst [vmem:[#allocation5 + $0x778] sm:$0xf] %v6443
    %6508 = vst [vmem:[#allocation5 + $0x79c] sm:$0xf] %v6444
    %6509 = vst [vmem:[#allocation5 + $0x7c0] sm:$0xf] %v6445
    %6510 = vst [vmem:[#allocation5 + $0x7e4] sm:$0xf] %v6446
    %6511 = vst [vmem:[#allocation5 + $0x808] sm:$0xf] %v6447
    %6512 = vst [vmem:[#allocation5 + $0x82c] sm:$0xf] %v6448
    %6513 = vst [vmem:[#allocation5 + $0x850] sm:$0xf] %v6449
    %6514 = vst [vmem:[#allocation5 + $0x874] sm:$0xf] %v6450
    %6515 = vst [vmem:[#allocation5 + $0x898] sm:$0xf] %v6451
    %6516 = vst [vmem:[#allocation5 + $0x8bc] sm:$0xf] %v6452
    %6517 = vst [vmem:[#allocation5 + $0x8e0] sm:$0xf] %v6453
    %v6518 = vld [vmem:[#allocation3 + $0x2] sm:$0xff]
    %v6519 = vld [vmem:[#allocation3 + $0xa] sm:$0xff]
    %v6520 = vld [vmem:[#allocation3 + $0x1a] sm:$0xff]
    %v6521 = vld [vmem:[#allocation3 + $0x22] sm:$0xff]
    %v6522 = vld [vmem:[#allocation3 + $0x32] sm:$0xff]
    %v6523 = vld [vmem:[#allocation3 + $0x3a] sm:$0xff]
    %v6524 = vld [vmem:[#allocation3 + $0x4a] sm:$0xff]
    %v6525 = vld [vmem:[#allocation3 + $0x52] sm:$0xff]
    %v6526 = vld [vmem:[#allocation3 + $0x62] sm:$0xff]
    %v6527 = vld [vmem:[#allocation3 + $0x6a] sm:$0xff]
    %v6528 = vld [vmem:[#allocation3 + $0x7a] sm:$0xff]
    %v6529 = vld [vmem:[#allocation3 + $0x82] sm:$0xff]
    %v6530 = vld [vmem:[#allocation3 + $0x92] sm:$0xff]
    %v6531 = vld [vmem:[#allocation3 + $0x9a] sm:$0xff]
    %v6532 = vld [vmem:[#allocation3 + $0xaa] sm:$0xff]
    %v6533 = vld [vmem:[#allocation3 + $0xb2] sm:$0xff]
    %v6534 = vld [vmem:[#allocation3 + $0xc2] sm:$0xff]
    %v6535 = vld [vmem:[#allocation3 + $0xca] sm:$0xff]
    %v6536 = vld [vmem:[#allocation3 + $0xda] sm:$0xff]
    %v6537 = vld [vmem:[#allocation3 + $0xe2] sm:$0xff]
    %v6538 = vld [vmem:[#allocation3 + $0xf2] sm:$0xff]
    %v6539 = vld [vmem:[#allocation3 + $0xfa] sm:$0xff]
    %v6540 = vld [vmem:[#allocation3 + $0x10a] sm:$0xff]
    %v6541 = vld [vmem:[#allocation3 + $0x112] sm:$0xff]
    %v6542 = vld [vmem:[#allocation3 + $0x122] sm:$0xff]
    %v6543 = vld [vmem:[#allocation3 + $0x12a] sm:$0xff]
    %v6544 = vld [vmem:[#allocation3 + $0x13a] sm:$0xff]
    %v6545 = vld [vmem:[#allocation3 + $0x142] sm:$0xff]
    %v6546 = vld [vmem:[#allocation3 + $0x152] sm:$0xff]
    %v6547 = vld [vmem:[#allocation3 + $0x15a] sm:$0xff]
    %v6548 = vld [vmem:[#allocation3 + $0x16a] sm:$0xff]
    %v6549 = vld [vmem:[#allocation3 + $0x172] sm:$0xff]
    %v6550 = vld [vmem:[#allocation3 + $0x1b2] sm:$0xff]
    %v6551 = vld [vmem:[#allocation3 + $0x1ba] sm:$0xff]
    %v6552 = vld [vmem:[#allocation3 + $0x1ca] sm:$0xff]
    %v6553 = vld [vmem:[#allocation3 + $0x1d2] sm:$0xff]
    %v6554 = vld [vmem:[#allocation3 + $0x1e2] sm:$0xff]
    %v6555 = vld [vmem:[#allocation3 + $0x1ea] sm:$0xff]
    %v6556 = vld [vmem:[#allocation3 + $0x1fa] sm:$0xff]
    %v6557 = vld [vmem:[#allocation3 + $0x202] sm:$0xff]
    %v6558 = vld [vmem:[#allocation3 + $0x212] sm:$0xff]
    %v6559 = vld [vmem:[#allocation3 + $0x21a] sm:$0xff]
    %v6560 = vld [vmem:[#allocation3 + $0x22a] sm:$0xff]
    %v6561 = vld [vmem:[#allocation3 + $0x232] sm:$0xff]
    %v6562 = vld [vmem:[#allocation3 + $0x242] sm:$0xff]
    %v6563 = vld [vmem:[#allocation3 + $0x24a] sm:$0xff]
    %v6564 = vld [vmem:[#allocation3 + $0x25a] sm:$0xff]
    %v6565 = vld [vmem:[#allocation3 + $0x262] sm:$0xff]
    %v6566 = vld [vmem:[#allocation3 + $0x272] sm:$0xff]
    %v6567 = vld [vmem:[#allocation3 + $0x27a] sm:$0xff]
    %v6568 = vld [vmem:[#allocation3 + $0x28a] sm:$0xff]
    %v6569 = vld [vmem:[#allocation3 + $0x292] sm:$0xff]
    %v6570 = vld [vmem:[#allocation3 + $0x2a2] sm:$0xff]
    %v6571 = vld [vmem:[#allocation3 + $0x2aa] sm:$0xff]
    %v6572 = vld [vmem:[#allocation3 + $0x2ba] sm:$0xff]
    %v6573 = vld [vmem:[#allocation3 + $0x2c2] sm:$0xff]
    %v6574 = vld [vmem:[#allocation3 + $0x2d2] sm:$0xff]
    %v6575 = vld [vmem:[#allocation3 + $0x2da] sm:$0xff]
    %v6576 = vld [vmem:[#allocation3 + $0x2ea] sm:$0xff]
    %v6577 = vld [vmem:[#allocation3 + $0x2f2] sm:$0xff]
    %v6578 = vld [vmem:[#allocation3 + $0x302] sm:$0xff]
    %v6579 = vld [vmem:[#allocation3 + $0x30a] sm:$0xff]
    %v6580 = vld [vmem:[#allocation3 + $0x31a] sm:$0xff]
    %v6581 = vld [vmem:[#allocation3 + $0x322] sm:$0xff]
    %v6582 = vpack.c.bf16 %v6518, %v6518
    %v6583 = vpack.c.bf16 %v6519, %v6519
    %v6584 = vpack.c.bf16 %v6520, %v6520
    %v6585 = vpack.c.bf16 %v6521, %v6521
    %v6586 = vpack.c.bf16 %v6522, %v6522
    %v6587 = vpack.c.bf16 %v6523, %v6523
    %v6588 = vpack.c.bf16 %v6524, %v6524
    %v6589 = vpack.c.bf16 %v6525, %v6525
    %v6590 = vpack.c.bf16 %v6526, %v6526
    %v6591 = vpack.c.bf16 %v6527, %v6527
    %v6592 = vpack.c.bf16 %v6528, %v6528
    %v6593 = vpack.c.bf16 %v6529, %v6529
    %v6594 = vpack.c.bf16 %v6530, %v6530
    %v6595 = vpack.c.bf16 %v6531, %v6531
    %v6596 = vpack.c.bf16 %v6532, %v6532
    %v6597 = vpack.c.bf16 %v6533, %v6533
    %v6598 = vpack.c.bf16 %v6534, %v6534
    %v6599 = vpack.c.bf16 %v6535, %v6535
    %v6600 = vpack.c.bf16 %v6536, %v6536
    %v6601 = vpack.c.bf16 %v6537, %v6537
    %v6602 = vpack.c.bf16 %v6538, %v6538
    %v6603 = vpack.c.bf16 %v6539, %v6539
    %v6604 = vpack.c.bf16 %v6540, %v6540
    %v6605 = vpack.c.bf16 %v6541, %v6541
    %v6606 = vpack.c.bf16 %v6542, %v6542
    %v6607 = vpack.c.bf16 %v6543, %v6543
    %v6608 = vpack.c.bf16 %v6544, %v6544
    %v6609 = vpack.c.bf16 %v6545, %v6545
    %v6610 = vpack.c.bf16 %v6546, %v6546
    %v6611 = vpack.c.bf16 %v6547, %v6547
    %v6612 = vpack.c.bf16 %v6548, %v6548
    %v6613 = vpack.c.bf16 %v6549, %v6549
    %v6614 = vpack.c.bf16 %v6550, %v6550
    %v6615 = vpack.c.bf16 %v6551, %v6551
    %v6616 = vpack.c.bf16 %v6552, %v6552
    %v6617 = vpack.c.bf16 %v6553, %v6553
    %v6618 = vpack.c.bf16 %v6554, %v6554
    %v6619 = vpack.c.bf16 %v6555, %v6555
    %v6620 = vpack.c.bf16 %v6556, %v6556
    %v6621 = vpack.c.bf16 %v6557, %v6557
    %v6622 = vpack.c.bf16 %v6558, %v6558
    %v6623 = vpack.c.bf16 %v6559, %v6559
    %v6624 = vpack.c.bf16 %v6560, %v6560
    %v6625 = vpack.c.bf16 %v6561, %v6561
    %v6626 = vpack.c.bf16 %v6562, %v6562
    %v6627 = vpack.c.bf16 %v6563, %v6563
    %v6628 = vpack.c.bf16 %v6564, %v6564
    %v6629 = vpack.c.bf16 %v6565, %v6565
    %v6630 = vpack.c.bf16 %v6566, %v6566
    %v6631 = vpack.c.bf16 %v6567, %v6567
    %v6632 = vpack.c.bf16 %v6568, %v6568
    %v6633 = vpack.c.bf16 %v6569, %v6569
    %v6634 = vpack.c.bf16 %v6570, %v6570
    %v6635 = vpack.c.bf16 %v6571, %v6571
    %v6636 = vpack.c.bf16 %v6572, %v6572
    %v6637 = vpack.c.bf16 %v6573, %v6573
    %v6638 = vpack.c.bf16 %v6574, %v6574
    %v6639 = vpack.c.bf16 %v6575, %v6575
    %v6640 = vpack.c.bf16 %v6576, %v6576
    %v6641 = vpack.c.bf16 %v6577, %v6577
    %v6642 = vpack.c.bf16 %v6578, %v6578
    %v6643 = vpack.c.bf16 %v6579, %v6579
    %v6644 = vpack.c.bf16 %v6580, %v6580
    %v6645 = vpack.c.bf16 %v6581, %v6581
    %6646 = vst [vmem:[#allocation5 + $0x8] sm:$0xf] %v6582
    %6647 = vst [vmem:[#allocation5 + $0x2c] sm:$0xf] %v6583
    %6648 = vst [vmem:[#allocation5 + $0x50] sm:$0xf] %v6584
    %6649 = vst [vmem:[#allocation5 + $0x74] sm:$0xf] %v6585
    %6650 = vst [vmem:[#allocation5 + $0x98] sm:$0xf] %v6586
    %6651 = vst [vmem:[#allocation5 + $0xbc] sm:$0xf] %v6587
    %6652 = vst [vmem:[#allocation5 + $0xe0] sm:$0xf] %v6588
    %6653 = vst [vmem:[#allocation5 + $0x104] sm:$0xf] %v6589
    %6654 = vst [vmem:[#allocation5 + $0x128] sm:$0xf] %v6590
    %6655 = vst [vmem:[#allocation5 + $0x14c] sm:$0xf] %v6591
    %6656 = vst [vmem:[#allocation5 + $0x170] sm:$0xf] %v6592
    %6657 = vst [vmem:[#allocation5 + $0x194] sm:$0xf] %v6593
    %6658 = vst [vmem:[#allocation5 + $0x1b8] sm:$0xf] %v6594
    %6659 = vst [vmem:[#allocation5 + $0x1dc] sm:$0xf] %v6595
    %6660 = vst [vmem:[#allocation5 + $0x200] sm:$0xf] %v6596
    %6661 = vst [vmem:[#allocation5 + $0x224] sm:$0xf] %v6597
    %6662 = vst [vmem:[#allocation5 + $0x248] sm:$0xf] %v6598
    %6663 = vst [vmem:[#allocation5 + $0x26c] sm:$0xf] %v6599
    %6664 = vst [vmem:[#allocation5 + $0x290] sm:$0xf] %v6600
    %6665 = vst [vmem:[#allocation5 + $0x2b4] sm:$0xf] %v6601
    %6666 = vst [vmem:[#allocation5 + $0x2d8] sm:$0xf] %v6602
    %6667 = vst [vmem:[#allocation5 + $0x2fc] sm:$0xf] %v6603
    %6668 = vst [vmem:[#allocation5 + $0x320] sm:$0xf] %v6604
    %6669 = vst [vmem:[#allocation5 + $0x344] sm:$0xf] %v6605
    %6670 = vst [vmem:[#allocation5 + $0x368] sm:$0xf] %v6606
    %6671 = vst [vmem:[#allocation5 + $0x38c] sm:$0xf] %v6607
    %6672 = vst [vmem:[#allocation5 + $0x3b0] sm:$0xf] %v6608
    %6673 = vst [vmem:[#allocation5 + $0x3d4] sm:$0xf] %v6609
    %6674 = vst [vmem:[#allocation5 + $0x3f8] sm:$0xf] %v6610
    %6675 = vst [vmem:[#allocation5 + $0x41c] sm:$0xf] %v6611
    %6676 = vst [vmem:[#allocation5 + $0x440] sm:$0xf] %v6612
    %6677 = vst [vmem:[#allocation5 + $0x464] sm:$0xf] %v6613
    %6678 = vst [vmem:[#allocation5 + $0x488] sm:$0xf] %v6614
    %6679 = vst [vmem:[#allocation5 + $0x4ac] sm:$0xf] %v6615
    %6680 = vst [vmem:[#allocation5 + $0x4d0] sm:$0xf] %v6616
    %6681 = vst [vmem:[#allocation5 + $0x4f4] sm:$0xf] %v6617
    %6682 = vst [vmem:[#allocation5 + $0x518] sm:$0xf] %v6618
    %6683 = vst [vmem:[#allocation5 + $0x53c] sm:$0xf] %v6619
    %6684 = vst [vmem:[#allocation5 + $0x560] sm:$0xf] %v6620
    %6685 = vst [vmem:[#allocation5 + $0x584] sm:$0xf] %v6621
    %6686 = vst [vmem:[#allocation5 + $0x5a8] sm:$0xf] %v6622
    %6687 = vst [vmem:[#allocation5 + $0x5cc] sm:$0xf] %v6623
    %6688 = vst [vmem:[#allocation5 + $0x5f0] sm:$0xf] %v6624
    %6689 = vst [vmem:[#allocation5 + $0x614] sm:$0xf] %v6625
    %6690 = vst [vmem:[#allocation5 + $0x638] sm:$0xf] %v6626
    %6691 = vst [vmem:[#allocation5 + $0x65c] sm:$0xf] %v6627
    %6692 = vst [vmem:[#allocation5 + $0x680] sm:$0xf] %v6628
    %6693 = vst [vmem:[#allocation5 + $0x6a4] sm:$0xf] %v6629
    %6694 = vst [vmem:[#allocation5 + $0x6c8] sm:$0xf] %v6630
    %6695 = vst [vmem:[#allocation5 + $0x6ec] sm:$0xf] %v6631
    %6696 = vst [vmem:[#allocation5 + $0x710] sm:$0xf] %v6632
    %6697 = vst [vmem:[#allocation5 + $0x734] sm:$0xf] %v6633
    %6698 = vst [vmem:[#allocation5 + $0x758] sm:$0xf] %v6634
    %6699 = vst [vmem:[#allocation5 + $0x77c] sm:$0xf] %v6635
    %6700 = vst [vmem:[#allocation5 + $0x7a0] sm:$0xf] %v6636
    %6701 = vst [vmem:[#allocation5 + $0x7c4] sm:$0xf] %v6637
    %6702 = vst [vmem:[#allocation5 + $0x7e8] sm:$0xf] %v6638
    %6703 = vst [vmem:[#allocation5 + $0x80c] sm:$0xf] %v6639
    %6704 = vst [vmem:[#allocation5 + $0x830] sm:$0xf] %v6640
    %6705 = vst [vmem:[#allocation5 + $0x854] sm:$0xf] %v6641
    %6706 = vst [vmem:[#allocation5 + $0x878] sm:$0xf] %v6642
    %6707 = vst [vmem:[#allocation5 + $0x89c] sm:$0xf] %v6643
    %6708 = vst [vmem:[#allocation5 + $0x8c0] sm:$0xf] %v6644
    %6709 = vst [vmem:[#allocation5 + $0x8e4] sm:$0xf] %v6645
    %v6710 = vld [vmem:[%s6069] sm:$0xff]
    %v6711 = vld [vmem:[%s6069 + $0x8] sm:$0xff]
    %v6712 = vld [vmem:[%s6069 + $0x18] sm:$0xff]
    %v6713 = vld [vmem:[%s6069 + $0x20] sm:$0xff]
    %v6714 = vld [vmem:[%s6069 + $0x30] sm:$0xff]
    %v6715 = vld [vmem:[%s6069 + $0x38] sm:$0xff]
    %v6716 = vld [vmem:[%s6069 + $0x48] sm:$0xff]
    %v6717 = vld [vmem:[%s6069 + $0x50] sm:$0xff]
    %v6718 = vld [vmem:[%s6069 + $0x60] sm:$0xff]
    %v6719 = vld [vmem:[%s6069 + $0x68] sm:$0xff]
    %v6720 = vld [vmem:[%s6069 + $0x78] sm:$0xff]
    %v6721 = vld [vmem:[%s6069 + $0x80] sm:$0xff]
    %v6722 = vld [vmem:[%s6069 + $0x90] sm:$0xff]
    %v6723 = vld [vmem:[%s6069 + $0x98] sm:$0xff]
    %v6724 = vld [vmem:[%s6069 + $0xa8] sm:$0xff]
    %v6725 = vld [vmem:[%s6069 + $0xb0] sm:$0xff]
    %v6726 = vld [vmem:[%s6069 + $0xc0] sm:$0xff]
    %v6727 = vld [vmem:[%s6069 + $0xc8] sm:$0xff]
    %v6728 = vld [vmem:[%s6069 + $0xd8] sm:$0xff]
    %v6729 = vld [vmem:[%s6069 + $0xe0] sm:$0xff]
    %v6730 = vld [vmem:[%s6069 + $0xf0] sm:$0xff]
    %v6731 = vld [vmem:[%s6069 + $0xf8] sm:$0xff]
    %v6732 = vld [vmem:[%s6069 + $0x108] sm:$0xff]
    %v6733 = vld [vmem:[%s6069 + $0x110] sm:$0xff]
    %v6734 = vld [vmem:[%s6069 + $0x120] sm:$0xff]
    %v6735 = vld [vmem:[%s6069 + $0x128] sm:$0xff]
    %v6736 = vld [vmem:[%s6069 + $0x138] sm:$0xff]
    %v6737 = vld [vmem:[%s6069 + $0x140] sm:$0xff]
    %v6738 = vld [vmem:[%s6069 + $0x150] sm:$0xff]
    %v6739 = vld [vmem:[%s6069 + $0x158] sm:$0xff]
    %v6740 = vld [vmem:[%s6069 + $0x168] sm:$0xff]
    %v6741 = vld [vmem:[%s6069 + $0x170] sm:$0xff]
    %v6742 = vld [vmem:[%s6069 + $0x1b0] sm:$0xff]
    %v6743 = vld [vmem:[%s6069 + $0x1b8] sm:$0xff]
    %v6744 = vld [vmem:[%s6069 + $0x1c8] sm:$0xff]
    %v6745 = vld [vmem:[%s6069 + $0x1d0] sm:$0xff]
    %v6746 = vld [vmem:[%s6069 + $0x1e0] sm:$0xff]
    %v6747 = vld [vmem:[%s6069 + $0x1e8] sm:$0xff]
    %v6748 = vld [vmem:[%s6069 + $0x1f8] sm:$0xff]
    %v6749 = vld [vmem:[%s6069 + $0x200] sm:$0xff]
    %v6750 = vld [vmem:[%s6069 + $0x210] sm:$0xff]
    %v6751 = vld [vmem:[%s6069 + $0x218] sm:$0xff]
    %v6752 = vld [vmem:[%s6069 + $0x228] sm:$0xff]
    %v6753 = vld [vmem:[%s6069 + $0x230] sm:$0xff]
    %v6754 = vld [vmem:[%s6069 + $0x240] sm:$0xff]
    %v6755 = vld [vmem:[%s6069 + $0x248] sm:$0xff]
    %v6756 = vld [vmem:[%s6069 + $0x258] sm:$0xff]
    %v6757 = vld [vmem:[%s6069 + $0x260] sm:$0xff]
    %v6758 = vld [vmem:[%s6069 + $0x270] sm:$0xff]
    %v6759 = vld [vmem:[%s6069 + $0x278] sm:$0xff]
    %v6760 = vld [vmem:[%s6069 + $0x288] sm:$0xff]
    %v6761 = vld [vmem:[%s6069 + $0x290] sm:$0xff]
    %v6762 = vld [vmem:[%s6069 + $0x2a0] sm:$0xff]
    %v6763 = vld [vmem:[%s6069 + $0x2a8] sm:$0xff]
    %v6764 = vld [vmem:[%s6069 + $0x2b8] sm:$0xff]
    %v6765 = vld [vmem:[%s6069 + $0x2c0] sm:$0xff]
    %v6766 = vld [vmem:[%s6069 + $0x2d0] sm:$0xff]
    %v6767 = vld [vmem:[%s6069 + $0x2d8] sm:$0xff]
    %v6768 = vld [vmem:[%s6069 + $0x2e8] sm:$0xff]
    %v6769 = vld [vmem:[%s6069 + $0x2f0] sm:$0xff]
    %v6770 = vld [vmem:[%s6069 + $0x300] sm:$0xff]
    %v6771 = vld [vmem:[%s6069 + $0x308] sm:$0xff]
    %v6772 = vld [vmem:[%s6069 + $0x318] sm:$0xff]
    %v6773 = vld [vmem:[%s6069 + $0x320] sm:$0xff]
    %v6774 = vpack.c.bf16 %v6710, %v6710
    %v6775 = vpack.c.bf16 %v6711, %v6711
    %v6776 = vpack.c.bf16 %v6712, %v6712
    %v6777 = vpack.c.bf16 %v6713, %v6713
    %v6778 = vpack.c.bf16 %v6714, %v6714
    %v6779 = vpack.c.bf16 %v6715, %v6715
    %v6780 = vpack.c.bf16 %v6716, %v6716
    %v6781 = vpack.c.bf16 %v6717, %v6717
    %v6782 = vpack.c.bf16 %v6718, %v6718
    %v6783 = vpack.c.bf16 %v6719, %v6719
    %v6784 = vpack.c.bf16 %v6720, %v6720
    %v6785 = vpack.c.bf16 %v6721, %v6721
    %v6786 = vpack.c.bf16 %v6722, %v6722
    %v6787 = vpack.c.bf16 %v6723, %v6723
    %v6788 = vpack.c.bf16 %v6724, %v6724
    %v6789 = vpack.c.bf16 %v6725, %v6725
    %v6790 = vpack.c.bf16 %v6726, %v6726
    %v6791 = vpack.c.bf16 %v6727, %v6727
    %v6792 = vpack.c.bf16 %v6728, %v6728
    %v6793 = vpack.c.bf16 %v6729, %v6729
    %v6794 = vpack.c.bf16 %v6730, %v6730
    %v6795 = vpack.c.bf16 %v6731, %v6731
    %v6796 = vpack.c.bf16 %v6732, %v6732
    %v6797 = vpack.c.bf16 %v6733, %v6733
    %v6798 = vpack.c.bf16 %v6734, %v6734
    %v6799 = vpack.c.bf16 %v6735, %v6735
    %v6800 = vpack.c.bf16 %v6736, %v6736
    %v6801 = vpack.c.bf16 %v6737, %v6737
    %v6802 = vpack.c.bf16 %v6738, %v6738
    %v6803 = vpack.c.bf16 %v6739, %v6739
    %v6804 = vpack.c.bf16 %v6740, %v6740
    %v6805 = vpack.c.bf16 %v6741, %v6741
    %v6806 = vpack.c.bf16 %v6742, %v6742
    %v6807 = vpack.c.bf16 %v6743, %v6743
    %v6808 = vpack.c.bf16 %v6744, %v6744
    %v6809 = vpack.c.bf16 %v6745, %v6745
    %v6810 = vpack.c.bf16 %v6746, %v6746
    %v6811 = vpack.c.bf16 %v6747, %v6747
    %v6812 = vpack.c.bf16 %v6748, %v6748
    %v6813 = vpack.c.bf16 %v6749, %v6749
    %v6814 = vpack.c.bf16 %v6750, %v6750
    %v6815 = vpack.c.bf16 %v6751, %v6751
    %v6816 = vpack.c.bf16 %v6752, %v6752
    %v6817 = vpack.c.bf16 %v6753, %v6753
    %v6818 = vpack.c.bf16 %v6754, %v6754
    %v6819 = vpack.c.bf16 %v6755, %v6755
    %v6820 = vpack.c.bf16 %v6756, %v6756
    %v6821 = vpack.c.bf16 %v6757, %v6757
    %v6822 = vpack.c.bf16 %v6758, %v6758
    %v6823 = vpack.c.bf16 %v6759, %v6759
    %v6824 = vpack.c.bf16 %v6760, %v6760
    %v6825 = vpack.c.bf16 %v6761, %v6761
    %v6826 = vpack.c.bf16 %v6762, %v6762
    %v6827 = vpack.c.bf16 %v6763, %v6763
    %v6828 = vpack.c.bf16 %v6764, %v6764
    %v6829 = vpack.c.bf16 %v6765, %v6765
    %v6830 = vpack.c.bf16 %v6766, %v6766
    %v6831 = vpack.c.bf16 %v6767, %v6767
    %v6832 = vpack.c.bf16 %v6768, %v6768
    %v6833 = vpack.c.bf16 %v6769, %v6769
    %v6834 = vpack.c.bf16 %v6770, %v6770
    %v6835 = vpack.c.bf16 %v6771, %v6771
    %v6836 = vpack.c.bf16 %v6772, %v6772
    %v6837 = vpack.c.bf16 %v6773, %v6773
    %6838 = vst [vmem:[#allocation5 + $0xc] sm:$0xf] %v6774
    %6839 = vst [vmem:[#allocation5 + $0x30] sm:$0xf] %v6775
    %6840 = vst [vmem:[#allocation5 + $0x54] sm:$0xf] %v6776
    %6841 = vst [vmem:[#allocation5 + $0x78] sm:$0xf] %v6777
    %6842 = vst [vmem:[#allocation5 + $0x9c] sm:$0xf] %v6778
    %6843 = vst [vmem:[#allocation5 + $0xc0] sm:$0xf] %v6779
    %6844 = vst [vmem:[#allocation5 + $0xe4] sm:$0xf] %v6780
    %6845 = vst [vmem:[#allocation5 + $0x108] sm:$0xf] %v6781
    %6846 = vst [vmem:[#allocation5 + $0x12c] sm:$0xf] %v6782
    %6847 = vst [vmem:[#allocation5 + $0x150] sm:$0xf] %v6783
    %6848 = vst [vmem:[#allocation5 + $0x174] sm:$0xf] %v6784
    %6849 = vst [vmem:[#allocation5 + $0x198] sm:$0xf] %v6785
    %6850 = vst [vmem:[#allocation5 + $0x1bc] sm:$0xf] %v6786
    %6851 = vst [vmem:[#allocation5 + $0x1e0] sm:$0xf] %v6787
    %6852 = vst [vmem:[#allocation5 + $0x204] sm:$0xf] %v6788
    %6853 = vst [vmem:[#allocation5 + $0x228] sm:$0xf] %v6789
    %6854 = vst [vmem:[#allocation5 + $0x24c] sm:$0xf] %v6790
    %6855 = vst [vmem:[#allocation5 + $0x270] sm:$0xf] %v6791
    %6856 = vst [vmem:[#allocation5 + $0x294] sm:$0xf] %v6792
    %6857 = vst [vmem:[#allocation5 + $0x2b8] sm:$0xf] %v6793
    %6858 = vst [vmem:[#allocation5 + $0x2dc] sm:$0xf] %v6794
    %6859 = vst [vmem:[#allocation5 + $0x300] sm:$0xf] %v6795
    %6860 = vst [vmem:[#allocation5 + $0x324] sm:$0xf] %v6796
    %6861 = vst [vmem:[#allocation5 + $0x348] sm:$0xf] %v6797
    %6862 = vst [vmem:[#allocation5 + $0x36c] sm:$0xf] %v6798
    %6863 = vst [vmem:[#allocation5 + $0x390] sm:$0xf] %v6799
    %6864 = vst [vmem:[#allocation5 + $0x3b4] sm:$0xf] %v6800
    %6865 = vst [vmem:[#allocation5 + $0x3d8] sm:$0xf] %v6801
    %6866 = vst [vmem:[#allocation5 + $0x3fc] sm:$0xf] %v6802
    %6867 = vst [vmem:[#allocation5 + $0x420] sm:$0xf] %v6803
    %6868 = vst [vmem:[#allocation5 + $0x444] sm:$0xf] %v6804
    %6869 = vst [vmem:[#allocation5 + $0x468] sm:$0xf] %v6805
    %6870 = vst [vmem:[#allocation5 + $0x48c] sm:$0xf] %v6806
    %6871 = vst [vmem:[#allocation5 + $0x4b0] sm:$0xf] %v6807
    %6872 = vst [vmem:[#allocation5 + $0x4d4] sm:$0xf] %v6808
    %6873 = vst [vmem:[#allocation5 + $0x4f8] sm:$0xf] %v6809
    %6874 = vst [vmem:[#allocation5 + $0x51c] sm:$0xf] %v6810
    %6875 = vst [vmem:[#allocation5 + $0x540] sm:$0xf] %v6811
    %6876 = vst [vmem:[#allocation5 + $0x564] sm:$0xf] %v6812
    %6877 = vst [vmem:[#allocation5 + $0x588] sm:$0xf] %v6813
    %6878 = vst [vmem:[#allocation5 + $0x5ac] sm:$0xf] %v6814
    %6879 = vst [vmem:[#allocation5 + $0x5d0] sm:$0xf] %v6815
    %6880 = vst [vmem:[#allocation5 + $0x5f4] sm:$0xf] %v6816
    %6881 = vst [vmem:[#allocation5 + $0x618] sm:$0xf] %v6817
    %6882 = vst [vmem:[#allocation5 + $0x63c] sm:$0xf] %v6818
    %6883 = vst [vmem:[#allocation5 + $0x660] sm:$0xf] %v6819
    %6884 = vst [vmem:[#allocation5 + $0x684] sm:$0xf] %v6820
    %6885 = vst [vmem:[#allocation5 + $0x6a8] sm:$0xf] %v6821
    %6886 = vst [vmem:[#allocation5 + $0x6cc] sm:$0xf] %v6822
    %6887 = vst [vmem:[#allocation5 + $0x6f0] sm:$0xf] %v6823
    %6888 = vst [vmem:[#allocation5 + $0x714] sm:$0xf] %v6824
    %6889 = vst [vmem:[#allocation5 + $0x738] sm:$0xf] %v6825
    %6890 = vst [vmem:[#allocation5 + $0x75c] sm:$0xf] %v6826
    %6891 = vst [vmem:[#allocation5 + $0x780] sm:$0xf] %v6827
    %6892 = vst [vmem:[#allocation5 + $0x7a4] sm:$0xf] %v6828
    %6893 = vst [vmem:[#allocation5 + $0x7c8] sm:$0xf] %v6829
    %6894 = vst [vmem:[#allocation5 + $0x7ec] sm:$0xf] %v6830
    %6895 = vst [vmem:[#allocation5 + $0x810] sm:$0xf] %v6831
    %6896 = vst [vmem:[#allocation5 + $0x834] sm:$0xf] %v6832
    %6897 = vst [vmem:[#allocation5 + $0x858] sm:$0xf] %v6833
    %6898 = vst [vmem:[#allocation5 + $0x87c] sm:$0xf] %v6834
    %6899 = vst [vmem:[#allocation5 + $0x8a0] sm:$0xf] %v6835
    %6900 = vst [vmem:[#allocation5 + $0x8c4] sm:$0xf] %v6836
    %6901 = vst [vmem:[#allocation5 + $0x8e8] sm:$0xf] %v6837
    %v6902 = vld [vmem:[%s6069 + $0x1] sm:$0xff]
    %v6903 = vld [vmem:[%s6069 + $0x9] sm:$0xff]
    %v6904 = vld [vmem:[%s6069 + $0x19] sm:$0xff]
    %v6905 = vld [vmem:[%s6069 + $0x21] sm:$0xff]
    %v6906 = vld [vmem:[%s6069 + $0x31] sm:$0xff]
    %v6907 = vld [vmem:[%s6069 + $0x39] sm:$0xff]
    %v6908 = vld [vmem:[%s6069 + $0x49] sm:$0xff]
    %v6909 = vld [vmem:[%s6069 + $0x51] sm:$0xff]
    %v6910 = vld [vmem:[%s6069 + $0x61] sm:$0xff]
    %v6911 = vld [vmem:[%s6069 + $0x69] sm:$0xff]
    %v6912 = vld [vmem:[%s6069 + $0x79] sm:$0xff]
    %v6913 = vld [vmem:[%s6069 + $0x81] sm:$0xff]
    %v6914 = vld [vmem:[%s6069 + $0x91] sm:$0xff]
    %v6915 = vld [vmem:[%s6069 + $0x99] sm:$0xff]
    %v6916 = vld [vmem:[%s6069 + $0xa9] sm:$0xff]
    %v6917 = vld [vmem:[%s6069 + $0xb1] sm:$0xff]
    %v6918 = vld [vmem:[%s6069 + $0xc1] sm:$0xff]
    %v6919 = vld [vmem:[%s6069 + $0xc9] sm:$0xff]
    %v6920 = vld [vmem:[%s6069 + $0xd9] sm:$0xff]
    %v6921 = vld [vmem:[%s6069 + $0xe1] sm:$0xff]
    %v6922 = vld [vmem:[%s6069 + $0xf1] sm:$0xff]
    %v6923 = vld [vmem:[%s6069 + $0xf9] sm:$0xff]
    %v6924 = vld [vmem:[%s6069 + $0x109] sm:$0xff]
    %v6925 = vld [vmem:[%s6069 + $0x111] sm:$0xff]
    %v6926 = vld [vmem:[%s6069 + $0x121] sm:$0xff]
    %v6927 = vld [vmem:[%s6069 + $0x129] sm:$0xff]
    %v6928 = vld [vmem:[%s6069 + $0x139] sm:$0xff]
    %v6929 = vld [vmem:[%s6069 + $0x141] sm:$0xff]
    %v6930 = vld [vmem:[%s6069 + $0x151] sm:$0xff]
    %v6931 = vld [vmem:[%s6069 + $0x159] sm:$0xff]
    %v6932 = vld [vmem:[%s6069 + $0x169] sm:$0xff]
    %v6933 = vld [vmem:[%s6069 + $0x171] sm:$0xff]
    %v6934 = vld [vmem:[%s6069 + $0x1b1] sm:$0xff]
    %v6935 = vld [vmem:[%s6069 + $0x1b9] sm:$0xff]
    %v6936 = vld [vmem:[%s6069 + $0x1c9] sm:$0xff]
    %v6937 = vld [vmem:[%s6069 + $0x1d1] sm:$0xff]
    %v6938 = vld [vmem:[%s6069 + $0x1e1] sm:$0xff]
    %v6939 = vld [vmem:[%s6069 + $0x1e9] sm:$0xff]
    %v6940 = vld [vmem:[%s6069 + $0x1f9] sm:$0xff]
    %v6941 = vld [vmem:[%s6069 + $0x201] sm:$0xff]
    %v6942 = vld [vmem:[%s6069 + $0x211] sm:$0xff]
    %v6943 = vld [vmem:[%s6069 + $0x219] sm:$0xff]
    %v6944 = vld [vmem:[%s6069 + $0x229] sm:$0xff]
    %v6945 = vld [vmem:[%s6069 + $0x231] sm:$0xff]
    %v6946 = vld [vmem:[%s6069 + $0x241] sm:$0xff]
    %v6947 = vld [vmem:[%s6069 + $0x249] sm:$0xff]
    %v6948 = vld [vmem:[%s6069 + $0x259] sm:$0xff]
    %v6949 = vld [vmem:[%s6069 + $0x261] sm:$0xff]
    %v6950 = vld [vmem:[%s6069 + $0x271] sm:$0xff]
    %v6951 = vld [vmem:[%s6069 + $0x279] sm:$0xff]
    %v6952 = vld [vmem:[%s6069 + $0x289] sm:$0xff]
    %v6953 = vld [vmem:[%s6069 + $0x291] sm:$0xff]
    %v6954 = vld [vmem:[%s6069 + $0x2a1] sm:$0xff]
    %v6955 = vld [vmem:[%s6069 + $0x2a9] sm:$0xff]
    %v6956 = vld [vmem:[%s6069 + $0x2b9] sm:$0xff]
    %v6957 = vld [vmem:[%s6069 + $0x2c1] sm:$0xff]
    %v6958 = vld [vmem:[%s6069 + $0x2d1] sm:$0xff]
    %v6959 = vld [vmem:[%s6069 + $0x2d9] sm:$0xff]
    %v6960 = vld [vmem:[%s6069 + $0x2e9] sm:$0xff]
    %v6961 = vld [vmem:[%s6069 + $0x2f1] sm:$0xff]
    %v6962 = vld [vmem:[%s6069 + $0x301] sm:$0xff]
    %v6963 = vld [vmem:[%s6069 + $0x309] sm:$0xff]
    %v6964 = vld [vmem:[%s6069 + $0x319] sm:$0xff]
    %v6965 = vld [vmem:[%s6069 + $0x321] sm:$0xff]
    %v6966 = vpack.c.bf16 %v6902, %v6902
    %v6967 = vpack.c.bf16 %v6903, %v6903
    %v6968 = vpack.c.bf16 %v6904, %v6904
    %v6969 = vpack.c.bf16 %v6905, %v6905
    %v6970 = vpack.c.bf16 %v6906, %v6906
    %v6971 = vpack.c.bf16 %v6907, %v6907
    %v6972 = vpack.c.bf16 %v6908, %v6908
    %v6973 = vpack.c.bf16 %v6909, %v6909
    %v6974 = vpack.c.bf16 %v6910, %v6910
    %v6975 = vpack.c.bf16 %v6911, %v6911
    %v6976 = vpack.c.bf16 %v6912, %v6912
    %v6977 = vpack.c.bf16 %v6913, %v6913
    %v6978 = vpack.c.bf16 %v6914, %v6914
    %v6979 = vpack.c.bf16 %v6915, %v6915
    %v6980 = vpack.c.bf16 %v6916, %v6916
    %v6981 = vpack.c.bf16 %v6917, %v6917
    %v6982 = vpack.c.bf16 %v6918, %v6918
    %v6983 = vpack.c.bf16 %v6919, %v6919
    %v6984 = vpack.c.bf16 %v6920, %v6920
    %v6985 = vpack.c.bf16 %v6921, %v6921
    %v6986 = vpack.c.bf16 %v6922, %v6922
    %v6987 = vpack.c.bf16 %v6923, %v6923
    %v6988 = vpack.c.bf16 %v6924, %v6924
    %v6989 = vpack.c.bf16 %v6925, %v6925
    %v6990 = vpack.c.bf16 %v6926, %v6926
    %v6991 = vpack.c.bf16 %v6927, %v6927
    %v6992 = vpack.c.bf16 %v6928, %v6928
    %v6993 = vpack.c.bf16 %v6929, %v6929
    %v6994 = vpack.c.bf16 %v6930, %v6930
    %v6995 = vpack.c.bf16 %v6931, %v6931
    %v6996 = vpack.c.bf16 %v6932, %v6932
    %v6997 = vpack.c.bf16 %v6933, %v6933
    %v6998 = vpack.c.bf16 %v6934, %v6934
    %v6999 = vpack.c.bf16 %v6935, %v6935
    %v7000 = vpack.c.bf16 %v6936, %v6936
    %v7001 = vpack.c.bf16 %v6937, %v6937
    %v7002 = vpack.c.bf16 %v6938, %v6938
    %v7003 = vpack.c.bf16 %v6939, %v6939
    %v7004 = vpack.c.bf16 %v6940, %v6940
    %v7005 = vpack.c.bf16 %v6941, %v6941
    %v7006 = vpack.c.bf16 %v6942, %v6942
    %v7007 = vpack.c.bf16 %v6943, %v6943
    %v7008 = vpack.c.bf16 %v6944, %v6944
    %v7009 = vpack.c.bf16 %v6945, %v6945
    %v7010 = vpack.c.bf16 %v6946, %v6946
    %v7011 = vpack.c.bf16 %v6947, %v6947
    %v7012 = vpack.c.bf16 %v6948, %v6948
    %v7013 = vpack.c.bf16 %v6949, %v6949
    %v7014 = vpack.c.bf16 %v6950, %v6950
    %v7015 = vpack.c.bf16 %v6951, %v6951
    %v7016 = vpack.c.bf16 %v6952, %v6952
    %v7017 = vpack.c.bf16 %v6953, %v6953
    %v7018 = vpack.c.bf16 %v6954, %v6954
    %v7019 = vpack.c.bf16 %v6955, %v6955
    %v7020 = vpack.c.bf16 %v6956, %v6956
    %v7021 = vpack.c.bf16 %v6957, %v6957
    %v7022 = vpack.c.bf16 %v6958, %v6958
    %v7023 = vpack.c.bf16 %v6959, %v6959
    %v7024 = vpack.c.bf16 %v6960, %v6960
    %v7025 = vpack.c.bf16 %v6961, %v6961
    %v7026 = vpack.c.bf16 %v6962, %v6962
    %v7027 = vpack.c.bf16 %v6963, %v6963
    %v7028 = vpack.c.bf16 %v6964, %v6964
    %v7029 = vpack.c.bf16 %v6965, %v6965
    %7030 = vst [vmem:[#allocation5 + $0x10] sm:$0xf] %v6966
    %7031 = vst [vmem:[#allocation5 + $0x34] sm:$0xf] %v6967
    %7032 = vst [vmem:[#allocation5 + $0x58] sm:$0xf] %v6968
    %7033 = vst [vmem:[#allocation5 + $0x7c] sm:$0xf] %v6969
    %7034 = vst [vmem:[#allocation5 + $0xa0] sm:$0xf] %v6970
    %7035 = vst [vmem:[#allocation5 + $0xc4] sm:$0xf] %v6971
    %7036 = vst [vmem:[#allocation5 + $0xe8] sm:$0xf] %v6972
    %7037 = vst [vmem:[#allocation5 + $0x10c] sm:$0xf] %v6973
    %7038 = vst [vmem:[#allocation5 + $0x130] sm:$0xf] %v6974
    %7039 = vst [vmem:[#allocation5 + $0x154] sm:$0xf] %v6975
    %7040 = vst [vmem:[#allocation5 + $0x178] sm:$0xf] %v6976
    %7041 = vst [vmem:[#allocation5 + $0x19c] sm:$0xf] %v6977
    %7042 = vst [vmem:[#allocation5 + $0x1c0] sm:$0xf] %v6978
    %7043 = vst [vmem:[#allocation5 + $0x1e4] sm:$0xf] %v6979
    %7044 = vst [vmem:[#allocation5 + $0x208] sm:$0xf] %v6980
    %7045 = vst [vmem:[#allocation5 + $0x22c] sm:$0xf] %v6981
    %7046 = vst [vmem:[#allocation5 + $0x250] sm:$0xf] %v6982
    %7047 = vst [vmem:[#allocation5 + $0x274] sm:$0xf] %v6983
    %7048 = vst [vmem:[#allocation5 + $0x298] sm:$0xf] %v6984
    %7049 = vst [vmem:[#allocation5 + $0x2bc] sm:$0xf] %v6985
    %7050 = vst [vmem:[#allocation5 + $0x2e0] sm:$0xf] %v6986
    %7051 = vst [vmem:[#allocation5 + $0x304] sm:$0xf] %v6987
    %7052 = vst [vmem:[#allocation5 + $0x328] sm:$0xf] %v6988
    %7053 = vst [vmem:[#allocation5 + $0x34c] sm:$0xf] %v6989
    %7054 = vst [vmem:[#allocation5 + $0x370] sm:$0xf] %v6990
    %7055 = vst [vmem:[#allocation5 + $0x394] sm:$0xf] %v6991
    %7056 = vst [vmem:[#allocation5 + $0x3b8] sm:$0xf] %v6992
    %7057 = vst [vmem:[#allocation5 + $0x3dc] sm:$0xf] %v6993
    %7058 = vst [vmem:[#allocation5 + $0x400] sm:$0xf] %v6994
    %7059 = vst [vmem:[#allocation5 + $0x424] sm:$0xf] %v6995
    %7060 = vst [vmem:[#allocation5 + $0x448] sm:$0xf] %v6996
    %7061 = vst [vmem:[#allocation5 + $0x46c] sm:$0xf] %v6997
    %7062 = vst [vmem:[#allocation5 + $0x490] sm:$0xf] %v6998
    %7063 = vst [vmem:[#allocation5 + $0x4b4] sm:$0xf] %v6999
    %7064 = vst [vmem:[#allocation5 + $0x4d8] sm:$0xf] %v7000
    %7065 = vst [vmem:[#allocation5 + $0x4fc] sm:$0xf] %v7001
    %7066 = vst [vmem:[#allocation5 + $0x520] sm:$0xf] %v7002
    %7067 = vst [vmem:[#allocation5 + $0x544] sm:$0xf] %v7003
    %7068 = vst [vmem:[#allocation5 + $0x568] sm:$0xf] %v7004
    %7069 = vst [vmem:[#allocation5 + $0x58c] sm:$0xf] %v7005
    %7070 = vst [vmem:[#allocation5 + $0x5b0] sm:$0xf] %v7006
    %7071 = vst [vmem:[#allocation5 + $0x5d4] sm:$0xf] %v7007
    %7072 = vst [vmem:[#allocation5 + $0x5f8] sm:$0xf] %v7008
    %7073 = vst [vmem:[#allocation5 + $0x61c] sm:$0xf] %v7009
    %7074 = vst [vmem:[#allocation5 + $0x640] sm:$0xf] %v7010
    %7075 = vst [vmem:[#allocation5 + $0x664] sm:$0xf] %v7011
    %7076 = vst [vmem:[#allocation5 + $0x688] sm:$0xf] %v7012
    %7077 = vst [vmem:[#allocation5 + $0x6ac] sm:$0xf] %v7013
    %7078 = vst [vmem:[#allocation5 + $0x6d0] sm:$0xf] %v7014
    %7079 = vst [vmem:[#allocation5 + $0x6f4] sm:$0xf] %v7015
    %7080 = vst [vmem:[#allocation5 + $0x718] sm:$0xf] %v7016
    %7081 = vst [vmem:[#allocation5 + $0x73c] sm:$0xf] %v7017
    %7082 = vst [vmem:[#allocation5 + $0x760] sm:$0xf] %v7018
    %7083 = vst [vmem:[#allocation5 + $0x784] sm:$0xf] %v7019
    %7084 = vst [vmem:[#allocation5 + $0x7a8] sm:$0xf] %v7020
    %7085 = vst [vmem:[#allocation5 + $0x7cc] sm:$0xf] %v7021
    %7086 = vst [vmem:[#allocation5 + $0x7f0] sm:$0xf] %v7022
    %7087 = vst [vmem:[#allocation5 + $0x814] sm:$0xf] %v7023
    %7088 = vst [vmem:[#allocation5 + $0x838] sm:$0xf] %v7024
    %7089 = vst [vmem:[#allocation5 + $0x85c] sm:$0xf] %v7025
    %7090 = vst [vmem:[#allocation5 + $0x880] sm:$0xf] %v7026
    %7091 = vst [vmem:[#allocation5 + $0x8a4] sm:$0xf] %v7027
    %7092 = vst [vmem:[#allocation5 + $0x8c8] sm:$0xf] %v7028
    %7093 = vst [vmem:[#allocation5 + $0x8ec] sm:$0xf] %v7029
    %v7094 = vld [vmem:[%s6069 + $0x2] sm:$0xff]
    %v7095 = vld [vmem:[%s6069 + $0xa] sm:$0xff]
    %v7096 = vld [vmem:[%s6069 + $0x1a] sm:$0xff]
    %v7097 = vld [vmem:[%s6069 + $0x22] sm:$0xff]
    %v7098 = vld [vmem:[%s6069 + $0x32] sm:$0xff]
    %v7099 = vld [vmem:[%s6069 + $0x3a] sm:$0xff]
    %v7100 = vld [vmem:[%s6069 + $0x4a] sm:$0xff]
    %v7101 = vld [vmem:[%s6069 + $0x52] sm:$0xff]
    %v7102 = vld [vmem:[%s6069 + $0x62] sm:$0xff]
    %v7103 = vld [vmem:[%s6069 + $0x6a] sm:$0xff]
    %v7104 = vld [vmem:[%s6069 + $0x7a] sm:$0xff]
    %v7105 = vld [vmem:[%s6069 + $0x82] sm:$0xff]
    %v7106 = vld [vmem:[%s6069 + $0x92] sm:$0xff]
    %v7107 = vld [vmem:[%s6069 + $0x9a] sm:$0xff]
    %v7108 = vld [vmem:[%s6069 + $0xaa] sm:$0xff]
    %v7109 = vld [vmem:[%s6069 + $0xb2] sm:$0xff]
    %v7110 = vld [vmem:[%s6069 + $0xc2] sm:$0xff]
    %v7111 = vld [vmem:[%s6069 + $0xca] sm:$0xff]
    %v7112 = vld [vmem:[%s6069 + $0xda] sm:$0xff]
    %v7113 = vld [vmem:[%s6069 + $0xe2] sm:$0xff]
    %v7114 = vld [vmem:[%s6069 + $0xf2] sm:$0xff]
    %v7115 = vld [vmem:[%s6069 + $0xfa] sm:$0xff]
    %v7116 = vld [vmem:[%s6069 + $0x10a] sm:$0xff]
    %v7117 = vld [vmem:[%s6069 + $0x112] sm:$0xff]
    %v7118 = vld [vmem:[%s6069 + $0x122] sm:$0xff]
    %v7119 = vld [vmem:[%s6069 + $0x12a] sm:$0xff]
    %v7120 = vld [vmem:[%s6069 + $0x13a] sm:$0xff]
    %v7121 = vld [vmem:[%s6069 + $0x142] sm:$0xff]
    %v7122 = vld [vmem:[%s6069 + $0x152] sm:$0xff]
    %v7123 = vld [vmem:[%s6069 + $0x15a] sm:$0xff]
    %v7124 = vld [vmem:[%s6069 + $0x16a] sm:$0xff]
    %v7125 = vld [vmem:[%s6069 + $0x172] sm:$0xff]
    %v7126 = vld [vmem:[%s6069 + $0x1b2] sm:$0xff]
    %v7127 = vld [vmem:[%s6069 + $0x1ba] sm:$0xff]
    %v7128 = vld [vmem:[%s6069 + $0x1ca] sm:$0xff]
    %v7129 = vld [vmem:[%s6069 + $0x1d2] sm:$0xff]
    %v7130 = vld [vmem:[%s6069 + $0x1e2] sm:$0xff]
    %v7131 = vld [vmem:[%s6069 + $0x1ea] sm:$0xff]
    %v7132 = vld [vmem:[%s6069 + $0x1fa] sm:$0xff]
    %v7133 = vld [vmem:[%s6069 + $0x202] sm:$0xff]
    %v7134 = vld [vmem:[%s6069 + $0x212] sm:$0xff]
    %v7135 = vld [vmem:[%s6069 + $0x21a] sm:$0xff]
    %v7136 = vld [vmem:[%s6069 + $0x22a] sm:$0xff]
    %v7137 = vld [vmem:[%s6069 + $0x232] sm:$0xff]
    %v7138 = vld [vmem:[%s6069 + $0x242] sm:$0xff]
    %v7139 = vld [vmem:[%s6069 + $0x24a] sm:$0xff]
    %v7140 = vld [vmem:[%s6069 + $0x25a] sm:$0xff]
    %v7141 = vld [vmem:[%s6069 + $0x262] sm:$0xff]
    %v7142 = vld [vmem:[%s6069 + $0x272] sm:$0xff]
    %v7143 = vld [vmem:[%s6069 + $0x27a] sm:$0xff]
    %v7144 = vld [vmem:[%s6069 + $0x28a] sm:$0xff]
    %v7145 = vld [vmem:[%s6069 + $0x292] sm:$0xff]
    %v7146 = vld [vmem:[%s6069 + $0x2a2] sm:$0xff]
    %v7147 = vld [vmem:[%s6069 + $0x2aa] sm:$0xff]
    %v7148 = vld [vmem:[%s6069 + $0x2ba] sm:$0xff]
    %v7149 = vld [vmem:[%s6069 + $0x2c2] sm:$0xff]
    %v7150 = vld [vmem:[%s6069 + $0x2d2] sm:$0xff]
    %v7151 = vld [vmem:[%s6069 + $0x2da] sm:$0xff]
    %v7152 = vld [vmem:[%s6069 + $0x2ea] sm:$0xff]
    %v7153 = vld [vmem:[%s6069 + $0x2f2] sm:$0xff]
    %v7154 = vld [vmem:[%s6069 + $0x302] sm:$0xff]
    %v7155 = vld [vmem:[%s6069 + $0x30a] sm:$0xff]
    %v7156 = vld [vmem:[%s6069 + $0x31a] sm:$0xff]
    %v7157 = vld [vmem:[%s6069 + $0x322] sm:$0xff]
    %v7158 = vpack.c.bf16 %v7094, %v7094
    %v7159 = vpack.c.bf16 %v7095, %v7095
    %v7160 = vpack.c.bf16 %v7096, %v7096
    %v7161 = vpack.c.bf16 %v7097, %v7097
    %v7162 = vpack.c.bf16 %v7098, %v7098
    %v7163 = vpack.c.bf16 %v7099, %v7099
    %v7164 = vpack.c.bf16 %v7100, %v7100
    %v7165 = vpack.c.bf16 %v7101, %v7101
    %v7166 = vpack.c.bf16 %v7102, %v7102
    %v7167 = vpack.c.bf16 %v7103, %v7103
    %v7168 = vpack.c.bf16 %v7104, %v7104
    %v7169 = vpack.c.bf16 %v7105, %v7105
    %v7170 = vpack.c.bf16 %v7106, %v7106
    %v7171 = vpack.c.bf16 %v7107, %v7107
    %v7172 = vpack.c.bf16 %v7108, %v7108
    %v7173 = vpack.c.bf16 %v7109, %v7109
    %v7174 = vpack.c.bf16 %v7110, %v7110
    %v7175 = vpack.c.bf16 %v7111, %v7111
    %v7176 = vpack.c.bf16 %v7112, %v7112
    %v7177 = vpack.c.bf16 %v7113, %v7113
    %v7178 = vpack.c.bf16 %v7114, %v7114
    %v7179 = vpack.c.bf16 %v7115, %v7115
    %v7180 = vpack.c.bf16 %v7116, %v7116
    %v7181 = vpack.c.bf16 %v7117, %v7117
    %v7182 = vpack.c.bf16 %v7118, %v7118
    %v7183 = vpack.c.bf16 %v7119, %v7119
    %v7184 = vpack.c.bf16 %v7120, %v7120
    %v7185 = vpack.c.bf16 %v7121, %v7121
    %v7186 = vpack.c.bf16 %v7122, %v7122
    %v7187 = vpack.c.bf16 %v7123, %v7123
    %v7188 = vpack.c.bf16 %v7124, %v7124
    %v7189 = vpack.c.bf16 %v7125, %v7125
    %v7190 = vpack.c.bf16 %v7126, %v7126
    %v7191 = vpack.c.bf16 %v7127, %v7127
    %v7192 = vpack.c.bf16 %v7128, %v7128
    %v7193 = vpack.c.bf16 %v7129, %v7129
    %v7194 = vpack.c.bf16 %v7130, %v7130
    %v7195 = vpack.c.bf16 %v7131, %v7131
    %v7196 = vpack.c.bf16 %v7132, %v7132
    %v7197 = vpack.c.bf16 %v7133, %v7133
    %v7198 = vpack.c.bf16 %v7134, %v7134
    %v7199 = vpack.c.bf16 %v7135, %v7135
    %v7200 = vpack.c.bf16 %v7136, %v7136
    %v7201 = vpack.c.bf16 %v7137, %v7137
    %v7202 = vpack.c.bf16 %v7138, %v7138
    %v7203 = vpack.c.bf16 %v7139, %v7139
    %v7204 = vpack.c.bf16 %v7140, %v7140
    %v7205 = vpack.c.bf16 %v7141, %v7141
    %v7206 = vpack.c.bf16 %v7142, %v7142
    %v7207 = vpack.c.bf16 %v7143, %v7143
    %v7208 = vpack.c.bf16 %v7144, %v7144
    %v7209 = vpack.c.bf16 %v7145, %v7145
    %v7210 = vpack.c.bf16 %v7146, %v7146
    %v7211 = vpack.c.bf16 %v7147, %v7147
    %v7212 = vpack.c.bf16 %v7148, %v7148
    %v7213 = vpack.c.bf16 %v7149, %v7149
    %v7214 = vpack.c.bf16 %v7150, %v7150
    %v7215 = vpack.c.bf16 %v7151, %v7151
    %v7216 = vpack.c.bf16 %v7152, %v7152
    %v7217 = vpack.c.bf16 %v7153, %v7153
    %v7218 = vpack.c.bf16 %v7154, %v7154
    %v7219 = vpack.c.bf16 %v7155, %v7155
    %v7220 = vpack.c.bf16 %v7156, %v7156
    %v7221 = vpack.c.bf16 %v7157, %v7157
    %7222 = vst [vmem:[#allocation5 + $0x14] sm:$0xf] %v7158
    %7223 = vst [vmem:[#allocation5 + $0x38] sm:$0xf] %v7159
    %7224 = vst [vmem:[#allocation5 + $0x5c] sm:$0xf] %v7160
    %7225 = vst [vmem:[#allocation5 + $0x80] sm:$0xf] %v7161
    %7226 = vst [vmem:[#allocation5 + $0xa4] sm:$0xf] %v7162
    %7227 = vst [vmem:[#allocation5 + $0xc8] sm:$0xf] %v7163
    %7228 = vst [vmem:[#allocation5 + $0xec] sm:$0xf] %v7164
    %7229 = vst [vmem:[#allocation5 + $0x110] sm:$0xf] %v7165
    %7230 = vst [vmem:[#allocation5 + $0x134] sm:$0xf] %v7166
    %7231 = vst [vmem:[#allocation5 + $0x158] sm:$0xf] %v7167
    %7232 = vst [vmem:[#allocation5 + $0x17c] sm:$0xf] %v7168
    %7233 = vst [vmem:[#allocation5 + $0x1a0] sm:$0xf] %v7169
    %7234 = vst [vmem:[#allocation5 + $0x1c4] sm:$0xf] %v7170
    %7235 = vst [vmem:[#allocation5 + $0x1e8] sm:$0xf] %v7171
    %7236 = vst [vmem:[#allocation5 + $0x20c] sm:$0xf] %v7172
    %7237 = vst [vmem:[#allocation5 + $0x230] sm:$0xf] %v7173
    %7238 = vst [vmem:[#allocation5 + $0x254] sm:$0xf] %v7174
    %7239 = vst [vmem:[#allocation5 + $0x278] sm:$0xf] %v7175
    %7240 = vst [vmem:[#allocation5 + $0x29c] sm:$0xf] %v7176
    %7241 = vst [vmem:[#allocation5 + $0x2c0] sm:$0xf] %v7177
    %7242 = vst [vmem:[#allocation5 + $0x2e4] sm:$0xf] %v7178
    %7243 = vst [vmem:[#allocation5 + $0x308] sm:$0xf] %v7179
    %7244 = vst [vmem:[#allocation5 + $0x32c] sm:$0xf] %v7180
    %7245 = vst [vmem:[#allocation5 + $0x350] sm:$0xf] %v7181
    %7246 = vst [vmem:[#allocation5 + $0x374] sm:$0xf] %v7182
    %7247 = vst [vmem:[#allocation5 + $0x398] sm:$0xf] %v7183
    %7248 = vst [vmem:[#allocation5 + $0x3bc] sm:$0xf] %v7184
    %7249 = vst [vmem:[#allocation5 + $0x3e0] sm:$0xf] %v7185
    %7250 = vst [vmem:[#allocation5 + $0x404] sm:$0xf] %v7186
    %7251 = vst [vmem:[#allocation5 + $0x428] sm:$0xf] %v7187
    %7252 = vst [vmem:[#allocation5 + $0x44c] sm:$0xf] %v7188
    %7253 = vst [vmem:[#allocation5 + $0x470] sm:$0xf] %v7189
    %7254 = vst [vmem:[#allocation5 + $0x494] sm:$0xf] %v7190
    %7255 = vst [vmem:[#allocation5 + $0x4b8] sm:$0xf] %v7191
    %7256 = vst [vmem:[#allocation5 + $0x4dc] sm:$0xf] %v7192
    %7257 = vst [vmem:[#allocation5 + $0x500] sm:$0xf] %v7193
    %7258 = vst [vmem:[#allocation5 + $0x524] sm:$0xf] %v7194
    %7259 = vst [vmem:[#allocation5 + $0x548] sm:$0xf] %v7195
    %7260 = vst [vmem:[#allocation5 + $0x56c] sm:$0xf] %v7196
    %7261 = vst [vmem:[#allocation5 + $0x590] sm:$0xf] %v7197
    %7262 = vst [vmem:[#allocation5 + $0x5b4] sm:$0xf] %v7198
    %7263 = vst [vmem:[#allocation5 + $0x5d8] sm:$0xf] %v7199
    %7264 = vst [vmem:[#allocation5 + $0x5fc] sm:$0xf] %v7200
    %7265 = vst [vmem:[#allocation5 + $0x620] sm:$0xf] %v7201
    %7266 = vst [vmem:[#allocation5 + $0x644] sm:$0xf] %v7202
    %7267 = vst [vmem:[#allocation5 + $0x668] sm:$0xf] %v7203
    %7268 = vst [vmem:[#allocation5 + $0x68c] sm:$0xf] %v7204
    %7269 = vst [vmem:[#allocation5 + $0x6b0] sm:$0xf] %v7205
    %7270 = vst [vmem:[#allocation5 + $0x6d4] sm:$0xf] %v7206
    %7271 = vst [vmem:[#allocation5 + $0x6f8] sm:$0xf] %v7207
    %7272 = vst [vmem:[#allocation5 + $0x71c] sm:$0xf] %v7208
    %7273 = vst [vmem:[#allocation5 + $0x740] sm:$0xf] %v7209
    %7274 = vst [vmem:[#allocation5 + $0x764] sm:$0xf] %v7210
    %7275 = vst [vmem:[#allocation5 + $0x788] sm:$0xf] %v7211
    %7276 = vst [vmem:[#allocation5 + $0x7ac] sm:$0xf] %v7212
    %7277 = vst [vmem:[#allocation5 + $0x7d0] sm:$0xf] %v7213
    %7278 = vst [vmem:[#allocation5 + $0x7f4] sm:$0xf] %v7214
    %7279 = vst [vmem:[#allocation5 + $0x818] sm:$0xf] %v7215
    %7280 = vst [vmem:[#allocation5 + $0x83c] sm:$0xf] %v7216
    %7281 = vst [vmem:[#allocation5 + $0x860] sm:$0xf] %v7217
    %7282 = vst [vmem:[#allocation5 + $0x884] sm:$0xf] %v7218
    %7283 = vst [vmem:[#allocation5 + $0x8a8] sm:$0xf] %v7219
    %7284 = vst [vmem:[#allocation5 + $0x8cc] sm:$0xf] %v7220
    %7285 = vst [vmem:[#allocation5 + $0x8f0] sm:$0xf] %v7221
    %s7286 = scalar_lea.vmem [#allocation3], 48
    %v7287 = vld [vmem:[%s7286] sm:$0xff]
    %v7288 = vld [vmem:[%s7286 + $0x8] sm:$0xff]
    %v7289 = vld [vmem:[%s7286 + $0x18] sm:$0xff]
    %v7290 = vld [vmem:[%s7286 + $0x20] sm:$0xff]
    %v7291 = vld [vmem:[%s7286 + $0x30] sm:$0xff]
    %v7292 = vld [vmem:[%s7286 + $0x38] sm:$0xff]
    %v7293 = vld [vmem:[%s7286 + $0x48] sm:$0xff]
    %v7294 = vld [vmem:[%s7286 + $0x50] sm:$0xff]
    %v7295 = vld [vmem:[%s7286 + $0x60] sm:$0xff]
    %v7296 = vld [vmem:[%s7286 + $0x68] sm:$0xff]
    %v7297 = vld [vmem:[%s7286 + $0x78] sm:$0xff]
    %v7298 = vld [vmem:[%s7286 + $0x80] sm:$0xff]
    %v7299 = vld [vmem:[%s7286 + $0x90] sm:$0xff]
    %v7300 = vld [vmem:[%s7286 + $0x98] sm:$0xff]
    %v7301 = vld [vmem:[%s7286 + $0xa8] sm:$0xff]
    %v7302 = vld [vmem:[%s7286 + $0xb0] sm:$0xff]
    %v7303 = vld [vmem:[%s7286 + $0xc0] sm:$0xff]
    %v7304 = vld [vmem:[%s7286 + $0xc8] sm:$0xff]
    %v7305 = vld [vmem:[%s7286 + $0xd8] sm:$0xff]
    %v7306 = vld [vmem:[%s7286 + $0xe0] sm:$0xff]
    %v7307 = vld [vmem:[%s7286 + $0xf0] sm:$0xff]
    %v7308 = vld [vmem:[%s7286 + $0xf8] sm:$0xff]
    %v7309 = vld [vmem:[%s7286 + $0x108] sm:$0xff]
    %v7310 = vld [vmem:[%s7286 + $0x110] sm:$0xff]
    %v7311 = vld [vmem:[%s7286 + $0x120] sm:$0xff]
    %v7312 = vld [vmem:[%s7286 + $0x128] sm:$0xff]
    %v7313 = vld [vmem:[%s7286 + $0x138] sm:$0xff]
    %v7314 = vld [vmem:[%s7286 + $0x140] sm:$0xff]
    %v7315 = vld [vmem:[%s7286 + $0x150] sm:$0xff]
    %v7316 = vld [vmem:[%s7286 + $0x158] sm:$0xff]
    %v7317 = vld [vmem:[%s7286 + $0x168] sm:$0xff]
    %v7318 = vld [vmem:[%s7286 + $0x170] sm:$0xff]
    %v7319 = vld [vmem:[%s7286 + $0x1b0] sm:$0xff]
    %v7320 = vld [vmem:[%s7286 + $0x1b8] sm:$0xff]
    %v7321 = vld [vmem:[%s7286 + $0x1c8] sm:$0xff]
    %v7322 = vld [vmem:[%s7286 + $0x1d0] sm:$0xff]
    %v7323 = vld [vmem:[%s7286 + $0x1e0] sm:$0xff]
    %v7324 = vld [vmem:[%s7286 + $0x1e8] sm:$0xff]
    %v7325 = vld [vmem:[%s7286 + $0x1f8] sm:$0xff]
    %v7326 = vld [vmem:[%s7286 + $0x200] sm:$0xff]
    %v7327 = vld [vmem:[%s7286 + $0x210] sm:$0xff]
    %v7328 = vld [vmem:[%s7286 + $0x218] sm:$0xff]
    %v7329 = vld [vmem:[%s7286 + $0x228] sm:$0xff]
    %v7330 = vld [vmem:[%s7286 + $0x230] sm:$0xff]
    %v7331 = vld [vmem:[%s7286 + $0x240] sm:$0xff]
    %v7332 = vld [vmem:[%s7286 + $0x248] sm:$0xff]
    %v7333 = vld [vmem:[%s7286 + $0x258] sm:$0xff]
    %v7334 = vld [vmem:[%s7286 + $0x260] sm:$0xff]
    %v7335 = vld [vmem:[%s7286 + $0x270] sm:$0xff]
    %v7336 = vld [vmem:[%s7286 + $0x278] sm:$0xff]
    %v7337 = vld [vmem:[%s7286 + $0x288] sm:$0xff]
    %v7338 = vld [vmem:[%s7286 + $0x290] sm:$0xff]
    %v7339 = vld [vmem:[%s7286 + $0x2a0] sm:$0xff]
    %v7340 = vld [vmem:[%s7286 + $0x2a8] sm:$0xff]
    %v7341 = vld [vmem:[%s7286 + $0x2b8] sm:$0xff]
    %v7342 = vld [vmem:[%s7286 + $0x2c0] sm:$0xff]
    %v7343 = vld [vmem:[%s7286 + $0x2d0] sm:$0xff]
    %v7344 = vld [vmem:[%s7286 + $0x2d8] sm:$0xff]
    %v7345 = vld [vmem:[%s7286 + $0x2e8] sm:$0xff]
    %v7346 = vld [vmem:[%s7286 + $0x2f0] sm:$0xff]
    %v7347 = vld [vmem:[%s7286 + $0x300] sm:$0xff]
    %v7348 = vld [vmem:[%s7286 + $0x308] sm:$0xff]
    %v7349 = vld [vmem:[%s7286 + $0x318] sm:$0xff]
    %v7350 = vld [vmem:[%s7286 + $0x320] sm:$0xff]
    %v7351 = vpack.c.bf16 %v7287, %v7287
    %v7352 = vpack.c.bf16 %v7288, %v7288
    %v7353 = vpack.c.bf16 %v7289, %v7289
    %v7354 = vpack.c.bf16 %v7290, %v7290
    %v7355 = vpack.c.bf16 %v7291, %v7291
    %v7356 = vpack.c.bf16 %v7292, %v7292
    %v7357 = vpack.c.bf16 %v7293, %v7293
    %v7358 = vpack.c.bf16 %v7294, %v7294
    %v7359 = vpack.c.bf16 %v7295, %v7295
    %v7360 = vpack.c.bf16 %v7296, %v7296
    %v7361 = vpack.c.bf16 %v7297, %v7297
    %v7362 = vpack.c.bf16 %v7298, %v7298
    %v7363 = vpack.c.bf16 %v7299, %v7299
    %v7364 = vpack.c.bf16 %v7300, %v7300
    %v7365 = vpack.c.bf16 %v7301, %v7301
    %v7366 = vpack.c.bf16 %v7302, %v7302
    %v7367 = vpack.c.bf16 %v7303, %v7303
    %v7368 = vpack.c.bf16 %v7304, %v7304
    %v7369 = vpack.c.bf16 %v7305, %v7305
    %v7370 = vpack.c.bf16 %v7306, %v7306
    %v7371 = vpack.c.bf16 %v7307, %v7307
    %v7372 = vpack.c.bf16 %v7308, %v7308
    %v7373 = vpack.c.bf16 %v7309, %v7309
    %v7374 = vpack.c.bf16 %v7310, %v7310
    %v7375 = vpack.c.bf16 %v7311, %v7311
    %v7376 = vpack.c.bf16 %v7312, %v7312
    %v7377 = vpack.c.bf16 %v7313, %v7313
    %v7378 = vpack.c.bf16 %v7314, %v7314
    %v7379 = vpack.c.bf16 %v7315, %v7315
    %v7380 = vpack.c.bf16 %v7316, %v7316
    %v7381 = vpack.c.bf16 %v7317, %v7317
    %v7382 = vpack.c.bf16 %v7318, %v7318
    %v7383 = vpack.c.bf16 %v7319, %v7319
    %v7384 = vpack.c.bf16 %v7320, %v7320
    %v7385 = vpack.c.bf16 %v7321, %v7321
    %v7386 = vpack.c.bf16 %v7322, %v7322
    %v7387 = vpack.c.bf16 %v7323, %v7323
    %v7388 = vpack.c.bf16 %v7324, %v7324
    %v7389 = vpack.c.bf16 %v7325, %v7325
    %v7390 = vpack.c.bf16 %v7326, %v7326
    %v7391 = vpack.c.bf16 %v7327, %v7327
    %v7392 = vpack.c.bf16 %v7328, %v7328
    %v7393 = vpack.c.bf16 %v7329, %v7329
    %v7394 = vpack.c.bf16 %v7330, %v7330
    %v7395 = vpack.c.bf16 %v7331, %v7331
    %v7396 = vpack.c.bf16 %v7332, %v7332
    %v7397 = vpack.c.bf16 %v7333, %v7333
    %v7398 = vpack.c.bf16 %v7334, %v7334
    %v7399 = vpack.c.bf16 %v7335, %v7335
    %v7400 = vpack.c.bf16 %v7336, %v7336
    %v7401 = vpack.c.bf16 %v7337, %v7337
    %v7402 = vpack.c.bf16 %v7338, %v7338
    %v7403 = vpack.c.bf16 %v7339, %v7339
    %v7404 = vpack.c.bf16 %v7340, %v7340
    %v7405 = vpack.c.bf16 %v7341, %v7341
    %v7406 = vpack.c.bf16 %v7342, %v7342
    %v7407 = vpack.c.bf16 %v7343, %v7343
    %v7408 = vpack.c.bf16 %v7344, %v7344
    %v7409 = vpack.c.bf16 %v7345, %v7345
    %v7410 = vpack.c.bf16 %v7346, %v7346
    %v7411 = vpack.c.bf16 %v7347, %v7347
    %v7412 = vpack.c.bf16 %v7348, %v7348
    %v7413 = vpack.c.bf16 %v7349, %v7349
    %v7414 = vpack.c.bf16 %v7350, %v7350
    %7415 = vst [vmem:[#allocation5 + $0x18] sm:$0xf] %v7351
    %7416 = vst [vmem:[#allocation5 + $0x3c] sm:$0xf] %v7352
    %7417 = vst [vmem:[#allocation5 + $0x60] sm:$0xf] %v7353
    %7418 = vst [vmem:[#allocation5 + $0x84] sm:$0xf] %v7354
    %7419 = vst [vmem:[#allocation5 + $0xa8] sm:$0xf] %v7355
    %7420 = vst [vmem:[#allocation5 + $0xcc] sm:$0xf] %v7356
    %7421 = vst [vmem:[#allocation5 + $0xf0] sm:$0xf] %v7357
    %7422 = vst [vmem:[#allocation5 + $0x114] sm:$0xf] %v7358
    %7423 = vst [vmem:[#allocation5 + $0x138] sm:$0xf] %v7359
    %7424 = vst [vmem:[#allocation5 + $0x15c] sm:$0xf] %v7360
    %7425 = vst [vmem:[#allocation5 + $0x180] sm:$0xf] %v7361
    %7426 = vst [vmem:[#allocation5 + $0x1a4] sm:$0xf] %v7362
    %7427 = vst [vmem:[#allocation5 + $0x1c8] sm:$0xf] %v7363
    %7428 = vst [vmem:[#allocation5 + $0x1ec] sm:$0xf] %v7364
    %7429 = vst [vmem:[#allocation5 + $0x210] sm:$0xf] %v7365
    %7430 = vst [vmem:[#allocation5 + $0x234] sm:$0xf] %v7366
    %7431 = vst [vmem:[#allocation5 + $0x258] sm:$0xf] %v7367
    %7432 = vst [vmem:[#allocation5 + $0x27c] sm:$0xf] %v7368
    %7433 = vst [vmem:[#allocation5 + $0x2a0] sm:$0xf] %v7369
    %7434 = vst [vmem:[#allocation5 + $0x2c4] sm:$0xf] %v7370
    %7435 = vst [vmem:[#allocation5 + $0x2e8] sm:$0xf] %v7371
    %7436 = vst [vmem:[#allocation5 + $0x30c] sm:$0xf] %v7372
    %7437 = vst [vmem:[#allocation5 + $0x330] sm:$0xf] %v7373
    %7438 = vst [vmem:[#allocation5 + $0x354] sm:$0xf] %v7374
    %7439 = vst [vmem:[#allocation5 + $0x378] sm:$0xf] %v7375
    %7440 = vst [vmem:[#allocation5 + $0x39c] sm:$0xf] %v7376
    %7441 = vst [vmem:[#allocation5 + $0x3c0] sm:$0xf] %v7377
    %7442 = vst [vmem:[#allocation5 + $0x3e4] sm:$0xf] %v7378
    %7443 = vst [vmem:[#allocation5 + $0x408] sm:$0xf] %v7379
    %7444 = vst [vmem:[#allocation5 + $0x42c] sm:$0xf] %v7380
    %7445 = vst [vmem:[#allocation5 + $0x450] sm:$0xf] %v7381
    %7446 = vst [vmem:[#allocation5 + $0x474] sm:$0xf] %v7382
    %7447 = vst [vmem:[#allocation5 + $0x498] sm:$0xf] %v7383
    %7448 = vst [vmem:[#allocation5 + $0x4bc] sm:$0xf] %v7384
    %7449 = vst [vmem:[#allocation5 + $0x4e0] sm:$0xf] %v7385
    %7450 = vst [vmem:[#allocation5 + $0x504] sm:$0xf] %v7386
    %7451 = vst [vmem:[#allocation5 + $0x528] sm:$0xf] %v7387
    %7452 = vst [vmem:[#allocation5 + $0x54c] sm:$0xf] %v7388
    %7453 = vst [vmem:[#allocation5 + $0x570] sm:$0xf] %v7389
    %7454 = vst [vmem:[#allocation5 + $0x594] sm:$0xf] %v7390
    %7455 = vst [vmem:[#allocation5 + $0x5b8] sm:$0xf] %v7391
    %7456 = vst [vmem:[#allocation5 + $0x5dc] sm:$0xf] %v7392
    %7457 = vst [vmem:[#allocation5 + $0x600] sm:$0xf] %v7393
    %7458 = vst [vmem:[#allocation5 + $0x624] sm:$0xf] %v7394
    %7459 = vst [vmem:[#allocation5 + $0x648] sm:$0xf] %v7395
    %7460 = vst [vmem:[#allocation5 + $0x66c] sm:$0xf] %v7396
    %7461 = vst [vmem:[#allocation5 + $0x690] sm:$0xf] %v7397
    %7462 = vst [vmem:[#allocation5 + $0x6b4] sm:$0xf] %v7398
    %7463 = vst [vmem:[#allocation5 + $0x6d8] sm:$0xf] %v7399
    %7464 = vst [vmem:[#allocation5 + $0x6fc] sm:$0xf] %v7400
    %7465 = vst [vmem:[#allocation5 + $0x720] sm:$0xf] %v7401
    %7466 = vst [vmem:[#allocation5 + $0x744] sm:$0xf] %v7402
    %7467 = vst [vmem:[#allocation5 + $0x768] sm:$0xf] %v7403
    %7468 = vst [vmem:[#allocation5 + $0x78c] sm:$0xf] %v7404
    %7469 = vst [vmem:[#allocation5 + $0x7b0] sm:$0xf] %v7405
    %7470 = vst [vmem:[#allocation5 + $0x7d4] sm:$0xf] %v7406
    %7471 = vst [vmem:[#allocation5 + $0x7f8] sm:$0xf] %v7407
    %7472 = vst [vmem:[#allocation5 + $0x81c] sm:$0xf] %v7408
    %7473 = vst [vmem:[#allocation5 + $0x840] sm:$0xf] %v7409
    %7474 = vst [vmem:[#allocation5 + $0x864] sm:$0xf] %v7410
    %7475 = vst [vmem:[#allocation5 + $0x888] sm:$0xf] %v7411
    %7476 = vst [vmem:[#allocation5 + $0x8ac] sm:$0xf] %v7412
    %7477 = vst [vmem:[#allocation5 + $0x8d0] sm:$0xf] %v7413
    %7478 = vst [vmem:[#allocation5 + $0x8f4] sm:$0xf] %v7414
    %v7479 = vld [vmem:[%s7286 + $0x1] sm:$0xff]
    %v7480 = vld [vmem:[%s7286 + $0x9] sm:$0xff]
    %v7481 = vld [vmem:[%s7286 + $0x19] sm:$0xff]
    %v7482 = vld [vmem:[%s7286 + $0x21] sm:$0xff]
    %v7483 = vld [vmem:[%s7286 + $0x31] sm:$0xff]
    %v7484 = vld [vmem:[%s7286 + $0x39] sm:$0xff]
    %v7485 = vld [vmem:[%s7286 + $0x49] sm:$0xff]
    %v7486 = vld [vmem:[%s7286 + $0x51] sm:$0xff]
    %v7487 = vld [vmem:[%s7286 + $0x61] sm:$0xff]
    %v7488 = vld [vmem:[%s7286 + $0x69] sm:$0xff]
    %v7489 = vld [vmem:[%s7286 + $0x79] sm:$0xff]
    %v7490 = vld [vmem:[%s7286 + $0x81] sm:$0xff]
    %v7491 = vld [vmem:[%s7286 + $0x91] sm:$0xff]
    %v7492 = vld [vmem:[%s7286 + $0x99] sm:$0xff]
    %v7493 = vld [vmem:[%s7286 + $0xa9] sm:$0xff]
    %v7494 = vld [vmem:[%s7286 + $0xb1] sm:$0xff]
    %v7495 = vld [vmem:[%s7286 + $0xc1] sm:$0xff]
    %v7496 = vld [vmem:[%s7286 + $0xc9] sm:$0xff]
    %v7497 = vld [vmem:[%s7286 + $0xd9] sm:$0xff]
    %v7498 = vld [vmem:[%s7286 + $0xe1] sm:$0xff]
    %v7499 = vld [vmem:[%s7286 + $0xf1] sm:$0xff]
    %v7500 = vld [vmem:[%s7286 + $0xf9] sm:$0xff]
    %v7501 = vld [vmem:[%s7286 + $0x109] sm:$0xff]
    %v7502 = vld [vmem:[%s7286 + $0x111] sm:$0xff]
    %v7503 = vld [vmem:[%s7286 + $0x121] sm:$0xff]
    %v7504 = vld [vmem:[%s7286 + $0x129] sm:$0xff]
    %v7505 = vld [vmem:[%s7286 + $0x139] sm:$0xff]
    %v7506 = vld [vmem:[%s7286 + $0x141] sm:$0xff]
    %v7507 = vld [vmem:[%s7286 + $0x151] sm:$0xff]
    %v7508 = vld [vmem:[%s7286 + $0x159] sm:$0xff]
    %v7509 = vld [vmem:[%s7286 + $0x169] sm:$0xff]
    %v7510 = vld [vmem:[%s7286 + $0x171] sm:$0xff]
    %v7511 = vld [vmem:[%s7286 + $0x1b1] sm:$0xff]
    %v7512 = vld [vmem:[%s7286 + $0x1b9] sm:$0xff]
    %v7513 = vld [vmem:[%s7286 + $0x1c9] sm:$0xff]
    %v7514 = vld [vmem:[%s7286 + $0x1d1] sm:$0xff]
    %v7515 = vld [vmem:[%s7286 + $0x1e1] sm:$0xff]
    %v7516 = vld [vmem:[%s7286 + $0x1e9] sm:$0xff]
    %v7517 = vld [vmem:[%s7286 + $0x1f9] sm:$0xff]
    %v7518 = vld [vmem:[%s7286 + $0x201] sm:$0xff]
    %v7519 = vld [vmem:[%s7286 + $0x211] sm:$0xff]
    %v7520 = vld [vmem:[%s7286 + $0x219] sm:$0xff]
    %v7521 = vld [vmem:[%s7286 + $0x229] sm:$0xff]
    %v7522 = vld [vmem:[%s7286 + $0x231] sm:$0xff]
    %v7523 = vld [vmem:[%s7286 + $0x241] sm:$0xff]
    %v7524 = vld [vmem:[%s7286 + $0x249] sm:$0xff]
    %v7525 = vld [vmem:[%s7286 + $0x259] sm:$0xff]
    %v7526 = vld [vmem:[%s7286 + $0x261] sm:$0xff]
    %v7527 = vld [vmem:[%s7286 + $0x271] sm:$0xff]
    %v7528 = vld [vmem:[%s7286 + $0x279] sm:$0xff]
    %v7529 = vld [vmem:[%s7286 + $0x289] sm:$0xff]
    %v7530 = vld [vmem:[%s7286 + $0x291] sm:$0xff]
    %v7531 = vld [vmem:[%s7286 + $0x2a1] sm:$0xff]
    %v7532 = vld [vmem:[%s7286 + $0x2a9] sm:$0xff]
    %v7533 = vld [vmem:[%s7286 + $0x2b9] sm:$0xff]
    %v7534 = vld [vmem:[%s7286 + $0x2c1] sm:$0xff]
    %v7535 = vld [vmem:[%s7286 + $0x2d1] sm:$0xff]
    %v7536 = vld [vmem:[%s7286 + $0x2d9] sm:$0xff]
    %v7537 = vld [vmem:[%s7286 + $0x2e9] sm:$0xff]
    %v7538 = vld [vmem:[%s7286 + $0x2f1] sm:$0xff]
    %v7539 = vld [vmem:[%s7286 + $0x301] sm:$0xff]
    %v7540 = vld [vmem:[%s7286 + $0x309] sm:$0xff]
    %v7541 = vld [vmem:[%s7286 + $0x319] sm:$0xff]
    %v7542 = vld [vmem:[%s7286 + $0x321] sm:$0xff]
    %v7543 = vpack.c.bf16 %v7479, %v7479
    %v7544 = vpack.c.bf16 %v7480, %v7480
    %v7545 = vpack.c.bf16 %v7481, %v7481
    %v7546 = vpack.c.bf16 %v7482, %v7482
    %v7547 = vpack.c.bf16 %v7483, %v7483
    %v7548 = vpack.c.bf16 %v7484, %v7484
    %v7549 = vpack.c.bf16 %v7485, %v7485
    %v7550 = vpack.c.bf16 %v7486, %v7486
    %v7551 = vpack.c.bf16 %v7487, %v7487
    %v7552 = vpack.c.bf16 %v7488, %v7488
    %v7553 = vpack.c.bf16 %v7489, %v7489
    %v7554 = vpack.c.bf16 %v7490, %v7490
    %v7555 = vpack.c.bf16 %v7491, %v7491
    %v7556 = vpack.c.bf16 %v7492, %v7492
    %v7557 = vpack.c.bf16 %v7493, %v7493
    %v7558 = vpack.c.bf16 %v7494, %v7494
    %v7559 = vpack.c.bf16 %v7495, %v7495
    %v7560 = vpack.c.bf16 %v7496, %v7496
    %v7561 = vpack.c.bf16 %v7497, %v7497
    %v7562 = vpack.c.bf16 %v7498, %v7498
    %v7563 = vpack.c.bf16 %v7499, %v7499
    %v7564 = vpack.c.bf16 %v7500, %v7500
    %v7565 = vpack.c.bf16 %v7501, %v7501
    %v7566 = vpack.c.bf16 %v7502, %v7502
    %v7567 = vpack.c.bf16 %v7503, %v7503
    %v7568 = vpack.c.bf16 %v7504, %v7504
    %v7569 = vpack.c.bf16 %v7505, %v7505
    %v7570 = vpack.c.bf16 %v7506, %v7506
    %v7571 = vpack.c.bf16 %v7507, %v7507
    %v7572 = vpack.c.bf16 %v7508, %v7508
    %v7573 = vpack.c.bf16 %v7509, %v7509
    %v7574 = vpack.c.bf16 %v7510, %v7510
    %v7575 = vpack.c.bf16 %v7511, %v7511
    %v7576 = vpack.c.bf16 %v7512, %v7512
    %v7577 = vpack.c.bf16 %v7513, %v7513
    %v7578 = vpack.c.bf16 %v7514, %v7514
    %v7579 = vpack.c.bf16 %v7515, %v7515
    %v7580 = vpack.c.bf16 %v7516, %v7516
    %v7581 = vpack.c.bf16 %v7517, %v7517
    %v7582 = vpack.c.bf16 %v7518, %v7518
    %v7583 = vpack.c.bf16 %v7519, %v7519
    %v7584 = vpack.c.bf16 %v7520, %v7520
    %v7585 = vpack.c.bf16 %v7521, %v7521
    %v7586 = vpack.c.bf16 %v7522, %v7522
    %v7587 = vpack.c.bf16 %v7523, %v7523
    %v7588 = vpack.c.bf16 %v7524, %v7524
    %v7589 = vpack.c.bf16 %v7525, %v7525
    %v7590 = vpack.c.bf16 %v7526, %v7526
    %v7591 = vpack.c.bf16 %v7527, %v7527
    %v7592 = vpack.c.bf16 %v7528, %v7528
    %v7593 = vpack.c.bf16 %v7529, %v7529
    %v7594 = vpack.c.bf16 %v7530, %v7530
    %v7595 = vpack.c.bf16 %v7531, %v7531
    %v7596 = vpack.c.bf16 %v7532, %v7532
    %v7597 = vpack.c.bf16 %v7533, %v7533
    %v7598 = vpack.c.bf16 %v7534, %v7534
    %v7599 = vpack.c.bf16 %v7535, %v7535
    %v7600 = vpack.c.bf16 %v7536, %v7536
    %v7601 = vpack.c.bf16 %v7537, %v7537
    %v7602 = vpack.c.bf16 %v7538, %v7538
    %v7603 = vpack.c.bf16 %v7539, %v7539
    %v7604 = vpack.c.bf16 %v7540, %v7540
    %v7605 = vpack.c.bf16 %v7541, %v7541
    %v7606 = vpack.c.bf16 %v7542, %v7542
    %7607 = vst [vmem:[#allocation5 + $0x1c] sm:$0xf] %v7543
    %7608 = vst [vmem:[#allocation5 + $0x40] sm:$0xf] %v7544
    %7609 = vst [vmem:[#allocation5 + $0x64] sm:$0xf] %v7545
    %7610 = vst [vmem:[#allocation5 + $0x88] sm:$0xf] %v7546
    %7611 = vst [vmem:[#allocation5 + $0xac] sm:$0xf] %v7547
    %7612 = vst [vmem:[#allocation5 + $0xd0] sm:$0xf] %v7548
    %7613 = vst [vmem:[#allocation5 + $0xf4] sm:$0xf] %v7549
    %7614 = vst [vmem:[#allocation5 + $0x118] sm:$0xf] %v7550
    %7615 = vst [vmem:[#allocation5 + $0x13c] sm:$0xf] %v7551
    %7616 = vst [vmem:[#allocation5 + $0x160] sm:$0xf] %v7552
    %7617 = vst [vmem:[#allocation5 + $0x184] sm:$0xf] %v7553
    %7618 = vst [vmem:[#allocation5 + $0x1a8] sm:$0xf] %v7554
    %7619 = vst [vmem:[#allocation5 + $0x1cc] sm:$0xf] %v7555
    %7620 = vst [vmem:[#allocation5 + $0x1f0] sm:$0xf] %v7556
    %7621 = vst [vmem:[#allocation5 + $0x214] sm:$0xf] %v7557
    %7622 = vst [vmem:[#allocation5 + $0x238] sm:$0xf] %v7558
    %7623 = vst [vmem:[#allocation5 + $0x25c] sm:$0xf] %v7559
    %7624 = vst [vmem:[#allocation5 + $0x280] sm:$0xf] %v7560
    %7625 = vst [vmem:[#allocation5 + $0x2a4] sm:$0xf] %v7561
    %7626 = vst [vmem:[#allocation5 + $0x2c8] sm:$0xf] %v7562
    %7627 = vst [vmem:[#allocation5 + $0x2ec] sm:$0xf] %v7563
    %7628 = vst [vmem:[#allocation5 + $0x310] sm:$0xf] %v7564
    %7629 = vst [vmem:[#allocation5 + $0x334] sm:$0xf] %v7565
    %7630 = vst [vmem:[#allocation5 + $0x358] sm:$0xf] %v7566
    %7631 = vst [vmem:[#allocation5 + $0x37c] sm:$0xf] %v7567
    %7632 = vst [vmem:[#allocation5 + $0x3a0] sm:$0xf] %v7568
    %7633 = vst [vmem:[#allocation5 + $0x3c4] sm:$0xf] %v7569
    %7634 = vst [vmem:[#allocation5 + $0x3e8] sm:$0xf] %v7570
    %7635 = vst [vmem:[#allocation5 + $0x40c] sm:$0xf] %v7571
    %7636 = vst [vmem:[#allocation5 + $0x430] sm:$0xf] %v7572
    %7637 = vst [vmem:[#allocation5 + $0x454] sm:$0xf] %v7573
    %7638 = vst [vmem:[#allocation5 + $0x478] sm:$0xf] %v7574
    %7639 = vst [vmem:[#allocation5 + $0x49c] sm:$0xf] %v7575
    %7640 = vst [vmem:[#allocation5 + $0x4c0] sm:$0xf] %v7576
    %7641 = vst [vmem:[#allocation5 + $0x4e4] sm:$0xf] %v7577
    %7642 = vst [vmem:[#allocation5 + $0x508] sm:$0xf] %v7578
    %7643 = vst [vmem:[#allocation5 + $0x52c] sm:$0xf] %v7579
    %7644 = vst [vmem:[#allocation5 + $0x550] sm:$0xf] %v7580
    %7645 = vst [vmem:[#allocation5 + $0x574] sm:$0xf] %v7581
    %7646 = vst [vmem:[#allocation5 + $0x598] sm:$0xf] %v7582
    %7647 = vst [vmem:[#allocation5 + $0x5bc] sm:$0xf] %v7583
    %7648 = vst [vmem:[#allocation5 + $0x5e0] sm:$0xf] %v7584
    %7649 = vst [vmem:[#allocation5 + $0x604] sm:$0xf] %v7585
    %7650 = vst [vmem:[#allocation5 + $0x628] sm:$0xf] %v7586
    %7651 = vst [vmem:[#allocation5 + $0x64c] sm:$0xf] %v7587
    %7652 = vst [vmem:[#allocation5 + $0x670] sm:$0xf] %v7588
    %7653 = vst [vmem:[#allocation5 + $0x694] sm:$0xf] %v7589
    %7654 = vst [vmem:[#allocation5 + $0x6b8] sm:$0xf] %v7590
    %7655 = vst [vmem:[#allocation5 + $0x6dc] sm:$0xf] %v7591
    %7656 = vst [vmem:[#allocation5 + $0x700] sm:$0xf] %v7592
    %7657 = vst [vmem:[#allocation5 + $0x724] sm:$0xf] %v7593
    %7658 = vst [vmem:[#allocation5 + $0x748] sm:$0xf] %v7594
    %7659 = vst [vmem:[#allocation5 + $0x76c] sm:$0xf] %v7595
    %7660 = vst [vmem:[#allocation5 + $0x790] sm:$0xf] %v7596
    %7661 = vst [vmem:[#allocation5 + $0x7b4] sm:$0xf] %v7597
    %7662 = vst [vmem:[#allocation5 + $0x7d8] sm:$0xf] %v7598
    %7663 = vst [vmem:[#allocation5 + $0x7fc] sm:$0xf] %v7599
    %7664 = vst [vmem:[#allocation5 + $0x820] sm:$0xf] %v7600
    %7665 = vst [vmem:[#allocation5 + $0x844] sm:$0xf] %v7601
    %7666 = vst [vmem:[#allocation5 + $0x868] sm:$0xf] %v7602
    %7667 = vst [vmem:[#allocation5 + $0x88c] sm:$0xf] %v7603
    %7668 = vst [vmem:[#allocation5 + $0x8b0] sm:$0xf] %v7604
    %7669 = vst [vmem:[#allocation5 + $0x8d4] sm:$0xf] %v7605
    %7670 = vst [vmem:[#allocation5 + $0x8f8] sm:$0xf] %v7606
    %v7671 = vld [vmem:[%s7286 + $0x2] sm:$0xff]
    %v7672 = vld [vmem:[%s7286 + $0xa] sm:$0xff]
    %v7673 = vld [vmem:[%s7286 + $0x1a] sm:$0xff]
    %v7674 = vld [vmem:[%s7286 + $0x22] sm:$0xff]
    %v7675 = vld [vmem:[%s7286 + $0x32] sm:$0xff]
    %v7676 = vld [vmem:[%s7286 + $0x3a] sm:$0xff]
    %v7677 = vld [vmem:[%s7286 + $0x4a] sm:$0xff]
    %v7678 = vld [vmem:[%s7286 + $0x52] sm:$0xff]
    %v7679 = vld [vmem:[%s7286 + $0x62] sm:$0xff]
    %v7680 = vld [vmem:[%s7286 + $0x6a] sm:$0xff]
    %v7681 = vld [vmem:[%s7286 + $0x7a] sm:$0xff]
    %v7682 = vld [vmem:[%s7286 + $0x82] sm:$0xff]
    %v7683 = vld [vmem:[%s7286 + $0x92] sm:$0xff]
    %v7684 = vld [vmem:[%s7286 + $0x9a] sm:$0xff]
    %v7685 = vld [vmem:[%s7286 + $0xaa] sm:$0xff]
    %v7686 = vld [vmem:[%s7286 + $0xb2] sm:$0xff]
    %v7687 = vld [vmem:[%s7286 + $0xc2] sm:$0xff]
    %v7688 = vld [vmem:[%s7286 + $0xca] sm:$0xff]
    %v7689 = vld [vmem:[%s7286 + $0xda] sm:$0xff]
    %v7690 = vld [vmem:[%s7286 + $0xe2] sm:$0xff]
    %v7691 = vld [vmem:[%s7286 + $0xf2] sm:$0xff]
    %v7692 = vld [vmem:[%s7286 + $0xfa] sm:$0xff]
    %v7693 = vld [vmem:[%s7286 + $0x10a] sm:$0xff]
    %v7694 = vld [vmem:[%s7286 + $0x112] sm:$0xff]
    %v7695 = vld [vmem:[%s7286 + $0x122] sm:$0xff]
    %v7696 = vld [vmem:[%s7286 + $0x12a] sm:$0xff]
    %v7697 = vld [vmem:[%s7286 + $0x13a] sm:$0xff]
    %v7698 = vld [vmem:[%s7286 + $0x142] sm:$0xff]
    %v7699 = vld [vmem:[%s7286 + $0x152] sm:$0xff]
    %v7700 = vld [vmem:[%s7286 + $0x15a] sm:$0xff]
    %v7701 = vld [vmem:[%s7286 + $0x16a] sm:$0xff]
    %v7702 = vld [vmem:[%s7286 + $0x172] sm:$0xff]
    %v7703 = vld [vmem:[%s7286 + $0x1b2] sm:$0xff]
    %v7704 = vld [vmem:[%s7286 + $0x1ba] sm:$0xff]
    %v7705 = vld [vmem:[%s7286 + $0x1ca] sm:$0xff]
    %v7706 = vld [vmem:[%s7286 + $0x1d2] sm:$0xff]
    %v7707 = vld [vmem:[%s7286 + $0x1e2] sm:$0xff]
    %v7708 = vld [vmem:[%s7286 + $0x1ea] sm:$0xff]
    %v7709 = vld [vmem:[%s7286 + $0x1fa] sm:$0xff]
    %v7710 = vld [vmem:[%s7286 + $0x202] sm:$0xff]
    %v7711 = vld [vmem:[%s7286 + $0x212] sm:$0xff]
    %v7712 = vld [vmem:[%s7286 + $0x21a] sm:$0xff]
    %v7713 = vld [vmem:[%s7286 + $0x22a] sm:$0xff]
    %v7714 = vld [vmem:[%s7286 + $0x232] sm:$0xff]
    %v7715 = vld [vmem:[%s7286 + $0x242] sm:$0xff]
    %v7716 = vld [vmem:[%s7286 + $0x24a] sm:$0xff]
    %v7717 = vld [vmem:[%s7286 + $0x25a] sm:$0xff]
    %v7718 = vld [vmem:[%s7286 + $0x262] sm:$0xff]
    %v7719 = vld [vmem:[%s7286 + $0x272] sm:$0xff]
    %v7720 = vld [vmem:[%s7286 + $0x27a] sm:$0xff]
    %v7721 = vld [vmem:[%s7286 + $0x28a] sm:$0xff]
    %v7722 = vld [vmem:[%s7286 + $0x292] sm:$0xff]
    %v7723 = vld [vmem:[%s7286 + $0x2a2] sm:$0xff]
    %v7724 = vld [vmem:[%s7286 + $0x2aa] sm:$0xff]
    %v7725 = vld [vmem:[%s7286 + $0x2ba] sm:$0xff]
    %v7726 = vld [vmem:[%s7286 + $0x2c2] sm:$0xff]
    %v7727 = vld [vmem:[%s7286 + $0x2d2] sm:$0xff]
    %v7728 = vld [vmem:[%s7286 + $0x2da] sm:$0xff]
    %v7729 = vld [vmem:[%s7286 + $0x2ea] sm:$0xff]
    %v7730 = vld [vmem:[%s7286 + $0x2f2] sm:$0xff]
    %v7731 = vld [vmem:[%s7286 + $0x302] sm:$0xff]
    %v7732 = vld [vmem:[%s7286 + $0x30a] sm:$0xff]
    %v7733 = vld [vmem:[%s7286 + $0x31a] sm:$0xff]
    %v7734 = vld [vmem:[%s7286 + $0x322] sm:$0xff]
    %v7735 = vpack.c.bf16 %v7671, %v7671
    %v7736 = vpack.c.bf16 %v7672, %v7672
    %v7737 = vpack.c.bf16 %v7673, %v7673
    %v7738 = vpack.c.bf16 %v7674, %v7674
    %v7739 = vpack.c.bf16 %v7675, %v7675
    %v7740 = vpack.c.bf16 %v7676, %v7676
    %v7741 = vpack.c.bf16 %v7677, %v7677
    %v7742 = vpack.c.bf16 %v7678, %v7678
    %v7743 = vpack.c.bf16 %v7679, %v7679
    %v7744 = vpack.c.bf16 %v7680, %v7680
    %v7745 = vpack.c.bf16 %v7681, %v7681
    %v7746 = vpack.c.bf16 %v7682, %v7682
    %v7747 = vpack.c.bf16 %v7683, %v7683
    %v7748 = vpack.c.bf16 %v7684, %v7684
    %v7749 = vpack.c.bf16 %v7685, %v7685
    %v7750 = vpack.c.bf16 %v7686, %v7686
    %v7751 = vpack.c.bf16 %v7687, %v7687
    %v7752 = vpack.c.bf16 %v7688, %v7688
    %v7753 = vpack.c.bf16 %v7689, %v7689
    %v7754 = vpack.c.bf16 %v7690, %v7690
    %v7755 = vpack.c.bf16 %v7691, %v7691
    %v7756 = vpack.c.bf16 %v7692, %v7692
    %v7757 = vpack.c.bf16 %v7693, %v7693
    %v7758 = vpack.c.bf16 %v7694, %v7694
    %v7759 = vpack.c.bf16 %v7695, %v7695
    %v7760 = vpack.c.bf16 %v7696, %v7696
    %v7761 = vpack.c.bf16 %v7697, %v7697
    %v7762 = vpack.c.bf16 %v7698, %v7698
    %v7763 = vpack.c.bf16 %v7699, %v7699
    %v7764 = vpack.c.bf16 %v7700, %v7700
    %v7765 = vpack.c.bf16 %v7701, %v7701
    %v7766 = vpack.c.bf16 %v7702, %v7702
    %v7767 = vpack.c.bf16 %v7703, %v7703
    %v7768 = vpack.c.bf16 %v7704, %v7704
    %v7769 = vpack.c.bf16 %v7705, %v7705
    %v7770 = vpack.c.bf16 %v7706, %v7706
    %v7771 = vpack.c.bf16 %v7707, %v7707
    %v7772 = vpack.c.bf16 %v7708, %v7708
    %v7773 = vpack.c.bf16 %v7709, %v7709
    %v7774 = vpack.c.bf16 %v7710, %v7710
    %v7775 = vpack.c.bf16 %v7711, %v7711
    %v7776 = vpack.c.bf16 %v7712, %v7712
    %v7777 = vpack.c.bf16 %v7713, %v7713
    %v7778 = vpack.c.bf16 %v7714, %v7714
    %v7779 = vpack.c.bf16 %v7715, %v7715
    %v7780 = vpack.c.bf16 %v7716, %v7716
    %v7781 = vpack.c.bf16 %v7717, %v7717
    %v7782 = vpack.c.bf16 %v7718, %v7718
    %v7783 = vpack.c.bf16 %v7719, %v7719
    %v7784 = vpack.c.bf16 %v7720, %v7720
    %v7785 = vpack.c.bf16 %v7721, %v7721
    %v7786 = vpack.c.bf16 %v7722, %v7722
    %v7787 = vpack.c.bf16 %v7723, %v7723
    %v7788 = vpack.c.bf16 %v7724, %v7724
    %v7789 = vpack.c.bf16 %v7725, %v7725
    %v7790 = vpack.c.bf16 %v7726, %v7726
    %v7791 = vpack.c.bf16 %v7727, %v7727
    %v7792 = vpack.c.bf16 %v7728, %v7728
    %v7793 = vpack.c.bf16 %v7729, %v7729
    %v7794 = vpack.c.bf16 %v7730, %v7730
    %v7795 = vpack.c.bf16 %v7731, %v7731
    %v7796 = vpack.c.bf16 %v7732, %v7732
    %v7797 = vpack.c.bf16 %v7733, %v7733
    %v7798 = vpack.c.bf16 %v7734, %v7734
    %7799 = vst [vmem:[#allocation5 + $0x20] sm:$0xf] %v7735
    %7800 = vst [vmem:[#allocation5 + $0x44] sm:$0xf] %v7736
    %7801 = vst [vmem:[#allocation5 + $0x68] sm:$0xf] %v7737
    %7802 = vst [vmem:[#allocation5 + $0x8c] sm:$0xf] %v7738
    %7803 = vst [vmem:[#allocation5 + $0xb0] sm:$0xf] %v7739
    %7804 = vst [vmem:[#allocation5 + $0xd4] sm:$0xf] %v7740
    %7805 = vst [vmem:[#allocation5 + $0xf8] sm:$0xf] %v7741
    %7806 = vst [vmem:[#allocation5 + $0x11c] sm:$0xf] %v7742
    %7807 = vst [vmem:[#allocation5 + $0x140] sm:$0xf] %v7743
    %7808 = vst [vmem:[#allocation5 + $0x164] sm:$0xf] %v7744
    %7809 = vst [vmem:[#allocation5 + $0x188] sm:$0xf] %v7745
    %7810 = vst [vmem:[#allocation5 + $0x1ac] sm:$0xf] %v7746
    %7811 = vst [vmem:[#allocation5 + $0x1d0] sm:$0xf] %v7747
    %7812 = vst [vmem:[#allocation5 + $0x1f4] sm:$0xf] %v7748
    %7813 = vst [vmem:[#allocation5 + $0x218] sm:$0xf] %v7749
    %7814 = vst [vmem:[#allocation5 + $0x23c] sm:$0xf] %v7750
    %7815 = vst [vmem:[#allocation5 + $0x260] sm:$0xf] %v7751
    %7816 = vst [vmem:[#allocation5 + $0x284] sm:$0xf] %v7752
    %7817 = vst [vmem:[#allocation5 + $0x2a8] sm:$0xf] %v7753
    %7818 = vst [vmem:[#allocation5 + $0x2cc] sm:$0xf] %v7754
    %7819 = vst [vmem:[#allocation5 + $0x2f0] sm:$0xf] %v7755
    %7820 = vst [vmem:[#allocation5 + $0x314] sm:$0xf] %v7756
    %7821 = vst [vmem:[#allocation5 + $0x338] sm:$0xf] %v7757
    %7822 = vst [vmem:[#allocation5 + $0x35c] sm:$0xf] %v7758
    %7823 = vst [vmem:[#allocation5 + $0x380] sm:$0xf] %v7759
    %7824 = vst [vmem:[#allocation5 + $0x3a4] sm:$0xf] %v7760
    %7825 = vst [vmem:[#allocation5 + $0x3c8] sm:$0xf] %v7761
    %7826 = vst [vmem:[#allocation5 + $0x3ec] sm:$0xf] %v7762
    %7827 = vst [vmem:[#allocation5 + $0x410] sm:$0xf] %v7763
    %7828 = vst [vmem:[#allocation5 + $0x434] sm:$0xf] %v7764
    %7829 = vst [vmem:[#allocation5 + $0x458] sm:$0xf] %v7765
    %7830 = vst [vmem:[#allocation5 + $0x47c] sm:$0xf] %v7766
    %7831 = vst [vmem:[#allocation5 + $0x4a0] sm:$0xf] %v7767
    %7832 = vst [vmem:[#allocation5 + $0x4c4] sm:$0xf] %v7768
    %7833 = vst [vmem:[#allocation5 + $0x4e8] sm:$0xf] %v7769
    %7834 = vst [vmem:[#allocation5 + $0x50c] sm:$0xf] %v7770
    %7835 = vst [vmem:[#allocation5 + $0x530] sm:$0xf] %v7771
    %7836 = vst [vmem:[#allocation5 + $0x554] sm:$0xf] %v7772
    %7837 = vst [vmem:[#allocation5 + $0x578] sm:$0xf] %v7773
    %7838 = vst [vmem:[#allocation5 + $0x59c] sm:$0xf] %v7774
    %7839 = vst [vmem:[#allocation5 + $0x5c0] sm:$0xf] %v7775
    %7840 = vst [vmem:[#allocation5 + $0x5e4] sm:$0xf] %v7776
    %7841 = vst [vmem:[#allocation5 + $0x608] sm:$0xf] %v7777
    %7842 = vst [vmem:[#allocation5 + $0x62c] sm:$0xf] %v7778
    %7843 = vst [vmem:[#allocation5 + $0x650] sm:$0xf] %v7779
    %7844 = vst [vmem:[#allocation5 + $0x674] sm:$0xf] %v7780
    %7845 = vst [vmem:[#allocation5 + $0x698] sm:$0xf] %v7781
    %7846 = vst [vmem:[#allocation5 + $0x6bc] sm:$0xf] %v7782
    %7847 = vst [vmem:[#allocation5 + $0x6e0] sm:$0xf] %v7783
    %7848 = vst [vmem:[#allocation5 + $0x704] sm:$0xf] %v7784
    %7849 = vst [vmem:[#allocation5 + $0x728] sm:$0xf] %v7785
    %7850 = vst [vmem:[#allocation5 + $0x74c] sm:$0xf] %v7786
    %7851 = vst [vmem:[#allocation5 + $0x770] sm:$0xf] %v7787
    %7852 = vst [vmem:[#allocation5 + $0x794] sm:$0xf] %v7788
    %7853 = vst [vmem:[#allocation5 + $0x7b8] sm:$0xf] %v7789
    %7854 = vst [vmem:[#allocation5 + $0x7dc] sm:$0xf] %v7790
    %7855 = vst [vmem:[#allocation5 + $0x800] sm:$0xf] %v7791
    %7856 = vst [vmem:[#allocation5 + $0x824] sm:$0xf] %v7792
    %7857 = vst [vmem:[#allocation5 + $0x848] sm:$0xf] %v7793
    %7858 = vst [vmem:[#allocation5 + $0x86c] sm:$0xf] %v7794
    %7859 = vst [vmem:[#allocation5 + $0x890] sm:$0xf] %v7795
    %7860 = vst [vmem:[#allocation5 + $0x8b4] sm:$0xf] %v7796
    %7861 = vst [vmem:[#allocation5 + $0x8d8] sm:$0xf] %v7797
    %7862 = vst [vmem:[#allocation5 + $0x8fc] sm:$0xf] %v7798
    %v7863 = vld [vmem:[#allocation5] sm:$0xff]
    %v7864 = vld [vmem:[#allocation5 + $0x8] sm:$0xff]
    %v7865 = vld [vmem:[#allocation5 + $0x10] sm:$0xff]
    %v7866 = vld [vmem:[#allocation5 + $0x18] sm:$0xff]
    %v7867 = vld [vmem:[#allocation5 + $0x20] sm:$0xf]
    %v7868 = vld [vmem:[#allocation5 + $0x24] sm:$0xff]
    %v7869 = vld [vmem:[#allocation5 + $0x2c] sm:$0xff]
    %v7870 = vld [vmem:[#allocation5 + $0x34] sm:$0xff]
    %v7871 = vld [vmem:[#allocation5 + $0x3c] sm:$0xff]
    %v7872 = vld [vmem:[#allocation5 + $0x44] sm:$0xf]
    %v7873 = vld [vmem:[#allocation5 + $0x48] sm:$0xff]
    %v7874 = vld [vmem:[#allocation5 + $0x50] sm:$0xff]
    %v7875 = vld [vmem:[#allocation5 + $0x58] sm:$0xff]
    %v7876 = vld [vmem:[#allocation5 + $0x60] sm:$0xff]
    %v7877 = vld [vmem:[#allocation5 + $0x68] sm:$0xf]
    %v7878 = vld [vmem:[#allocation5 + $0x6c] sm:$0xff]
    %v7879 = vld [vmem:[#allocation5 + $0x74] sm:$0xff]
    %v7880 = vld [vmem:[#allocation5 + $0x7c] sm:$0xff]
    %v7881 = vld [vmem:[#allocation5 + $0x84] sm:$0xff]
    %v7882 = vld [vmem:[#allocation5 + $0x8c] sm:$0xf]
    %v7883 = vld [vmem:[#allocation5 + $0x90] sm:$0xff]
    %v7884 = vld [vmem:[#allocation5 + $0x98] sm:$0xff]
    %v7885 = vld [vmem:[#allocation5 + $0xa0] sm:$0xff]
    %v7886 = vld [vmem:[#allocation5 + $0xa8] sm:$0xff]
    %v7887 = vld [vmem:[#allocation5 + $0xb0] sm:$0xf]
    %v7888 = vld [vmem:[#allocation5 + $0xb4] sm:$0xff]
    %v7889 = vld [vmem:[#allocation5 + $0xbc] sm:$0xff]
    %v7890 = vld [vmem:[#allocation5 + $0xc4] sm:$0xff]
    %v7891 = vld [vmem:[#allocation5 + $0xcc] sm:$0xff]
    %v7892 = vld [vmem:[#allocation5 + $0xd4] sm:$0xf]
    %v7893 = vld [vmem:[#allocation5 + $0xd8] sm:$0xff]
    %v7894 = vld [vmem:[#allocation5 + $0xe0] sm:$0xff]
    %v7895 = vld [vmem:[#allocation5 + $0xe8] sm:$0xff]
    %v7896 = vld [vmem:[#allocation5 + $0xf0] sm:$0xff]
    %v7897 = vld [vmem:[#allocation5 + $0xf8] sm:$0xf]
    %v7898 = vld [vmem:[#allocation5 + $0xfc] sm:$0xff]
    %v7899 = vld [vmem:[#allocation5 + $0x104] sm:$0xff]
    %v7900 = vld [vmem:[#allocation5 + $0x10c] sm:$0xff]
    %v7901 = vld [vmem:[#allocation5 + $0x114] sm:$0xff]
    %v7902 = vld [vmem:[#allocation5 + $0x11c] sm:$0xf]
    %v7903 = vld [vmem:[#allocation5 + $0x120] sm:$0xff]
    %v7904 = vld [vmem:[#allocation5 + $0x128] sm:$0xff]
    %v7905 = vld [vmem:[#allocation5 + $0x130] sm:$0xff]
    %v7906 = vld [vmem:[#allocation5 + $0x138] sm:$0xff]
    %v7907 = vld [vmem:[#allocation5 + $0x140] sm:$0xf]
    %v7908 = vld [vmem:[#allocation5 + $0x144] sm:$0xff]
    %v7909 = vld [vmem:[#allocation5 + $0x14c] sm:$0xff]
    %v7910 = vld [vmem:[#allocation5 + $0x154] sm:$0xff]
    %v7911 = vld [vmem:[#allocation5 + $0x15c] sm:$0xff]
    %v7912 = vld [vmem:[#allocation5 + $0x164] sm:$0xf]
    %v7913 = vld [vmem:[#allocation5 + $0x168] sm:$0xff]
    %v7914 = vld [vmem:[#allocation5 + $0x170] sm:$0xff]
    %v7915 = vld [vmem:[#allocation5 + $0x178] sm:$0xff]
    %v7916 = vld [vmem:[#allocation5 + $0x180] sm:$0xff]
    %v7917 = vld [vmem:[#allocation5 + $0x188] sm:$0xf]
    %v7918 = vld [vmem:[#allocation5 + $0x18c] sm:$0xff]
    %v7919 = vld [vmem:[#allocation5 + $0x194] sm:$0xff]
    %v7920 = vld [vmem:[#allocation5 + $0x19c] sm:$0xff]
    %v7921 = vld [vmem:[#allocation5 + $0x1a4] sm:$0xff]
    %v7922 = vld [vmem:[#allocation5 + $0x1ac] sm:$0xf]
    %v7923 = vld [vmem:[#allocation5 + $0x1b0] sm:$0xff]
    %v7924 = vld [vmem:[#allocation5 + $0x1b8] sm:$0xff]
    %v7925 = vld [vmem:[#allocation5 + $0x1c0] sm:$0xff]
    %v7926 = vld [vmem:[#allocation5 + $0x1c8] sm:$0xff]
    %v7927 = vld [vmem:[#allocation5 + $0x1d0] sm:$0xf]
    %v7928 = vld [vmem:[#allocation5 + $0x1d4] sm:$0xff]
    %v7929 = vld [vmem:[#allocation5 + $0x1dc] sm:$0xff]
    %v7930 = vld [vmem:[#allocation5 + $0x1e4] sm:$0xff]
    %v7931 = vld [vmem:[#allocation5 + $0x1ec] sm:$0xff]
    %v7932 = vld [vmem:[#allocation5 + $0x1f4] sm:$0xf]
    %v7933 = vld [vmem:[#allocation5 + $0x1f8] sm:$0xff]
    %v7934 = vld [vmem:[#allocation5 + $0x200] sm:$0xff]
    %v7935 = vld [vmem:[#allocation5 + $0x208] sm:$0xff]
    %v7936 = vld [vmem:[#allocation5 + $0x210] sm:$0xff]
    %v7937 = vld [vmem:[#allocation5 + $0x218] sm:$0xf]
    %v7938 = vld [vmem:[#allocation5 + $0x21c] sm:$0xff]
    %v7939 = vld [vmem:[#allocation5 + $0x224] sm:$0xff]
    %v7940 = vld [vmem:[#allocation5 + $0x22c] sm:$0xff]
    %v7941 = vld [vmem:[#allocation5 + $0x234] sm:$0xff]
    %v7942 = vld [vmem:[#allocation5 + $0x23c] sm:$0xf]
    %v7943 = vld [vmem:[#allocation5 + $0x240] sm:$0xff]
    %v7944 = vld [vmem:[#allocation5 + $0x248] sm:$0xff]
    %v7945 = vld [vmem:[#allocation5 + $0x250] sm:$0xff]
    %v7946 = vld [vmem:[#allocation5 + $0x258] sm:$0xff]
    %v7947 = vld [vmem:[#allocation5 + $0x260] sm:$0xf]
    %v7948 = vld [vmem:[#allocation5 + $0x264] sm:$0xff]
    %v7949 = vld [vmem:[#allocation5 + $0x26c] sm:$0xff]
    %v7950 = vld [vmem:[#allocation5 + $0x274] sm:$0xff]
    %v7951 = vld [vmem:[#allocation5 + $0x27c] sm:$0xff]
    %v7952 = vld [vmem:[#allocation5 + $0x284] sm:$0xf]
    %v7953 = vld [vmem:[#allocation5 + $0x288] sm:$0xff]
    %v7954 = vld [vmem:[#allocation5 + $0x290] sm:$0xff]
    %v7955 = vld [vmem:[#allocation5 + $0x298] sm:$0xff]
    %v7956 = vld [vmem:[#allocation5 + $0x2a0] sm:$0xff]
    %v7957 = vld [vmem:[#allocation5 + $0x2a8] sm:$0xf]
    %v7958 = vld [vmem:[#allocation5 + $0x2ac] sm:$0xff]
    %v7959 = vld [vmem:[#allocation5 + $0x2b4] sm:$0xff]
    %v7960 = vld [vmem:[#allocation5 + $0x2bc] sm:$0xff]
    %v7961 = vld [vmem:[#allocation5 + $0x2c4] sm:$0xff]
    %v7962 = vld [vmem:[#allocation5 + $0x2cc] sm:$0xf]
    %v7963 = vld [vmem:[#allocation5 + $0x2d0] sm:$0xff]
    %v7964 = vld [vmem:[#allocation5 + $0x2d8] sm:$0xff]
    %v7965 = vld [vmem:[#allocation5 + $0x2e0] sm:$0xff]
    %v7966 = vld [vmem:[#allocation5 + $0x2e8] sm:$0xff]
    %v7967 = vld [vmem:[#allocation5 + $0x2f0] sm:$0xf]
    %v7968 = vld [vmem:[#allocation5 + $0x2f4] sm:$0xff]
    %v7969 = vld [vmem:[#allocation5 + $0x2fc] sm:$0xff]
    %v7970 = vld [vmem:[#allocation5 + $0x304] sm:$0xff]
    %v7971 = vld [vmem:[#allocation5 + $0x30c] sm:$0xff]
    %v7972 = vld [vmem:[#allocation5 + $0x314] sm:$0xf]
    %v7973 = vld [vmem:[#allocation5 + $0x318] sm:$0xff]
    %v7974 = vld [vmem:[#allocation5 + $0x320] sm:$0xff]
    %v7975 = vld [vmem:[#allocation5 + $0x328] sm:$0xff]
    %v7976 = vld [vmem:[#allocation5 + $0x330] sm:$0xff]
    %v7977 = vld [vmem:[#allocation5 + $0x338] sm:$0xf]
    %v7978 = vld [vmem:[#allocation5 + $0x33c] sm:$0xff]
    %v7979 = vld [vmem:[#allocation5 + $0x344] sm:$0xff]
    %v7980 = vld [vmem:[#allocation5 + $0x34c] sm:$0xff]
    %v7981 = vld [vmem:[#allocation5 + $0x354] sm:$0xff]
    %v7982 = vld [vmem:[#allocation5 + $0x35c] sm:$0xf]
    %v7983 = vld [vmem:[#allocation5 + $0x360] sm:$0xff]
    %v7984 = vld [vmem:[#allocation5 + $0x368] sm:$0xff]
    %v7985 = vld [vmem:[#allocation5 + $0x370] sm:$0xff]
    %v7986 = vld [vmem:[#allocation5 + $0x378] sm:$0xff]
    %v7987 = vld [vmem:[#allocation5 + $0x380] sm:$0xf]
    %v7988 = vld [vmem:[#allocation5 + $0x384] sm:$0xff]
    %v7989 = vld [vmem:[#allocation5 + $0x38c] sm:$0xff]
    %v7990 = vld [vmem:[#allocation5 + $0x394] sm:$0xff]
    %v7991 = vld [vmem:[#allocation5 + $0x39c] sm:$0xff]
    %v7992 = vld [vmem:[#allocation5 + $0x3a4] sm:$0xf]
    %v7993 = vld [vmem:[#allocation5 + $0x3a8] sm:$0xff]
    %v7994 = vld [vmem:[#allocation5 + $0x3b0] sm:$0xff]
    %v7995 = vld [vmem:[#allocation5 + $0x3b8] sm:$0xff]
    %v7996 = vld [vmem:[#allocation5 + $0x3c0] sm:$0xff]
    %v7997 = vld [vmem:[#allocation5 + $0x3c8] sm:$0xf]
    %v7998 = vld [vmem:[#allocation5 + $0x3cc] sm:$0xff]
    %v7999 = vld [vmem:[#allocation5 + $0x3d4] sm:$0xff]
    %v8000 = vld [vmem:[#allocation5 + $0x3dc] sm:$0xff]
    %v8001 = vld [vmem:[#allocation5 + $0x3e4] sm:$0xff]
    %v8002 = vld [vmem:[#allocation5 + $0x3ec] sm:$0xf]
    %v8003 = vld [vmem:[#allocation5 + $0x3f0] sm:$0xff]
    %v8004 = vld [vmem:[#allocation5 + $0x3f8] sm:$0xff]
    %v8005 = vld [vmem:[#allocation5 + $0x400] sm:$0xff]
    %v8006 = vld [vmem:[#allocation5 + $0x408] sm:$0xff]
    %v8007 = vld [vmem:[#allocation5 + $0x410] sm:$0xf]
    %v8008 = vld [vmem:[#allocation5 + $0x414] sm:$0xff]
    %v8009 = vld [vmem:[#allocation5 + $0x41c] sm:$0xff]
    %v8010 = vld [vmem:[#allocation5 + $0x424] sm:$0xff]
    %v8011 = vld [vmem:[#allocation5 + $0x42c] sm:$0xff]
    %v8012 = vld [vmem:[#allocation5 + $0x434] sm:$0xf]
    %v8013 = vld [vmem:[#allocation5 + $0x438] sm:$0xff]
    %v8014 = vld [vmem:[#allocation5 + $0x440] sm:$0xff]
    %v8015 = vld [vmem:[#allocation5 + $0x448] sm:$0xff]
    %v8016 = vld [vmem:[#allocation5 + $0x450] sm:$0xff]
    %v8017 = vld [vmem:[#allocation5 + $0x458] sm:$0xf]
    %v8018 = vld [vmem:[#allocation5 + $0x45c] sm:$0xff]
    %v8019 = vld [vmem:[#allocation5 + $0x464] sm:$0xff]
    %v8020 = vld [vmem:[#allocation5 + $0x46c] sm:$0xff]
    %v8021 = vld [vmem:[#allocation5 + $0x474] sm:$0xff]
    %v8022 = vld [vmem:[#allocation5 + $0x47c] sm:$0xf]
    %v8023 = vld [vmem:[#allocation5 + $0x480] sm:$0xff]
    %v8024 = vld [vmem:[#allocation5 + $0x488] sm:$0xff]
    %v8025 = vld [vmem:[#allocation5 + $0x490] sm:$0xff]
    %v8026 = vld [vmem:[#allocation5 + $0x498] sm:$0xff]
    %v8027 = vld [vmem:[#allocation5 + $0x4a0] sm:$0xf]
    %v8028 = vld [vmem:[#allocation5 + $0x4a4] sm:$0xff]
    %v8029 = vld [vmem:[#allocation5 + $0x4ac] sm:$0xff]
    %v8030 = vld [vmem:[#allocation5 + $0x4b4] sm:$0xff]
    %v8031 = vld [vmem:[#allocation5 + $0x4bc] sm:$0xff]
    %v8032 = vld [vmem:[#allocation5 + $0x4c4] sm:$0xf]
    %v8033 = vld [vmem:[#allocation5 + $0x4c8] sm:$0xff]
    %v8034 = vld [vmem:[#allocation5 + $0x4d0] sm:$0xff]
    %v8035 = vld [vmem:[#allocation5 + $0x4d8] sm:$0xff]
    %v8036 = vld [vmem:[#allocation5 + $0x4e0] sm:$0xff]
    %v8037 = vld [vmem:[#allocation5 + $0x4e8] sm:$0xf]
    %v8038 = vld [vmem:[#allocation5 + $0x4ec] sm:$0xff]
    %v8039 = vld [vmem:[#allocation5 + $0x4f4] sm:$0xff]
    %v8040 = vld [vmem:[#allocation5 + $0x4fc] sm:$0xff]
    %v8041 = vld [vmem:[#allocation5 + $0x504] sm:$0xff]
    %v8042 = vld [vmem:[#allocation5 + $0x50c] sm:$0xf]
    %v8043 = vld [vmem:[#allocation5 + $0x510] sm:$0xff]
    %v8044 = vld [vmem:[#allocation5 + $0x518] sm:$0xff]
    %v8045 = vld [vmem:[#allocation5 + $0x520] sm:$0xff]
    %v8046 = vld [vmem:[#allocation5 + $0x528] sm:$0xff]
    %v8047 = vld [vmem:[#allocation5 + $0x530] sm:$0xf]
    %v8048 = vld [vmem:[#allocation5 + $0x534] sm:$0xff]
    %v8049 = vld [vmem:[#allocation5 + $0x53c] sm:$0xff]
    %v8050 = vld [vmem:[#allocation5 + $0x544] sm:$0xff]
    %v8051 = vld [vmem:[#allocation5 + $0x54c] sm:$0xff]
    %v8052 = vld [vmem:[#allocation5 + $0x554] sm:$0xf]
    %v8053 = vld [vmem:[#allocation5 + $0x558] sm:$0xff]
    %v8054 = vld [vmem:[#allocation5 + $0x560] sm:$0xff]
    %v8055 = vld [vmem:[#allocation5 + $0x568] sm:$0xff]
    %v8056 = vld [vmem:[#allocation5 + $0x570] sm:$0xff]
    %v8057 = vld [vmem:[#allocation5 + $0x578] sm:$0xf]
    %v8058 = vld [vmem:[#allocation5 + $0x57c] sm:$0xff]
    %v8059 = vld [vmem:[#allocation5 + $0x584] sm:$0xff]
    %v8060 = vld [vmem:[#allocation5 + $0x58c] sm:$0xff]
    %v8061 = vld [vmem:[#allocation5 + $0x594] sm:$0xff]
    %v8062 = vld [vmem:[#allocation5 + $0x59c] sm:$0xf]
    %v8063 = vld [vmem:[#allocation5 + $0x5a0] sm:$0xff]
    %v8064 = vld [vmem:[#allocation5 + $0x5a8] sm:$0xff]
    %v8065 = vld [vmem:[#allocation5 + $0x5b0] sm:$0xff]
    %v8066 = vld [vmem:[#allocation5 + $0x5b8] sm:$0xff]
    %v8067 = vld [vmem:[#allocation5 + $0x5c0] sm:$0xf]
    %v8068 = vld [vmem:[#allocation5 + $0x5c4] sm:$0xff]
    %v8069 = vld [vmem:[#allocation5 + $0x5cc] sm:$0xff]
    %v8070 = vld [vmem:[#allocation5 + $0x5d4] sm:$0xff]
    %v8071 = vld [vmem:[#allocation5 + $0x5dc] sm:$0xff]
    %v8072 = vld [vmem:[#allocation5 + $0x5e4] sm:$0xf]
    %v8073 = vld [vmem:[#allocation5 + $0x5e8] sm:$0xff]
    %v8074 = vld [vmem:[#allocation5 + $0x5f0] sm:$0xff]
    %v8075 = vld [vmem:[#allocation5 + $0x5f8] sm:$0xff]
    %v8076 = vld [vmem:[#allocation5 + $0x600] sm:$0xff]
    %v8077 = vld [vmem:[#allocation5 + $0x608] sm:$0xf]
    %v8078 = vld [vmem:[#allocation5 + $0x60c] sm:$0xff]
    %v8079 = vld [vmem:[#allocation5 + $0x614] sm:$0xff]
    %v8080 = vld [vmem:[#allocation5 + $0x61c] sm:$0xff]
    %v8081 = vld [vmem:[#allocation5 + $0x624] sm:$0xff]
    %v8082 = vld [vmem:[#allocation5 + $0x62c] sm:$0xf]
    %v8083 = vld [vmem:[#allocation5 + $0x630] sm:$0xff]
    %v8084 = vld [vmem:[#allocation5 + $0x638] sm:$0xff]
    %v8085 = vld [vmem:[#allocation5 + $0x640] sm:$0xff]
    %v8086 = vld [vmem:[#allocation5 + $0x648] sm:$0xff]
    %v8087 = vld [vmem:[#allocation5 + $0x650] sm:$0xf]
    %v8088 = vld [vmem:[#allocation5 + $0x654] sm:$0xff]
    %v8089 = vld [vmem:[#allocation5 + $0x65c] sm:$0xff]
    %v8090 = vld [vmem:[#allocation5 + $0x664] sm:$0xff]
    %v8091 = vld [vmem:[#allocation5 + $0x66c] sm:$0xff]
    %v8092 = vld [vmem:[#allocation5 + $0x674] sm:$0xf]
    %v8093 = vld [vmem:[#allocation5 + $0x678] sm:$0xff]
    %v8094 = vld [vmem:[#allocation5 + $0x680] sm:$0xff]
    %v8095 = vld [vmem:[#allocation5 + $0x688] sm:$0xff]
    %v8096 = vld [vmem:[#allocation5 + $0x690] sm:$0xff]
    %v8097 = vld [vmem:[#allocation5 + $0x698] sm:$0xf]
    %v8098 = vld [vmem:[#allocation5 + $0x69c] sm:$0xff]
    %v8099 = vld [vmem:[#allocation5 + $0x6a4] sm:$0xff]
    %v8100 = vld [vmem:[#allocation5 + $0x6ac] sm:$0xff]
    %v8101 = vld [vmem:[#allocation5 + $0x6b4] sm:$0xff]
    %v8102 = vld [vmem:[#allocation5 + $0x6bc] sm:$0xf]
    %v8103 = vld [vmem:[#allocation5 + $0x6c0] sm:$0xff]
    %v8104 = vld [vmem:[#allocation5 + $0x6c8] sm:$0xff]
    %v8105 = vld [vmem:[#allocation5 + $0x6d0] sm:$0xff]
    %v8106 = vld [vmem:[#allocation5 + $0x6d8] sm:$0xff]
    %v8107 = vld [vmem:[#allocation5 + $0x6e0] sm:$0xf]
    %v8108 = vld [vmem:[#allocation5 + $0x6e4] sm:$0xff]
    %v8109 = vld [vmem:[#allocation5 + $0x6ec] sm:$0xff]
    %v8110 = vld [vmem:[#allocation5 + $0x6f4] sm:$0xff]
    %v8111 = vld [vmem:[#allocation5 + $0x6fc] sm:$0xff]
    %v8112 = vld [vmem:[#allocation5 + $0x704] sm:$0xf]
    %v8113 = vld [vmem:[#allocation5 + $0x708] sm:$0xff]
    %v8114 = vld [vmem:[#allocation5 + $0x710] sm:$0xff]
    %v8115 = vld [vmem:[#allocation5 + $0x718] sm:$0xff]
    %v8116 = vld [vmem:[#allocation5 + $0x720] sm:$0xff]
    %v8117 = vld [vmem:[#allocation5 + $0x728] sm:$0xf]
    %v8118 = vld [vmem:[#allocation5 + $0x72c] sm:$0xff]
    %v8119 = vld [vmem:[#allocation5 + $0x734] sm:$0xff]
    %v8120 = vld [vmem:[#allocation5 + $0x73c] sm:$0xff]
    %v8121 = vld [vmem:[#allocation5 + $0x744] sm:$0xff]
    %v8122 = vld [vmem:[#allocation5 + $0x74c] sm:$0xf]
    %v8123 = vld [vmem:[#allocation5 + $0x750] sm:$0xff]
    %v8124 = vld [vmem:[#allocation5 + $0x758] sm:$0xff]
    %v8125 = vld [vmem:[#allocation5 + $0x760] sm:$0xff]
    %v8126 = vld [vmem:[#allocation5 + $0x768] sm:$0xff]
    %v8127 = vld [vmem:[#allocation5 + $0x770] sm:$0xf]
    %v8128 = vld [vmem:[#allocation5 + $0x774] sm:$0xff]
    %v8129 = vld [vmem:[#allocation5 + $0x77c] sm:$0xff]
    %v8130 = vld [vmem:[#allocation5 + $0x784] sm:$0xff]
    %v8131 = vld [vmem:[#allocation5 + $0x78c] sm:$0xff]
    %v8132 = vld [vmem:[#allocation5 + $0x794] sm:$0xf]
    %v8133 = vld [vmem:[#allocation5 + $0x798] sm:$0xff]
    %v8134 = vld [vmem:[#allocation5 + $0x7a0] sm:$0xff]
    %v8135 = vld [vmem:[#allocation5 + $0x7a8] sm:$0xff]
    %v8136 = vld [vmem:[#allocation5 + $0x7b0] sm:$0xff]
    %v8137 = vld [vmem:[#allocation5 + $0x7b8] sm:$0xf]
    %v8138 = vld [vmem:[#allocation5 + $0x7bc] sm:$0xff]
    %v8139 = vld [vmem:[#allocation5 + $0x7c4] sm:$0xff]
    %v8140 = vld [vmem:[#allocation5 + $0x7cc] sm:$0xff]
    %v8141 = vld [vmem:[#allocation5 + $0x7d4] sm:$0xff]
    %v8142 = vld [vmem:[#allocation5 + $0x7dc] sm:$0xf]
    %v8143 = vld [vmem:[#allocation5 + $0x7e0] sm:$0xff]
    %v8144 = vld [vmem:[#allocation5 + $0x7e8] sm:$0xff]
    %v8145 = vld [vmem:[#allocation5 + $0x7f0] sm:$0xff]
    %v8146 = vld [vmem:[#allocation5 + $0x7f8] sm:$0xff]
    %v8147 = vld [vmem:[#allocation5 + $0x800] sm:$0xf]
    %v8148 = vld [vmem:[#allocation5 + $0x804] sm:$0xff]
    %v8149 = vld [vmem:[#allocation5 + $0x80c] sm:$0xff]
    %v8150 = vld [vmem:[#allocation5 + $0x814] sm:$0xff]
    %v8151 = vld [vmem:[#allocation5 + $0x81c] sm:$0xff]
    %v8152 = vld [vmem:[#allocation5 + $0x824] sm:$0xf]
    %v8153 = vld [vmem:[#allocation5 + $0x828] sm:$0xff]
    %v8154 = vld [vmem:[#allocation5 + $0x830] sm:$0xff]
    %v8155 = vld [vmem:[#allocation5 + $0x838] sm:$0xff]
    %v8156 = vld [vmem:[#allocation5 + $0x840] sm:$0xff]
    %v8157 = vld [vmem:[#allocation5 + $0x848] sm:$0xf]
    %v8158 = vld [vmem:[#allocation5 + $0x84c] sm:$0xff]
    %v8159 = vld [vmem:[#allocation5 + $0x854] sm:$0xff]
    %v8160 = vld [vmem:[#allocation5 + $0x85c] sm:$0xff]
    %v8161 = vld [vmem:[#allocation5 + $0x864] sm:$0xff]
    %v8162 = vld [vmem:[#allocation5 + $0x86c] sm:$0xf]
    %v8163 = vld [vmem:[#allocation5 + $0x870] sm:$0xff]
    %v8164 = vld [vmem:[#allocation5 + $0x878] sm:$0xff]
    %v8165 = vld [vmem:[#allocation5 + $0x880] sm:$0xff]
    %v8166 = vld [vmem:[#allocation5 + $0x888] sm:$0xff]
    %v8167 = vld [vmem:[#allocation5 + $0x890] sm:$0xf]
    %v8168 = vld [vmem:[#allocation5 + $0x894] sm:$0xff]
    %v8169 = vld [vmem:[#allocation5 + $0x89c] sm:$0xff]
    %v8170 = vld [vmem:[#allocation5 + $0x8a4] sm:$0xff]
    %v8171 = vld [vmem:[#allocation5 + $0x8ac] sm:$0xff]
    %v8172 = vld [vmem:[#allocation5 + $0x8b4] sm:$0xf]
    %v8173 = vld [vmem:[#allocation5 + $0x8b8] sm:$0xff]
    %v8174 = vld [vmem:[#allocation5 + $0x8c0] sm:$0xff]
    %v8175 = vld [vmem:[#allocation5 + $0x8c8] sm:$0xff]
    %v8176 = vld [vmem:[#allocation5 + $0x8d0] sm:$0xff]
    %v8177 = vld [vmem:[#allocation5 + $0x8d8] sm:$0xf]
    %v8178 = vld [vmem:[#allocation5 + $0x8dc] sm:$0xff]
    %v8179 = vld [vmem:[#allocation5 + $0x8e4] sm:$0xff]
    %v8180 = vld [vmem:[#allocation5 + $0x8ec] sm:$0xff]
    %v8181 = vld [vmem:[#allocation5 + $0x8f4] sm:$0xff]
    %v8182 = vld [vmem:[#allocation5 + $0x8fc] sm:$0xf]
    %v8183 = vld [vmem:[#allocation6] sm:$0xf]
    %v8184 = vld [vmem:[#allocation6 + $0x4] sm:$0xf]
    %v8185 = vld [vmem:[#allocation6 + $0x8] sm:$0xf]
    %v8186 = vld [vmem:[#allocation6 + $0xc] sm:$0xf]
    %v8187 = vld [vmem:[#allocation6 + $0x10] sm:$0xf]
    %v8188 = vld [vmem:[#allocation6 + $0x14] sm:$0xf]
    %v8189 = vld [vmem:[#allocation6 + $0x18] sm:$0xf]
    %v8190 = vld [vmem:[#allocation6 + $0x1c] sm:$0xf]
    %v8191 = vld [vmem:[#allocation6 + $0x20] sm:$0xf]
    %v8192 = vld [vmem:[#allocation6 + $0x24] sm:$0xf]
    %v8193 = vld [vmem:[#allocation6 + $0x28] sm:$0xf]
    %v8194 = vld [vmem:[#allocation6 + $0x2c] sm:$0xf]
    %v8195 = vld [vmem:[#allocation6 + $0x30] sm:$0xf]
    %v8196 = vld [vmem:[#allocation6 + $0x34] sm:$0xf]
    %v8197 = vld [vmem:[#allocation6 + $0x38] sm:$0xf]
    %v8198 = vld [vmem:[#allocation6 + $0x3c] sm:$0xf]
    %v8199 = vld [vmem:[#allocation6 + $0x40] sm:$0xf]
    %v8200 = vld [vmem:[#allocation6 + $0x44] sm:$0xf]
    %v8201 = vld [vmem:[#allocation6 + $0x48] sm:$0xf]
    %v8202 = vld [vmem:[#allocation6 + $0x4c] sm:$0xf]
    %v8203 = vld [vmem:[#allocation6 + $0x50] sm:$0xf]
    %v8204 = vld [vmem:[#allocation6 + $0x54] sm:$0xf]
    %v8205 = vld [vmem:[#allocation6 + $0x58] sm:$0xf]
    %v8206 = vld [vmem:[#allocation6 + $0x5c] sm:$0xf]
    %v8207 = vld [vmem:[#allocation6 + $0x60] sm:$0xf]
    %v8208 = vld [vmem:[#allocation6 + $0x64] sm:$0xf]
    %v8209 = vld [vmem:[#allocation6 + $0x68] sm:$0xf]
    %v8210 = vld [vmem:[#allocation6 + $0x6c] sm:$0xf]
    %v8211 = vld [vmem:[#allocation6 + $0x70] sm:$0xf]
    %v8212 = vld [vmem:[#allocation6 + $0x74] sm:$0xf]
    %v8213 = vld [vmem:[#allocation6 + $0x78] sm:$0xf]
    %v8214 = vld [vmem:[#allocation6 + $0x7c] sm:$0xf]
    %v8215 = vld [vmem:[#allocation6 + $0x80] sm:$0xf]
    %v8216 = vld [vmem:[#allocation6 + $0x84] sm:$0xf]
    %v8217 = vld [vmem:[#allocation6 + $0x88] sm:$0xf]
    %v8218 = vld [vmem:[#allocation6 + $0x8c] sm:$0xf]
    %v8219 = vld [vmem:[#allocation6 + $0x90] sm:$0xf]
    %v8220 = vld [vmem:[#allocation6 + $0x94] sm:$0xf]
    %v8221 = vld [vmem:[#allocation6 + $0x98] sm:$0xf]
    %v8222 = vld [vmem:[#allocation6 + $0x9c] sm:$0xf]
    %v8223 = vld [vmem:[#allocation6 + $0xa0] sm:$0xf]
    %v8224 = vld [vmem:[#allocation6 + $0xa4] sm:$0xf]
    %v8225 = vld [vmem:[#allocation6 + $0xa8] sm:$0xf]
    %v8226 = vld [vmem:[#allocation6 + $0xac] sm:$0xf]
    %v8227 = vld [vmem:[#allocation6 + $0xb0] sm:$0xf]
    %v8228 = vld [vmem:[#allocation6 + $0xb4] sm:$0xf]
    %v8229 = vld [vmem:[#allocation6 + $0xb8] sm:$0xf]
    %v8230 = vld [vmem:[#allocation6 + $0xbc] sm:$0xf]
    %v8231 = vld [vmem:[#allocation6 + $0xc0] sm:$0xf]
    %v8232 = vld [vmem:[#allocation6 + $0xc4] sm:$0xf]
    %v8233 = vld [vmem:[#allocation6 + $0xc8] sm:$0xf]
    %v8234 = vld [vmem:[#allocation6 + $0xcc] sm:$0xf]
    %v8235 = vld [vmem:[#allocation6 + $0xd0] sm:$0xf]
    %v8236 = vld [vmem:[#allocation6 + $0xd4] sm:$0xf]
    %v8237 = vld [vmem:[#allocation6 + $0xd8] sm:$0xf]
    %v8238 = vld [vmem:[#allocation6 + $0xdc] sm:$0xf]
    %v8239 = vld [vmem:[#allocation6 + $0xe0] sm:$0xf]
    %v8240 = vld [vmem:[#allocation6 + $0xe4] sm:$0xf]
    %v8241 = vld [vmem:[#allocation6 + $0xe8] sm:$0xf]
    %v8242 = vld [vmem:[#allocation6 + $0xec] sm:$0xf]
    %v8243 = vld [vmem:[#allocation6 + $0xf0] sm:$0xf]
    %v8244 = vld [vmem:[#allocation6 + $0xf4] sm:$0xf]
    %v8245 = vld [vmem:[#allocation6 + $0xf8] sm:$0xf]
    %v8246 = vld [vmem:[#allocation6 + $0xfc] sm:$0xf]
    %v8247 = vld [vmem:[#allocation6 + $0x100] sm:$0xf]
    %v8248 = vld [vmem:[#allocation6 + $0x104] sm:$0xf]
    %v8249 = vld [vmem:[#allocation6 + $0x108] sm:$0xf]
    %v8250 = vld [vmem:[#allocation6 + $0x10c] sm:$0xf]
    %v8251 = vld [vmem:[#allocation6 + $0x110] sm:$0xf]
    %v8252 = vld [vmem:[#allocation6 + $0x114] sm:$0xf]
    %v8253 = vld [vmem:[#allocation6 + $0x118] sm:$0xf]
    %v8254 = vld [vmem:[#allocation6 + $0x11c] sm:$0xf]
    %v8255 = vld [vmem:[#allocation6 + $0x120] sm:$0xf]
    %v8256 = vld [vmem:[#allocation6 + $0x124] sm:$0xf]
    %v8257 = vld [vmem:[#allocation6 + $0x128] sm:$0xf]
    %v8258 = vld [vmem:[#allocation6 + $0x12c] sm:$0xf]
    %v8259 = vld [vmem:[#allocation6 + $0x130] sm:$0xf]
    %v8260 = vld [vmem:[#allocation6 + $0x134] sm:$0xf]
    %v8261 = vld [vmem:[#allocation6 + $0x138] sm:$0xf]
    %v8262 = vld [vmem:[#allocation6 + $0x13c] sm:$0xf]
    %v8263 = vld [vmem:[#allocation6 + $0x140] sm:$0xf]
    %v8264 = vld [vmem:[#allocation6 + $0x144] sm:$0xf]
    %v8265 = vld [vmem:[#allocation6 + $0x148] sm:$0xf]
    %v8266 = vld [vmem:[#allocation6 + $0x14c] sm:$0xf]
    %v8267 = vld [vmem:[#allocation6 + $0x150] sm:$0xf]
    %v8268 = vld [vmem:[#allocation6 + $0x154] sm:$0xf]
    %v8269 = vld [vmem:[#allocation6 + $0x158] sm:$0xf]
    %v8270 = vld [vmem:[#allocation6 + $0x15c] sm:$0xf]
    %v8271 = vld [vmem:[#allocation6 + $0x160] sm:$0xf]
    %v8272 = vld [vmem:[#allocation6 + $0x164] sm:$0xf]
    %v8273 = vld [vmem:[#allocation6 + $0x168] sm:$0xf]
    %v8274 = vld [vmem:[#allocation6 + $0x16c] sm:$0xf]
    %v8275 = vld [vmem:[#allocation6 + $0x170] sm:$0xf]
    %v8276 = vld [vmem:[#allocation6 + $0x174] sm:$0xf]
    %v8277 = vld [vmem:[#allocation6 + $0x178] sm:$0xf]
    %v8278 = vld [vmem:[#allocation6 + $0x17c] sm:$0xf]
    %v8279 = vld [vmem:[#allocation6 + $0x180] sm:$0xf]
    %v8280 = vld [vmem:[#allocation6 + $0x184] sm:$0xf]
    %v8281 = vld [vmem:[#allocation6 + $0x188] sm:$0xf]
    %v8282 = vld [vmem:[#allocation6 + $0x18c] sm:$0xf]
    %v8283 = vld [vmem:[#allocation6 + $0x190] sm:$0xf]
    %v8284 = vld [vmem:[#allocation6 + $0x194] sm:$0xf]
    %v8285 = vld [vmem:[#allocation6 + $0x198] sm:$0xf]
    %v8286 = vld [vmem:[#allocation6 + $0x19c] sm:$0xf]
    %v8287 = vld [vmem:[#allocation6 + $0x1a0] sm:$0xf]
    %v8288 = vld [vmem:[#allocation6 + $0x1a4] sm:$0xf]
    %v8289 = vld [vmem:[#allocation6 + $0x1a8] sm:$0xf]
    %v8290 = vld [vmem:[#allocation6 + $0x1ac] sm:$0xf]
    %v8291 = vld [vmem:[#allocation6 + $0x1b0] sm:$0xf]
    %v8292 = vld [vmem:[#allocation6 + $0x1b4] sm:$0xf]
    %v8293 = vld [vmem:[#allocation6 + $0x1b8] sm:$0xf]
    %v8294 = vld [vmem:[#allocation6 + $0x1bc] sm:$0xf]
    %v8295 = vld [vmem:[#allocation6 + $0x1c0] sm:$0xf]
    %v8296 = vld [vmem:[#allocation6 + $0x1c4] sm:$0xf]
    %v8297 = vld [vmem:[#allocation6 + $0x1c8] sm:$0xf]
    %v8298 = vld [vmem:[#allocation6 + $0x1cc] sm:$0xf]
    %v8299 = vld [vmem:[#allocation6 + $0x1d0] sm:$0xf]
    %v8300 = vld [vmem:[#allocation6 + $0x1d4] sm:$0xf]
    %v8301 = vld [vmem:[#allocation6 + $0x1d8] sm:$0xf]
    %v8302 = vld [vmem:[#allocation6 + $0x1dc] sm:$0xf]
    %v8303 = vld [vmem:[#allocation6 + $0x1e0] sm:$0xf]
    %v8304 = vld [vmem:[#allocation6 + $0x1e4] sm:$0xf]
    %v8305 = vld [vmem:[#allocation6 + $0x1e8] sm:$0xf]
    %v8306 = vld [vmem:[#allocation6 + $0x1ec] sm:$0xf]
    %v8307 = vld [vmem:[#allocation6 + $0x1f0] sm:$0xf]
    %v8308 = vld [vmem:[#allocation6 + $0x1f4] sm:$0xf]
    %v8309 = vld [vmem:[#allocation6 + $0x1f8] sm:$0xf]
    %v8310 = vld [vmem:[#allocation6 + $0x1fc] sm:$0xf]
    %v8311 = vld [vmem:[#allocation6 + $0x200] sm:$0xf]
    %v8312 = vld [vmem:[#allocation6 + $0x204] sm:$0xf]
    %v8313 = vld [vmem:[#allocation6 + $0x208] sm:$0xf]
    %v8314 = vld [vmem:[#allocation6 + $0x20c] sm:$0xf]
    %v8315 = vld [vmem:[#allocation6 + $0x210] sm:$0xf]
    %v8316 = vld [vmem:[#allocation6 + $0x214] sm:$0xf]
    %v8317 = vld [vmem:[#allocation6 + $0x218] sm:$0xf]
    %v8318 = vld [vmem:[#allocation6 + $0x21c] sm:$0xf]
    %v8319 = vld [vmem:[#allocation6 + $0x220] sm:$0xf]
    %v8320 = vld [vmem:[#allocation6 + $0x224] sm:$0xf]
    %v8321 = vld [vmem:[#allocation6 + $0x228] sm:$0xf]
    %v8322 = vld [vmem:[#allocation6 + $0x22c] sm:$0xf]
    %v8323 = vld [vmem:[#allocation6 + $0x230] sm:$0xf]
    %v8324 = vld [vmem:[#allocation6 + $0x234] sm:$0xf]
    %v8325 = vld [vmem:[#allocation6 + $0x238] sm:$0xf]
    %v8326 = vld [vmem:[#allocation6 + $0x23c] sm:$0xf]
    %v8327 = vld [vmem:[%s4] sm:$0x1]
    %v8329 = vperm.slane %v8327, 0
    %v8651 = vunpack.c.l.b16 %v7863
    %v8652 = vunpack.c.h.b16 %v7863
    %v8653 = vunpack.c.l.b16 %v7864
    %v8654 = vunpack.c.h.b16 %v7864
    %v8655 = vunpack.c.l.b16 %v7865
    %v8656 = vunpack.c.h.b16 %v7865
    %v8657 = vunpack.c.l.b16 %v7866
    %v8658 = vunpack.c.h.b16 %v7866
    %v8659 = vunpack.c.l.b16 %v7867
    %v8660 = vunpack.c.l.b16 %v7868
    %v8661 = vunpack.c.h.b16 %v7868
    %v8662 = vunpack.c.l.b16 %v7869
    %v8663 = vunpack.c.h.b16 %v7869
    %v8664 = vunpack.c.l.b16 %v7870
    %v8665 = vunpack.c.h.b16 %v7870
    %v8666 = vunpack.c.l.b16 %v7871
    %v8667 = vunpack.c.h.b16 %v7871
    %v8668 = vunpack.c.l.b16 %v7872
    %v8669 = vunpack.c.l.b16 %v7873
    %v8670 = vunpack.c.h.b16 %v7873
    %v8671 = vunpack.c.l.b16 %v7874
    %v8672 = vunpack.c.h.b16 %v7874
    %v8673 = vunpack.c.l.b16 %v7875
    %v8674 = vunpack.c.h.b16 %v7875
    %v8675 = vunpack.c.l.b16 %v7876
    %v8676 = vunpack.c.h.b16 %v7876
    %v8677 = vunpack.c.l.b16 %v7877
    %v8678 = vunpack.c.l.b16 %v7878
    %v8679 = vunpack.c.h.b16 %v7878
    %v8680 = vunpack.c.l.b16 %v7879
    %v8681 = vunpack.c.h.b16 %v7879
    %v8682 = vunpack.c.l.b16 %v7880
    %v8683 = vunpack.c.h.b16 %v7880
    %v8684 = vunpack.c.l.b16 %v7881
    %v8685 = vunpack.c.h.b16 %v7881
    %v8686 = vunpack.c.l.b16 %v7882
    %v8687 = vunpack.c.l.b16 %v7883
    %v8688 = vunpack.c.h.b16 %v7883
    %v8689 = vunpack.c.l.b16 %v7884
    %v8690 = vunpack.c.h.b16 %v7884
    %v8691 = vunpack.c.l.b16 %v7885
    %v8692 = vunpack.c.h.b16 %v7885
    %v8693 = vunpack.c.l.b16 %v7886
    %v8694 = vunpack.c.h.b16 %v7886
    %v8695 = vunpack.c.l.b16 %v7887
    %v8696 = vunpack.c.l.b16 %v7888
    %v8697 = vunpack.c.h.b16 %v7888
    %v8698 = vunpack.c.l.b16 %v7889
    %v8699 = vunpack.c.h.b16 %v7889
    %v8700 = vunpack.c.l.b16 %v7890
    %v8701 = vunpack.c.h.b16 %v7890
    %v8702 = vunpack.c.l.b16 %v7891
    %v8703 = vunpack.c.h.b16 %v7891
    %v8704 = vunpack.c.l.b16 %v7892
    %v8705 = vunpack.c.l.b16 %v7893
    %v8706 = vunpack.c.h.b16 %v7893
    %v8707 = vunpack.c.l.b16 %v7894
    %v8708 = vunpack.c.h.b16 %v7894
    %v8709 = vunpack.c.l.b16 %v7895
    %v8710 = vunpack.c.h.b16 %v7895
    %v8711 = vunpack.c.l.b16 %v7896
    %v8712 = vunpack.c.h.b16 %v7896
    %v8713 = vunpack.c.l.b16 %v7897
    %v8714 = vunpack.c.l.b16 %v7898
    %v8715 = vunpack.c.h.b16 %v7898
    %v8716 = vunpack.c.l.b16 %v7899
    %v8717 = vunpack.c.h.b16 %v7899
    %v8718 = vunpack.c.l.b16 %v7900
    %v8719 = vunpack.c.h.b16 %v7900
    %v8720 = vunpack.c.l.b16 %v7901
    %v8721 = vunpack.c.h.b16 %v7901
    %v8722 = vunpack.c.l.b16 %v7902
    %v8723 = vunpack.c.l.b16 %v7903
    %v8724 = vunpack.c.h.b16 %v7903
    %v8725 = vunpack.c.l.b16 %v7904
    %v8726 = vunpack.c.h.b16 %v7904
    %v8727 = vunpack.c.l.b16 %v7905
    %v8728 = vunpack.c.h.b16 %v7905
    %v8729 = vunpack.c.l.b16 %v7906
    %v8730 = vunpack.c.h.b16 %v7906
    %v8731 = vunpack.c.l.b16 %v7907
    %v8732 = vunpack.c.l.b16 %v7908
    %v8733 = vunpack.c.h.b16 %v7908
    %v8734 = vunpack.c.l.b16 %v7909
    %v8735 = vunpack.c.h.b16 %v7909
    %v8736 = vunpack.c.l.b16 %v7910
    %v8737 = vunpack.c.h.b16 %v7910
    %v8738 = vunpack.c.l.b16 %v7911
    %v8739 = vunpack.c.h.b16 %v7911
    %v8740 = vunpack.c.l.b16 %v7912
    %v8741 = vunpack.c.l.b16 %v7913
    %v8742 = vunpack.c.h.b16 %v7913
    %v8743 = vunpack.c.l.b16 %v7914
    %v8744 = vunpack.c.h.b16 %v7914
    %v8745 = vunpack.c.l.b16 %v7915
    %v8746 = vunpack.c.h.b16 %v7915
    %v8747 = vunpack.c.l.b16 %v7916
    %v8748 = vunpack.c.h.b16 %v7916
    %v8749 = vunpack.c.l.b16 %v7917
    %v8750 = vunpack.c.l.b16 %v7918
    %v8751 = vunpack.c.h.b16 %v7918
    %v8752 = vunpack.c.l.b16 %v7919
    %v8753 = vunpack.c.h.b16 %v7919
    %v8754 = vunpack.c.l.b16 %v7920
    %v8755 = vunpack.c.h.b16 %v7920
    %v8756 = vunpack.c.l.b16 %v7921
    %v8757 = vunpack.c.h.b16 %v7921
    %v8758 = vunpack.c.l.b16 %v7922
    %v8759 = vunpack.c.l.b16 %v7923
    %v8760 = vunpack.c.h.b16 %v7923
    %v8761 = vunpack.c.l.b16 %v7924
    %v8762 = vunpack.c.h.b16 %v7924
    %v8763 = vunpack.c.l.b16 %v7925
    %v8764 = vunpack.c.h.b16 %v7925
    %v8765 = vunpack.c.l.b16 %v7926
    %v8766 = vunpack.c.h.b16 %v7926
    %v8767 = vunpack.c.l.b16 %v7927
    %v8768 = vunpack.c.l.b16 %v7928
    %v8769 = vunpack.c.h.b16 %v7928
    %v8770 = vunpack.c.l.b16 %v7929
    %v8771 = vunpack.c.h.b16 %v7929
    %v8772 = vunpack.c.l.b16 %v7930
    %v8773 = vunpack.c.h.b16 %v7930
    %v8774 = vunpack.c.l.b16 %v7931
    %v8775 = vunpack.c.h.b16 %v7931
    %v8776 = vunpack.c.l.b16 %v7932
    %v8777 = vunpack.c.l.b16 %v7933
    %v8778 = vunpack.c.h.b16 %v7933
    %v8779 = vunpack.c.l.b16 %v7934
    %v8780 = vunpack.c.h.b16 %v7934
    %v8781 = vunpack.c.l.b16 %v7935
    %v8782 = vunpack.c.h.b16 %v7935
    %v8783 = vunpack.c.l.b16 %v7936
    %v8784 = vunpack.c.h.b16 %v7936
    %v8785 = vunpack.c.l.b16 %v7937
    %v8786 = vunpack.c.l.b16 %v7938
    %v8787 = vunpack.c.h.b16 %v7938
    %v8788 = vunpack.c.l.b16 %v7939
    %v8789 = vunpack.c.h.b16 %v7939
    %v8790 = vunpack.c.l.b16 %v7940
    %v8791 = vunpack.c.h.b16 %v7940
    %v8792 = vunpack.c.l.b16 %v7941
    %v8793 = vunpack.c.h.b16 %v7941
    %v8794 = vunpack.c.l.b16 %v7942
    %v8795 = vunpack.c.l.b16 %v7943
    %v8796 = vunpack.c.h.b16 %v7943
    %v8797 = vunpack.c.l.b16 %v7944
    %v8798 = vunpack.c.h.b16 %v7944
    %v8799 = vunpack.c.l.b16 %v7945
    %v8800 = vunpack.c.h.b16 %v7945
    %v8801 = vunpack.c.l.b16 %v7946
    %v8802 = vunpack.c.h.b16 %v7946
    %v8803 = vunpack.c.l.b16 %v7947
    %v8804 = vunpack.c.l.b16 %v7948
    %v8805 = vunpack.c.h.b16 %v7948
    %v8806 = vunpack.c.l.b16 %v7949
    %v8807 = vunpack.c.h.b16 %v7949
    %v8808 = vunpack.c.l.b16 %v7950
    %v8809 = vunpack.c.h.b16 %v7950
    %v8810 = vunpack.c.l.b16 %v7951
    %v8811 = vunpack.c.h.b16 %v7951
    %v8812 = vunpack.c.l.b16 %v7952
    %v8813 = vunpack.c.l.b16 %v7953
    %v8814 = vunpack.c.h.b16 %v7953
    %v8815 = vunpack.c.l.b16 %v7954
    %v8816 = vunpack.c.h.b16 %v7954
    %v8817 = vunpack.c.l.b16 %v7955
    %v8818 = vunpack.c.h.b16 %v7955
    %v8819 = vunpack.c.l.b16 %v7956
    %v8820 = vunpack.c.h.b16 %v7956
    %v8821 = vunpack.c.l.b16 %v7957
    %v8822 = vunpack.c.l.b16 %v7958
    %v8823 = vunpack.c.h.b16 %v7958
    %v8824 = vunpack.c.l.b16 %v7959
    %v8825 = vunpack.c.h.b16 %v7959
    %v8826 = vunpack.c.l.b16 %v7960
    %v8827 = vunpack.c.h.b16 %v7960
    %v8828 = vunpack.c.l.b16 %v7961
    %v8829 = vunpack.c.h.b16 %v7961
    %v8830 = vunpack.c.l.b16 %v7962
    %v8831 = vunpack.c.l.b16 %v7963
    %v8832 = vunpack.c.h.b16 %v7963
    %v8833 = vunpack.c.l.b16 %v7964
    %v8834 = vunpack.c.h.b16 %v7964
    %v8835 = vunpack.c.l.b16 %v7965
    %v8836 = vunpack.c.h.b16 %v7965
    %v8837 = vunpack.c.l.b16 %v7966
    %v8838 = vunpack.c.h.b16 %v7966
    %v8839 = vunpack.c.l.b16 %v7967
    %v8840 = vunpack.c.l.b16 %v7968
    %v8841 = vunpack.c.h.b16 %v7968
    %v8842 = vunpack.c.l.b16 %v7969
    %v8843 = vunpack.c.h.b16 %v7969
    %v8844 = vunpack.c.l.b16 %v7970
    %v8845 = vunpack.c.h.b16 %v7970
    %v8846 = vunpack.c.l.b16 %v7971
    %v8847 = vunpack.c.h.b16 %v7971
    %v8848 = vunpack.c.l.b16 %v7972
    %v8849 = vunpack.c.l.b16 %v7973
    %v8850 = vunpack.c.h.b16 %v7973
    %v8851 = vunpack.c.l.b16 %v7974
    %v8852 = vunpack.c.h.b16 %v7974
    %v8853 = vunpack.c.l.b16 %v7975
    %v8854 = vunpack.c.h.b16 %v7975
    %v8855 = vunpack.c.l.b16 %v7976
    %v8856 = vunpack.c.h.b16 %v7976
    %v8857 = vunpack.c.l.b16 %v7977
    %v8858 = vunpack.c.l.b16 %v7978
    %v8859 = vunpack.c.h.b16 %v7978
    %v8860 = vunpack.c.l.b16 %v7979
    %v8861 = vunpack.c.h.b16 %v7979
    %v8862 = vunpack.c.l.b16 %v7980
    %v8863 = vunpack.c.h.b16 %v7980
    %v8864 = vunpack.c.l.b16 %v7981
    %v8865 = vunpack.c.h.b16 %v7981
    %v8866 = vunpack.c.l.b16 %v7982
    %v8867 = vunpack.c.l.b16 %v7983
    %v8868 = vunpack.c.h.b16 %v7983
    %v8869 = vunpack.c.l.b16 %v7984
    %v8870 = vunpack.c.h.b16 %v7984
    %v8871 = vunpack.c.l.b16 %v7985
    %v8872 = vunpack.c.h.b16 %v7985
    %v8873 = vunpack.c.l.b16 %v7986
    %v8874 = vunpack.c.h.b16 %v7986
    %v8875 = vunpack.c.l.b16 %v7987
    %v8876 = vunpack.c.l.b16 %v7988
    %v8877 = vunpack.c.h.b16 %v7988
    %v8878 = vunpack.c.l.b16 %v7989
    %v8879 = vunpack.c.h.b16 %v7989
    %v8880 = vunpack.c.l.b16 %v7990
    %v8881 = vunpack.c.h.b16 %v7990
    %v8882 = vunpack.c.l.b16 %v7991
    %v8883 = vunpack.c.h.b16 %v7991
    %v8884 = vunpack.c.l.b16 %v7992
    %v8885 = vunpack.c.l.b16 %v7993
    %v8886 = vunpack.c.h.b16 %v7993
    %v8887 = vunpack.c.l.b16 %v7994
    %v8888 = vunpack.c.h.b16 %v7994
    %v8889 = vunpack.c.l.b16 %v7995
    %v8890 = vunpack.c.h.b16 %v7995
    %v8891 = vunpack.c.l.b16 %v7996
    %v8892 = vunpack.c.h.b16 %v7996
    %v8893 = vunpack.c.l.b16 %v7997
    %v8894 = vunpack.c.l.b16 %v7998
    %v8895 = vunpack.c.h.b16 %v7998
    %v8896 = vunpack.c.l.b16 %v7999
    %v8897 = vunpack.c.h.b16 %v7999
    %v8898 = vunpack.c.l.b16 %v8000
    %v8899 = vunpack.c.h.b16 %v8000
    %v8900 = vunpack.c.l.b16 %v8001
    %v8901 = vunpack.c.h.b16 %v8001
    %v8902 = vunpack.c.l.b16 %v8002
    %v8903 = vunpack.c.l.b16 %v8003
    %v8904 = vunpack.c.h.b16 %v8003
    %v8905 = vunpack.c.l.b16 %v8004
    %v8906 = vunpack.c.h.b16 %v8004
    %v8907 = vunpack.c.l.b16 %v8005
    %v8908 = vunpack.c.h.b16 %v8005
    %v8909 = vunpack.c.l.b16 %v8006
    %v8910 = vunpack.c.h.b16 %v8006
    %v8911 = vunpack.c.l.b16 %v8007
    %v8912 = vunpack.c.l.b16 %v8008
    %v8913 = vunpack.c.h.b16 %v8008
    %v8914 = vunpack.c.l.b16 %v8009
    %v8915 = vunpack.c.h.b16 %v8009
    %v8916 = vunpack.c.l.b16 %v8010
    %v8917 = vunpack.c.h.b16 %v8010
    %v8918 = vunpack.c.l.b16 %v8011
    %v8919 = vunpack.c.h.b16 %v8011
    %v8920 = vunpack.c.l.b16 %v8012
    %v8921 = vunpack.c.l.b16 %v8013
    %v8922 = vunpack.c.h.b16 %v8013
    %v8923 = vunpack.c.l.b16 %v8014
    %v8924 = vunpack.c.h.b16 %v8014
    %v8925 = vunpack.c.l.b16 %v8015
    %v8926 = vunpack.c.h.b16 %v8015
    %v8927 = vunpack.c.l.b16 %v8016
    %v8928 = vunpack.c.h.b16 %v8016
    %v8929 = vunpack.c.l.b16 %v8017
    %v8930 = vunpack.c.l.b16 %v8018
    %v8931 = vunpack.c.h.b16 %v8018
    %v8932 = vunpack.c.l.b16 %v8019
    %v8933 = vunpack.c.h.b16 %v8019
    %v8934 = vunpack.c.l.b16 %v8020
    %v8935 = vunpack.c.h.b16 %v8020
    %v8936 = vunpack.c.l.b16 %v8021
    %v8937 = vunpack.c.h.b16 %v8021
    %v8938 = vunpack.c.l.b16 %v8022
    %v8939 = vunpack.c.l.b16 %v8023
    %v8940 = vunpack.c.h.b16 %v8023
    %v8941 = vunpack.c.l.b16 %v8024
    %v8942 = vunpack.c.h.b16 %v8024
    %v8943 = vunpack.c.l.b16 %v8025
    %v8944 = vunpack.c.h.b16 %v8025
    %v8945 = vunpack.c.l.b16 %v8026
    %v8946 = vunpack.c.h.b16 %v8026
    %v8947 = vunpack.c.l.b16 %v8027
    %v8948 = vunpack.c.l.b16 %v8028
    %v8949 = vunpack.c.h.b16 %v8028
    %v8950 = vunpack.c.l.b16 %v8029
    %v8951 = vunpack.c.h.b16 %v8029
    %v8952 = vunpack.c.l.b16 %v8030
    %v8953 = vunpack.c.h.b16 %v8030
    %v8954 = vunpack.c.l.b16 %v8031
    %v8955 = vunpack.c.h.b16 %v8031
    %v8956 = vunpack.c.l.b16 %v8032
    %v8957 = vunpack.c.l.b16 %v8033
    %v8958 = vunpack.c.h.b16 %v8033
    %v8959 = vunpack.c.l.b16 %v8034
    %v8960 = vunpack.c.h.b16 %v8034
    %v8961 = vunpack.c.l.b16 %v8035
    %v8962 = vunpack.c.h.b16 %v8035
    %v8963 = vunpack.c.l.b16 %v8036
    %v8964 = vunpack.c.h.b16 %v8036
    %v8965 = vunpack.c.l.b16 %v8037
    %v8966 = vunpack.c.l.b16 %v8038
    %v8967 = vunpack.c.h.b16 %v8038
    %v8968 = vunpack.c.l.b16 %v8039
    %v8969 = vunpack.c.h.b16 %v8039
    %v8970 = vunpack.c.l.b16 %v8040
    %v8971 = vunpack.c.h.b16 %v8040
    %v8972 = vunpack.c.l.b16 %v8041
    %v8973 = vunpack.c.h.b16 %v8041
    %v8974 = vunpack.c.l.b16 %v8042
    %v8975 = vunpack.c.l.b16 %v8043
    %v8976 = vunpack.c.h.b16 %v8043
    %v8977 = vunpack.c.l.b16 %v8044
    %v8978 = vunpack.c.h.b16 %v8044
    %v8979 = vunpack.c.l.b16 %v8045
    %v8980 = vunpack.c.h.b16 %v8045
    %v8981 = vunpack.c.l.b16 %v8046
    %v8982 = vunpack.c.h.b16 %v8046
    %v8983 = vunpack.c.l.b16 %v8047
    %v8984 = vunpack.c.l.b16 %v8048
    %v8985 = vunpack.c.h.b16 %v8048
    %v8986 = vunpack.c.l.b16 %v8049
    %v8987 = vunpack.c.h.b16 %v8049
    %v8988 = vunpack.c.l.b16 %v8050
    %v8989 = vunpack.c.h.b16 %v8050
    %v8990 = vunpack.c.l.b16 %v8051
    %v8991 = vunpack.c.h.b16 %v8051
    %v8992 = vunpack.c.l.b16 %v8052
    %v8993 = vunpack.c.l.b16 %v8053
    %v8994 = vunpack.c.h.b16 %v8053
    %v8995 = vunpack.c.l.b16 %v8054
    %v8996 = vunpack.c.h.b16 %v8054
    %v8997 = vunpack.c.l.b16 %v8055
    %v8998 = vunpack.c.h.b16 %v8055
    %v8999 = vunpack.c.l.b16 %v8056
    %v9000 = vunpack.c.h.b16 %v8056
    %v9001 = vunpack.c.l.b16 %v8057
    %v9002 = vunpack.c.l.b16 %v8058
    %v9003 = vunpack.c.h.b16 %v8058
    %v9004 = vunpack.c.l.b16 %v8059
    %v9005 = vunpack.c.h.b16 %v8059
    %v9006 = vunpack.c.l.b16 %v8060
    %v9007 = vunpack.c.h.b16 %v8060
    %v9008 = vunpack.c.l.b16 %v8061
    %v9009 = vunpack.c.h.b16 %v8061
    %v9010 = vunpack.c.l.b16 %v8062
    %v9011 = vunpack.c.l.b16 %v8063
    %v9012 = vunpack.c.h.b16 %v8063
    %v9013 = vunpack.c.l.b16 %v8064
    %v9014 = vunpack.c.h.b16 %v8064
    %v9015 = vunpack.c.l.b16 %v8065
    %v9016 = vunpack.c.h.b16 %v8065
    %v9017 = vunpack.c.l.b16 %v8066
    %v9018 = vunpack.c.h.b16 %v8066
    %v9019 = vunpack.c.l.b16 %v8067
    %v9020 = vunpack.c.l.b16 %v8068
    %v9021 = vunpack.c.h.b16 %v8068
    %v9022 = vunpack.c.l.b16 %v8069
    %v9023 = vunpack.c.h.b16 %v8069
    %v9024 = vunpack.c.l.b16 %v8070
    %v9025 = vunpack.c.h.b16 %v8070
    %v9026 = vunpack.c.l.b16 %v8071
    %v9027 = vunpack.c.h.b16 %v8071
    %v9028 = vunpack.c.l.b16 %v8072
    %v9029 = vunpack.c.l.b16 %v8073
    %v9030 = vunpack.c.h.b16 %v8073
    %v9031 = vunpack.c.l.b16 %v8074
    %v9032 = vunpack.c.h.b16 %v8074
    %v9033 = vunpack.c.l.b16 %v8075
    %v9034 = vunpack.c.h.b16 %v8075
    %v9035 = vunpack.c.l.b16 %v8076
    %v9036 = vunpack.c.h.b16 %v8076
    %v9037 = vunpack.c.l.b16 %v8077
    %v9038 = vunpack.c.l.b16 %v8078
    %v9039 = vunpack.c.h.b16 %v8078
    %v9040 = vunpack.c.l.b16 %v8079
    %v9041 = vunpack.c.h.b16 %v8079
    %v9042 = vunpack.c.l.b16 %v8080
    %v9043 = vunpack.c.h.b16 %v8080
    %v9044 = vunpack.c.l.b16 %v8081
    %v9045 = vunpack.c.h.b16 %v8081
    %v9046 = vunpack.c.l.b16 %v8082
    %v9047 = vunpack.c.l.b16 %v8083
    %v9048 = vunpack.c.h.b16 %v8083
    %v9049 = vunpack.c.l.b16 %v8084
    %v9050 = vunpack.c.h.b16 %v8084
    %v9051 = vunpack.c.l.b16 %v8085
    %v9052 = vunpack.c.h.b16 %v8085
    %v9053 = vunpack.c.l.b16 %v8086
    %v9054 = vunpack.c.h.b16 %v8086
    %v9055 = vunpack.c.l.b16 %v8087
    %v9056 = vunpack.c.l.b16 %v8088
    %v9057 = vunpack.c.h.b16 %v8088
    %v9058 = vunpack.c.l.b16 %v8089
    %v9059 = vunpack.c.h.b16 %v8089
    %v9060 = vunpack.c.l.b16 %v8090
    %v9061 = vunpack.c.h.b16 %v8090
    %v9062 = vunpack.c.l.b16 %v8091
    %v9063 = vunpack.c.h.b16 %v8091
    %v9064 = vunpack.c.l.b16 %v8092
    %v9065 = vunpack.c.l.b16 %v8093
    %v9066 = vunpack.c.h.b16 %v8093
    %v9067 = vunpack.c.l.b16 %v8094
    %v9068 = vunpack.c.h.b16 %v8094
    %v9069 = vunpack.c.l.b16 %v8095
    %v9070 = vunpack.c.h.b16 %v8095
    %v9071 = vunpack.c.l.b16 %v8096
    %v9072 = vunpack.c.h.b16 %v8096
    %v9073 = vunpack.c.l.b16 %v8097
    %v9074 = vunpack.c.l.b16 %v8098
    %v9075 = vunpack.c.h.b16 %v8098
    %v9076 = vunpack.c.l.b16 %v8099
    %v9077 = vunpack.c.h.b16 %v8099
    %v9078 = vunpack.c.l.b16 %v8100
    %v9079 = vunpack.c.h.b16 %v8100
    %v9080 = vunpack.c.l.b16 %v8101
    %v9081 = vunpack.c.h.b16 %v8101
    %v9082 = vunpack.c.l.b16 %v8102
    %v9083 = vunpack.c.l.b16 %v8103
    %v9084 = vunpack.c.h.b16 %v8103
    %v9085 = vunpack.c.l.b16 %v8104
    %v9086 = vunpack.c.h.b16 %v8104
    %v9087 = vunpack.c.l.b16 %v8105
    %v9088 = vunpack.c.h.b16 %v8105
    %v9089 = vunpack.c.l.b16 %v8106
    %v9090 = vunpack.c.h.b16 %v8106
    %v9091 = vunpack.c.l.b16 %v8107
    %v9092 = vunpack.c.l.b16 %v8108
    %v9093 = vunpack.c.h.b16 %v8108
    %v9094 = vunpack.c.l.b16 %v8109
    %v9095 = vunpack.c.h.b16 %v8109
    %v9096 = vunpack.c.l.b16 %v8110
    %v9097 = vunpack.c.h.b16 %v8110
    %v9098 = vunpack.c.l.b16 %v8111
    %v9099 = vunpack.c.h.b16 %v8111
    %v9100 = vunpack.c.l.b16 %v8112
    %v9101 = vunpack.c.l.b16 %v8113
    %v9102 = vunpack.c.h.b16 %v8113
    %v9103 = vunpack.c.l.b16 %v8114
    %v9104 = vunpack.c.h.b16 %v8114
    %v9105 = vunpack.c.l.b16 %v8115
    %v9106 = vunpack.c.h.b16 %v8115
    %v9107 = vunpack.c.l.b16 %v8116
    %v9108 = vunpack.c.h.b16 %v8116
    %v9109 = vunpack.c.l.b16 %v8117
    %v9110 = vunpack.c.l.b16 %v8118
    %v9111 = vunpack.c.h.b16 %v8118
    %v9112 = vunpack.c.l.b16 %v8119
    %v9113 = vunpack.c.h.b16 %v8119
    %v9114 = vunpack.c.l.b16 %v8120
    %v9115 = vunpack.c.h.b16 %v8120
    %v9116 = vunpack.c.l.b16 %v8121
    %v9117 = vunpack.c.h.b16 %v8121
    %v9118 = vunpack.c.l.b16 %v8122
    %v9119 = vunpack.c.l.b16 %v8123
    %v9120 = vunpack.c.h.b16 %v8123
    %v9121 = vunpack.c.l.b16 %v8124
    %v9122 = vunpack.c.h.b16 %v8124
    %v9123 = vunpack.c.l.b16 %v8125
    %v9124 = vunpack.c.h.b16 %v8125
    %v9125 = vunpack.c.l.b16 %v8126
    %v9126 = vunpack.c.h.b16 %v8126
    %v9127 = vunpack.c.l.b16 %v8127
    %v9128 = vunpack.c.l.b16 %v8128
    %v9129 = vunpack.c.h.b16 %v8128
    %v9130 = vunpack.c.l.b16 %v8129
    %v9131 = vunpack.c.h.b16 %v8129
    %v9132 = vunpack.c.l.b16 %v8130
    %v9133 = vunpack.c.h.b16 %v8130
    %v9134 = vunpack.c.l.b16 %v8131
    %v9135 = vunpack.c.h.b16 %v8131
    %v9136 = vunpack.c.l.b16 %v8132
    %v9137 = vunpack.c.l.b16 %v8133
    %v9138 = vunpack.c.h.b16 %v8133
    %v9139 = vunpack.c.l.b16 %v8134
    %v9140 = vunpack.c.h.b16 %v8134
    %v9141 = vunpack.c.l.b16 %v8135
    %v9142 = vunpack.c.h.b16 %v8135
    %v9143 = vunpack.c.l.b16 %v8136
    %v9144 = vunpack.c.h.b16 %v8136
    %v9145 = vunpack.c.l.b16 %v8137
    %v9146 = vunpack.c.l.b16 %v8138
    %v9147 = vunpack.c.h.b16 %v8138
    %v9148 = vunpack.c.l.b16 %v8139
    %v9149 = vunpack.c.h.b16 %v8139
    %v9150 = vunpack.c.l.b16 %v8140
    %v9151 = vunpack.c.h.b16 %v8140
    %v9152 = vunpack.c.l.b16 %v8141
    %v9153 = vunpack.c.h.b16 %v8141
    %v9154 = vunpack.c.l.b16 %v8142
    %v9155 = vunpack.c.l.b16 %v8143
    %v9156 = vunpack.c.h.b16 %v8143
    %v9157 = vunpack.c.l.b16 %v8144
    %v9158 = vunpack.c.h.b16 %v8144
    %v9159 = vunpack.c.l.b16 %v8145
    %v9160 = vunpack.c.h.b16 %v8145
    %v9161 = vunpack.c.l.b16 %v8146
    %v9162 = vunpack.c.h.b16 %v8146
    %v9163 = vunpack.c.l.b16 %v8147
    %v9164 = vunpack.c.l.b16 %v8148
    %v9165 = vunpack.c.h.b16 %v8148
    %v9166 = vunpack.c.l.b16 %v8149
    %v9167 = vunpack.c.h.b16 %v8149
    %v9168 = vunpack.c.l.b16 %v8150
    %v9169 = vunpack.c.h.b16 %v8150
    %v9170 = vunpack.c.l.b16 %v8151
    %v9171 = vunpack.c.h.b16 %v8151
    %v9172 = vunpack.c.l.b16 %v8152
    %v9173 = vunpack.c.l.b16 %v8153
    %v9174 = vunpack.c.h.b16 %v8153
    %v9175 = vunpack.c.l.b16 %v8154
    %v9176 = vunpack.c.h.b16 %v8154
    %v9177 = vunpack.c.l.b16 %v8155
    %v9178 = vunpack.c.h.b16 %v8155
    %v9179 = vunpack.c.l.b16 %v8156
    %v9180 = vunpack.c.h.b16 %v8156
    %v9181 = vunpack.c.l.b16 %v8157
    %v9182 = vunpack.c.l.b16 %v8158
    %v9183 = vunpack.c.h.b16 %v8158
    %v9184 = vunpack.c.l.b16 %v8159
    %v9185 = vunpack.c.h.b16 %v8159
    %v9186 = vunpack.c.l.b16 %v8160
    %v9187 = vunpack.c.h.b16 %v8160
    %v9188 = vunpack.c.l.b16 %v8161
    %v9189 = vunpack.c.h.b16 %v8161
    %v9190 = vunpack.c.l.b16 %v8162
    %v9191 = vunpack.c.l.b16 %v8163
    %v9192 = vunpack.c.h.b16 %v8163
    %v9193 = vunpack.c.l.b16 %v8164
    %v9194 = vunpack.c.h.b16 %v8164
    %v9195 = vunpack.c.l.b16 %v8165
    %v9196 = vunpack.c.h.b16 %v8165
    %v9197 = vunpack.c.l.b16 %v8166
    %v9198 = vunpack.c.h.b16 %v8166
    %v9199 = vunpack.c.l.b16 %v8167
    %v9200 = vunpack.c.l.b16 %v8168
    %v9201 = vunpack.c.h.b16 %v8168
    %v9202 = vunpack.c.l.b16 %v8169
    %v9203 = vunpack.c.h.b16 %v8169
    %v9204 = vunpack.c.l.b16 %v8170
    %v9205 = vunpack.c.h.b16 %v8170
    %v9206 = vunpack.c.l.b16 %v8171
    %v9207 = vunpack.c.h.b16 %v8171
    %v9208 = vunpack.c.l.b16 %v8172
    %v9209 = vunpack.c.l.b16 %v8173
    %v9210 = vunpack.c.h.b16 %v8173
    %v9211 = vunpack.c.l.b16 %v8174
    %v9212 = vunpack.c.h.b16 %v8174
    %v9213 = vunpack.c.l.b16 %v8175
    %v9214 = vunpack.c.h.b16 %v8175
    %v9215 = vunpack.c.l.b16 %v8176
    %v9216 = vunpack.c.h.b16 %v8176
    %v9217 = vunpack.c.l.b16 %v8177
    %v9218 = vunpack.c.l.b16 %v8178
    %v9219 = vunpack.c.h.b16 %v8178
    %v9220 = vunpack.c.l.b16 %v8179
    %v9221 = vunpack.c.h.b16 %v8179
    %v9222 = vunpack.c.l.b16 %v8180
    %v9223 = vunpack.c.h.b16 %v8180
    %v9224 = vunpack.c.l.b16 %v8181
    %v9225 = vunpack.c.h.b16 %v8181
    %v9226 = vunpack.c.l.b16 %v8182
    %v9227 = vpack.c.b16 %v8660, %v8651
    %v9228 = vpack.c.b16 %v8661, %v8652
    %v9229 = vpack.c.b16 %v8662, %v8653
    %v9230 = vpack.c.b16 %v8663, %v8654
    %v9231 = vpack.c.b16 %v8664, %v8655
    %v9232 = vpack.c.b16 %v8665, %v8656
    %v9233 = vpack.c.b16 %v8666, %v8657
    %v9234 = vpack.c.b16 %v8667, %v8658
    %v9235 = vpack.c.b16 %v8668, %v8659
    %v9236 = vpack.c.b16 %v8678, %v8669
    %v9237 = vpack.c.b16 %v8679, %v8670
    %v9238 = vpack.c.b16 %v8680, %v8671
    %v9239 = vpack.c.b16 %v8681, %v8672
    %v9240 = vpack.c.b16 %v8682, %v8673
    %v9241 = vpack.c.b16 %v8683, %v8674
    %v9242 = vpack.c.b16 %v8684, %v8675
    %v9243 = vpack.c.b16 %v8685, %v8676
    %v9244 = vpack.c.b16 %v8686, %v8677
    %v9245 = vpack.c.b16 %v8696, %v8687
    %v9246 = vpack.c.b16 %v8697, %v8688
    %v9247 = vpack.c.b16 %v8698, %v8689
    %v9248 = vpack.c.b16 %v8699, %v8690
    %v9249 = vpack.c.b16 %v8700, %v8691
    %v9250 = vpack.c.b16 %v8701, %v8692
    %v9251 = vpack.c.b16 %v8702, %v8693
    %v9252 = vpack.c.b16 %v8703, %v8694
    %v9253 = vpack.c.b16 %v8704, %v8695
    %v9254 = vpack.c.b16 %v8714, %v8705
    %v9255 = vpack.c.b16 %v8715, %v8706
    %v9256 = vpack.c.b16 %v8716, %v8707
    %v9257 = vpack.c.b16 %v8717, %v8708
    %v9258 = vpack.c.b16 %v8718, %v8709
    %v9259 = vpack.c.b16 %v8719, %v8710
    %v9260 = vpack.c.b16 %v8720, %v8711
    %v9261 = vpack.c.b16 %v8721, %v8712
    %v9262 = vpack.c.b16 %v8722, %v8713
    %v9263 = vpack.c.b16 %v8732, %v8723
    %v9264 = vpack.c.b16 %v8733, %v8724
    %v9265 = vpack.c.b16 %v8734, %v8725
    %v9266 = vpack.c.b16 %v8735, %v8726
    %v9267 = vpack.c.b16 %v8736, %v8727
    %v9268 = vpack.c.b16 %v8737, %v8728
    %v9269 = vpack.c.b16 %v8738, %v8729
    %v9270 = vpack.c.b16 %v8739, %v8730
    %v9271 = vpack.c.b16 %v8740, %v8731
    %v9272 = vpack.c.b16 %v8750, %v8741
    %v9273 = vpack.c.b16 %v8751, %v8742
    %v9274 = vpack.c.b16 %v8752, %v8743
    %v9275 = vpack.c.b16 %v8753, %v8744
    %v9276 = vpack.c.b16 %v8754, %v8745
    %v9277 = vpack.c.b16 %v8755, %v8746
    %v9278 = vpack.c.b16 %v8756, %v8747
    %v9279 = vpack.c.b16 %v8757, %v8748
    %v9280 = vpack.c.b16 %v8758, %v8749
    %v9281 = vpack.c.b16 %v8768, %v8759
    %v9282 = vpack.c.b16 %v8769, %v8760
    %v9283 = vpack.c.b16 %v8770, %v8761
    %v9284 = vpack.c.b16 %v8771, %v8762
    %v9285 = vpack.c.b16 %v8772, %v8763
    %v9286 = vpack.c.b16 %v8773, %v8764
    %v9287 = vpack.c.b16 %v8774, %v8765
    %v9288 = vpack.c.b16 %v8775, %v8766
    %v9289 = vpack.c.b16 %v8776, %v8767
    %v9290 = vpack.c.b16 %v8786, %v8777
    %v9291 = vpack.c.b16 %v8787, %v8778
    %v9292 = vpack.c.b16 %v8788, %v8779
    %v9293 = vpack.c.b16 %v8789, %v8780
    %v9294 = vpack.c.b16 %v8790, %v8781
    %v9295 = vpack.c.b16 %v8791, %v8782
    %v9296 = vpack.c.b16 %v8792, %v8783
    %v9297 = vpack.c.b16 %v8793, %v8784
    %v9298 = vpack.c.b16 %v8794, %v8785
    %v9299 = vpack.c.b16 %v8804, %v8795
    %v9300 = vpack.c.b16 %v8805, %v8796
    %v9301 = vpack.c.b16 %v8806, %v8797
    %v9302 = vpack.c.b16 %v8807, %v8798
    %v9303 = vpack.c.b16 %v8808, %v8799
    %v9304 = vpack.c.b16 %v8809, %v8800
    %v9305 = vpack.c.b16 %v8810, %v8801
    %v9306 = vpack.c.b16 %v8811, %v8802
    %v9307 = vpack.c.b16 %v8812, %v8803
    %v9308 = vpack.c.b16 %v8822, %v8813
    %v9309 = vpack.c.b16 %v8823, %v8814
    %v9310 = vpack.c.b16 %v8824, %v8815
    %v9311 = vpack.c.b16 %v8825, %v8816
    %v9312 = vpack.c.b16 %v8826, %v8817
    %v9313 = vpack.c.b16 %v8827, %v8818
    %v9314 = vpack.c.b16 %v8828, %v8819
    %v9315 = vpack.c.b16 %v8829, %v8820
    %v9316 = vpack.c.b16 %v8830, %v8821
    %v9317 = vpack.c.b16 %v8840, %v8831
    %v9318 = vpack.c.b16 %v8841, %v8832
    %v9319 = vpack.c.b16 %v8842, %v8833
    %v9320 = vpack.c.b16 %v8843, %v8834
    %v9321 = vpack.c.b16 %v8844, %v8835
    %v9322 = vpack.c.b16 %v8845, %v8836
    %v9323 = vpack.c.b16 %v8846, %v8837
    %v9324 = vpack.c.b16 %v8847, %v8838
    %v9325 = vpack.c.b16 %v8848, %v8839
    %v9326 = vpack.c.b16 %v8858, %v8849
    %v9327 = vpack.c.b16 %v8859, %v8850
    %v9328 = vpack.c.b16 %v8860, %v8851
    %v9329 = vpack.c.b16 %v8861, %v8852
    %v9330 = vpack.c.b16 %v8862, %v8853
    %v9331 = vpack.c.b16 %v8863, %v8854
    %v9332 = vpack.c.b16 %v8864, %v8855
    %v9333 = vpack.c.b16 %v8865, %v8856
    %v9334 = vpack.c.b16 %v8866, %v8857
    %v9335 = vpack.c.b16 %v8876, %v8867
    %v9336 = vpack.c.b16 %v8877, %v8868
    %v9337 = vpack.c.b16 %v8878, %v8869
    %v9338 = vpack.c.b16 %v8879, %v8870
    %v9339 = vpack.c.b16 %v8880, %v8871
    %v9340 = vpack.c.b16 %v8881, %v8872
    %v9341 = vpack.c.b16 %v8882, %v8873
    %v9342 = vpack.c.b16 %v8883, %v8874
    %v9343 = vpack.c.b16 %v8884, %v8875
    %v9344 = vpack.c.b16 %v8894, %v8885
    %v9345 = vpack.c.b16 %v8895, %v8886
    %v9346 = vpack.c.b16 %v8896, %v8887
    %v9347 = vpack.c.b16 %v8897, %v8888
    %v9348 = vpack.c.b16 %v8898, %v8889
    %v9349 = vpack.c.b16 %v8899, %v8890
    %v9350 = vpack.c.b16 %v8900, %v8891
    %v9351 = vpack.c.b16 %v8901, %v8892
    %v9352 = vpack.c.b16 %v8902, %v8893
    %v9353 = vpack.c.b16 %v8912, %v8903
    %v9354 = vpack.c.b16 %v8913, %v8904
    %v9355 = vpack.c.b16 %v8914, %v8905
    %v9356 = vpack.c.b16 %v8915, %v8906
    %v9357 = vpack.c.b16 %v8916, %v8907
    %v9358 = vpack.c.b16 %v8917, %v8908
    %v9359 = vpack.c.b16 %v8918, %v8909
    %v9360 = vpack.c.b16 %v8919, %v8910
    %v9361 = vpack.c.b16 %v8920, %v8911
    %v9362 = vpack.c.b16 %v8930, %v8921
    %v9363 = vpack.c.b16 %v8931, %v8922
    %v9364 = vpack.c.b16 %v8932, %v8923
    %v9365 = vpack.c.b16 %v8933, %v8924
    %v9366 = vpack.c.b16 %v8934, %v8925
    %v9367 = vpack.c.b16 %v8935, %v8926
    %v9368 = vpack.c.b16 %v8936, %v8927
    %v9369 = vpack.c.b16 %v8937, %v8928
    %v9370 = vpack.c.b16 %v8938, %v8929
    %v9371 = vpack.c.b16 %v8948, %v8939
    %v9372 = vpack.c.b16 %v8949, %v8940
    %v9373 = vpack.c.b16 %v8950, %v8941
    %v9374 = vpack.c.b16 %v8951, %v8942
    %v9375 = vpack.c.b16 %v8952, %v8943
    %v9376 = vpack.c.b16 %v8953, %v8944
    %v9377 = vpack.c.b16 %v8954, %v8945
    %v9378 = vpack.c.b16 %v8955, %v8946
    %v9379 = vpack.c.b16 %v8956, %v8947
    %v9380 = vpack.c.b16 %v8966, %v8957
    %v9381 = vpack.c.b16 %v8967, %v8958
    %v9382 = vpack.c.b16 %v8968, %v8959
    %v9383 = vpack.c.b16 %v8969, %v8960
    %v9384 = vpack.c.b16 %v8970, %v8961
    %v9385 = vpack.c.b16 %v8971, %v8962
    %v9386 = vpack.c.b16 %v8972, %v8963
    %v9387 = vpack.c.b16 %v8973, %v8964
    %v9388 = vpack.c.b16 %v8974, %v8965
    %v9389 = vpack.c.b16 %v8984, %v8975
    %v9390 = vpack.c.b16 %v8985, %v8976
    %v9391 = vpack.c.b16 %v8986, %v8977
    %v9392 = vpack.c.b16 %v8987, %v8978
    %v9393 = vpack.c.b16 %v8988, %v8979
    %v9394 = vpack.c.b16 %v8989, %v8980
    %v9395 = vpack.c.b16 %v8990, %v8981
    %v9396 = vpack.c.b16 %v8991, %v8982
    %v9397 = vpack.c.b16 %v8992, %v8983
    %v9398 = vpack.c.b16 %v9002, %v8993
    %v9399 = vpack.c.b16 %v9003, %v8994
    %v9400 = vpack.c.b16 %v9004, %v8995
    %v9401 = vpack.c.b16 %v9005, %v8996
    %v9402 = vpack.c.b16 %v9006, %v8997
    %v9403 = vpack.c.b16 %v9007, %v8998
    %v9404 = vpack.c.b16 %v9008, %v8999
    %v9405 = vpack.c.b16 %v9009, %v9000
    %v9406 = vpack.c.b16 %v9010, %v9001
    %v9407 = vpack.c.b16 %v9020, %v9011
    %v9408 = vpack.c.b16 %v9021, %v9012
    %v9409 = vpack.c.b16 %v9022, %v9013
    %v9410 = vpack.c.b16 %v9023, %v9014
    %v9411 = vpack.c.b16 %v9024, %v9015
    %v9412 = vpack.c.b16 %v9025, %v9016
    %v9413 = vpack.c.b16 %v9026, %v9017
    %v9414 = vpack.c.b16 %v9027, %v9018
    %v9415 = vpack.c.b16 %v9028, %v9019
    %v9416 = vpack.c.b16 %v9038, %v9029
    %v9417 = vpack.c.b16 %v9039, %v9030
    %v9418 = vpack.c.b16 %v9040, %v9031
    %v9419 = vpack.c.b16 %v9041, %v9032
    %v9420 = vpack.c.b16 %v9042, %v9033
    %v9421 = vpack.c.b16 %v9043, %v9034
    %v9422 = vpack.c.b16 %v9044, %v9035
    %v9423 = vpack.c.b16 %v9045, %v9036
    %v9424 = vpack.c.b16 %v9046, %v9037
    %v9425 = vpack.c.b16 %v9056, %v9047
    %v9426 = vpack.c.b16 %v9057, %v9048
    %v9427 = vpack.c.b16 %v9058, %v9049
    %v9428 = vpack.c.b16 %v9059, %v9050
    %v9429 = vpack.c.b16 %v9060, %v9051
    %v9430 = vpack.c.b16 %v9061, %v9052
    %v9431 = vpack.c.b16 %v9062, %v9053
    %v9432 = vpack.c.b16 %v9063, %v9054
    %v9433 = vpack.c.b16 %v9064, %v9055
    %v9434 = vpack.c.b16 %v9074, %v9065
    %v9435 = vpack.c.b16 %v9075, %v9066
    %v9436 = vpack.c.b16 %v9076, %v9067
    %v9437 = vpack.c.b16 %v9077, %v9068
    %v9438 = vpack.c.b16 %v9078, %v9069
    %v9439 = vpack.c.b16 %v9079, %v9070
    %v9440 = vpack.c.b16 %v9080, %v9071
    %v9441 = vpack.c.b16 %v9081, %v9072
    %v9442 = vpack.c.b16 %v9082, %v9073
    %v9443 = vpack.c.b16 %v9092, %v9083
    %v9444 = vpack.c.b16 %v9093, %v9084
    %v9445 = vpack.c.b16 %v9094, %v9085
    %v9446 = vpack.c.b16 %v9095, %v9086
    %v9447 = vpack.c.b16 %v9096, %v9087
    %v9448 = vpack.c.b16 %v9097, %v9088
    %v9449 = vpack.c.b16 %v9098, %v9089
    %v9450 = vpack.c.b16 %v9099, %v9090
    %v9451 = vpack.c.b16 %v9100, %v9091
    %v9452 = vpack.c.b16 %v9110, %v9101
    %v9453 = vpack.c.b16 %v9111, %v9102
    %v9454 = vpack.c.b16 %v9112, %v9103
    %v9455 = vpack.c.b16 %v9113, %v9104
    %v9456 = vpack.c.b16 %v9114, %v9105
    %v9457 = vpack.c.b16 %v9115, %v9106
    %v9458 = vpack.c.b16 %v9116, %v9107
    %v9459 = vpack.c.b16 %v9117, %v9108
    %v9460 = vpack.c.b16 %v9118, %v9109
    %v9461 = vpack.c.b16 %v9128, %v9119
    %v9462 = vpack.c.b16 %v9129, %v9120
    %v9463 = vpack.c.b16 %v9130, %v9121
    %v9464 = vpack.c.b16 %v9131, %v9122
    %v9465 = vpack.c.b16 %v9132, %v9123
    %v9466 = vpack.c.b16 %v9133, %v9124
    %v9467 = vpack.c.b16 %v9134, %v9125
    %v9468 = vpack.c.b16 %v9135, %v9126
    %v9469 = vpack.c.b16 %v9136, %v9127
    %v9470 = vpack.c.b16 %v9146, %v9137
    %v9471 = vpack.c.b16 %v9147, %v9138
    %v9472 = vpack.c.b16 %v9148, %v9139
    %v9473 = vpack.c.b16 %v9149, %v9140
    %v9474 = vpack.c.b16 %v9150, %v9141
    %v9475 = vpack.c.b16 %v9151, %v9142
    %v9476 = vpack.c.b16 %v9152, %v9143
    %v9477 = vpack.c.b16 %v9153, %v9144
    %v9478 = vpack.c.b16 %v9154, %v9145
    %v9479 = vpack.c.b16 %v9164, %v9155
    %v9480 = vpack.c.b16 %v9165, %v9156
    %v9481 = vpack.c.b16 %v9166, %v9157
    %v9482 = vpack.c.b16 %v9167, %v9158
    %v9483 = vpack.c.b16 %v9168, %v9159
    %v9484 = vpack.c.b16 %v9169, %v9160
    %v9485 = vpack.c.b16 %v9170, %v9161
    %v9486 = vpack.c.b16 %v9171, %v9162
    %v9487 = vpack.c.b16 %v9172, %v9163
    %v9488 = vpack.c.b16 %v9182, %v9173
    %v9489 = vpack.c.b16 %v9183, %v9174
    %v9490 = vpack.c.b16 %v9184, %v9175
    %v9491 = vpack.c.b16 %v9185, %v9176
    %v9492 = vpack.c.b16 %v9186, %v9177
    %v9493 = vpack.c.b16 %v9187, %v9178
    %v9494 = vpack.c.b16 %v9188, %v9179
    %v9495 = vpack.c.b16 %v9189, %v9180
    %v9496 = vpack.c.b16 %v9190, %v9181
    %v9497 = vpack.c.b16 %v9200, %v9191
    %v9498 = vpack.c.b16 %v9201, %v9192
    %v9499 = vpack.c.b16 %v9202, %v9193
    %v9500 = vpack.c.b16 %v9203, %v9194
    %v9501 = vpack.c.b16 %v9204, %v9195
    %v9502 = vpack.c.b16 %v9205, %v9196
    %v9503 = vpack.c.b16 %v9206, %v9197
    %v9504 = vpack.c.b16 %v9207, %v9198
    %v9505 = vpack.c.b16 %v9208, %v9199
    %v9506 = vpack.c.b16 %v9218, %v9209
    %v9507 = vpack.c.b16 %v9219, %v9210
    %v9508 = vpack.c.b16 %v9220, %v9211
    %v9509 = vpack.c.b16 %v9221, %v9212
    %v9510 = vpack.c.b16 %v9222, %v9213
    %v9511 = vpack.c.b16 %v9223, %v9214
    %v9512 = vpack.c.b16 %v9224, %v9215
    %v9513 = vpack.c.b16 %v9225, %v9216
    %v9514 = vpack.c.b16 %v9226, %v9217
    %v9947 = vunpack.c.l.b16 %v8183
    %v9948 = vunpack.c.l.b16 %v8184
    %v9949 = vunpack.c.l.b16 %v8185
    %v9950 = vunpack.c.l.b16 %v8186
    %v9951 = vunpack.c.l.b16 %v8187
    %v9952 = vunpack.c.l.b16 %v8188
    %v9953 = vunpack.c.l.b16 %v8189
    %v9954 = vunpack.c.l.b16 %v8190
    %v9955 = vunpack.c.l.b16 %v8191
    %v9956 = vunpack.c.l.b16 %v8192
    %v9957 = vunpack.c.l.b16 %v8193
    %v9958 = vunpack.c.l.b16 %v8194
    %v9959 = vunpack.c.l.b16 %v8195
    %v9960 = vunpack.c.l.b16 %v8196
    %v9961 = vunpack.c.l.b16 %v8197
    %v9962 = vunpack.c.l.b16 %v8198
    %v9963 = vunpack.c.l.b16 %v8199
    %v9964 = vunpack.c.l.b16 %v8200
    %v9965 = vunpack.c.l.b16 %v8201
    %v9966 = vunpack.c.l.b16 %v8202
    %v9967 = vunpack.c.l.b16 %v8203
    %v9968 = vunpack.c.l.b16 %v8204
    %v9969 = vunpack.c.l.b16 %v8205
    %v9970 = vunpack.c.l.b16 %v8206
    %v9971 = vunpack.c.l.b16 %v8207
    %v9972 = vunpack.c.l.b16 %v8208
    %v9973 = vunpack.c.l.b16 %v8209
    %v9974 = vunpack.c.l.b16 %v8210
    %v9975 = vunpack.c.l.b16 %v8211
    %v9976 = vunpack.c.l.b16 %v8212
    %v9977 = vunpack.c.l.b16 %v8213
    %v9978 = vunpack.c.l.b16 %v8214
    %v9979 = vunpack.c.l.b16 %v8215
    %v9980 = vunpack.c.l.b16 %v8216
    %v9981 = vunpack.c.l.b16 %v8217
    %v9982 = vunpack.c.l.b16 %v8218
    %v9983 = vunpack.c.l.b16 %v8219
    %v9984 = vunpack.c.l.b16 %v8220
    %v9985 = vunpack.c.l.b16 %v8221
    %v9986 = vunpack.c.l.b16 %v8222
    %v9987 = vunpack.c.l.b16 %v8223
    %v9988 = vunpack.c.l.b16 %v8224
    %v9989 = vunpack.c.l.b16 %v8225
    %v9990 = vunpack.c.l.b16 %v8226
    %v9991 = vunpack.c.l.b16 %v8227
    %v9992 = vunpack.c.l.b16 %v8228
    %v9993 = vunpack.c.l.b16 %v8229
    %v9994 = vunpack.c.l.b16 %v8230
    %v9995 = vunpack.c.l.b16 %v8231
    %v9996 = vunpack.c.l.b16 %v8232
    %v9997 = vunpack.c.l.b16 %v8233
    %v9998 = vunpack.c.l.b16 %v8234
    %v9999 = vunpack.c.l.b16 %v8235
    %v10000 = vunpack.c.l.b16 %v8236
    %v10001 = vunpack.c.l.b16 %v8237
    %v10002 = vunpack.c.l.b16 %v8238
    %v10003 = vunpack.c.l.b16 %v8239
    %v10004 = vunpack.c.l.b16 %v8240
    %v10005 = vunpack.c.l.b16 %v8241
    %v10006 = vunpack.c.l.b16 %v8242
    %v10007 = vunpack.c.l.b16 %v8243
    %v10008 = vunpack.c.l.b16 %v8244
    %v10009 = vunpack.c.l.b16 %v8245
    %v10010 = vunpack.c.l.b16 %v8246
    %v10011 = vunpack.c.l.b16 %v8247
    %v10012 = vunpack.c.l.b16 %v8248
    %v10013 = vunpack.c.l.b16 %v8249
    %v10014 = vunpack.c.l.b16 %v8250
    %v10015 = vunpack.c.l.b16 %v8251
    %v10016 = vunpack.c.l.b16 %v8252
    %v10017 = vunpack.c.l.b16 %v8253
    %v10018 = vunpack.c.l.b16 %v8254
    %v10019 = vunpack.c.l.b16 %v8255
    %v10020 = vunpack.c.l.b16 %v8256
    %v10021 = vunpack.c.l.b16 %v8257
    %v10022 = vunpack.c.l.b16 %v8258
    %v10023 = vunpack.c.l.b16 %v8259
    %v10024 = vunpack.c.l.b16 %v8260
    %v10025 = vunpack.c.l.b16 %v8261
    %v10026 = vunpack.c.l.b16 %v8262
    %v10027 = vunpack.c.l.b16 %v8263
    %v10028 = vunpack.c.l.b16 %v8264
    %v10029 = vunpack.c.l.b16 %v8265
    %v10030 = vunpack.c.l.b16 %v8266
    %v10031 = vunpack.c.l.b16 %v8267
    %v10032 = vunpack.c.l.b16 %v8268
    %v10033 = vunpack.c.l.b16 %v8269
    %v10034 = vunpack.c.l.b16 %v8270
    %v10035 = vunpack.c.l.b16 %v8271
    %v10036 = vunpack.c.l.b16 %v8272
    %v10037 = vunpack.c.l.b16 %v8273
    %v10038 = vunpack.c.l.b16 %v8274
    %v10039 = vunpack.c.l.b16 %v8275
    %v10040 = vunpack.c.l.b16 %v8276
    %v10041 = vunpack.c.l.b16 %v8277
    %v10042 = vunpack.c.l.b16 %v8278
    %v10043 = vunpack.c.l.b16 %v8279
    %v10044 = vunpack.c.l.b16 %v8280
    %v10045 = vunpack.c.l.b16 %v8281
    %v10046 = vunpack.c.l.b16 %v8282
    %v10047 = vunpack.c.l.b16 %v8283
    %v10048 = vunpack.c.l.b16 %v8284
    %v10049 = vunpack.c.l.b16 %v8285
    %v10050 = vunpack.c.l.b16 %v8286
    %v10051 = vunpack.c.l.b16 %v8287
    %v10052 = vunpack.c.l.b16 %v8288
    %v10053 = vunpack.c.l.b16 %v8289
    %v10054 = vunpack.c.l.b16 %v8290
    %v10055 = vunpack.c.l.b16 %v8291
    %v10056 = vunpack.c.l.b16 %v8292
    %v10057 = vunpack.c.l.b16 %v8293
    %v10058 = vunpack.c.l.b16 %v8294
    %v10059 = vunpack.c.l.b16 %v8295
    %v10060 = vunpack.c.l.b16 %v8296
    %v10061 = vunpack.c.l.b16 %v8297
    %v10062 = vunpack.c.l.b16 %v8298
    %v10063 = vunpack.c.l.b16 %v8299
    %v10064 = vunpack.c.l.b16 %v8300
    %v10065 = vunpack.c.l.b16 %v8301
    %v10066 = vunpack.c.l.b16 %v8302
    %v10067 = vunpack.c.l.b16 %v8303
    %v10068 = vunpack.c.l.b16 %v8304
    %v10069 = vunpack.c.l.b16 %v8305
    %v10070 = vunpack.c.l.b16 %v8306
    %v10071 = vunpack.c.l.b16 %v8307
    %v10072 = vunpack.c.l.b16 %v8308
    %v10073 = vunpack.c.l.b16 %v8309
    %v10074 = vunpack.c.l.b16 %v8310
    %v10075 = vunpack.c.l.b16 %v8311
    %v10076 = vunpack.c.l.b16 %v8312
    %v10077 = vunpack.c.l.b16 %v8313
    %v10078 = vunpack.c.l.b16 %v8314
    %v10079 = vunpack.c.l.b16 %v8315
    %v10080 = vunpack.c.l.b16 %v8316
    %v10081 = vunpack.c.l.b16 %v8317
    %v10082 = vunpack.c.l.b16 %v8318
    %v10083 = vunpack.c.l.b16 %v8319
    %v10084 = vunpack.c.l.b16 %v8320
    %v10085 = vunpack.c.l.b16 %v8321
    %v10086 = vunpack.c.l.b16 %v8322
    %v10087 = vunpack.c.l.b16 %v8323
    %v10088 = vunpack.c.l.b16 %v8324
    %v10089 = vunpack.c.l.b16 %v8325
    %v10090 = vunpack.c.l.b16 %v8326
    %v10091 = vpack.c.b16 %v9948, %v9947
    %v10092 = vpack.c.b16 %v9950, %v9949
    %v10093 = vpack.c.b16 %v9952, %v9951
    %v10094 = vpack.c.b16 %v9954, %v9953
    %v10095 = vpack.c.b16 %v9956, %v9955
    %v10096 = vpack.c.b16 %v9958, %v9957
    %v10097 = vpack.c.b16 %v9960, %v9959
    %v10098 = vpack.c.b16 %v9962, %v9961
    %v10099 = vpack.c.b16 %v9964, %v9963
    %v10100 = vpack.c.b16 %v9966, %v9965
    %v10101 = vpack.c.b16 %v9968, %v9967
    %v10102 = vpack.c.b16 %v9970, %v9969
    %v10103 = vpack.c.b16 %v9972, %v9971
    %v10104 = vpack.c.b16 %v9974, %v9973
    %v10105 = vpack.c.b16 %v9976, %v9975
    %v10106 = vpack.c.b16 %v9978, %v9977
    %v10107 = vpack.c.b16 %v9980, %v9979
    %v10108 = vpack.c.b16 %v9982, %v9981
    %v10109 = vpack.c.b16 %v9984, %v9983
    %v10110 = vpack.c.b16 %v9986, %v9985
    %v10111 = vpack.c.b16 %v9988, %v9987
    %v10112 = vpack.c.b16 %v9990, %v9989
    %v10113 = vpack.c.b16 %v9992, %v9991
    %v10114 = vpack.c.b16 %v9994, %v9993
    %v10115 = vpack.c.b16 %v9996, %v9995
    %v10116 = vpack.c.b16 %v9998, %v9997
    %v10117 = vpack.c.b16 %v10000, %v9999
    %v10118 = vpack.c.b16 %v10002, %v10001
    %v10119 = vpack.c.b16 %v10004, %v10003
    %v10120 = vpack.c.b16 %v10006, %v10005
    %v10121 = vpack.c.b16 %v10008, %v10007
    %v10122 = vpack.c.b16 %v10010, %v10009
    %v10123 = vpack.c.b16 %v10012, %v10011
    %v10124 = vpack.c.b16 %v10014, %v10013
    %v10125 = vpack.c.b16 %v10016, %v10015
    %v10126 = vpack.c.b16 %v10018, %v10017
    %v10127 = vpack.c.b16 %v10020, %v10019
    %v10128 = vpack.c.b16 %v10022, %v10021
    %v10129 = vpack.c.b16 %v10024, %v10023
    %v10130 = vpack.c.b16 %v10026, %v10025
    %v10131 = vpack.c.b16 %v10028, %v10027
    %v10132 = vpack.c.b16 %v10030, %v10029
    %v10133 = vpack.c.b16 %v10032, %v10031
    %v10134 = vpack.c.b16 %v10034, %v10033
    %v10135 = vpack.c.b16 %v10036, %v10035
    %v10136 = vpack.c.b16 %v10038, %v10037
    %v10137 = vpack.c.b16 %v10040, %v10039
    %v10138 = vpack.c.b16 %v10042, %v10041
    %v10139 = vpack.c.b16 %v10044, %v10043
    %v10140 = vpack.c.b16 %v10046, %v10045
    %v10141 = vpack.c.b16 %v10048, %v10047
    %v10142 = vpack.c.b16 %v10050, %v10049
    %v10143 = vpack.c.b16 %v10052, %v10051
    %v10144 = vpack.c.b16 %v10054, %v10053
    %v10145 = vpack.c.b16 %v10056, %v10055
    %v10146 = vpack.c.b16 %v10058, %v10057
    %v10147 = vpack.c.b16 %v10060, %v10059
    %v10148 = vpack.c.b16 %v10062, %v10061
    %v10149 = vpack.c.b16 %v10064, %v10063
    %v10150 = vpack.c.b16 %v10066, %v10065
    %v10151 = vpack.c.b16 %v10068, %v10067
    %v10152 = vpack.c.b16 %v10070, %v10069
    %v10153 = vpack.c.b16 %v10072, %v10071
    %v10154 = vpack.c.b16 %v10074, %v10073
    %v10155 = vpack.c.b16 %v10076, %v10075
    %v10156 = vpack.c.b16 %v10078, %v10077
    %v10157 = vpack.c.b16 %v10080, %v10079
    %v10158 = vpack.c.b16 %v10082, %v10081
    %v10159 = vpack.c.b16 %v10084, %v10083
    %v10160 = vpack.c.b16 %v10086, %v10085
    %v10161 = vpack.c.b16 %v10088, %v10087
    %v10162 = vpack.c.b16 %v10090, %v10089
    %10235 = vmatpush.bf16.msra.mxu0 %v10098
    %10236 = vmatpush.bf16.msra.mxu0 %v10097
    %10237 = vmatpush.bf16.msra.mxu0 %v10096
    %10238 = vmatpush.bf16.msra.mxu0 %v10095
    %10239 = vmatpush.bf16.msra.mxu0 %v10094
    %10240 = vmatpush.bf16.msra.mxu0 %v10093
    %10241 = vmatpush.bf16.msra.mxu0 %v10092
    %10242 = vmatpush.bf16.msra.mxu0 %v10091
    %10243 = vmatmul.bf16.gmra.mxu0 %v9227
    %v10244 = vpop.f32.mrf.mxu0
    %v10245 = vadd.f32 %v8329, %v10244
    %v10246 = vpop.f32.mrf.mxu0
    %v10247 = vadd.f32 %v8329, %v10246
    %10248 = vmatmul.bf16.gmra.mxu0 %v9236
    %v10249 = vpop.f32.mrf.mxu0
    %v10250 = vadd.f32 %v8329, %v10249
    %v10251 = vpop.f32.mrf.mxu0
    %v10252 = vadd.f32 %v8329, %v10251
    %10253 = vmatmul.bf16.gmra.mxu0 %v9245
    %v10254 = vpop.f32.mrf.mxu0
    %v10255 = vadd.f32 %v8329, %v10254
    %v10256 = vpop.f32.mrf.mxu0
    %v10257 = vadd.f32 %v8329, %v10256
    %10258 = vmatmul.bf16.gmra.mxu0 %v9254
    %v10259 = vpop.f32.mrf.mxu0
    %v10260 = vadd.f32 %v8329, %v10259
    %v10261 = vpop.f32.mrf.mxu0
    %v10262 = vadd.f32 %v8329, %v10261
    %10263 = vmatmul.bf16.gmra.mxu0 %v9263
    %v10264 = vpop.f32.mrf.mxu0
    %v10265 = vadd.f32 %v8329, %v10264
    %v10266 = vpop.f32.mrf.mxu0
    %v10267 = vadd.f32 %v8329, %v10266
    %10268 = vmatmul.bf16.gmra.mxu0 %v9272
    %v10269 = vpop.f32.mrf.mxu0
    %v10270 = vadd.f32 %v8329, %v10269
    %v10271 = vpop.f32.mrf.mxu0
    %v10272 = vadd.f32 %v8329, %v10271
    %10273 = vmatmul.bf16.gmra.mxu0 %v9281
    %v10274 = vpop.f32.mrf.mxu0
    %v10275 = vadd.f32 %v8329, %v10274
    %v10276 = vpop.f32.mrf.mxu0
    %v10277 = vadd.f32 %v8329, %v10276
    %10278 = vmatmul.bf16.gmra.mxu0 %v9290
    %v10279 = vpop.f32.mrf.mxu0
    %v10280 = vadd.f32 %v8329, %v10279
    %v10281 = vpop.f32.mrf.mxu0
    %v10282 = vadd.f32 %v8329, %v10281
    %10283 = vmatmul.bf16.gmra.mxu0 %v9299
    %v10284 = vpop.f32.mrf.mxu0
    %v10285 = vadd.f32 %v8329, %v10284
    %v10286 = vpop.f32.mrf.mxu0
    %v10287 = vadd.f32 %v8329, %v10286
    %10288 = vmatmul.bf16.gmra.mxu0 %v9308
    %v10289 = vpop.f32.mrf.mxu0
    %v10290 = vadd.f32 %v8329, %v10289
    %v10291 = vpop.f32.mrf.mxu0
    %v10292 = vadd.f32 %v8329, %v10291
    %10293 = vmatmul.bf16.gmra.mxu0 %v9317
    %v10294 = vpop.f32.mrf.mxu0
    %v10295 = vadd.f32 %v8329, %v10294
    %v10296 = vpop.f32.mrf.mxu0
    %v10297 = vadd.f32 %v8329, %v10296
    %10298 = vmatmul.bf16.gmra.mxu0 %v9326
    %v10299 = vpop.f32.mrf.mxu0
    %v10300 = vadd.f32 %v8329, %v10299
    %v10301 = vpop.f32.mrf.mxu0
    %v10302 = vadd.f32 %v8329, %v10301
    %10303 = vmatmul.bf16.gmra.mxu0 %v9335
    %v10304 = vpop.f32.mrf.mxu0
    %v10305 = vadd.f32 %v8329, %v10304
    %v10306 = vpop.f32.mrf.mxu0
    %v10307 = vadd.f32 %v8329, %v10306
    %10308 = vmatmul.bf16.gmra.mxu0 %v9344
    %v10309 = vpop.f32.mrf.mxu0
    %v10310 = vadd.f32 %v8329, %v10309
    %v10311 = vpop.f32.mrf.mxu0
    %v10312 = vadd.f32 %v8329, %v10311
    %10313 = vmatmul.bf16.gmra.mxu0 %v9353
    %v10314 = vpop.f32.mrf.mxu0
    %v10315 = vadd.f32 %v8329, %v10314
    %v10316 = vpop.f32.mrf.mxu0
    %v10317 = vadd.f32 %v8329, %v10316
    %10318 = vmatmul.bf16.gmra.mxu0 %v9362
    %v10319 = vpop.f32.mrf.mxu0
    %v10320 = vadd.f32 %v8329, %v10319
    %v10321 = vpop.f32.mrf.mxu0
    %v10322 = vadd.f32 %v8329, %v10321
    %10323 = vmatmul.bf16.gmra.mxu0 %v9371
    %v10324 = vpop.f32.mrf.mxu0
    %v10325 = vadd.f32 %v8329, %v10324
    %v10326 = vpop.f32.mrf.mxu0
    %v10327 = vadd.f32 %v8329, %v10326
    %10328 = vmatmul.bf16.gmra.mxu0 %v9380
    %v10329 = vpop.f32.mrf.mxu0
    %v10330 = vadd.f32 %v8329, %v10329
    %v10331 = vpop.f32.mrf.mxu0
    %v10332 = vadd.f32 %v8329, %v10331
    %10333 = vmatmul.bf16.gmra.mxu0 %v9389
    %v10334 = vpop.f32.mrf.mxu0
    %v10335 = vadd.f32 %v8329, %v10334
    %v10336 = vpop.f32.mrf.mxu0
    %v10337 = vadd.f32 %v8329, %v10336
    %10338 = vmatmul.bf16.gmra.mxu0 %v9398
    %v10339 = vpop.f32.mrf.mxu0
    %v10340 = vadd.f32 %v8329, %v10339
    %v10341 = vpop.f32.mrf.mxu0
    %v10342 = vadd.f32 %v8329, %v10341
    %10343 = vmatmul.bf16.gmra.mxu0 %v9407
    %v10344 = vpop.f32.mrf.mxu0
    %v10345 = vadd.f32 %v8329, %v10344
    %v10346 = vpop.f32.mrf.mxu0
    %v10347 = vadd.f32 %v8329, %v10346
    %10348 = vmatmul.bf16.gmra.mxu0 %v9416
    %v10349 = vpop.f32.mrf.mxu0
    %v10350 = vadd.f32 %v8329, %v10349
    %v10351 = vpop.f32.mrf.mxu0
    %v10352 = vadd.f32 %v8329, %v10351
    %10353 = vmatmul.bf16.gmra.mxu0 %v9425
    %v10354 = vpop.f32.mrf.mxu0
    %v10355 = vadd.f32 %v8329, %v10354
    %v10356 = vpop.f32.mrf.mxu0
    %v10357 = vadd.f32 %v8329, %v10356
    %10358 = vmatmul.bf16.gmra.mxu0 %v9434
    %v10359 = vpop.f32.mrf.mxu0
    %v10360 = vadd.f32 %v8329, %v10359
    %v10361 = vpop.f32.mrf.mxu0
    %v10362 = vadd.f32 %v8329, %v10361
    %10363 = vmatmul.bf16.gmra.mxu0 %v9443
    %v10364 = vpop.f32.mrf.mxu0
    %v10365 = vadd.f32 %v8329, %v10364
    %v10366 = vpop.f32.mrf.mxu0
    %v10367 = vadd.f32 %v8329, %v10366
    %10368 = vmatmul.bf16.gmra.mxu0 %v9452
    %v10369 = vpop.f32.mrf.mxu0
    %v10370 = vadd.f32 %v8329, %v10369
    %v10371 = vpop.f32.mrf.mxu0
    %v10372 = vadd.f32 %v8329, %v10371
    %10373 = vmatmul.bf16.gmra.mxu0 %v9461
    %v10374 = vpop.f32.mrf.mxu0
    %v10375 = vadd.f32 %v8329, %v10374
    %v10376 = vpop.f32.mrf.mxu0
    %v10377 = vadd.f32 %v8329, %v10376
    %10378 = vmatmul.bf16.gmra.mxu0 %v9470
    %v10379 = vpop.f32.mrf.mxu0
    %v10380 = vadd.f32 %v8329, %v10379
    %v10381 = vpop.f32.mrf.mxu0
    %v10382 = vadd.f32 %v8329, %v10381
    %10383 = vmatmul.bf16.gmra.mxu0 %v9479
    %v10384 = vpop.f32.mrf.mxu0
    %v10385 = vadd.f32 %v8329, %v10384
    %v10386 = vpop.f32.mrf.mxu0
    %v10387 = vadd.f32 %v8329, %v10386
    %10388 = vmatmul.bf16.gmra.mxu0 %v9488
    %v10389 = vpop.f32.mrf.mxu0
    %v10390 = vadd.f32 %v8329, %v10389
    %v10391 = vpop.f32.mrf.mxu0
    %v10392 = vadd.f32 %v8329, %v10391
    %10393 = vmatmul.bf16.gmra.mxu0 %v9497
    %v10394 = vpop.f32.mrf.mxu0
    %v10395 = vadd.f32 %v8329, %v10394
    %v10396 = vpop.f32.mrf.mxu0
    %v10397 = vadd.f32 %v8329, %v10396
    %10398 = vmatmul.bf16.gmra.mxu0 %v9506
    %v10399 = vpop.f32.mrf.mxu0
    %v10400 = vadd.f32 %v8329, %v10399
    %v10401 = vpop.f32.mrf.mxu0
    %v10402 = vadd.f32 %v8329, %v10401
    %10403 = vdwg.mxu0
    %10404 = vmatpush.bf16.msra.mxu0 %v10106
    %10405 = vmatpush.bf16.msra.mxu0 %v10105
    %10406 = vmatpush.bf16.msra.mxu0 %v10104
    %10407 = vmatpush.bf16.msra.mxu0 %v10103
    %10408 = vmatpush.bf16.msra.mxu0 %v10102
    %10409 = vmatpush.bf16.msra.mxu0 %v10101
    %10410 = vmatpush.bf16.msra.mxu0 %v10100
    %10411 = vmatpush.bf16.msra.mxu0 %v10099
    %10412 = vmatmul.bf16.gmra.mxu0 %v9228
    %v10413 = vpop.f32.mrf.mxu0
    %v10414 = vadd.f32 %v10245, %v10413
    %v10415 = vpop.f32.mrf.mxu0
    %v10416 = vadd.f32 %v10247, %v10415
    %10417 = vmatmul.bf16.gmra.mxu0 %v9237
    %v10418 = vpop.f32.mrf.mxu0
    %v10419 = vadd.f32 %v10250, %v10418
    %v10420 = vpop.f32.mrf.mxu0
    %v10421 = vadd.f32 %v10252, %v10420
    %10422 = vmatmul.bf16.gmra.mxu0 %v9246
    %v10423 = vpop.f32.mrf.mxu0
    %v10424 = vadd.f32 %v10255, %v10423
    %v10425 = vpop.f32.mrf.mxu0
    %v10426 = vadd.f32 %v10257, %v10425
    %10427 = vmatmul.bf16.gmra.mxu0 %v9255
    %v10428 = vpop.f32.mrf.mxu0
    %v10429 = vadd.f32 %v10260, %v10428
    %v10430 = vpop.f32.mrf.mxu0
    %v10431 = vadd.f32 %v10262, %v10430
    %10432 = vmatmul.bf16.gmra.mxu0 %v9264
    %v10433 = vpop.f32.mrf.mxu0
    %v10434 = vadd.f32 %v10265, %v10433
    %v10435 = vpop.f32.mrf.mxu0
    %v10436 = vadd.f32 %v10267, %v10435
    %10437 = vmatmul.bf16.gmra.mxu0 %v9273
    %v10438 = vpop.f32.mrf.mxu0
    %v10439 = vadd.f32 %v10270, %v10438
    %v10440 = vpop.f32.mrf.mxu0
    %v10441 = vadd.f32 %v10272, %v10440
    %10442 = vmatmul.bf16.gmra.mxu0 %v9282
    %v10443 = vpop.f32.mrf.mxu0
    %v10444 = vadd.f32 %v10275, %v10443
    %v10445 = vpop.f32.mrf.mxu0
    %v10446 = vadd.f32 %v10277, %v10445
    %10447 = vmatmul.bf16.gmra.mxu0 %v9291
    %v10448 = vpop.f32.mrf.mxu0
    %v10449 = vadd.f32 %v10280, %v10448
    %v10450 = vpop.f32.mrf.mxu0
    %v10451 = vadd.f32 %v10282, %v10450
    %10452 = vmatmul.bf16.gmra.mxu0 %v9300
    %v10453 = vpop.f32.mrf.mxu0
    %v10454 = vadd.f32 %v10285, %v10453
    %v10455 = vpop.f32.mrf.mxu0
    %v10456 = vadd.f32 %v10287, %v10455
    %10457 = vmatmul.bf16.gmra.mxu0 %v9309
    %v10458 = vpop.f32.mrf.mxu0
    %v10459 = vadd.f32 %v10290, %v10458
    %v10460 = vpop.f32.mrf.mxu0
    %v10461 = vadd.f32 %v10292, %v10460
    %10462 = vmatmul.bf16.gmra.mxu0 %v9318
    %v10463 = vpop.f32.mrf.mxu0
    %v10464 = vadd.f32 %v10295, %v10463
    %v10465 = vpop.f32.mrf.mxu0
    %v10466 = vadd.f32 %v10297, %v10465
    %10467 = vmatmul.bf16.gmra.mxu0 %v9327
    %v10468 = vpop.f32.mrf.mxu0
    %v10469 = vadd.f32 %v10300, %v10468
    %v10470 = vpop.f32.mrf.mxu0
    %v10471 = vadd.f32 %v10302, %v10470
    %10472 = vmatmul.bf16.gmra.mxu0 %v9336
    %v10473 = vpop.f32.mrf.mxu0
    %v10474 = vadd.f32 %v10305, %v10473
    %v10475 = vpop.f32.mrf.mxu0
    %v10476 = vadd.f32 %v10307, %v10475
    %10477 = vmatmul.bf16.gmra.mxu0 %v9345
    %v10478 = vpop.f32.mrf.mxu0
    %v10479 = vadd.f32 %v10310, %v10478
    %v10480 = vpop.f32.mrf.mxu0
    %v10481 = vadd.f32 %v10312, %v10480
    %10482 = vmatmul.bf16.gmra.mxu0 %v9354
    %v10483 = vpop.f32.mrf.mxu0
    %v10484 = vadd.f32 %v10315, %v10483
    %v10485 = vpop.f32.mrf.mxu0
    %v10486 = vadd.f32 %v10317, %v10485
    %10487 = vmatmul.bf16.gmra.mxu0 %v9363
    %v10488 = vpop.f32.mrf.mxu0
    %v10489 = vadd.f32 %v10320, %v10488
    %v10490 = vpop.f32.mrf.mxu0
    %v10491 = vadd.f32 %v10322, %v10490
    %10492 = vmatmul.bf16.gmra.mxu0 %v9372
    %v10493 = vpop.f32.mrf.mxu0
    %v10494 = vadd.f32 %v10325, %v10493
    %v10495 = vpop.f32.mrf.mxu0
    %v10496 = vadd.f32 %v10327, %v10495
    %10497 = vmatmul.bf16.gmra.mxu0 %v9381
    %v10498 = vpop.f32.mrf.mxu0
    %v10499 = vadd.f32 %v10330, %v10498
    %v10500 = vpop.f32.mrf.mxu0
    %v10501 = vadd.f32 %v10332, %v10500
    %10502 = vmatmul.bf16.gmra.mxu0 %v9390
    %v10503 = vpop.f32.mrf.mxu0
    %v10504 = vadd.f32 %v10335, %v10503
    %v10505 = vpop.f32.mrf.mxu0
    %v10506 = vadd.f32 %v10337, %v10505
    %10507 = vmatmul.bf16.gmra.mxu0 %v9399
    %v10508 = vpop.f32.mrf.mxu0
    %v10509 = vadd.f32 %v10340, %v10508
    %v10510 = vpop.f32.mrf.mxu0
    %v10511 = vadd.f32 %v10342, %v10510
    %10512 = vmatmul.bf16.gmra.mxu0 %v9408
    %v10513 = vpop.f32.mrf.mxu0
    %v10514 = vadd.f32 %v10345, %v10513
    %v10515 = vpop.f32.mrf.mxu0
    %v10516 = vadd.f32 %v10347, %v10515
    %10517 = vmatmul.bf16.gmra.mxu0 %v9417
    %v10518 = vpop.f32.mrf.mxu0
    %v10519 = vadd.f32 %v10350, %v10518
    %v10520 = vpop.f32.mrf.mxu0
    %v10521 = vadd.f32 %v10352, %v10520
    %10522 = vmatmul.bf16.gmra.mxu0 %v9426
    %v10523 = vpop.f32.mrf.mxu0
    %v10524 = vadd.f32 %v10355, %v10523
    %v10525 = vpop.f32.mrf.mxu0
    %v10526 = vadd.f32 %v10357, %v10525
    %10527 = vmatmul.bf16.gmra.mxu0 %v9435
    %v10528 = vpop.f32.mrf.mxu0
    %v10529 = vadd.f32 %v10360, %v10528
    %v10530 = vpop.f32.mrf.mxu0
    %v10531 = vadd.f32 %v10362, %v10530
    %10532 = vmatmul.bf16.gmra.mxu0 %v9444
    %v10533 = vpop.f32.mrf.mxu0
    %v10534 = vadd.f32 %v10365, %v10533
    %v10535 = vpop.f32.mrf.mxu0
    %v10536 = vadd.f32 %v10367, %v10535
    %10537 = vmatmul.bf16.gmra.mxu0 %v9453
    %v10538 = vpop.f32.mrf.mxu0
    %v10539 = vadd.f32 %v10370, %v10538
    %v10540 = vpop.f32.mrf.mxu0
    %v10541 = vadd.f32 %v10372, %v10540
    %10542 = vmatmul.bf16.gmra.mxu0 %v9462
    %v10543 = vpop.f32.mrf.mxu0
    %v10544 = vadd.f32 %v10375, %v10543
    %v10545 = vpop.f32.mrf.mxu0
    %v10546 = vadd.f32 %v10377, %v10545
    %10547 = vmatmul.bf16.gmra.mxu0 %v9471
    %v10548 = vpop.f32.mrf.mxu0
    %v10549 = vadd.f32 %v10380, %v10548
    %v10550 = vpop.f32.mrf.mxu0
    %v10551 = vadd.f32 %v10382, %v10550
    %10552 = vmatmul.bf16.gmra.mxu0 %v9480
    %v10553 = vpop.f32.mrf.mxu0
    %v10554 = vadd.f32 %v10385, %v10553
    %v10555 = vpop.f32.mrf.mxu0
    %v10556 = vadd.f32 %v10387, %v10555
    %10557 = vmatmul.bf16.gmra.mxu0 %v9489
    %v10558 = vpop.f32.mrf.mxu0
    %v10559 = vadd.f32 %v10390, %v10558
    %v10560 = vpop.f32.mrf.mxu0
    %v10561 = vadd.f32 %v10392, %v10560
    %10562 = vmatmul.bf16.gmra.mxu0 %v9498
    %v10563 = vpop.f32.mrf.mxu0
    %v10564 = vadd.f32 %v10395, %v10563
    %v10565 = vpop.f32.mrf.mxu0
    %v10566 = vadd.f32 %v10397, %v10565
    %10567 = vmatmul.bf16.gmra.mxu0 %v9507
    %v10568 = vpop.f32.mrf.mxu0
    %v10569 = vadd.f32 %v10400, %v10568
    %v10570 = vpop.f32.mrf.mxu0
    %v10571 = vadd.f32 %v10402, %v10570
    %10572 = vdwg.mxu0
    %10573 = vmatpush.bf16.msra.mxu0 %v10114
    %10574 = vmatpush.bf16.msra.mxu0 %v10113
    %10575 = vmatpush.bf16.msra.mxu0 %v10112
    %10576 = vmatpush.bf16.msra.mxu0 %v10111
    %10577 = vmatpush.bf16.msra.mxu0 %v10110
    %10578 = vmatpush.bf16.msra.mxu0 %v10109
    %10579 = vmatpush.bf16.msra.mxu0 %v10108
    %10580 = vmatpush.bf16.msra.mxu0 %v10107
    %10581 = vmatmul.bf16.gmra.mxu0 %v9229
    %v10582 = vpop.f32.mrf.mxu0
    %v10583 = vadd.f32 %v10414, %v10582
    %v10584 = vpop.f32.mrf.mxu0
    %v10585 = vadd.f32 %v10416, %v10584
    %10586 = vmatmul.bf16.gmra.mxu0 %v9238
    %v10587 = vpop.f32.mrf.mxu0
    %v10588 = vadd.f32 %v10419, %v10587
    %v10589 = vpop.f32.mrf.mxu0
    %v10590 = vadd.f32 %v10421, %v10589
    %10591 = vmatmul.bf16.gmra.mxu0 %v9247
    %v10592 = vpop.f32.mrf.mxu0
    %v10593 = vadd.f32 %v10424, %v10592
    %v10594 = vpop.f32.mrf.mxu0
    %v10595 = vadd.f32 %v10426, %v10594
    %10596 = vmatmul.bf16.gmra.mxu0 %v9256
    %v10597 = vpop.f32.mrf.mxu0
    %v10598 = vadd.f32 %v10429, %v10597
    %v10599 = vpop.f32.mrf.mxu0
    %v10600 = vadd.f32 %v10431, %v10599
    %10601 = vmatmul.bf16.gmra.mxu0 %v9265
    %v10602 = vpop.f32.mrf.mxu0
    %v10603 = vadd.f32 %v10434, %v10602
    %v10604 = vpop.f32.mrf.mxu0
    %v10605 = vadd.f32 %v10436, %v10604
    %10606 = vmatmul.bf16.gmra.mxu0 %v9274
    %v10607 = vpop.f32.mrf.mxu0
    %v10608 = vadd.f32 %v10439, %v10607
    %v10609 = vpop.f32.mrf.mxu0
    %v10610 = vadd.f32 %v10441, %v10609
    %10611 = vmatmul.bf16.gmra.mxu0 %v9283
    %v10612 = vpop.f32.mrf.mxu0
    %v10613 = vadd.f32 %v10444, %v10612
    %v10614 = vpop.f32.mrf.mxu0
    %v10615 = vadd.f32 %v10446, %v10614
    %10616 = vmatmul.bf16.gmra.mxu0 %v9292
    %v10617 = vpop.f32.mrf.mxu0
    %v10618 = vadd.f32 %v10449, %v10617
    %v10619 = vpop.f32.mrf.mxu0
    %v10620 = vadd.f32 %v10451, %v10619
    %10621 = vmatmul.bf16.gmra.mxu0 %v9301
    %v10622 = vpop.f32.mrf.mxu0
    %v10623 = vadd.f32 %v10454, %v10622
    %v10624 = vpop.f32.mrf.mxu0
    %v10625 = vadd.f32 %v10456, %v10624
    %10626 = vmatmul.bf16.gmra.mxu0 %v9310
    %v10627 = vpop.f32.mrf.mxu0
    %v10628 = vadd.f32 %v10459, %v10627
    %v10629 = vpop.f32.mrf.mxu0
    %v10630 = vadd.f32 %v10461, %v10629
    %10631 = vmatmul.bf16.gmra.mxu0 %v9319
    %v10632 = vpop.f32.mrf.mxu0
    %v10633 = vadd.f32 %v10464, %v10632
    %v10634 = vpop.f32.mrf.mxu0
    %v10635 = vadd.f32 %v10466, %v10634
    %10636 = vmatmul.bf16.gmra.mxu0 %v9328
    %v10637 = vpop.f32.mrf.mxu0
    %v10638 = vadd.f32 %v10469, %v10637
    %v10639 = vpop.f32.mrf.mxu0
    %v10640 = vadd.f32 %v10471, %v10639
    %10641 = vmatmul.bf16.gmra.mxu0 %v9337
    %v10642 = vpop.f32.mrf.mxu0
    %v10643 = vadd.f32 %v10474, %v10642
    %v10644 = vpop.f32.mrf.mxu0
    %v10645 = vadd.f32 %v10476, %v10644
    %10646 = vmatmul.bf16.gmra.mxu0 %v9346
    %v10647 = vpop.f32.mrf.mxu0
    %v10648 = vadd.f32 %v10479, %v10647
    %v10649 = vpop.f32.mrf.mxu0
    %v10650 = vadd.f32 %v10481, %v10649
    %10651 = vmatmul.bf16.gmra.mxu0 %v9355
    %v10652 = vpop.f32.mrf.mxu0
    %v10653 = vadd.f32 %v10484, %v10652
    %v10654 = vpop.f32.mrf.mxu0
    %v10655 = vadd.f32 %v10486, %v10654
    %10656 = vmatmul.bf16.gmra.mxu0 %v9364
    %v10657 = vpop.f32.mrf.mxu0
    %v10658 = vadd.f32 %v10489, %v10657
    %v10659 = vpop.f32.mrf.mxu0
    %v10660 = vadd.f32 %v10491, %v10659
    %10661 = vmatmul.bf16.gmra.mxu0 %v9373
    %v10662 = vpop.f32.mrf.mxu0
    %v10663 = vadd.f32 %v10494, %v10662
    %v10664 = vpop.f32.mrf.mxu0
    %v10665 = vadd.f32 %v10496, %v10664
    %10666 = vmatmul.bf16.gmra.mxu0 %v9382
    %v10667 = vpop.f32.mrf.mxu0
    %v10668 = vadd.f32 %v10499, %v10667
    %v10669 = vpop.f32.mrf.mxu0
    %v10670 = vadd.f32 %v10501, %v10669
    %10671 = vmatmul.bf16.gmra.mxu0 %v9391
    %v10672 = vpop.f32.mrf.mxu0
    %v10673 = vadd.f32 %v10504, %v10672
    %v10674 = vpop.f32.mrf.mxu0
    %v10675 = vadd.f32 %v10506, %v10674
    %10676 = vmatmul.bf16.gmra.mxu0 %v9400
    %v10677 = vpop.f32.mrf.mxu0
    %v10678 = vadd.f32 %v10509, %v10677
    %v10679 = vpop.f32.mrf.mxu0
    %v10680 = vadd.f32 %v10511, %v10679
    %10681 = vmatmul.bf16.gmra.mxu0 %v9409
    %v10682 = vpop.f32.mrf.mxu0
    %v10683 = vadd.f32 %v10514, %v10682
    %v10684 = vpop.f32.mrf.mxu0
    %v10685 = vadd.f32 %v10516, %v10684
    %10686 = vmatmul.bf16.gmra.mxu0 %v9418
    %v10687 = vpop.f32.mrf.mxu0
    %v10688 = vadd.f32 %v10519, %v10687
    %v10689 = vpop.f32.mrf.mxu0
    %v10690 = vadd.f32 %v10521, %v10689
    %10691 = vmatmul.bf16.gmra.mxu0 %v9427
    %v10692 = vpop.f32.mrf.mxu0
    %v10693 = vadd.f32 %v10524, %v10692
    %v10694 = vpop.f32.mrf.mxu0
    %v10695 = vadd.f32 %v10526, %v10694
    %10696 = vmatmul.bf16.gmra.mxu0 %v9436
    %v10697 = vpop.f32.mrf.mxu0
    %v10698 = vadd.f32 %v10529, %v10697
    %v10699 = vpop.f32.mrf.mxu0
    %v10700 = vadd.f32 %v10531, %v10699
    %10701 = vmatmul.bf16.gmra.mxu0 %v9445
    %v10702 = vpop.f32.mrf.mxu0
    %v10703 = vadd.f32 %v10534, %v10702
    %v10704 = vpop.f32.mrf.mxu0
    %v10705 = vadd.f32 %v10536, %v10704
    %10706 = vmatmul.bf16.gmra.mxu0 %v9454
    %v10707 = vpop.f32.mrf.mxu0
    %v10708 = vadd.f32 %v10539, %v10707
    %v10709 = vpop.f32.mrf.mxu0
    %v10710 = vadd.f32 %v10541, %v10709
    %10711 = vmatmul.bf16.gmra.mxu0 %v9463
    %v10712 = vpop.f32.mrf.mxu0
    %v10713 = vadd.f32 %v10544, %v10712
    %v10714 = vpop.f32.mrf.mxu0
    %v10715 = vadd.f32 %v10546, %v10714
    %10716 = vmatmul.bf16.gmra.mxu0 %v9472
    %v10717 = vpop.f32.mrf.mxu0
    %v10718 = vadd.f32 %v10549, %v10717
    %v10719 = vpop.f32.mrf.mxu0
    %v10720 = vadd.f32 %v10551, %v10719
    %10721 = vmatmul.bf16.gmra.mxu0 %v9481
    %v10722 = vpop.f32.mrf.mxu0
    %v10723 = vadd.f32 %v10554, %v10722
    %v10724 = vpop.f32.mrf.mxu0
    %v10725 = vadd.f32 %v10556, %v10724
    %10726 = vmatmul.bf16.gmra.mxu0 %v9490
    %v10727 = vpop.f32.mrf.mxu0
    %v10728 = vadd.f32 %v10559, %v10727
    %v10729 = vpop.f32.mrf.mxu0
    %v10730 = vadd.f32 %v10561, %v10729
    %10731 = vmatmul.bf16.gmra.mxu0 %v9499
    %v10732 = vpop.f32.mrf.mxu0
    %v10733 = vadd.f32 %v10564, %v10732
    %v10734 = vpop.f32.mrf.mxu0
    %v10735 = vadd.f32 %v10566, %v10734
    %10736 = vmatmul.bf16.gmra.mxu0 %v9508
    %v10737 = vpop.f32.mrf.mxu0
    %v10738 = vadd.f32 %v10569, %v10737
    %v10739 = vpop.f32.mrf.mxu0
    %v10740 = vadd.f32 %v10571, %v10739
    %10741 = vdwg.mxu0
    %10742 = vmatpush.bf16.msra.mxu0 %v10122
    %10743 = vmatpush.bf16.msra.mxu0 %v10121
    %10744 = vmatpush.bf16.msra.mxu0 %v10120
    %10745 = vmatpush.bf16.msra.mxu0 %v10119
    %10746 = vmatpush.bf16.msra.mxu0 %v10118
    %10747 = vmatpush.bf16.msra.mxu0 %v10117
    %10748 = vmatpush.bf16.msra.mxu0 %v10116
    %10749 = vmatpush.bf16.msra.mxu0 %v10115
    %10750 = vmatmul.bf16.gmra.mxu0 %v9230
    %v10751 = vpop.f32.mrf.mxu0
    %v10752 = vadd.f32 %v10583, %v10751
    %v10753 = vpop.f32.mrf.mxu0
    %v10754 = vadd.f32 %v10585, %v10753
    %10755 = vmatmul.bf16.gmra.mxu0 %v9239
    %v10756 = vpop.f32.mrf.mxu0
    %v10757 = vadd.f32 %v10588, %v10756
    %v10758 = vpop.f32.mrf.mxu0
    %v10759 = vadd.f32 %v10590, %v10758
    %10760 = vmatmul.bf16.gmra.mxu0 %v9248
    %v10761 = vpop.f32.mrf.mxu0
    %v10762 = vadd.f32 %v10593, %v10761
    %v10763 = vpop.f32.mrf.mxu0
    %v10764 = vadd.f32 %v10595, %v10763
    %10765 = vmatmul.bf16.gmra.mxu0 %v9257
    %v10766 = vpop.f32.mrf.mxu0
    %v10767 = vadd.f32 %v10598, %v10766
    %v10768 = vpop.f32.mrf.mxu0
    %v10769 = vadd.f32 %v10600, %v10768
    %10770 = vmatmul.bf16.gmra.mxu0 %v9266
    %v10771 = vpop.f32.mrf.mxu0
    %v10772 = vadd.f32 %v10603, %v10771
    %v10773 = vpop.f32.mrf.mxu0
    %v10774 = vadd.f32 %v10605, %v10773
    %10775 = vmatmul.bf16.gmra.mxu0 %v9275
    %v10776 = vpop.f32.mrf.mxu0
    %v10777 = vadd.f32 %v10608, %v10776
    %v10778 = vpop.f32.mrf.mxu0
    %v10779 = vadd.f32 %v10610, %v10778
    %10780 = vmatmul.bf16.gmra.mxu0 %v9284
    %v10781 = vpop.f32.mrf.mxu0
    %v10782 = vadd.f32 %v10613, %v10781
    %v10783 = vpop.f32.mrf.mxu0
    %v10784 = vadd.f32 %v10615, %v10783
    %10785 = vmatmul.bf16.gmra.mxu0 %v9293
    %v10786 = vpop.f32.mrf.mxu0
    %v10787 = vadd.f32 %v10618, %v10786
    %v10788 = vpop.f32.mrf.mxu0
    %v10789 = vadd.f32 %v10620, %v10788
    %10790 = vmatmul.bf16.gmra.mxu0 %v9302
    %v10791 = vpop.f32.mrf.mxu0
    %v10792 = vadd.f32 %v10623, %v10791
    %v10793 = vpop.f32.mrf.mxu0
    %v10794 = vadd.f32 %v10625, %v10793
    %10795 = vmatmul.bf16.gmra.mxu0 %v9311
    %v10796 = vpop.f32.mrf.mxu0
    %v10797 = vadd.f32 %v10628, %v10796
    %v10798 = vpop.f32.mrf.mxu0
    %v10799 = vadd.f32 %v10630, %v10798
    %10800 = vmatmul.bf16.gmra.mxu0 %v9320
    %v10801 = vpop.f32.mrf.mxu0
    %v10802 = vadd.f32 %v10633, %v10801
    %v10803 = vpop.f32.mrf.mxu0
    %v10804 = vadd.f32 %v10635, %v10803
    %10805 = vmatmul.bf16.gmra.mxu0 %v9329
    %v10806 = vpop.f32.mrf.mxu0
    %v10807 = vadd.f32 %v10638, %v10806
    %v10808 = vpop.f32.mrf.mxu0
    %v10809 = vadd.f32 %v10640, %v10808
    %10810 = vmatmul.bf16.gmra.mxu0 %v9338
    %v10811 = vpop.f32.mrf.mxu0
    %v10812 = vadd.f32 %v10643, %v10811
    %v10813 = vpop.f32.mrf.mxu0
    %v10814 = vadd.f32 %v10645, %v10813
    %10815 = vmatmul.bf16.gmra.mxu0 %v9347
    %v10816 = vpop.f32.mrf.mxu0
    %v10817 = vadd.f32 %v10648, %v10816
    %v10818 = vpop.f32.mrf.mxu0
    %v10819 = vadd.f32 %v10650, %v10818
    %10820 = vmatmul.bf16.gmra.mxu0 %v9356
    %v10821 = vpop.f32.mrf.mxu0
    %v10822 = vadd.f32 %v10653, %v10821
    %v10823 = vpop.f32.mrf.mxu0
    %v10824 = vadd.f32 %v10655, %v10823
    %10825 = vmatmul.bf16.gmra.mxu0 %v9365
    %v10826 = vpop.f32.mrf.mxu0
    %v10827 = vadd.f32 %v10658, %v10826
    %v10828 = vpop.f32.mrf.mxu0
    %v10829 = vadd.f32 %v10660, %v10828
    %10830 = vmatmul.bf16.gmra.mxu0 %v9374
    %v10831 = vpop.f32.mrf.mxu0
    %v10832 = vadd.f32 %v10663, %v10831
    %v10833 = vpop.f32.mrf.mxu0
    %v10834 = vadd.f32 %v10665, %v10833
    %10835 = vmatmul.bf16.gmra.mxu0 %v9383
    %v10836 = vpop.f32.mrf.mxu0
    %v10837 = vadd.f32 %v10668, %v10836
    %v10838 = vpop.f32.mrf.mxu0
    %v10839 = vadd.f32 %v10670, %v10838
    %10840 = vmatmul.bf16.gmra.mxu0 %v9392
    %v10841 = vpop.f32.mrf.mxu0
    %v10842 = vadd.f32 %v10673, %v10841
    %v10843 = vpop.f32.mrf.mxu0
    %v10844 = vadd.f32 %v10675, %v10843
    %10845 = vmatmul.bf16.gmra.mxu0 %v9401
    %v10846 = vpop.f32.mrf.mxu0
    %v10847 = vadd.f32 %v10678, %v10846
    %v10848 = vpop.f32.mrf.mxu0
    %v10849 = vadd.f32 %v10680, %v10848
    %10850 = vmatmul.bf16.gmra.mxu0 %v9410
    %v10851 = vpop.f32.mrf.mxu0
    %v10852 = vadd.f32 %v10683, %v10851
    %v10853 = vpop.f32.mrf.mxu0
    %v10854 = vadd.f32 %v10685, %v10853
    %10855 = vmatmul.bf16.gmra.mxu0 %v9419
    %v10856 = vpop.f32.mrf.mxu0
    %v10857 = vadd.f32 %v10688, %v10856
    %v10858 = vpop.f32.mrf.mxu0
    %v10859 = vadd.f32 %v10690, %v10858
    %10860 = vmatmul.bf16.gmra.mxu0 %v9428
    %v10861 = vpop.f32.mrf.mxu0
    %v10862 = vadd.f32 %v10693, %v10861
    %v10863 = vpop.f32.mrf.mxu0
    %v10864 = vadd.f32 %v10695, %v10863
    %10865 = vmatmul.bf16.gmra.mxu0 %v9437
    %v10866 = vpop.f32.mrf.mxu0
    %v10867 = vadd.f32 %v10698, %v10866
    %v10868 = vpop.f32.mrf.mxu0
    %v10869 = vadd.f32 %v10700, %v10868
    %10870 = vmatmul.bf16.gmra.mxu0 %v9446
    %v10871 = vpop.f32.mrf.mxu0
    %v10872 = vadd.f32 %v10703, %v10871
    %v10873 = vpop.f32.mrf.mxu0
    %v10874 = vadd.f32 %v10705, %v10873
    %10875 = vmatmul.bf16.gmra.mxu0 %v9455
    %v10876 = vpop.f32.mrf.mxu0
    %v10877 = vadd.f32 %v10708, %v10876
    %v10878 = vpop.f32.mrf.mxu0
    %v10879 = vadd.f32 %v10710, %v10878
    %10880 = vmatmul.bf16.gmra.mxu0 %v9464
    %v10881 = vpop.f32.mrf.mxu0
    %v10882 = vadd.f32 %v10713, %v10881
    %v10883 = vpop.f32.mrf.mxu0
    %v10884 = vadd.f32 %v10715, %v10883
    %10885 = vmatmul.bf16.gmra.mxu0 %v9473
    %v10886 = vpop.f32.mrf.mxu0
    %v10887 = vadd.f32 %v10718, %v10886
    %v10888 = vpop.f32.mrf.mxu0
    %v10889 = vadd.f32 %v10720, %v10888
    %10890 = vmatmul.bf16.gmra.mxu0 %v9482
    %v10891 = vpop.f32.mrf.mxu0
    %v10892 = vadd.f32 %v10723, %v10891
    %v10893 = vpop.f32.mrf.mxu0
    %v10894 = vadd.f32 %v10725, %v10893
    %10895 = vmatmul.bf16.gmra.mxu0 %v9491
    %v10896 = vpop.f32.mrf.mxu0
    %v10897 = vadd.f32 %v10728, %v10896
    %v10898 = vpop.f32.mrf.mxu0
    %v10899 = vadd.f32 %v10730, %v10898
    %10900 = vmatmul.bf16.gmra.mxu0 %v9500
    %v10901 = vpop.f32.mrf.mxu0
    %v10902 = vadd.f32 %v10733, %v10901
    %v10903 = vpop.f32.mrf.mxu0
    %v10904 = vadd.f32 %v10735, %v10903
    %10905 = vmatmul.bf16.gmra.mxu0 %v9509
    %v10906 = vpop.f32.mrf.mxu0
    %v10907 = vadd.f32 %v10738, %v10906
    %v10908 = vpop.f32.mrf.mxu0
    %v10909 = vadd.f32 %v10740, %v10908
    %10910 = vdwg.mxu0
    %10911 = vmatpush.bf16.msra.mxu0 %v10130
    %10912 = vmatpush.bf16.msra.mxu0 %v10129
    %10913 = vmatpush.bf16.msra.mxu0 %v10128
    %10914 = vmatpush.bf16.msra.mxu0 %v10127
    %10915 = vmatpush.bf16.msra.mxu0 %v10126
    %10916 = vmatpush.bf16.msra.mxu0 %v10125
    %10917 = vmatpush.bf16.msra.mxu0 %v10124
    %10918 = vmatpush.bf16.msra.mxu0 %v10123
    %10919 = vmatmul.bf16.gmra.mxu0 %v9231
    %v10920 = vpop.f32.mrf.mxu0
    %v10921 = vadd.f32 %v10752, %v10920
    %v10922 = vpop.f32.mrf.mxu0
    %v10923 = vadd.f32 %v10754, %v10922
    %10924 = vmatmul.bf16.gmra.mxu0 %v9240
    %v10925 = vpop.f32.mrf.mxu0
    %v10926 = vadd.f32 %v10757, %v10925
    %v10927 = vpop.f32.mrf.mxu0
    %v10928 = vadd.f32 %v10759, %v10927
    %10929 = vmatmul.bf16.gmra.mxu0 %v9249
    %v10930 = vpop.f32.mrf.mxu0
    %v10931 = vadd.f32 %v10762, %v10930
    %v10932 = vpop.f32.mrf.mxu0
    %v10933 = vadd.f32 %v10764, %v10932
    %10934 = vmatmul.bf16.gmra.mxu0 %v9258
    %v10935 = vpop.f32.mrf.mxu0
    %v10936 = vadd.f32 %v10767, %v10935
    %v10937 = vpop.f32.mrf.mxu0
    %v10938 = vadd.f32 %v10769, %v10937
    %10939 = vmatmul.bf16.gmra.mxu0 %v9267
    %v10940 = vpop.f32.mrf.mxu0
    %v10941 = vadd.f32 %v10772, %v10940
    %v10942 = vpop.f32.mrf.mxu0
    %v10943 = vadd.f32 %v10774, %v10942
    %10944 = vmatmul.bf16.gmra.mxu0 %v9276
    %v10945 = vpop.f32.mrf.mxu0
    %v10946 = vadd.f32 %v10777, %v10945
    %v10947 = vpop.f32.mrf.mxu0
    %v10948 = vadd.f32 %v10779, %v10947
    %10949 = vmatmul.bf16.gmra.mxu0 %v9285
    %v10950 = vpop.f32.mrf.mxu0
    %v10951 = vadd.f32 %v10782, %v10950
    %v10952 = vpop.f32.mrf.mxu0
    %v10953 = vadd.f32 %v10784, %v10952
    %10954 = vmatmul.bf16.gmra.mxu0 %v9294
    %v10955 = vpop.f32.mrf.mxu0
    %v10956 = vadd.f32 %v10787, %v10955
    %v10957 = vpop.f32.mrf.mxu0
    %v10958 = vadd.f32 %v10789, %v10957
    %10959 = vmatmul.bf16.gmra.mxu0 %v9303
    %v10960 = vpop.f32.mrf.mxu0
    %v10961 = vadd.f32 %v10792, %v10960
    %v10962 = vpop.f32.mrf.mxu0
    %v10963 = vadd.f32 %v10794, %v10962
    %10964 = vmatmul.bf16.gmra.mxu0 %v9312
    %v10965 = vpop.f32.mrf.mxu0
    %v10966 = vadd.f32 %v10797, %v10965
    %v10967 = vpop.f32.mrf.mxu0
    %v10968 = vadd.f32 %v10799, %v10967
    %10969 = vmatmul.bf16.gmra.mxu0 %v9321
    %v10970 = vpop.f32.mrf.mxu0
    %v10971 = vadd.f32 %v10802, %v10970
    %v10972 = vpop.f32.mrf.mxu0
    %v10973 = vadd.f32 %v10804, %v10972
    %10974 = vmatmul.bf16.gmra.mxu0 %v9330
    %v10975 = vpop.f32.mrf.mxu0
    %v10976 = vadd.f32 %v10807, %v10975
    %v10977 = vpop.f32.mrf.mxu0
    %v10978 = vadd.f32 %v10809, %v10977
    %10979 = vmatmul.bf16.gmra.mxu0 %v9339
    %v10980 = vpop.f32.mrf.mxu0
    %v10981 = vadd.f32 %v10812, %v10980
    %v10982 = vpop.f32.mrf.mxu0
    %v10983 = vadd.f32 %v10814, %v10982
    %10984 = vmatmul.bf16.gmra.mxu0 %v9348
    %v10985 = vpop.f32.mrf.mxu0
    %v10986 = vadd.f32 %v10817, %v10985
    %v10987 = vpop.f32.mrf.mxu0
    %v10988 = vadd.f32 %v10819, %v10987
    %10989 = vmatmul.bf16.gmra.mxu0 %v9357
    %v10990 = vpop.f32.mrf.mxu0
    %v10991 = vadd.f32 %v10822, %v10990
    %v10992 = vpop.f32.mrf.mxu0
    %v10993 = vadd.f32 %v10824, %v10992
    %10994 = vmatmul.bf16.gmra.mxu0 %v9366
    %v10995 = vpop.f32.mrf.mxu0
    %v10996 = vadd.f32 %v10827, %v10995
    %v10997 = vpop.f32.mrf.mxu0
    %v10998 = vadd.f32 %v10829, %v10997
    %10999 = vmatmul.bf16.gmra.mxu0 %v9375
    %v11000 = vpop.f32.mrf.mxu0
    %v11001 = vadd.f32 %v10832, %v11000
    %v11002 = vpop.f32.mrf.mxu0
    %v11003 = vadd.f32 %v10834, %v11002
    %11004 = vmatmul.bf16.gmra.mxu0 %v9384
    %v11005 = vpop.f32.mrf.mxu0
    %v11006 = vadd.f32 %v10837, %v11005
    %v11007 = vpop.f32.mrf.mxu0
    %v11008 = vadd.f32 %v10839, %v11007
    %11009 = vmatmul.bf16.gmra.mxu0 %v9393
    %v11010 = vpop.f32.mrf.mxu0
    %v11011 = vadd.f32 %v10842, %v11010
    %v11012 = vpop.f32.mrf.mxu0
    %v11013 = vadd.f32 %v10844, %v11012
    %11014 = vmatmul.bf16.gmra.mxu0 %v9402
    %v11015 = vpop.f32.mrf.mxu0
    %v11016 = vadd.f32 %v10847, %v11015
    %v11017 = vpop.f32.mrf.mxu0
    %v11018 = vadd.f32 %v10849, %v11017
    %11019 = vmatmul.bf16.gmra.mxu0 %v9411
    %v11020 = vpop.f32.mrf.mxu0
    %v11021 = vadd.f32 %v10852, %v11020
    %v11022 = vpop.f32.mrf.mxu0
    %v11023 = vadd.f32 %v10854, %v11022
    %11024 = vmatmul.bf16.gmra.mxu0 %v9420
    %v11025 = vpop.f32.mrf.mxu0
    %v11026 = vadd.f32 %v10857, %v11025
    %v11027 = vpop.f32.mrf.mxu0
    %v11028 = vadd.f32 %v10859, %v11027
    %11029 = vmatmul.bf16.gmra.mxu0 %v9429
    %v11030 = vpop.f32.mrf.mxu0
    %v11031 = vadd.f32 %v10862, %v11030
    %v11032 = vpop.f32.mrf.mxu0
    %v11033 = vadd.f32 %v10864, %v11032
    %11034 = vmatmul.bf16.gmra.mxu0 %v9438
    %v11035 = vpop.f32.mrf.mxu0
    %v11036 = vadd.f32 %v10867, %v11035
    %v11037 = vpop.f32.mrf.mxu0
    %v11038 = vadd.f32 %v10869, %v11037
    %11039 = vmatmul.bf16.gmra.mxu0 %v9447
    %v11040 = vpop.f32.mrf.mxu0
    %v11041 = vadd.f32 %v10872, %v11040
    %v11042 = vpop.f32.mrf.mxu0
    %v11043 = vadd.f32 %v10874, %v11042
    %11044 = vmatmul.bf16.gmra.mxu0 %v9456
    %v11045 = vpop.f32.mrf.mxu0
    %v11046 = vadd.f32 %v10877, %v11045
    %v11047 = vpop.f32.mrf.mxu0
    %v11048 = vadd.f32 %v10879, %v11047
    %11049 = vmatmul.bf16.gmra.mxu0 %v9465
    %v11050 = vpop.f32.mrf.mxu0
    %v11051 = vadd.f32 %v10882, %v11050
    %v11052 = vpop.f32.mrf.mxu0
    %v11053 = vadd.f32 %v10884, %v11052
    %11054 = vmatmul.bf16.gmra.mxu0 %v9474
    %v11055 = vpop.f32.mrf.mxu0
    %v11056 = vadd.f32 %v10887, %v11055
    %v11057 = vpop.f32.mrf.mxu0
    %v11058 = vadd.f32 %v10889, %v11057
    %11059 = vmatmul.bf16.gmra.mxu0 %v9483
    %v11060 = vpop.f32.mrf.mxu0
    %v11061 = vadd.f32 %v10892, %v11060
    %v11062 = vpop.f32.mrf.mxu0
    %v11063 = vadd.f32 %v10894, %v11062
    %11064 = vmatmul.bf16.gmra.mxu0 %v9492
    %v11065 = vpop.f32.mrf.mxu0
    %v11066 = vadd.f32 %v10897, %v11065
    %v11067 = vpop.f32.mrf.mxu0
    %v11068 = vadd.f32 %v10899, %v11067
    %11069 = vmatmul.bf16.gmra.mxu0 %v9501
    %v11070 = vpop.f32.mrf.mxu0
    %v11071 = vadd.f32 %v10902, %v11070
    %v11072 = vpop.f32.mrf.mxu0
    %v11073 = vadd.f32 %v10904, %v11072
    %11074 = vmatmul.bf16.gmra.mxu0 %v9510
    %v11075 = vpop.f32.mrf.mxu0
    %v11076 = vadd.f32 %v10907, %v11075
    %v11077 = vpop.f32.mrf.mxu0
    %v11078 = vadd.f32 %v10909, %v11077
    %11079 = vdwg.mxu0
    %11080 = vmatpush.bf16.msra.mxu0 %v10138
    %11081 = vmatpush.bf16.msra.mxu0 %v10137
    %11082 = vmatpush.bf16.msra.mxu0 %v10136
    %11083 = vmatpush.bf16.msra.mxu0 %v10135
    %11084 = vmatpush.bf16.msra.mxu0 %v10134
    %11085 = vmatpush.bf16.msra.mxu0 %v10133
    %11086 = vmatpush.bf16.msra.mxu0 %v10132
    %11087 = vmatpush.bf16.msra.mxu0 %v10131
    %11088 = vmatmul.bf16.gmra.mxu0 %v9232
    %v11089 = vpop.f32.mrf.mxu0
    %v11090 = vadd.f32 %v10921, %v11089
    %v11091 = vpop.f32.mrf.mxu0
    %v11092 = vadd.f32 %v10923, %v11091
    %11093 = vmatmul.bf16.gmra.mxu0 %v9241
    %v11094 = vpop.f32.mrf.mxu0
    %v11095 = vadd.f32 %v10926, %v11094
    %v11096 = vpop.f32.mrf.mxu0
    %v11097 = vadd.f32 %v10928, %v11096
    %11098 = vmatmul.bf16.gmra.mxu0 %v9250
    %v11099 = vpop.f32.mrf.mxu0
    %v11100 = vadd.f32 %v10931, %v11099
    %v11101 = vpop.f32.mrf.mxu0
    %v11102 = vadd.f32 %v10933, %v11101
    %11103 = vmatmul.bf16.gmra.mxu0 %v9259
    %v11104 = vpop.f32.mrf.mxu0
    %v11105 = vadd.f32 %v10936, %v11104
    %v11106 = vpop.f32.mrf.mxu0
    %v11107 = vadd.f32 %v10938, %v11106
    %11108 = vmatmul.bf16.gmra.mxu0 %v9268
    %v11109 = vpop.f32.mrf.mxu0
    %v11110 = vadd.f32 %v10941, %v11109
    %v11111 = vpop.f32.mrf.mxu0
    %v11112 = vadd.f32 %v10943, %v11111
    %11113 = vmatmul.bf16.gmra.mxu0 %v9277
    %v11114 = vpop.f32.mrf.mxu0
    %v11115 = vadd.f32 %v10946, %v11114
    %v11116 = vpop.f32.mrf.mxu0
    %v11117 = vadd.f32 %v10948, %v11116
    %11118 = vmatmul.bf16.gmra.mxu0 %v9286
    %v11119 = vpop.f32.mrf.mxu0
    %v11120 = vadd.f32 %v10951, %v11119
    %v11121 = vpop.f32.mrf.mxu0
    %v11122 = vadd.f32 %v10953, %v11121
    %11123 = vmatmul.bf16.gmra.mxu0 %v9295
    %v11124 = vpop.f32.mrf.mxu0
    %v11125 = vadd.f32 %v10956, %v11124
    %v11126 = vpop.f32.mrf.mxu0
    %v11127 = vadd.f32 %v10958, %v11126
    %11128 = vmatmul.bf16.gmra.mxu0 %v9304
    %v11129 = vpop.f32.mrf.mxu0
    %v11130 = vadd.f32 %v10961, %v11129
    %v11131 = vpop.f32.mrf.mxu0
    %v11132 = vadd.f32 %v10963, %v11131
    %11133 = vmatmul.bf16.gmra.mxu0 %v9313
    %v11134 = vpop.f32.mrf.mxu0
    %v11135 = vadd.f32 %v10966, %v11134
    %v11136 = vpop.f32.mrf.mxu0
    %v11137 = vadd.f32 %v10968, %v11136
    %11138 = vmatmul.bf16.gmra.mxu0 %v9322
    %v11139 = vpop.f32.mrf.mxu0
    %v11140 = vadd.f32 %v10971, %v11139
    %v11141 = vpop.f32.mrf.mxu0
    %v11142 = vadd.f32 %v10973, %v11141
    %11143 = vmatmul.bf16.gmra.mxu0 %v9331
    %v11144 = vpop.f32.mrf.mxu0
    %v11145 = vadd.f32 %v10976, %v11144
    %v11146 = vpop.f32.mrf.mxu0
    %v11147 = vadd.f32 %v10978, %v11146
    %11148 = vmatmul.bf16.gmra.mxu0 %v9340
    %v11149 = vpop.f32.mrf.mxu0
    %v11150 = vadd.f32 %v10981, %v11149
    %v11151 = vpop.f32.mrf.mxu0
    %v11152 = vadd.f32 %v10983, %v11151
    %11153 = vmatmul.bf16.gmra.mxu0 %v9349
    %v11154 = vpop.f32.mrf.mxu0
    %v11155 = vadd.f32 %v10986, %v11154
    %v11156 = vpop.f32.mrf.mxu0
    %v11157 = vadd.f32 %v10988, %v11156
    %11158 = vmatmul.bf16.gmra.mxu0 %v9358
    %v11159 = vpop.f32.mrf.mxu0
    %v11160 = vadd.f32 %v10991, %v11159
    %v11161 = vpop.f32.mrf.mxu0
    %v11162 = vadd.f32 %v10993, %v11161
    %11163 = vmatmul.bf16.gmra.mxu0 %v9367
    %v11164 = vpop.f32.mrf.mxu0
    %v11165 = vadd.f32 %v10996, %v11164
    %v11166 = vpop.f32.mrf.mxu0
    %v11167 = vadd.f32 %v10998, %v11166
    %11168 = vmatmul.bf16.gmra.mxu0 %v9376
    %v11169 = vpop.f32.mrf.mxu0
    %v11170 = vadd.f32 %v11001, %v11169
    %v11171 = vpop.f32.mrf.mxu0
    %v11172 = vadd.f32 %v11003, %v11171
    %11173 = vmatmul.bf16.gmra.mxu0 %v9385
    %v11174 = vpop.f32.mrf.mxu0
    %v11175 = vadd.f32 %v11006, %v11174
    %v11176 = vpop.f32.mrf.mxu0
    %v11177 = vadd.f32 %v11008, %v11176
    %11178 = vmatmul.bf16.gmra.mxu0 %v9394
    %v11179 = vpop.f32.mrf.mxu0
    %v11180 = vadd.f32 %v11011, %v11179
    %v11181 = vpop.f32.mrf.mxu0
    %v11182 = vadd.f32 %v11013, %v11181
    %11183 = vmatmul.bf16.gmra.mxu0 %v9403
    %v11184 = vpop.f32.mrf.mxu0
    %v11185 = vadd.f32 %v11016, %v11184
    %v11186 = vpop.f32.mrf.mxu0
    %v11187 = vadd.f32 %v11018, %v11186
    %11188 = vmatmul.bf16.gmra.mxu0 %v9412
    %v11189 = vpop.f32.mrf.mxu0
    %v11190 = vadd.f32 %v11021, %v11189
    %v11191 = vpop.f32.mrf.mxu0
    %v11192 = vadd.f32 %v11023, %v11191
    %11193 = vmatmul.bf16.gmra.mxu0 %v9421
    %v11194 = vpop.f32.mrf.mxu0
    %v11195 = vadd.f32 %v11026, %v11194
    %v11196 = vpop.f32.mrf.mxu0
    %v11197 = vadd.f32 %v11028, %v11196
    %11198 = vmatmul.bf16.gmra.mxu0 %v9430
    %v11199 = vpop.f32.mrf.mxu0
    %v11200 = vadd.f32 %v11031, %v11199
    %v11201 = vpop.f32.mrf.mxu0
    %v11202 = vadd.f32 %v11033, %v11201
    %11203 = vmatmul.bf16.gmra.mxu0 %v9439
    %v11204 = vpop.f32.mrf.mxu0
    %v11205 = vadd.f32 %v11036, %v11204
    %v11206 = vpop.f32.mrf.mxu0
    %v11207 = vadd.f32 %v11038, %v11206
    %11208 = vmatmul.bf16.gmra.mxu0 %v9448
    %v11209 = vpop.f32.mrf.mxu0
    %v11210 = vadd.f32 %v11041, %v11209
    %v11211 = vpop.f32.mrf.mxu0
    %v11212 = vadd.f32 %v11043, %v11211
    %11213 = vmatmul.bf16.gmra.mxu0 %v9457
    %v11214 = vpop.f32.mrf.mxu0
    %v11215 = vadd.f32 %v11046, %v11214
    %v11216 = vpop.f32.mrf.mxu0
    %v11217 = vadd.f32 %v11048, %v11216
    %11218 = vmatmul.bf16.gmra.mxu0 %v9466
    %v11219 = vpop.f32.mrf.mxu0
    %v11220 = vadd.f32 %v11051, %v11219
    %v11221 = vpop.f32.mrf.mxu0
    %v11222 = vadd.f32 %v11053, %v11221
    %11223 = vmatmul.bf16.gmra.mxu0 %v9475
    %v11224 = vpop.f32.mrf.mxu0
    %v11225 = vadd.f32 %v11056, %v11224
    %v11226 = vpop.f32.mrf.mxu0
    %v11227 = vadd.f32 %v11058, %v11226
    %11228 = vmatmul.bf16.gmra.mxu0 %v9484
    %v11229 = vpop.f32.mrf.mxu0
    %v11230 = vadd.f32 %v11061, %v11229
    %v11231 = vpop.f32.mrf.mxu0
    %v11232 = vadd.f32 %v11063, %v11231
    %11233 = vmatmul.bf16.gmra.mxu0 %v9493
    %v11234 = vpop.f32.mrf.mxu0
    %v11235 = vadd.f32 %v11066, %v11234
    %v11236 = vpop.f32.mrf.mxu0
    %v11237 = vadd.f32 %v11068, %v11236
    %11238 = vmatmul.bf16.gmra.mxu0 %v9502
    %v11239 = vpop.f32.mrf.mxu0
    %v11240 = vadd.f32 %v11071, %v11239
    %v11241 = vpop.f32.mrf.mxu0
    %v11242 = vadd.f32 %v11073, %v11241
    %11243 = vmatmul.bf16.gmra.mxu0 %v9511
    %v11244 = vpop.f32.mrf.mxu0
    %v11245 = vadd.f32 %v11076, %v11244
    %v11246 = vpop.f32.mrf.mxu0
    %v11247 = vadd.f32 %v11078, %v11246
    %11248 = vdwg.mxu0
    %11249 = vmatpush.bf16.msra.mxu0 %v10146
    %11250 = vmatpush.bf16.msra.mxu0 %v10145
    %11251 = vmatpush.bf16.msra.mxu0 %v10144
    %11252 = vmatpush.bf16.msra.mxu0 %v10143
    %11253 = vmatpush.bf16.msra.mxu0 %v10142
    %11254 = vmatpush.bf16.msra.mxu0 %v10141
    %11255 = vmatpush.bf16.msra.mxu0 %v10140
    %11256 = vmatpush.bf16.msra.mxu0 %v10139
    %11257 = vmatmul.bf16.gmra.mxu0 %v9233
    %v11258 = vpop.f32.mrf.mxu0
    %v11259 = vadd.f32 %v11090, %v11258
    %v11260 = vpop.f32.mrf.mxu0
    %v11261 = vadd.f32 %v11092, %v11260
    %11262 = vmatmul.bf16.gmra.mxu0 %v9242
    %v11263 = vpop.f32.mrf.mxu0
    %v11264 = vadd.f32 %v11095, %v11263
    %v11265 = vpop.f32.mrf.mxu0
    %v11266 = vadd.f32 %v11097, %v11265
    %11267 = vmatmul.bf16.gmra.mxu0 %v9251
    %v11268 = vpop.f32.mrf.mxu0
    %v11269 = vadd.f32 %v11100, %v11268
    %v11270 = vpop.f32.mrf.mxu0
    %v11271 = vadd.f32 %v11102, %v11270
    %11272 = vmatmul.bf16.gmra.mxu0 %v9260
    %v11273 = vpop.f32.mrf.mxu0
    %v11274 = vadd.f32 %v11105, %v11273
    %v11275 = vpop.f32.mrf.mxu0
    %v11276 = vadd.f32 %v11107, %v11275
    %11277 = vmatmul.bf16.gmra.mxu0 %v9269
    %v11278 = vpop.f32.mrf.mxu0
    %v11279 = vadd.f32 %v11110, %v11278
    %v11280 = vpop.f32.mrf.mxu0
    %v11281 = vadd.f32 %v11112, %v11280
    %11282 = vmatmul.bf16.gmra.mxu0 %v9278
    %v11283 = vpop.f32.mrf.mxu0
    %v11284 = vadd.f32 %v11115, %v11283
    %v11285 = vpop.f32.mrf.mxu0
    %v11286 = vadd.f32 %v11117, %v11285
    %11287 = vmatmul.bf16.gmra.mxu0 %v9287
    %v11288 = vpop.f32.mrf.mxu0
    %v11289 = vadd.f32 %v11120, %v11288
    %v11290 = vpop.f32.mrf.mxu0
    %v11291 = vadd.f32 %v11122, %v11290
    %11292 = vmatmul.bf16.gmra.mxu0 %v9296
    %v11293 = vpop.f32.mrf.mxu0
    %v11294 = vadd.f32 %v11125, %v11293
    %v11295 = vpop.f32.mrf.mxu0
    %v11296 = vadd.f32 %v11127, %v11295
    %11297 = vmatmul.bf16.gmra.mxu0 %v9305
    %v11298 = vpop.f32.mrf.mxu0
    %v11299 = vadd.f32 %v11130, %v11298
    %v11300 = vpop.f32.mrf.mxu0
    %v11301 = vadd.f32 %v11132, %v11300
    %11302 = vmatmul.bf16.gmra.mxu0 %v9314
    %v11303 = vpop.f32.mrf.mxu0
    %v11304 = vadd.f32 %v11135, %v11303
    %v11305 = vpop.f32.mrf.mxu0
    %v11306 = vadd.f32 %v11137, %v11305
    %11307 = vmatmul.bf16.gmra.mxu0 %v9323
    %v11308 = vpop.f32.mrf.mxu0
    %v11309 = vadd.f32 %v11140, %v11308
    %v11310 = vpop.f32.mrf.mxu0
    %v11311 = vadd.f32 %v11142, %v11310
    %11312 = vmatmul.bf16.gmra.mxu0 %v9332
    %v11313 = vpop.f32.mrf.mxu0
    %v11314 = vadd.f32 %v11145, %v11313
    %v11315 = vpop.f32.mrf.mxu0
    %v11316 = vadd.f32 %v11147, %v11315
    %11317 = vmatmul.bf16.gmra.mxu0 %v9341
    %v11318 = vpop.f32.mrf.mxu0
    %v11319 = vadd.f32 %v11150, %v11318
    %v11320 = vpop.f32.mrf.mxu0
    %v11321 = vadd.f32 %v11152, %v11320
    %11322 = vmatmul.bf16.gmra.mxu0 %v9350
    %v11323 = vpop.f32.mrf.mxu0
    %v11324 = vadd.f32 %v11155, %v11323
    %v11325 = vpop.f32.mrf.mxu0
    %v11326 = vadd.f32 %v11157, %v11325
    %11327 = vmatmul.bf16.gmra.mxu0 %v9359
    %v11328 = vpop.f32.mrf.mxu0
    %v11329 = vadd.f32 %v11160, %v11328
    %v11330 = vpop.f32.mrf.mxu0
    %v11331 = vadd.f32 %v11162, %v11330
    %11332 = vmatmul.bf16.gmra.mxu0 %v9368
    %v11333 = vpop.f32.mrf.mxu0
    %v11334 = vadd.f32 %v11165, %v11333
    %v11335 = vpop.f32.mrf.mxu0
    %v11336 = vadd.f32 %v11167, %v11335
    %11337 = vmatmul.bf16.gmra.mxu0 %v9377
    %v11338 = vpop.f32.mrf.mxu0
    %v11339 = vadd.f32 %v11170, %v11338
    %v11340 = vpop.f32.mrf.mxu0
    %v11341 = vadd.f32 %v11172, %v11340
    %11342 = vmatmul.bf16.gmra.mxu0 %v9386
    %v11343 = vpop.f32.mrf.mxu0
    %v11344 = vadd.f32 %v11175, %v11343
    %v11345 = vpop.f32.mrf.mxu0
    %v11346 = vadd.f32 %v11177, %v11345
    %11347 = vmatmul.bf16.gmra.mxu0 %v9395
    %v11348 = vpop.f32.mrf.mxu0
    %v11349 = vadd.f32 %v11180, %v11348
    %v11350 = vpop.f32.mrf.mxu0
    %v11351 = vadd.f32 %v11182, %v11350
    %11352 = vmatmul.bf16.gmra.mxu0 %v9404
    %v11353 = vpop.f32.mrf.mxu0
    %v11354 = vadd.f32 %v11185, %v11353
    %v11355 = vpop.f32.mrf.mxu0
    %v11356 = vadd.f32 %v11187, %v11355
    %11357 = vmatmul.bf16.gmra.mxu0 %v9413
    %v11358 = vpop.f32.mrf.mxu0
    %v11359 = vadd.f32 %v11190, %v11358
    %v11360 = vpop.f32.mrf.mxu0
    %v11361 = vadd.f32 %v11192, %v11360
    %11362 = vmatmul.bf16.gmra.mxu0 %v9422
    %v11363 = vpop.f32.mrf.mxu0
    %v11364 = vadd.f32 %v11195, %v11363
    %v11365 = vpop.f32.mrf.mxu0
    %v11366 = vadd.f32 %v11197, %v11365
    %11367 = vmatmul.bf16.gmra.mxu0 %v9431
    %v11368 = vpop.f32.mrf.mxu0
    %v11369 = vadd.f32 %v11200, %v11368
    %v11370 = vpop.f32.mrf.mxu0
    %v11371 = vadd.f32 %v11202, %v11370
    %11372 = vmatmul.bf16.gmra.mxu0 %v9440
    %v11373 = vpop.f32.mrf.mxu0
    %v11374 = vadd.f32 %v11205, %v11373
    %v11375 = vpop.f32.mrf.mxu0
    %v11376 = vadd.f32 %v11207, %v11375
    %11377 = vmatmul.bf16.gmra.mxu0 %v9449
    %v11378 = vpop.f32.mrf.mxu0
    %v11379 = vadd.f32 %v11210, %v11378
    %v11380 = vpop.f32.mrf.mxu0
    %v11381 = vadd.f32 %v11212, %v11380
    %11382 = vmatmul.bf16.gmra.mxu0 %v9458
    %v11383 = vpop.f32.mrf.mxu0
    %v11384 = vadd.f32 %v11215, %v11383
    %v11385 = vpop.f32.mrf.mxu0
    %v11386 = vadd.f32 %v11217, %v11385
    %11387 = vmatmul.bf16.gmra.mxu0 %v9467
    %v11388 = vpop.f32.mrf.mxu0
    %v11389 = vadd.f32 %v11220, %v11388
    %v11390 = vpop.f32.mrf.mxu0
    %v11391 = vadd.f32 %v11222, %v11390
    %11392 = vmatmul.bf16.gmra.mxu0 %v9476
    %v11393 = vpop.f32.mrf.mxu0
    %v11394 = vadd.f32 %v11225, %v11393
    %v11395 = vpop.f32.mrf.mxu0
    %v11396 = vadd.f32 %v11227, %v11395
    %11397 = vmatmul.bf16.gmra.mxu0 %v9485
    %v11398 = vpop.f32.mrf.mxu0
    %v11399 = vadd.f32 %v11230, %v11398
    %v11400 = vpop.f32.mrf.mxu0
    %v11401 = vadd.f32 %v11232, %v11400
    %11402 = vmatmul.bf16.gmra.mxu0 %v9494
    %v11403 = vpop.f32.mrf.mxu0
    %v11404 = vadd.f32 %v11235, %v11403
    %v11405 = vpop.f32.mrf.mxu0
    %v11406 = vadd.f32 %v11237, %v11405
    %11407 = vmatmul.bf16.gmra.mxu0 %v9503
    %v11408 = vpop.f32.mrf.mxu0
    %v11409 = vadd.f32 %v11240, %v11408
    %v11410 = vpop.f32.mrf.mxu0
    %v11411 = vadd.f32 %v11242, %v11410
    %11412 = vmatmul.bf16.gmra.mxu0 %v9512
    %v11413 = vpop.f32.mrf.mxu0
    %v11414 = vadd.f32 %v11245, %v11413
    %v11415 = vpop.f32.mrf.mxu0
    %v11416 = vadd.f32 %v11247, %v11415
    %11417 = vdwg.mxu0
    %11418 = vmatpush.bf16.msra.mxu0 %v10154
    %11419 = vmatpush.bf16.msra.mxu0 %v10153
    %11420 = vmatpush.bf16.msra.mxu0 %v10152
    %11421 = vmatpush.bf16.msra.mxu0 %v10151
    %11422 = vmatpush.bf16.msra.mxu0 %v10150
    %11423 = vmatpush.bf16.msra.mxu0 %v10149
    %11424 = vmatpush.bf16.msra.mxu0 %v10148
    %11425 = vmatpush.bf16.msra.mxu0 %v10147
    %11426 = vmatmul.bf16.gmra.mxu0 %v9234
    %v11427 = vpop.f32.mrf.mxu0
    %v11428 = vadd.f32 %v11259, %v11427
    %v11429 = vpop.f32.mrf.mxu0
    %v11430 = vadd.f32 %v11261, %v11429
    %11431 = vmatmul.bf16.gmra.mxu0 %v9243
    %v11432 = vpop.f32.mrf.mxu0
    %v11433 = vadd.f32 %v11264, %v11432
    %v11434 = vpop.f32.mrf.mxu0
    %v11435 = vadd.f32 %v11266, %v11434
    %11436 = vmatmul.bf16.gmra.mxu0 %v9252
    %v11437 = vpop.f32.mrf.mxu0
    %v11438 = vadd.f32 %v11269, %v11437
    %v11439 = vpop.f32.mrf.mxu0
    %v11440 = vadd.f32 %v11271, %v11439
    %11441 = vmatmul.bf16.gmra.mxu0 %v9261
    %v11442 = vpop.f32.mrf.mxu0
    %v11443 = vadd.f32 %v11274, %v11442
    %v11444 = vpop.f32.mrf.mxu0
    %v11445 = vadd.f32 %v11276, %v11444
    %11446 = vmatmul.bf16.gmra.mxu0 %v9270
    %v11447 = vpop.f32.mrf.mxu0
    %v11448 = vadd.f32 %v11279, %v11447
    %v11449 = vpop.f32.mrf.mxu0
    %v11450 = vadd.f32 %v11281, %v11449
    %11451 = vmatmul.bf16.gmra.mxu0 %v9279
    %v11452 = vpop.f32.mrf.mxu0
    %v11453 = vadd.f32 %v11284, %v11452
    %v11454 = vpop.f32.mrf.mxu0
    %v11455 = vadd.f32 %v11286, %v11454
    %11456 = vmatmul.bf16.gmra.mxu0 %v9288
    %v11457 = vpop.f32.mrf.mxu0
    %v11458 = vadd.f32 %v11289, %v11457
    %v11459 = vpop.f32.mrf.mxu0
    %v11460 = vadd.f32 %v11291, %v11459
    %11461 = vmatmul.bf16.gmra.mxu0 %v9297
    %v11462 = vpop.f32.mrf.mxu0
    %v11463 = vadd.f32 %v11294, %v11462
    %v11464 = vpop.f32.mrf.mxu0
    %v11465 = vadd.f32 %v11296, %v11464
    %11466 = vmatmul.bf16.gmra.mxu0 %v9306
    %v11467 = vpop.f32.mrf.mxu0
    %v11468 = vadd.f32 %v11299, %v11467
    %v11469 = vpop.f32.mrf.mxu0
    %v11470 = vadd.f32 %v11301, %v11469
    %11471 = vmatmul.bf16.gmra.mxu0 %v9315
    %v11472 = vpop.f32.mrf.mxu0
    %v11473 = vadd.f32 %v11304, %v11472
    %v11474 = vpop.f32.mrf.mxu0
    %v11475 = vadd.f32 %v11306, %v11474
    %11476 = vmatmul.bf16.gmra.mxu0 %v9324
    %v11477 = vpop.f32.mrf.mxu0
    %v11478 = vadd.f32 %v11309, %v11477
    %v11479 = vpop.f32.mrf.mxu0
    %v11480 = vadd.f32 %v11311, %v11479
    %11481 = vmatmul.bf16.gmra.mxu0 %v9333
    %v11482 = vpop.f32.mrf.mxu0
    %v11483 = vadd.f32 %v11314, %v11482
    %v11484 = vpop.f32.mrf.mxu0
    %v11485 = vadd.f32 %v11316, %v11484
    %11486 = vmatmul.bf16.gmra.mxu0 %v9342
    %v11487 = vpop.f32.mrf.mxu0
    %v11488 = vadd.f32 %v11319, %v11487
    %v11489 = vpop.f32.mrf.mxu0
    %v11490 = vadd.f32 %v11321, %v11489
    %11491 = vmatmul.bf16.gmra.mxu0 %v9351
    %v11492 = vpop.f32.mrf.mxu0
    %v11493 = vadd.f32 %v11324, %v11492
    %v11494 = vpop.f32.mrf.mxu0
    %v11495 = vadd.f32 %v11326, %v11494
    %11496 = vmatmul.bf16.gmra.mxu0 %v9360
    %v11497 = vpop.f32.mrf.mxu0
    %v11498 = vadd.f32 %v11329, %v11497
    %v11499 = vpop.f32.mrf.mxu0
    %v11500 = vadd.f32 %v11331, %v11499
    %11501 = vmatmul.bf16.gmra.mxu0 %v9369
    %v11502 = vpop.f32.mrf.mxu0
    %v11503 = vadd.f32 %v11334, %v11502
    %v11504 = vpop.f32.mrf.mxu0
    %v11505 = vadd.f32 %v11336, %v11504
    %11506 = vmatmul.bf16.gmra.mxu0 %v9378
    %v11507 = vpop.f32.mrf.mxu0
    %v11508 = vadd.f32 %v11339, %v11507
    %v11509 = vpop.f32.mrf.mxu0
    %v11510 = vadd.f32 %v11341, %v11509
    %11511 = vmatmul.bf16.gmra.mxu0 %v9387
    %v11512 = vpop.f32.mrf.mxu0
    %v11513 = vadd.f32 %v11344, %v11512
    %v11514 = vpop.f32.mrf.mxu0
    %v11515 = vadd.f32 %v11346, %v11514
    %11516 = vmatmul.bf16.gmra.mxu0 %v9396
    %v11517 = vpop.f32.mrf.mxu0
    %v11518 = vadd.f32 %v11349, %v11517
    %v11519 = vpop.f32.mrf.mxu0
    %v11520 = vadd.f32 %v11351, %v11519
    %11521 = vmatmul.bf16.gmra.mxu0 %v9405
    %v11522 = vpop.f32.mrf.mxu0
    %v11523 = vadd.f32 %v11354, %v11522
    %v11524 = vpop.f32.mrf.mxu0
    %v11525 = vadd.f32 %v11356, %v11524
    %11526 = vmatmul.bf16.gmra.mxu0 %v9414
    %v11527 = vpop.f32.mrf.mxu0
    %v11528 = vadd.f32 %v11359, %v11527
    %v11529 = vpop.f32.mrf.mxu0
    %v11530 = vadd.f32 %v11361, %v11529
    %11531 = vmatmul.bf16.gmra.mxu0 %v9423
    %v11532 = vpop.f32.mrf.mxu0
    %v11533 = vadd.f32 %v11364, %v11532
    %v11534 = vpop.f32.mrf.mxu0
    %v11535 = vadd.f32 %v11366, %v11534
    %11536 = vmatmul.bf16.gmra.mxu0 %v9432
    %v11537 = vpop.f32.mrf.mxu0
    %v11538 = vadd.f32 %v11369, %v11537
    %v11539 = vpop.f32.mrf.mxu0
    %v11540 = vadd.f32 %v11371, %v11539
    %11541 = vmatmul.bf16.gmra.mxu0 %v9441
    %v11542 = vpop.f32.mrf.mxu0
    %v11543 = vadd.f32 %v11374, %v11542
    %v11544 = vpop.f32.mrf.mxu0
    %v11545 = vadd.f32 %v11376, %v11544
    %11546 = vmatmul.bf16.gmra.mxu0 %v9450
    %v11547 = vpop.f32.mrf.mxu0
    %v11548 = vadd.f32 %v11379, %v11547
    %v11549 = vpop.f32.mrf.mxu0
    %v11550 = vadd.f32 %v11381, %v11549
    %11551 = vmatmul.bf16.gmra.mxu0 %v9459
    %v11552 = vpop.f32.mrf.mxu0
    %v11553 = vadd.f32 %v11384, %v11552
    %v11554 = vpop.f32.mrf.mxu0
    %v11555 = vadd.f32 %v11386, %v11554
    %11556 = vmatmul.bf16.gmra.mxu0 %v9468
    %v11557 = vpop.f32.mrf.mxu0
    %v11558 = vadd.f32 %v11389, %v11557
    %v11559 = vpop.f32.mrf.mxu0
    %v11560 = vadd.f32 %v11391, %v11559
    %11561 = vmatmul.bf16.gmra.mxu0 %v9477
    %v11562 = vpop.f32.mrf.mxu0
    %v11563 = vadd.f32 %v11394, %v11562
    %v11564 = vpop.f32.mrf.mxu0
    %v11565 = vadd.f32 %v11396, %v11564
    %11566 = vmatmul.bf16.gmra.mxu0 %v9486
    %v11567 = vpop.f32.mrf.mxu0
    %v11568 = vadd.f32 %v11399, %v11567
    %v11569 = vpop.f32.mrf.mxu0
    %v11570 = vadd.f32 %v11401, %v11569
    %11571 = vmatmul.bf16.gmra.mxu0 %v9495
    %v11572 = vpop.f32.mrf.mxu0
    %v11573 = vadd.f32 %v11404, %v11572
    %v11574 = vpop.f32.mrf.mxu0
    %v11575 = vadd.f32 %v11406, %v11574
    %11576 = vmatmul.bf16.gmra.mxu0 %v9504
    %v11577 = vpop.f32.mrf.mxu0
    %v11578 = vadd.f32 %v11409, %v11577
    %v11579 = vpop.f32.mrf.mxu0
    %v11580 = vadd.f32 %v11411, %v11579
    %11581 = vmatmul.bf16.gmra.mxu0 %v9513
    %v11582 = vpop.f32.mrf.mxu0
    %v11583 = vadd.f32 %v11414, %v11582
    %v11584 = vpop.f32.mrf.mxu0
    %v11585 = vadd.f32 %v11416, %v11584
    %11586 = vdwg.mxu0
    %11587 = vmatpush.bf16.msra.mxu0 %v10162
    %11588 = vmatpush.bf16.msra.mxu0 %v10161
    %11589 = vmatpush.bf16.msra.mxu0 %v10160
    %11590 = vmatpush.bf16.msra.mxu0 %v10159
    %11591 = vmatpush.bf16.msra.mxu0 %v10158
    %11592 = vmatpush.bf16.msra.mxu0 %v10157
    %11593 = vmatpush.bf16.msra.mxu0 %v10156
    %11594 = vmatpush.bf16.msra.mxu0 %v10155
    %11595 = vmatmul.bf16.gmra.mxu0 %v9235
    %v11596 = vpop.f32.mrf.mxu0
    %v11597 = vadd.f32 %v11428, %v11596
    %v11598 = vpop.f32.mrf.mxu0
    %v11599 = vadd.f32 %v11430, %v11598
    %11600 = vmatmul.bf16.gmra.mxu0 %v9244
    %v11601 = vpop.f32.mrf.mxu0
    %v11602 = vadd.f32 %v11433, %v11601
    %v11603 = vpop.f32.mrf.mxu0
    %v11604 = vadd.f32 %v11435, %v11603
    %11605 = vmatmul.bf16.gmra.mxu0 %v9253
    %v11606 = vpop.f32.mrf.mxu0
    %v11607 = vadd.f32 %v11438, %v11606
    %v11608 = vpop.f32.mrf.mxu0
    %v11609 = vadd.f32 %v11440, %v11608
    %11610 = vmatmul.bf16.gmra.mxu0 %v9262
    %v11611 = vpop.f32.mrf.mxu0
    %v11612 = vadd.f32 %v11443, %v11611
    %v11613 = vpop.f32.mrf.mxu0
    %v11614 = vadd.f32 %v11445, %v11613
    %11615 = vmatmul.bf16.gmra.mxu0 %v9271
    %v11616 = vpop.f32.mrf.mxu0
    %v11617 = vadd.f32 %v11448, %v11616
    %v11618 = vpop.f32.mrf.mxu0
    %v11619 = vadd.f32 %v11450, %v11618
    %11620 = vmatmul.bf16.gmra.mxu0 %v9280
    %v11621 = vpop.f32.mrf.mxu0
    %v11622 = vadd.f32 %v11453, %v11621
    %v11623 = vpop.f32.mrf.mxu0
    %v11624 = vadd.f32 %v11455, %v11623
    %11625 = vmatmul.bf16.gmra.mxu0 %v9289
    %v11626 = vpop.f32.mrf.mxu0
    %v11627 = vadd.f32 %v11458, %v11626
    %v11628 = vpop.f32.mrf.mxu0
    %v11629 = vadd.f32 %v11460, %v11628
    %11630 = vmatmul.bf16.gmra.mxu0 %v9298
    %v11631 = vpop.f32.mrf.mxu0
    %v11632 = vadd.f32 %v11463, %v11631
    %v11633 = vpop.f32.mrf.mxu0
    %v11634 = vadd.f32 %v11465, %v11633
    %11635 = vmatmul.bf16.gmra.mxu0 %v9307
    %v11636 = vpop.f32.mrf.mxu0
    %v11637 = vadd.f32 %v11468, %v11636
    %v11638 = vpop.f32.mrf.mxu0
    %v11639 = vadd.f32 %v11470, %v11638
    %11640 = vmatmul.bf16.gmra.mxu0 %v9316
    %v11641 = vpop.f32.mrf.mxu0
    %v11642 = vadd.f32 %v11473, %v11641
    %v11643 = vpop.f32.mrf.mxu0
    %v11644 = vadd.f32 %v11475, %v11643
    %11645 = vmatmul.bf16.gmra.mxu0 %v9325
    %v11646 = vpop.f32.mrf.mxu0
    %v11647 = vadd.f32 %v11478, %v11646
    %v11648 = vpop.f32.mrf.mxu0
    %v11649 = vadd.f32 %v11480, %v11648
    %11650 = vmatmul.bf16.gmra.mxu0 %v9334
    %v11651 = vpop.f32.mrf.mxu0
    %v11652 = vadd.f32 %v11483, %v11651
    %v11653 = vpop.f32.mrf.mxu0
    %v11654 = vadd.f32 %v11485, %v11653
    %11655 = vmatmul.bf16.gmra.mxu0 %v9343
    %v11656 = vpop.f32.mrf.mxu0
    %v11657 = vadd.f32 %v11488, %v11656
    %v11658 = vpop.f32.mrf.mxu0
    %v11659 = vadd.f32 %v11490, %v11658
    %11660 = vmatmul.bf16.gmra.mxu0 %v9352
    %v11661 = vpop.f32.mrf.mxu0
    %v11662 = vadd.f32 %v11493, %v11661
    %v11663 = vpop.f32.mrf.mxu0
    %v11664 = vadd.f32 %v11495, %v11663
    %11665 = vmatmul.bf16.gmra.mxu0 %v9361
    %v11666 = vpop.f32.mrf.mxu0
    %v11667 = vadd.f32 %v11498, %v11666
    %v11668 = vpop.f32.mrf.mxu0
    %v11669 = vadd.f32 %v11500, %v11668
    %11670 = vmatmul.bf16.gmra.mxu0 %v9370
    %v11671 = vpop.f32.mrf.mxu0
    %v11672 = vadd.f32 %v11503, %v11671
    %v11673 = vpop.f32.mrf.mxu0
    %v11674 = vadd.f32 %v11505, %v11673
    %11675 = vmatmul.bf16.gmra.mxu0 %v9379
    %v11676 = vpop.f32.mrf.mxu0
    %v11677 = vadd.f32 %v11508, %v11676
    %v11678 = vpop.f32.mrf.mxu0
    %v11679 = vadd.f32 %v11510, %v11678
    %11680 = vmatmul.bf16.gmra.mxu0 %v9388
    %v11681 = vpop.f32.mrf.mxu0
    %v11682 = vadd.f32 %v11513, %v11681
    %v11683 = vpop.f32.mrf.mxu0
    %v11684 = vadd.f32 %v11515, %v11683
    %11685 = vmatmul.bf16.gmra.mxu0 %v9397
    %v11686 = vpop.f32.mrf.mxu0
    %v11687 = vadd.f32 %v11518, %v11686
    %v11688 = vpop.f32.mrf.mxu0
    %v11689 = vadd.f32 %v11520, %v11688
    %11690 = vmatmul.bf16.gmra.mxu0 %v9406
    %v11691 = vpop.f32.mrf.mxu0
    %v11692 = vadd.f32 %v11523, %v11691
    %v11693 = vpop.f32.mrf.mxu0
    %v11694 = vadd.f32 %v11525, %v11693
    %11695 = vmatmul.bf16.gmra.mxu0 %v9415
    %v11696 = vpop.f32.mrf.mxu0
    %v11697 = vadd.f32 %v11528, %v11696
    %v11698 = vpop.f32.mrf.mxu0
    %v11699 = vadd.f32 %v11530, %v11698
    %11700 = vmatmul.bf16.gmra.mxu0 %v9424
    %v11701 = vpop.f32.mrf.mxu0
    %v11702 = vadd.f32 %v11533, %v11701
    %v11703 = vpop.f32.mrf.mxu0
    %v11704 = vadd.f32 %v11535, %v11703
    %11705 = vmatmul.bf16.gmra.mxu0 %v9433
    %v11706 = vpop.f32.mrf.mxu0
    %v11707 = vadd.f32 %v11538, %v11706
    %v11708 = vpop.f32.mrf.mxu0
    %v11709 = vadd.f32 %v11540, %v11708
    %11710 = vmatmul.bf16.gmra.mxu0 %v9442
    %v11711 = vpop.f32.mrf.mxu0
    %v11712 = vadd.f32 %v11543, %v11711
    %v11713 = vpop.f32.mrf.mxu0
    %v11714 = vadd.f32 %v11545, %v11713
    %11715 = vmatmul.bf16.gmra.mxu0 %v9451
    %v11716 = vpop.f32.mrf.mxu0
    %v11717 = vadd.f32 %v11548, %v11716
    %v11718 = vpop.f32.mrf.mxu0
    %v11719 = vadd.f32 %v11550, %v11718
    %11720 = vmatmul.bf16.gmra.mxu0 %v9460
    %v11721 = vpop.f32.mrf.mxu0
    %v11722 = vadd.f32 %v11553, %v11721
    %v11723 = vpop.f32.mrf.mxu0
    %v11724 = vadd.f32 %v11555, %v11723
    %11725 = vmatmul.bf16.gmra.mxu0 %v9469
    %v11726 = vpop.f32.mrf.mxu0
    %v11727 = vadd.f32 %v11558, %v11726
    %v11728 = vpop.f32.mrf.mxu0
    %v11729 = vadd.f32 %v11560, %v11728
    %11730 = vmatmul.bf16.gmra.mxu0 %v9478
    %v11731 = vpop.f32.mrf.mxu0
    %v11732 = vadd.f32 %v11563, %v11731
    %v11733 = vpop.f32.mrf.mxu0
    %v11734 = vadd.f32 %v11565, %v11733
    %11735 = vmatmul.bf16.gmra.mxu0 %v9487
    %v11736 = vpop.f32.mrf.mxu0
    %v11737 = vadd.f32 %v11568, %v11736
    %v11738 = vpop.f32.mrf.mxu0
    %v11739 = vadd.f32 %v11570, %v11738
    %11740 = vmatmul.bf16.gmra.mxu0 %v9496
    %v11741 = vpop.f32.mrf.mxu0
    %v11742 = vadd.f32 %v11573, %v11741
    %v11743 = vpop.f32.mrf.mxu0
    %v11744 = vadd.f32 %v11575, %v11743
    %11745 = vmatmul.bf16.gmra.mxu0 %v9505
    %v11746 = vpop.f32.mrf.mxu0
    %v11747 = vadd.f32 %v11578, %v11746
    %v11748 = vpop.f32.mrf.mxu0
    %v11749 = vadd.f32 %v11580, %v11748
    %11750 = vmatmul.bf16.gmra.mxu0 %v9514
    %v11751 = vpop.f32.mrf.mxu0
    %v11752 = vadd.f32 %v11583, %v11751
    %v11753 = vpop.f32.mrf.mxu0
    %v11754 = vadd.f32 %v11585, %v11753
    %11755 = vdwg.mxu0
    %v11756 = vmax.f32 %v11597, 0.0
    %v11757 = vmax.f32 %v11599, 0.0
    %v11758 = vmax.f32 %v11602, 0.0
    %v11759 = vmax.f32 %v11604, 0.0
    %v11760 = vmax.f32 %v11607, 0.0
    %v11761 = vmax.f32 %v11609, 0.0
    %v11762 = vmax.f32 %v11612, 0.0
    %v11763 = vmax.f32 %v11614, 0.0
    %v11764 = vmax.f32 %v11617, 0.0
    %v11765 = vmax.f32 %v11619, 0.0
    %v11766 = vmax.f32 %v11622, 0.0
    %v11767 = vmax.f32 %v11624, 0.0
    %v11768 = vmax.f32 %v11627, 0.0
    %v11769 = vmax.f32 %v11629, 0.0
    %v11770 = vmax.f32 %v11632, 0.0
    %v11771 = vmax.f32 %v11634, 0.0
    %v11772 = vmax.f32 %v11637, 0.0
    %v11773 = vmax.f32 %v11639, 0.0
    %v11774 = vmax.f32 %v11642, 0.0
    %v11775 = vmax.f32 %v11644, 0.0
    %v11776 = vmax.f32 %v11647, 0.0
    %v11777 = vmax.f32 %v11649, 0.0
    %v11778 = vmax.f32 %v11652, 0.0
    %v11779 = vmax.f32 %v11654, 0.0
    %v11780 = vmax.f32 %v11657, 0.0
    %v11781 = vmax.f32 %v11659, 0.0
    %v11782 = vmax.f32 %v11662, 0.0
    %v11783 = vmax.f32 %v11664, 0.0
    %v11784 = vmax.f32 %v11667, 0.0
    %v11785 = vmax.f32 %v11669, 0.0
    %v11786 = vmax.f32 %v11672, 0.0
    %v11787 = vmax.f32 %v11674, 0.0
    %v11788 = vmax.f32 %v11677, 0.0
    %v11789 = vmax.f32 %v11679, 0.0
    %v11790 = vmax.f32 %v11682, 0.0
    %v11791 = vmax.f32 %v11684, 0.0
    %v11792 = vmax.f32 %v11687, 0.0
    %v11793 = vmax.f32 %v11689, 0.0
    %v11794 = vmax.f32 %v11692, 0.0
    %v11795 = vmax.f32 %v11694, 0.0
    %v11796 = vmax.f32 %v11697, 0.0
    %v11797 = vmax.f32 %v11699, 0.0
    %v11798 = vmax.f32 %v11702, 0.0
    %v11799 = vmax.f32 %v11704, 0.0
    %v11800 = vmax.f32 %v11707, 0.0
    %v11801 = vmax.f32 %v11709, 0.0
    %v11802 = vmax.f32 %v11712, 0.0
    %v11803 = vmax.f32 %v11714, 0.0
    %v11804 = vmax.f32 %v11717, 0.0
    %v11805 = vmax.f32 %v11719, 0.0
    %v11806 = vmax.f32 %v11722, 0.0
    %v11807 = vmax.f32 %v11724, 0.0
    %v11808 = vmax.f32 %v11727, 0.0
    %v11809 = vmax.f32 %v11729, 0.0
    %v11810 = vmax.f32 %v11732, 0.0
    %v11811 = vmax.f32 %v11734, 0.0
    %v11812 = vmax.f32 %v11737, 0.0
    %v11813 = vmax.f32 %v11739, 0.0
    %v11814 = vmax.f32 %v11742, 0.0
    %v11815 = vmax.f32 %v11744, 0.0
    %v11816 = vmax.f32 %v11747, 0.0
    %v11817 = vmax.f32 %v11749, 0.0
    %v11818 = vmax.f32 %v11752, 0.0
    %v11819 = vmax.f32 %v11754, 0.0
    %11820 = vst [vmem:[#allocation9] sm:$0xff] %v11756
    %11821 = vst [vmem:[#allocation9 + $0x8] sm:$0xff] %v11757
    %11822 = vst [vmem:[#allocation9 + $0x10] sm:$0xff] %v11758
    %11823 = vst [vmem:[#allocation9 + $0x18] sm:$0xff] %v11759
    %11824 = vst [vmem:[#allocation9 + $0x20] sm:$0xff] %v11760
    %11825 = vst [vmem:[#allocation9 + $0x28] sm:$0xff] %v11761
    %11826 = vst [vmem:[#allocation9 + $0x30] sm:$0xff] %v11762
    %11827 = vst [vmem:[#allocation9 + $0x38] sm:$0xff] %v11763
    %11828 = vst [vmem:[#allocation9 + $0x40] sm:$0xff] %v11764
    %11829 = vst [vmem:[#allocation9 + $0x48] sm:$0xff] %v11765
    %11830 = vst [vmem:[#allocation9 + $0x50] sm:$0xff] %v11766
    %11831 = vst [vmem:[#allocation9 + $0x58] sm:$0xff] %v11767
    %11832 = vst [vmem:[#allocation9 + $0x60] sm:$0xff] %v11768
    %11833 = vst [vmem:[#allocation9 + $0x68] sm:$0xff] %v11769
    %11834 = vst [vmem:[#allocation9 + $0x70] sm:$0xff] %v11770
    %11835 = vst [vmem:[#allocation9 + $0x78] sm:$0xff] %v11771
    %11836 = vst [vmem:[#allocation9 + $0x80] sm:$0xff] %v11772
    %11837 = vst [vmem:[#allocation9 + $0x88] sm:$0xff] %v11773
    %11838 = vst [vmem:[#allocation9 + $0x90] sm:$0xff] %v11774
    %11839 = vst [vmem:[#allocation9 + $0x98] sm:$0xff] %v11775
    %11840 = vst [vmem:[#allocation9 + $0xa0] sm:$0xff] %v11776
    %11841 = vst [vmem:[#allocation9 + $0xa8] sm:$0xff] %v11777
    %11842 = vst [vmem:[#allocation9 + $0xb0] sm:$0xff] %v11778
    %11843 = vst [vmem:[#allocation9 + $0xb8] sm:$0xff] %v11779
    %11844 = vst [vmem:[#allocation9 + $0xc0] sm:$0xff] %v11780
    %11845 = vst [vmem:[#allocation9 + $0xc8] sm:$0xff] %v11781
    %11846 = vst [vmem:[#allocation9 + $0xd0] sm:$0xff] %v11782
    %11847 = vst [vmem:[#allocation9 + $0xd8] sm:$0xff] %v11783
    %11848 = vst [vmem:[#allocation9 + $0xe0] sm:$0xff] %v11784
    %11849 = vst [vmem:[#allocation9 + $0xe8] sm:$0xff] %v11785
    %11850 = vst [vmem:[#allocation9 + $0xf0] sm:$0xff] %v11786
    %11851 = vst [vmem:[#allocation9 + $0xf8] sm:$0xff] %v11787
    %11852 = vst [vmem:[#allocation9 + $0x100] sm:$0xff] %v11788
    %11853 = vst [vmem:[#allocation9 + $0x108] sm:$0xff] %v11789
    %11854 = vst [vmem:[#allocation9 + $0x110] sm:$0xff] %v11790
    %11855 = vst [vmem:[#allocation9 + $0x118] sm:$0xff] %v11791
    %11856 = vst [vmem:[#allocation9 + $0x120] sm:$0xff] %v11792
    %11857 = vst [vmem:[#allocation9 + $0x128] sm:$0xff] %v11793
    %11858 = vst [vmem:[#allocation9 + $0x130] sm:$0xff] %v11794
    %11859 = vst [vmem:[#allocation9 + $0x138] sm:$0xff] %v11795
    %11860 = vst [vmem:[#allocation9 + $0x140] sm:$0xff] %v11796
    %11861 = vst [vmem:[#allocation9 + $0x148] sm:$0xff] %v11797
    %11862 = vst [vmem:[#allocation9 + $0x150] sm:$0xff] %v11798
    %11863 = vst [vmem:[#allocation9 + $0x158] sm:$0xff] %v11799
    %11864 = vst [vmem:[#allocation9 + $0x160] sm:$0xff] %v11800
    %11865 = vst [vmem:[#allocation9 + $0x168] sm:$0xff] %v11801
    %11866 = vst [vmem:[#allocation9 + $0x170] sm:$0xff] %v11802
    %11867 = vst [vmem:[#allocation9 + $0x178] sm:$0xff] %v11803
    %11868 = vst [vmem:[#allocation9 + $0x180] sm:$0xff] %v11804
    %11869 = vst [vmem:[#allocation9 + $0x188] sm:$0xff] %v11805
    %11870 = vst [vmem:[#allocation9 + $0x190] sm:$0xff] %v11806
    %11871 = vst [vmem:[#allocation9 + $0x198] sm:$0xff] %v11807
    %11872 = vst [vmem:[#allocation9 + $0x1a0] sm:$0xff] %v11808
    %11873 = vst [vmem:[#allocation9 + $0x1a8] sm:$0xff] %v11809
    %11874 = vst [vmem:[#allocation9 + $0x1b0] sm:$0xff] %v11810
    %11875 = vst [vmem:[#allocation9 + $0x1b8] sm:$0xff] %v11811
    %11876 = vst [vmem:[#allocation9 + $0x1c0] sm:$0xff] %v11812
    %11877 = vst [vmem:[#allocation9 + $0x1c8] sm:$0xff] %v11813
    %11878 = vst [vmem:[#allocation9 + $0x1d0] sm:$0xff] %v11814
    %11879 = vst [vmem:[#allocation9 + $0x1d8] sm:$0xff] %v11815
    %11880 = vst [vmem:[#allocation9 + $0x1e0] sm:$0xff] %v11816
    %11881 = vst [vmem:[#allocation9 + $0x1e8] sm:$0xff] %v11817
    %11882 = vst [vmem:[#allocation9 + $0x1f0] sm:$0xff] %v11818
    %11883 = vst [vmem:[#allocation9 + $0x1f8] sm:$0xff] %v11819
    // Predicated region
    $region26: #{tpu_custom_call.1} parent=1 // pred_check
      _
    $region27: #{tpu_custom_call.1} parent=1 // pred_check_branch
      %11885 = sbr.rel (0) target = $region29
    $region28: #{tpu_custom_call.1} parent=1 // pred_region
      %11887 = vsyncadd [#allocation8], 0
      %s11888 = sshll.u32 [#allocation9], 4
      %s11889 = int_to_ptr.vmem [resolvable:$true] %s11888
      %s11890 = sshll.u32 %s5, 4
      %s11891 = int_to_ptr.hbm [resolvable:$true] %s11890
      %11896 = dma.vmem_to_hbm [thread:$0]  %s11889, 8192, %s11891, [#allocation8], 128, 128, 8
    $region29: #{tpu_custom_call.1} parent=1 // pred_fallthru
      _
    // Predicated region
    $region30: #{tpu_custom_call.1} parent=1 // pred_check
      _
    $region31: #{tpu_custom_call.1} parent=1 // pred_check_branch
      %11898 = sbr.rel (0) target = $region33
    $region32: #{tpu_custom_call.1} parent=1 // pred_region
      %11900 = dma.done [#allocation8], 8192
    $region33: #{tpu_custom_call.1} parent=1 // pred_fallthru
      _
    %11901 = vsyncpa [#allocation7], 1
    %11902 = vsyncpa [#allocation8], 1

</llo_original>
